<compile_context>
chip_gen: v7x
topology: tpu7x:2x2x1
jax: 0.10.0
libtpu: 0.0.40
codegen_flags: <defaults>
</compile_context>

<pallas_src>
import functools
import math

import jax
import jax.numpy as jnp
import numpy as np
from jax.experimental import pallas as pl
from jax.experimental.pallas import tpu as pltpu


_LN_ORDER = ("enc.ln1", "enc.ln2", "dec.ln1", "dec.ln2", "dec.ln3",
             "enc.norm", "dec.norm")
_HW_PAD = 128          # flattened H*W spatial axis zero-padded to one full lane dim


# ----------------------------------------------------------------------------
# Compile-time constant geometry (tap validity masks, pooling matrix, PE).
# ----------------------------------------------------------------------------
def _tap_mask(h_dim, w_dim):
    """m[k, 0, i*W+j] == 1 iff the k-th 3x3 tap reads an in-bounds pixel."""
    m = np.zeros((9, 1, _HW_PAD), np.float32)
    k = 0
    for dy in (-1, 0, 1):
        for dx in (-1, 0, 1):
            for i in range(h_dim):
                for j in range(w_dim):
                    if 0 <= i + dy < h_dim and 0 <= j + dx < w_dim:
                        m[k, 0, i * w_dim + j] = 1.0
            k += 1
    return m


def _pool_matrix(h_dim, w_dim):
    """pool[s, p] so that  einsum('sp,cp->sc', pool, fmap)  is the 2x2 avg-pool."""
    hp, wp = h_dim // 2, w_dim // 2
    p = np.zeros((hp * wp, _HW_PAD), np.float32)
    for i in range(hp):
        for j in range(wp):
            for di in range(2):
                for dj in range(2):
                    p[i * wp + j, (2 * i + di) * w_dim + (2 * j + dj)] = 0.25
    return p


def _positional_encoding(seq_len, d_model):
    # Matches ImplicitPositionalEncoding for seq_len == max_len (= 25 here).
    pos = np.arange(seq_len, dtype=np.float32)[:, None]
    div = np.exp(np.arange(0, d_model, 2, dtype=np.float32)
                 * (-math.log(10000.0) / d_model))
    pe = np.zeros((seq_len, d_model), np.float32)
    pe[:, 0::2] = np.sin(pos * div)
    pe[:, 1::2] = np.cos(pos * div)
    return pe


# ----------------------------------------------------------------------------
# The fused kernel (one grid step == one batch element; all math in VMEM).
# ----------------------------------------------------------------------------
def _make_kernel(*, d_model, nhead, h_dim, w_dim, action_dim):
    D = d_model
    hd = D // nhead
    scale = 1.0 / math.sqrt(hd)
    # tap order: dy outer, dx inner -- must match _tap_mask() and pack_params().
    offsets = [dy * w_dim + dx for dy in (-1, 0, 1) for dx in (-1, 0, 1)]
    f32 = jnp.float32

    def kernel(x_ref, tapm_ref, pool_ref, pe_ref,
               c1w_ref, c1b_ref, c2w_ref, c2b_ref, c3w_ref, c3b_ref,
               aw_ref, ab_ref, fw1_ref, fb1_ref, fw2_ref, fb2_ref,
               ln_ref, hw1_ref, hb1_ref, hw2_ref, hb2_ref, o_ref):

        def relu(v):
            return jnp.maximum(v, 0.0)

        # ---- fused obs|msk CNN (feature-major: channels x 128 padded lanes) --
        def conv3x3(v, w_ref, b_ref):
            # v: (Cin, 128).  Each tap = lane roll (XLU) * 0/1 boundary mask
            # (VPU); the 9 maps are sublane-concatenated at 8/64-row aligned
            # offsets so the whole layer is ONE wide-K MXU matmul.
            taps = []
            for k, off in enumerate(offsets):
                shifted = v if off == 0 else pltpu.roll(v, shift=(-off) % _HW_PAD,
                                                        axis=1)
                taps.append(shifted * tapm_ref[k])
            colmat = jnp.concatenate(taps, axis=0)            # (9*Cin, 128)
            return jnp.dot(w_ref[...], colmat,
                           preferred_element_type=f32) + b_ref[...]

        x = x_ref[0]                                          # (8, 128)
        y1 = relu(conv3x3(x, c1w_ref, c1b_ref))               # (64, 128)
        y2 = relu(conv3x3(y1, c2w_ref, c2b_ref))              # (128, 128)

        # 2x2 avg-pool + feature-major -> sequence-major flip in one NT matmul.
        seq = jnp.einsum("sp,cp->sc", pool_ref[...], y2,
                         preferred_element_type=f32)           # (S, 128)
        seq = relu(jnp.dot(seq, c3w_ref[...],
                           preferred_element_type=f32) + c3b_ref[...])   # (S, 2D)
        seq = seq + pe_ref[...]                                # + positional enc.
        obs_seq = seq[:, :D]                                   # (S, D)
        msk_seq = seq[:, D:]                                   # (S, D)

        # ---- transformer building blocks -------------------------------------
        def layer_norm(v, idx, eps=1e-5):
            mu = jnp.mean(v, axis=-1, keepdims=True)
            vc = v - mu
            var = jnp.mean(vc * vc, axis=-1, keepdims=True)
            return vc * jax.lax.rsqrt(var + eps) * ln_ref[2 * idx] + ln_ref[2 * idx + 1]

        def mha(q_in, kv_in, idx, fused_qkv):
            w = aw_ref[idx]                                    # (D, 4D) = [Wq|Wk|Wv|Wo]
            b = ab_ref[idx]                                    # (1, 4D)
            if fused_qkv:                                      # self-attention
                qkv = jnp.dot(q_in, w[:, :3 * D],
                              preferred_element_type=f32) + b[:, :3 * D]
                q, k, v = qkv[:, :D], qkv[:, D:2 * D], qkv[:, 2 * D:]
            else:                                              # cross-attention
                q = jnp.dot(q_in, w[:, :D],
                            preferred_element_type=f32) + b[:, :D]
                kv = jnp.dot(kv_in, w[:, D:3 * D],
                             preferred_element_type=f32) + b[:, D:3 * D]
                k, v = kv[:, :D], kv[:, D:]
            wo = w[:, 3 * D:]
            out = jnp.zeros((q_in.shape[0], D), f32) + b[:, 3 * D:]
            for h in range(nhead):                             # tiny 25x25 per-head math
                sl = slice(h * hd, (h + 1) * hd)
                s = jnp.einsum("qd,kd->qk", q[:, sl], k[:, sl],
                               preferred_element_type=f32) * scale
                s = s - jnp.max(s, axis=-1, keepdims=True)
                p = jnp.exp(s)
                p = p * pl.reciprocal(jnp.sum(p, axis=-1, keepdims=True), approx=True)
                oh = jnp.dot(p, v[:, sl], preferred_element_type=f32)
                out = out + jnp.dot(oh, wo[sl, :], preferred_element_type=f32)
            return out

        def ffn(v, idx):
            h1 = relu(jnp.dot(v, fw1_ref[idx],
                              preferred_element_type=f32) + fb1_ref[idx])
            return jnp.dot(h1, fw2_ref[idx],
                           preferred_element_type=f32) + fb2_ref[idx]

        # ---- encoder layer (post-norm) + final encoder norm -------------------
        e = obs_seq
        e = layer_norm(e + mha(e, e, 0, True), 0)              # enc.ln1
        e = layer_norm(e + ffn(e, 0), 1)                       # enc.ln2
        memory = layer_norm(e, 5)                              # enc final norm

        # ---- decoder layer (post-norm) + final decoder norm -------------------
        d = msk_seq
        d = layer_norm(d + mha(d, d, 1, True), 2)              # dec.ln1 (self)
        d = layer_norm(d + mha(d, memory, 2, False), 3)        # dec.ln2 (cross)
        d = layer_norm(d + ffn(d, 1), 4)                       # dec.ln3
        d = layer_norm(d, 6)                                   # dec final norm

        # ---- mean over sequence + fused mask/actor/critic heads ---------------
        pooled = jnp.mean(d, axis=0, keepdims=True)            # (1, D)
        h1 = relu(jnp.dot(pooled, hw1_ref[...],
                          preferred_element_type=f32) + hb1_ref[...])
        heads = jnp.dot(h1, hw2_ref[...],
                        preferred_element_type=f32) + hb2_ref[...]        # (1, 2A+1)
        lane = jax.lax.broadcasted_iota(jnp.int32, heads.shape, 1)
        heads = jnp.where(lane < action_dim, jax.nn.sigmoid(heads), heads)
        o_ref[0] = heads

    return kernel


# ----------------------------------------------------------------------------
# Parameter init (deterministic, synthetic, "natural" PyTorch-like shapes).
# ----------------------------------------------------------------------------
def init_params(key, *, d_model=32, nhead=4, ff=64, hidden=32, action_dim=4):
    keys = iter(jax.random.split(key, 40))

    def w(shape, scale=0.05):
        return (scale * jax.random.normal(next(keys), shape)).astype(jnp.float32)

    def zeros(shape):
        return jnp.zeros(shape, jnp.float32)

    def ones(shape):
        return jnp.ones(shape, jnp.float32)

    def cnn(cin):
        return dict(w1=w((3, 3, cin, 32)), b1=zeros((32,)),
                    w2=w((3, 3, 32, 64)), b2=zeros((64,)),
                    w3=w((64, d_model)), b3=zeros((d_model,)))

    def attn():
        return dict(wq=w((d_model, d_model)), bq=zeros((d_model,)),
                    wk=w((d_model, d_model)), bk=zeros((d_model,)),
                    wv=w((d_model, d_model)), bv=zeros((d_model,)),
                    wo=w((d_model, d_model)), bo=zeros((d_model,)))

    enc = dict(self_attn=attn(),
               w1=w((d_model, ff)), b1=zeros((ff,)),
               w2=w((ff, d_model)), b2=zeros((d_model,)),
               ln1_g=ones((d_model,)), ln1_b=zeros((d_model,)),
               ln2_g=ones((d_model,)), ln2_b=zeros((d_model,)))
    dec = dict(self_attn=attn(), cross_attn=attn(),
               w1=w((d_model, ff)), b1=zeros((ff,)),
               w2=w((ff, d_model)), b2=zeros((d_model,)),
               ln1_g=ones((d_model,)), ln1_b=zeros((d_model,)),
               ln2_g=ones((d_model,)), ln2_b=zeros((d_model,)),
               ln3_g=ones((d_model,)), ln3_b=zeros((d_model,)))

    return dict(
        obs_cnn=cnn(3), mask_cnn=cnn(1), enc=enc, dec=dec,
        enc_norm_g=ones((d_model,)), enc_norm_b=zeros((d_model,)),
        dec_norm_g=ones((d_model,)), dec_norm_b=zeros((d_model,)),
        mask_net=dict(w1=w((d_model, hidden)), b1=zeros((hidden,)),
                      w2=w((hidden, action_dim)), b2=zeros((action_dim,))),
        actor_net=dict(w1=w((d_model, hidden)), b1=zeros((hidden,)),
                       w2=w((hidden, action_dim)), b2=zeros((action_dim,))),
        critic_net=dict(w1=w((d_model, hidden // 2)), b1=zeros((hidden // 2,)),
                        w2=w((hidden // 2, 1)), b2=zeros((1,))),
    )


# ----------------------------------------------------------------------------
# One-time packing into the kernel's consolidated operand layout.
# ----------------------------------------------------------------------------
def pack_params(p, *, d_model=32, hidden=32, action_dim=4):
    D = d_model

    def npa(a):
        return np.asarray(a, dtype=np.float32)

    # Fused obs|msk conv weights, feature-major + per-tap wide-K layout:
    #   out = W @ concat_k(tap_k(x)),   W: (Cout_total, 9 * cin_block).
    def conv_pack(w_obs, w_msk, b_obs, b_msk, cin_block):
        w_obs, w_msk = npa(w_obs), npa(w_msk)                  # (3,3,ci,co)
        ci_o, co_o = w_obs.shape[2], w_obs.shape[3]
        ci_m, co_m = w_msk.shape[2], w_msk.shape[3]
        w = np.zeros((co_o + co_m, 9 * cin_block), np.float32)
        for k in range(9):                                     # dy outer, dx inner
            dy_i, dx_i = k // 3, k % 3
            base = k * cin_block
            w[:co_o, base:base + ci_o] = w_obs[dy_i, dx_i].T
            w[co_o:, base + ci_o:base + ci_o + ci_m] = w_msk[dy_i, dx_i].T
        b = np.concatenate([npa(b_obs), npa(b_msk)]).reshape(-1, 1)
        return w, b

    c1w, c1b = conv_pack(p["obs_cnn"]["w1"], p["mask_cnn"]["w1"],
                         p["obs_cnn"]["b1"], p["mask_cnn"]["b1"], cin_block=8)
    c2w, c2b = conv_pack(p["obs_cnn"]["w2"], p["mask_cnn"]["w2"],
                         p["obs_cnn"]["b2"], p["mask_cnn"]["b2"], cin_block=64)

    c3w = np.zeros((128, 2 * D), np.float32)                   # 1x1 conv, block-diag
    c3w[:64, :D] = npa(p["obs_cnn"]["w3"])
    c3w[64:, D:] = npa(p["mask_cnn"]["w3"])
    c3b = np.concatenate([npa(p["obs_cnn"]["b3"]),
                          npa(p["mask_cnn"]["b3"])]).reshape(1, -1)

    # Attention: one (D, 4D) = [Wq|Wk|Wv|Wo] slab + one (1, 4D) bias per MHA.
    def attn_pack(a):
        w = np.concatenate([npa(a["wq"]), npa(a["wk"]), npa(a["wv"]), npa(a["wo"])],
                           axis=1)
        b = np.concatenate([npa(a["bq"]), npa(a["bk"]), npa(a["bv"]),
                            npa(a["bo"])]).reshape(1, -1)
        return w, b

    mhas = (p["enc"]["self_attn"], p["dec"]["self_attn"], p["dec"]["cross_attn"])
    attn_w = np.stack([attn_pack(a)[0] for a in mhas])         # (3, D, 4D)
    attn_b = np.stack([attn_pack(a)[1] for a in mhas])         # (3, 1, 4D)

    ffn_w1 = np.stack([npa(p["enc"]["w1"]), npa(p["dec"]["w1"])])
    ffn_b1 = np.stack([npa(p["enc"]["b1"]).reshape(1, -1),
                       npa(p["dec"]["b1"]).reshape(1, -1)])
    ffn_w2 = np.stack([npa(p["enc"]["w2"]), npa(p["dec"]["w2"])])
    ffn_b2 = np.stack([npa(p["enc"]["b2"]).reshape(1, -1),
                       npa(p["dec"]["b2"]).reshape(1, -1)])

    ln_src = {
        "enc.ln1": (p["enc"]["ln1_g"], p["enc"]["ln1_b"]),
        "enc.ln2": (p["enc"]["ln2_g"], p["enc"]["ln2_b"]),
        "dec.ln1": (p["dec"]["ln1_g"], p["dec"]["ln1_b"]),
        "dec.ln2": (p["dec"]["ln2_g"], p["dec"]["ln2_b"]),
        "dec.ln3": (p["dec"]["ln3_g"], p["dec"]["ln3_b"]),
        "enc.norm": (p["enc_norm_g"], p["enc_norm_b"]),
        "dec.norm": (p["dec_norm_g"], p["dec_norm_b"]),
    }
    ln_rows = []
    for name in _LN_ORDER:
        gam, bet = ln_src[name]
        ln_rows.append(npa(gam).reshape(1, -1))
        ln_rows.append(npa(bet).reshape(1, -1))
    ln = np.stack(ln_rows, axis=0)                             # (14, 1, D)

    # Fused heads: shared first layer + block-diagonal second layer.
    h2, a_dim = hidden // 2, action_dim
    head_w1 = np.concatenate([npa(p["mask_net"]["w1"]), npa(p["actor_net"]["w1"]),
                              npa(p["critic_net"]["w1"])], axis=1)        # (D, 80)
    head_b1 = np.concatenate([npa(p["mask_net"]["b1"]), npa(p["actor_net"]["b1"]),
                              npa(p["critic_net"]["b1"])]).reshape(1, -1)
    head_w2 = np.zeros((2 * hidden + h2, 2 * a_dim + 1), np.float32)
    head_w2[:hidden, :a_dim] = npa(p["mask_net"]["w2"])
    head_w2[hidden:2 * hidden, a_dim:2 * a_dim] = npa(p["actor_net"]["w2"])
    head_w2[2 * hidden:, 2 * a_dim:] = npa(p["critic_net"]["w2"])
    head_b2 = np.concatenate([npa(p["mask_net"]["b2"]), npa(p["actor_net"]["b2"]),
                              npa(p["critic_net"]["b2"])]).reshape(1, -1)

    packed_np = dict(conv1_w=c1w, conv1_b=c1b, conv2_w=c2w, conv2_b=c2b,
                     conv3_w=c3w, conv3_b=c3b, attn_w=attn_w, attn_b=attn_b,
                     ffn_w1=ffn_w1, ffn_b1=ffn_b1, ffn_w2=ffn_w2, ffn_b2=ffn_b2,
                     ln=ln, head_w1=head_w1, head_b1=head_b1,
                     head_w2=head_w2, head_b2=head_b2)
    return {k: jnp.asarray(v) for k, v in packed_np.items()}


# ----------------------------------------------------------------------------
# Forward pass: layout glue + ONE fused pallas_call.
# ----------------------------------------------------------------------------
def forward(packed, observations_nchw, interest_mask, *, d_model=32, nhead=4,
            action_dim=4):
    B, C, H, W = observations_nchw.shape
    HW = H * W
    assert HW <= _HW_PAD
    S = (H // 2) * (W // 2)
    n_out = 2 * action_dim + 1

    # Layout glue only (plain XLA): NCHW -> feature-major (channels, H*W),
    # obs|mask channel-concatenated for the block-diagonal fused CNN, channels
    # zero-padded to 8 and the flattened spatial axis zero-padded to 128 lanes.
    obs = observations_nchw.reshape(B, C, HW).astype(jnp.float32)
    msk = interest_mask.astype(jnp.float32).reshape(B, 1, HW)
    x = jnp.concatenate([obs, msk], axis=1)
    x = jnp.pad(x, ((0, 0), (0, 8 - (C + 1)), (0, _HW_PAD - HW)))   # (B, 8, 128)

    ops = dict(packed)
    ops["tapmask"] = jnp.asarray(_tap_mask(H, W))
    ops["pool"] = jnp.asarray(_pool_matrix(H, W))
    ops["pe2"] = jnp.asarray(
        np.concatenate([_positional_encoding(S, d_model)] * 2, axis=1))

    order = ("tapmask", "pool", "pe2", "conv1_w", "conv1_b", "conv2_w", "conv2_b",
             "conv3_w", "conv3_b", "attn_w", "attn_b", "ffn_w1", "ffn_b1",
             "ffn_w2", "ffn_b2", "ln", "head_w1", "head_b1", "head_w2", "head_b2")
    operands = [x] + [ops[k] for k in order]

    in_specs = [pl.BlockSpec((1, 8, _HW_PAD), lambda b: (b, 0, 0))]
    for k in order:
        a = ops[k]
        in_specs.append(pl.BlockSpec(tuple(a.shape),
                                     lambda b, n=a.ndim: (0,) * n))

    kernel = _make_kernel(d_model=d_model, nhead=nhead, h_dim=H, w_dim=W,
                          action_dim=action_dim)

    out = pl.pallas_call(
        kernel,
        out_shape=jax.ShapeDtypeStruct((B, 1, n_out), jnp.float32),
        grid=(B,),
        in_specs=in_specs,
        out_specs=pl.BlockSpec((1, 1, n_out), lambda b: (b, 0, 0)),
        compiler_params=pltpu.CompilerParams(
            dimension_semantics=("parallel",)),
    )(*operands)

    out = out[:, 0, :]
    mask_probs = out[:, :action_dim]
    action_logits = out[:, action_dim:2 * action_dim]
    values = out[:, 2 * action_dim:]
    return mask_probs, action_logits, values


if __name__ == "__main__":
    d_model, nhead, ff, hidden, action_dim = 32, 4, 64, 32, 4
    B, H, W = 2, 10, 10   # pooled seq len = 5*5 = 25 == ImplicitPositionalEncoding max_len

    key = jax.random.PRNGKey(0)
    kp, ko, km = jax.random.split(key, 3)
    params = init_params(kp, d_model=d_model, nhead=nhead, ff=ff,
                         hidden=hidden, action_dim=action_dim)
    packed = pack_params(params, d_model=d_model, hidden=hidden,
                         action_dim=action_dim)

    observations = jax.random.normal(ko, (B, 3, H, W), jnp.float32)
    interest_mask = (jax.random.uniform(km, (B, H, W)) > 0.5).astype(jnp.float32)

    fwd = jax.jit(functools.partial(forward, d_model=d_model, nhead=nhead,
                                    action_dim=action_dim))
    mask_probs, action_logits, values = fwd(packed, observations, interest_mask)
    jax.block_until_ready((mask_probs, action_logits, values))

    assert mask_probs.shape == (B, action_dim)
    assert action_logits.shape == (B, action_dim)
    assert values.shape == (B, 1)
    assert bool(jnp.all(jnp.isfinite(mask_probs)))
    assert bool(jnp.all((mask_probs >= 0.0) & (mask_probs <= 1.0)))
    assert bool(jnp.all(jnp.isfinite(action_logits)))
    assert bool(jnp.all(jnp.isfinite(values)))
    print("KERNEL_OK")
</pallas_src>

<mosaic_0001>
module attributes {stable_mosaic.version = 11 : i64} {
  func.func @kernel(%arg0: i32, %arg1: memref<1x8x128xf32, #tpu.memory_space<vmem>>, %arg2: memref<9x1x128xf32, #tpu.memory_space<vmem>>, %arg3: memref<25x128xf32, #tpu.memory_space<vmem>>, %arg4: memref<25x64xf32, #tpu.memory_space<vmem>>, %arg5: memref<64x72xf32, #tpu.memory_space<vmem>>, %arg6: memref<64x1xf32, #tpu.memory_space<vmem>>, %arg7: memref<128x576xf32, #tpu.memory_space<vmem>>, %arg8: memref<128x1xf32, #tpu.memory_space<vmem>>, %arg9: memref<128x64xf32, #tpu.memory_space<vmem>>, %arg10: memref<1x64xf32, #tpu.memory_space<vmem>>, %arg11: memref<3x32x128xf32, #tpu.memory_space<vmem>>, %arg12: memref<3x1x128xf32, #tpu.memory_space<vmem>>, %arg13: memref<2x32x64xf32, #tpu.memory_space<vmem>>, %arg14: memref<2x1x64xf32, #tpu.memory_space<vmem>>, %arg15: memref<2x64x32xf32, #tpu.memory_space<vmem>>, %arg16: memref<2x1x32xf32, #tpu.memory_space<vmem>>, %arg17: memref<14x1x32xf32, #tpu.memory_space<vmem>>, %arg18: memref<32x80xf32, #tpu.memory_space<vmem>>, %arg19: memref<1x80xf32, #tpu.memory_space<vmem>>, %arg20: memref<80x9xf32, #tpu.memory_space<vmem>>, %arg21: memref<1x9xf32, #tpu.memory_space<vmem>>, %arg22: memref<1x1x9xf32, #tpu.memory_space<vmem>>) attributes {dimension_semantics = [#tpu.dimension_semantics<parallel>], iteration_bounds = array<i64: 2>, scalar_prefetch = 0 : i64, scratch_operands = 0 : i64, tpu.core_type = #tpu.core_type<tc>, window_params = [{transform_indices = @transform_0, window_bounds = array<i64: 1, 8, 128>}, {pipeline_mode = #tpu.pipeline_mode<synchronous>, transform_indices = @transform_1, window_bounds = array<i64: 9, 1, 128>}, {pipeline_mode = #tpu.pipeline_mode<synchronous>, transform_indices = @transform_2, window_bounds = array<i64: 25, 128>}, {pipeline_mode = #tpu.pipeline_mode<synchronous>, transform_indices = @transform_3, window_bounds = array<i64: 25, 64>}, {pipeline_mode = #tpu.pipeline_mode<synchronous>, transform_indices = @transform_4, window_bounds = array<i64: 64, 72>}, {pipeline_mode = #tpu.pipeline_mode<synchronous>, transform_indices = @transform_5, window_bounds = array<i64: 64, 1>}, {pipeline_mode = #tpu.pipeline_mode<synchronous>, transform_indices = @transform_6, window_bounds = array<i64: 128, 576>}, {pipeline_mode = #tpu.pipeline_mode<synchronous>, transform_indices = @transform_7, window_bounds = array<i64: 128, 1>}, {pipeline_mode = #tpu.pipeline_mode<synchronous>, transform_indices = @transform_8, window_bounds = array<i64: 128, 64>}, {pipeline_mode = #tpu.pipeline_mode<synchronous>, transform_indices = @transform_9, window_bounds = array<i64: 1, 64>}, {pipeline_mode = #tpu.pipeline_mode<synchronous>, transform_indices = @transform_10, window_bounds = array<i64: 3, 32, 128>}, {pipeline_mode = #tpu.pipeline_mode<synchronous>, transform_indices = @transform_11, window_bounds = array<i64: 3, 1, 128>}, {pipeline_mode = #tpu.pipeline_mode<synchronous>, transform_indices = @transform_12, window_bounds = array<i64: 2, 32, 64>}, {pipeline_mode = #tpu.pipeline_mode<synchronous>, transform_indices = @transform_13, window_bounds = array<i64: 2, 1, 64>}, {pipeline_mode = #tpu.pipeline_mode<synchronous>, transform_indices = @transform_14, window_bounds = array<i64: 2, 64, 32>}, {pipeline_mode = #tpu.pipeline_mode<synchronous>, transform_indices = @transform_15, window_bounds = array<i64: 2, 1, 32>}, {pipeline_mode = #tpu.pipeline_mode<synchronous>, transform_indices = @transform_16, window_bounds = array<i64: 14, 1, 32>}, {pipeline_mode = #tpu.pipeline_mode<synchronous>, transform_indices = @transform_17, window_bounds = array<i64: 32, 80>}, {pipeline_mode = #tpu.pipeline_mode<synchronous>, transform_indices = @transform_18, window_bounds = array<i64: 1, 80>}, {pipeline_mode = #tpu.pipeline_mode<synchronous>, transform_indices = @transform_19, window_bounds = array<i64: 80, 9>}, {pipeline_mode = #tpu.pipeline_mode<synchronous>, transform_indices = @transform_20, window_bounds = array<i64: 1, 9>}, {transform_indices = @transform_21, window_bounds = array<i64: 1, 1, 9>}]} {
    %c0 = arith.constant 0 : index
    %c0_0 = arith.constant 0 : index
    %c0_1 = arith.constant 0 : index
    %0 = vector.load %arg1[%c0, %c0_0, %c0_1] : memref<1x8x128xf32, #tpu.memory_space<vmem>>, vector<1x8x128xf32>
    %1 = vector.shape_cast %0 : vector<1x8x128xf32> to vector<8x128xf32>
    %c11_i32 = arith.constant 11 : i32
    %2 = tpu.dynamic_rotate %1 by %c11_i32 dim 1 : vector<8x128xf32>, i32 -> vector<8x128xf32>
    %c0_2 = arith.constant 0 : index
    %c0_3 = arith.constant 0 : index
    %c0_4 = arith.constant 0 : index
    %3 = vector.load %arg2[%c0_2, %c0_3, %c0_4] : memref<9x1x128xf32, #tpu.memory_space<vmem>>, vector<1x1x128xf32>
    %4 = vector.shape_cast %3 : vector<1x1x128xf32> to vector<1x128xf32>
    %5 = vector.broadcast %4 : vector<1x128xf32> to vector<8x128xf32>
    %6 = arith.mulf %2, %5 : vector<8x128xf32>
    %c10_i32 = arith.constant 10 : i32
    %7 = tpu.dynamic_rotate %1 by %c10_i32 dim 1 : vector<8x128xf32>, i32 -> vector<8x128xf32>
    %c1 = arith.constant 1 : index
    %c0_5 = arith.constant 0 : index
    %c0_6 = arith.constant 0 : index
    %8 = vector.load %arg2[%c1, %c0_5, %c0_6] : memref<9x1x128xf32, #tpu.memory_space<vmem>>, vector<1x1x128xf32>
    %9 = vector.shape_cast %8 : vector<1x1x128xf32> to vector<1x128xf32>
    %10 = vector.broadcast %9 : vector<1x128xf32> to vector<8x128xf32>
    %11 = arith.mulf %7, %10 : vector<8x128xf32>
    %c9_i32 = arith.constant 9 : i32
    %12 = tpu.dynamic_rotate %1 by %c9_i32 dim 1 : vector<8x128xf32>, i32 -> vector<8x128xf32>
    %c2 = arith.constant 2 : index
    %c0_7 = arith.constant 0 : index
    %c0_8 = arith.constant 0 : index
    %13 = vector.load %arg2[%c2, %c0_7, %c0_8] : memref<9x1x128xf32, #tpu.memory_space<vmem>>, vector<1x1x128xf32>
    %14 = vector.shape_cast %13 : vector<1x1x128xf32> to vector<1x128xf32>
    %15 = vector.broadcast %14 : vector<1x128xf32> to vector<8x128xf32>
    %16 = arith.mulf %12, %15 : vector<8x128xf32>
    %c1_i32 = arith.constant 1 : i32
    %17 = tpu.dynamic_rotate %1 by %c1_i32 dim 1 : vector<8x128xf32>, i32 -> vector<8x128xf32>
    %c3 = arith.constant 3 : index
    %c0_9 = arith.constant 0 : index
    %c0_10 = arith.constant 0 : index
    %18 = vector.load %arg2[%c3, %c0_9, %c0_10] : memref<9x1x128xf32, #tpu.memory_space<vmem>>, vector<1x1x128xf32>
    %19 = vector.shape_cast %18 : vector<1x1x128xf32> to vector<1x128xf32>
    %20 = vector.broadcast %19 : vector<1x128xf32> to vector<8x128xf32>
    %21 = arith.mulf %17, %20 : vector<8x128xf32>
    %c4 = arith.constant 4 : index
    %c0_11 = arith.constant 0 : index
    %c0_12 = arith.constant 0 : index
    %22 = vector.load %arg2[%c4, %c0_11, %c0_12] : memref<9x1x128xf32, #tpu.memory_space<vmem>>, vector<1x1x128xf32>
    %23 = vector.shape_cast %22 : vector<1x1x128xf32> to vector<1x128xf32>
    %24 = vector.broadcast %23 : vector<1x128xf32> to vector<8x128xf32>
    %25 = arith.mulf %1, %24 : vector<8x128xf32>
    %c127_i32 = arith.constant 127 : i32
    %26 = tpu.dynamic_rotate %1 by %c127_i32 dim 1 : vector<8x128xf32>, i32 -> vector<8x128xf32>
    %c5 = arith.constant 5 : index
    %c0_13 = arith.constant 0 : index
    %c0_14 = arith.constant 0 : index
    %27 = vector.load %arg2[%c5, %c0_13, %c0_14] : memref<9x1x128xf32, #tpu.memory_space<vmem>>, vector<1x1x128xf32>
    %28 = vector.shape_cast %27 : vector<1x1x128xf32> to vector<1x128xf32>
    %29 = vector.broadcast %28 : vector<1x128xf32> to vector<8x128xf32>
    %30 = arith.mulf %26, %29 : vector<8x128xf32>
    %c119_i32 = arith.constant 119 : i32
    %31 = tpu.dynamic_rotate %1 by %c119_i32 dim 1 : vector<8x128xf32>, i32 -> vector<8x128xf32>
    %c6 = arith.constant 6 : index
    %c0_15 = arith.constant 0 : index
    %c0_16 = arith.constant 0 : index
    %32 = vector.load %arg2[%c6, %c0_15, %c0_16] : memref<9x1x128xf32, #tpu.memory_space<vmem>>, vector<1x1x128xf32>
    %33 = vector.shape_cast %32 : vector<1x1x128xf32> to vector<1x128xf32>
    %34 = vector.broadcast %33 : vector<1x128xf32> to vector<8x128xf32>
    %35 = arith.mulf %31, %34 : vector<8x128xf32>
    %c118_i32 = arith.constant 118 : i32
    %36 = tpu.dynamic_rotate %1 by %c118_i32 dim 1 : vector<8x128xf32>, i32 -> vector<8x128xf32>
    %c7 = arith.constant 7 : index
    %c0_17 = arith.constant 0 : index
    %c0_18 = arith.constant 0 : index
    %37 = vector.load %arg2[%c7, %c0_17, %c0_18] : memref<9x1x128xf32, #tpu.memory_space<vmem>>, vector<1x1x128xf32>
    %38 = vector.shape_cast %37 : vector<1x1x128xf32> to vector<1x128xf32>
    %39 = vector.broadcast %38 : vector<1x128xf32> to vector<8x128xf32>
    %40 = arith.mulf %36, %39 : vector<8x128xf32>
    %c117_i32 = arith.constant 117 : i32
    %41 = tpu.dynamic_rotate %1 by %c117_i32 dim 1 : vector<8x128xf32>, i32 -> vector<8x128xf32>
    %c8 = arith.constant 8 : index
    %c0_19 = arith.constant 0 : index
    %c0_20 = arith.constant 0 : index
    %42 = vector.load %arg2[%c8, %c0_19, %c0_20] : memref<9x1x128xf32, #tpu.memory_space<vmem>>, vector<1x1x128xf32>
    %43 = vector.shape_cast %42 : vector<1x1x128xf32> to vector<1x128xf32>
    %44 = vector.broadcast %43 : vector<1x128xf32> to vector<8x128xf32>
    %45 = arith.mulf %41, %44 : vector<8x128xf32>
    %46 = tpu.concatenate %6, %11, %16, %21, %25, %30, %35, %40, %45 in 0 : vector<8x128xf32>, vector<8x128xf32>, vector<8x128xf32>, vector<8x128xf32>, vector<8x128xf32>, vector<8x128xf32>, vector<8x128xf32>, vector<8x128xf32>, vector<8x128xf32> -> vector<72x128xf32>
    %c0_21 = arith.constant 0 : index
    %c0_22 = arith.constant 0 : index
    %47 = vector.load %arg5[%c0_21, %c0_22] : memref<64x72xf32, #tpu.memory_space<vmem>>, vector<64x72xf32>
    %cst = arith.constant dense<0.000000e+00> : vector<64x128xf32>
    %48 = tpu.matmul %47, %46, %cst {dimension_numbers = #tpu.dot_dimension_numbers<[1], [0], [0], [1], [0, 0, 1, 1], [], []>} : vector<64x72xf32>, vector<72x128xf32>, vector<64x128xf32> -> vector<64x128xf32>
    %c0_23 = arith.constant 0 : index
    %c0_24 = arith.constant 0 : index
    %49 = vector.load %arg6[%c0_23, %c0_24] : memref<64x1xf32, #tpu.memory_space<vmem>>, vector<64x1xf32>
    %50 = vector.broadcast %49 : vector<64x1xf32> to vector<64x128xf32>
    %51 = arith.addf %48, %50 : vector<64x128xf32>
    %cst_25 = arith.constant 0.000000e+00 : f32
    %52 = vector.broadcast %cst_25 : f32 to vector<64x128xf32>
    %53 = arith.maximumf %51, %52 : vector<64x128xf32>
    %c11_i32_26 = arith.constant 11 : i32
    %54 = tpu.dynamic_rotate %53 by %c11_i32_26 dim 1 : vector<64x128xf32>, i32 -> vector<64x128xf32>
    %c0_27 = arith.constant 0 : index
    %c0_28 = arith.constant 0 : index
    %c0_29 = arith.constant 0 : index
    %55 = vector.load %arg2[%c0_27, %c0_28, %c0_29] : memref<9x1x128xf32, #tpu.memory_space<vmem>>, vector<1x1x128xf32>
    %56 = vector.shape_cast %55 : vector<1x1x128xf32> to vector<1x128xf32>
    %57 = vector.broadcast %56 : vector<1x128xf32> to vector<64x128xf32>
    %58 = arith.mulf %54, %57 : vector<64x128xf32>
    %c10_i32_30 = arith.constant 10 : i32
    %59 = tpu.dynamic_rotate %53 by %c10_i32_30 dim 1 : vector<64x128xf32>, i32 -> vector<64x128xf32>
    %c1_31 = arith.constant 1 : index
    %c0_32 = arith.constant 0 : index
    %c0_33 = arith.constant 0 : index
    %60 = vector.load %arg2[%c1_31, %c0_32, %c0_33] : memref<9x1x128xf32, #tpu.memory_space<vmem>>, vector<1x1x128xf32>
    %61 = vector.shape_cast %60 : vector<1x1x128xf32> to vector<1x128xf32>
    %62 = vector.broadcast %61 : vector<1x128xf32> to vector<64x128xf32>
    %63 = arith.mulf %59, %62 : vector<64x128xf32>
    %c9_i32_34 = arith.constant 9 : i32
    %64 = tpu.dynamic_rotate %53 by %c9_i32_34 dim 1 : vector<64x128xf32>, i32 -> vector<64x128xf32>
    %c2_35 = arith.constant 2 : index
    %c0_36 = arith.constant 0 : index
    %c0_37 = arith.constant 0 : index
    %65 = vector.load %arg2[%c2_35, %c0_36, %c0_37] : memref<9x1x128xf32, #tpu.memory_space<vmem>>, vector<1x1x128xf32>
    %66 = vector.shape_cast %65 : vector<1x1x128xf32> to vector<1x128xf32>
    %67 = vector.broadcast %66 : vector<1x128xf32> to vector<64x128xf32>
    %68 = arith.mulf %64, %67 : vector<64x128xf32>
    %c1_i32_38 = arith.constant 1 : i32
    %69 = tpu.dynamic_rotate %53 by %c1_i32_38 dim 1 : vector<64x128xf32>, i32 -> vector<64x128xf32>
    %c3_39 = arith.constant 3 : index
    %c0_40 = arith.constant 0 : index
    %c0_41 = arith.constant 0 : index
    %70 = vector.load %arg2[%c3_39, %c0_40, %c0_41] : memref<9x1x128xf32, #tpu.memory_space<vmem>>, vector<1x1x128xf32>
    %71 = vector.shape_cast %70 : vector<1x1x128xf32> to vector<1x128xf32>
    %72 = vector.broadcast %71 : vector<1x128xf32> to vector<64x128xf32>
    %73 = arith.mulf %69, %72 : vector<64x128xf32>
    %c4_42 = arith.constant 4 : index
    %c0_43 = arith.constant 0 : index
    %c0_44 = arith.constant 0 : index
    %74 = vector.load %arg2[%c4_42, %c0_43, %c0_44] : memref<9x1x128xf32, #tpu.memory_space<vmem>>, vector<1x1x128xf32>
    %75 = vector.shape_cast %74 : vector<1x1x128xf32> to vector<1x128xf32>
    %76 = vector.broadcast %75 : vector<1x128xf32> to vector<64x128xf32>
    %77 = arith.mulf %53, %76 : vector<64x128xf32>
    %c127_i32_45 = arith.constant 127 : i32
    %78 = tpu.dynamic_rotate %53 by %c127_i32_45 dim 1 : vector<64x128xf32>, i32 -> vector<64x128xf32>
    %c5_46 = arith.constant 5 : index
    %c0_47 = arith.constant 0 : index
    %c0_48 = arith.constant 0 : index
    %79 = vector.load %arg2[%c5_46, %c0_47, %c0_48] : memref<9x1x128xf32, #tpu.memory_space<vmem>>, vector<1x1x128xf32>
    %80 = vector.shape_cast %79 : vector<1x1x128xf32> to vector<1x128xf32>
    %81 = vector.broadcast %80 : vector<1x128xf32> to vector<64x128xf32>
    %82 = arith.mulf %78, %81 : vector<64x128xf32>
    %c119_i32_49 = arith.constant 119 : i32
    %83 = tpu.dynamic_rotate %53 by %c119_i32_49 dim 1 : vector<64x128xf32>, i32 -> vector<64x128xf32>
    %c6_50 = arith.constant 6 : index
    %c0_51 = arith.constant 0 : index
    %c0_52 = arith.constant 0 : index
    %84 = vector.load %arg2[%c6_50, %c0_51, %c0_52] : memref<9x1x128xf32, #tpu.memory_space<vmem>>, vector<1x1x128xf32>
    %85 = vector.shape_cast %84 : vector<1x1x128xf32> to vector<1x128xf32>
    %86 = vector.broadcast %85 : vector<1x128xf32> to vector<64x128xf32>
    %87 = arith.mulf %83, %86 : vector<64x128xf32>
    %c118_i32_53 = arith.constant 118 : i32
    %88 = tpu.dynamic_rotate %53 by %c118_i32_53 dim 1 : vector<64x128xf32>, i32 -> vector<64x128xf32>
    %c7_54 = arith.constant 7 : index
    %c0_55 = arith.constant 0 : index
    %c0_56 = arith.constant 0 : index
    %89 = vector.load %arg2[%c7_54, %c0_55, %c0_56] : memref<9x1x128xf32, #tpu.memory_space<vmem>>, vector<1x1x128xf32>
    %90 = vector.shape_cast %89 : vector<1x1x128xf32> to vector<1x128xf32>
    %91 = vector.broadcast %90 : vector<1x128xf32> to vector<64x128xf32>
    %92 = arith.mulf %88, %91 : vector<64x128xf32>
    %c117_i32_57 = arith.constant 117 : i32
    %93 = tpu.dynamic_rotate %53 by %c117_i32_57 dim 1 : vector<64x128xf32>, i32 -> vector<64x128xf32>
    %c8_58 = arith.constant 8 : index
    %c0_59 = arith.constant 0 : index
    %c0_60 = arith.constant 0 : index
    %94 = vector.load %arg2[%c8_58, %c0_59, %c0_60] : memref<9x1x128xf32, #tpu.memory_space<vmem>>, vector<1x1x128xf32>
    %95 = vector.shape_cast %94 : vector<1x1x128xf32> to vector<1x128xf32>
    %96 = vector.broadcast %95 : vector<1x128xf32> to vector<64x128xf32>
    %97 = arith.mulf %93, %96 : vector<64x128xf32>
    %98 = tpu.concatenate %58, %63, %68, %73, %77, %82, %87, %92, %97 in 0 : vector<64x128xf32>, vector<64x128xf32>, vector<64x128xf32>, vector<64x128xf32>, vector<64x128xf32>, vector<64x128xf32>, vector<64x128xf32>, vector<64x128xf32>, vector<64x128xf32> -> vector<576x128xf32>
    %c0_61 = arith.constant 0 : index
    %c0_62 = arith.constant 0 : index
    %99 = vector.load %arg7[%c0_61, %c0_62] : memref<128x576xf32, #tpu.memory_space<vmem>>, vector<128x576xf32>
    %cst_63 = arith.constant dense<0.000000e+00> : vector<128x128xf32>
    %100 = tpu.matmul %99, %98, %cst_63 {dimension_numbers = #tpu.dot_dimension_numbers<[1], [0], [0], [1], [0, 0, 1, 1], [], []>} : vector<128x576xf32>, vector<576x128xf32>, vector<128x128xf32> -> vector<128x128xf32>
    %c0_64 = arith.constant 0 : index
    %c0_65 = arith.constant 0 : index
    %101 = vector.load %arg8[%c0_64, %c0_65] : memref<128x1xf32, #tpu.memory_space<vmem>>, vector<128x1xf32>
    %102 = vector.broadcast %101 : vector<128x1xf32> to vector<128x128xf32>
    %103 = arith.addf %100, %102 : vector<128x128xf32>
    %cst_66 = arith.constant 0.000000e+00 : f32
    %104 = vector.broadcast %cst_66 : f32 to vector<128x128xf32>
    %105 = arith.maximumf %103, %104 : vector<128x128xf32>
    %c0_67 = arith.constant 0 : index
    %c0_68 = arith.constant 0 : index
    %106 = vector.load %arg3[%c0_67, %c0_68] : memref<25x128xf32, #tpu.memory_space<vmem>>, vector<25x128xf32>
    "tpu.trace_start"() <{level = 10 : i32, message = "sp,cp->sc"}> : () -> ()
    %cst_69 = arith.constant dense<0.000000e+00> : vector<25x128xf32>
    %107 = tpu.matmul %106, %105, %cst_69 {dimension_numbers = #tpu.dot_dimension_numbers<[1], [1], [0], [0], [0, 0, 1, 0], [], []>} : vector<25x128xf32>, vector<128x128xf32>, vector<25x128xf32> -> vector<25x128xf32>
    "tpu.trace_stop"() : () -> ()
    %c0_70 = arith.constant 0 : index
    %c0_71 = arith.constant 0 : index
    %108 = vector.load %arg9[%c0_70, %c0_71] : memref<128x64xf32, #tpu.memory_space<vmem>>, vector<128x64xf32>
    %cst_72 = arith.constant dense<0.000000e+00> : vector<25x64xf32>
    %109 = tpu.matmul %107, %108, %cst_72 {dimension_numbers = #tpu.dot_dimension_numbers<[1], [0], [0], [1], [0, 0, 1, 1], [], []>} : vector<25x128xf32>, vector<128x64xf32>, vector<25x64xf32> -> vector<25x64xf32>
    %c0_73 = arith.constant 0 : index
    %c0_74 = arith.constant 0 : index
    %110 = vector.load %arg10[%c0_73, %c0_74] : memref<1x64xf32, #tpu.memory_space<vmem>>, vector<1x64xf32>
    %111 = vector.broadcast %110 : vector<1x64xf32> to vector<25x64xf32>
    %112 = arith.addf %109, %111 : vector<25x64xf32>
    %cst_75 = arith.constant 0.000000e+00 : f32
    %113 = vector.broadcast %cst_75 : f32 to vector<25x64xf32>
    %114 = arith.maximumf %112, %113 : vector<25x64xf32>
    %c0_76 = arith.constant 0 : index
    %c0_77 = arith.constant 0 : index
    %115 = vector.load %arg4[%c0_76, %c0_77] : memref<25x64xf32, #tpu.memory_space<vmem>>, vector<25x64xf32>
    %116 = arith.addf %114, %115 : vector<25x64xf32>
    %117 = vector.extract_strided_slice %116 {offsets = [0, 0], sizes = [25, 32], strides = [1, 1]} : vector<25x64xf32> to vector<25x32xf32>
    %118 = vector.extract_strided_slice %116 {offsets = [0, 32], sizes = [25, 32], strides = [1, 1]} : vector<25x64xf32> to vector<25x32xf32>
    %c0_78 = arith.constant 0 : index
    %c0_79 = arith.constant 0 : index
    %c0_80 = arith.constant 0 : index
    %119 = vector.load %arg11[%c0_78, %c0_79, %c0_80] : memref<3x32x128xf32, #tpu.memory_space<vmem>>, vector<1x32x128xf32>
    %120 = vector.shape_cast %119 : vector<1x32x128xf32> to vector<32x128xf32>
    %c0_81 = arith.constant 0 : index
    %c0_82 = arith.constant 0 : index
    %c0_83 = arith.constant 0 : index
    %121 = vector.load %arg12[%c0_81, %c0_82, %c0_83] : memref<3x1x128xf32, #tpu.memory_space<vmem>>, vector<1x1x128xf32>
    %122 = vector.shape_cast %121 : vector<1x1x128xf32> to vector<1x128xf32>
    %123 = vector.extract_strided_slice %120 {offsets = [0, 0], sizes = [32, 96], strides = [1, 1]} : vector<32x128xf32> to vector<32x96xf32>
    %cst_84 = arith.constant dense<0.000000e+00> : vector<25x96xf32>
    %124 = tpu.matmul %117, %123, %cst_84 {dimension_numbers = #tpu.dot_dimension_numbers<[1], [0], [0], [1], [0, 0, 1, 1], [], []>} : vector<25x32xf32>, vector<32x96xf32>, vector<25x96xf32> -> vector<25x96xf32>
    %125 = vector.extract_strided_slice %122 {offsets = [0, 0], sizes = [1, 96], strides = [1, 1]} : vector<1x128xf32> to vector<1x96xf32>
    %126 = vector.broadcast %125 : vector<1x96xf32> to vector<25x96xf32>
    %127 = arith.addf %124, %126 : vector<25x96xf32>
    %128 = vector.extract_strided_slice %127 {offsets = [0, 0], sizes = [25, 32], strides = [1, 1]} : vector<25x96xf32> to vector<25x32xf32>
    %129 = vector.extract_strided_slice %127 {offsets = [0, 32], sizes = [25, 32], strides = [1, 1]} : vector<25x96xf32> to vector<25x32xf32>
    %130 = vector.extract_strided_slice %127 {offsets = [0, 64], sizes = [25, 32], strides = [1, 1]} : vector<25x96xf32> to vector<25x32xf32>
    %131 = vector.extract_strided_slice %120 {offsets = [0, 96], sizes = [32, 32], strides = [1, 1]} : vector<32x128xf32> to vector<32x32xf32>
    %cst_85 = arith.constant 0.000000e+00 : f32
    %132 = vector.broadcast %cst_85 : f32 to vector<25x32xf32>
    %133 = vector.extract_strided_slice %122 {offsets = [0, 96], sizes = [1, 32], strides = [1, 1]} : vector<1x128xf32> to vector<1x32xf32>
    %134 = vector.broadcast %133 : vector<1x32xf32> to vector<25x32xf32>
    %135 = arith.addf %132, %134 : vector<25x32xf32>
    %136 = vector.extract_strided_slice %128 {offsets = [0, 0], sizes = [25, 8], strides = [1, 1]} : vector<25x32xf32> to vector<25x8xf32>
    %137 = vector.extract_strided_slice %129 {offsets = [0, 0], sizes = [25, 8], strides = [1, 1]} : vector<25x32xf32> to vector<25x8xf32>
    "tpu.trace_start"() <{level = 10 : i32, message = "qd,kd->qk"}> : () -> ()
    %cst_86 = arith.constant dense<0.000000e+00> : vector<25x25xf32>
    %138 = tpu.matmul %136, %137, %cst_86 {dimension_numbers = #tpu.dot_dimension_numbers<[1], [1], [0], [0], [0, 0, 1, 0], [], []>} : vector<25x8xf32>, vector<25x8xf32>, vector<25x25xf32> -> vector<25x25xf32>
    "tpu.trace_stop"() : () -> ()
    %cst_87 = arith.constant 0.353553385 : f32
    %139 = vector.broadcast %cst_87 : f32 to vector<25x25xf32>
    %140 = arith.mulf %138, %139 : vector<25x25xf32>
    %cst_88 = arith.constant dense<0xFF800000> : vector<25xf32>
    %141 = vector.multi_reduction <maximumf>, %140, %cst_88 [1] : vector<25x25xf32> to vector<25xf32>
    %142 = vector.shape_cast %141 : vector<25xf32> to vector<25x1xf32>
    %143 = vector.broadcast %142 : vector<25x1xf32> to vector<25x25xf32>
    %144 = arith.subf %140, %143 : vector<25x25xf32>
    %145 = math.exp %144 : vector<25x25xf32>
    %cst_89 = arith.constant dense<0.000000e+00> : vector<25xf32>
    %146 = vector.multi_reduction <add>, %145, %cst_89 [1] : vector<25x25xf32> to vector<25xf32>
    %147 = vector.shape_cast %146 : vector<25xf32> to vector<25x1xf32>
    %148 = tpu.reciprocal %147 {approx = true} : vector<25x1xf32> -> vector<25x1xf32>
    %149 = vector.broadcast %148 : vector<25x1xf32> to vector<25x25xf32>
    %150 = arith.mulf %145, %149 : vector<25x25xf32>
    %151 = vector.extract_strided_slice %130 {offsets = [0, 0], sizes = [25, 8], strides = [1, 1]} : vector<25x32xf32> to vector<25x8xf32>
    %cst_90 = arith.constant dense<0.000000e+00> : vector<25x8xf32>
    %152 = tpu.matmul %150, %151, %cst_90 {dimension_numbers = #tpu.dot_dimension_numbers<[1], [0], [0], [1], [0, 0, 1, 1], [], []>} : vector<25x25xf32>, vector<25x8xf32>, vector<25x8xf32> -> vector<25x8xf32>
    %153 = vector.extract_strided_slice %131 {offsets = [0, 0], sizes = [8, 32], strides = [1, 1]} : vector<32x32xf32> to vector<8x32xf32>
    %cst_91 = arith.constant dense<0.000000e+00> : vector<25x32xf32>
    %154 = tpu.matmul %152, %153, %cst_91 {dimension_numbers = #tpu.dot_dimension_numbers<[1], [0], [0], [1], [0, 0, 1, 1], [], []>} : vector<25x8xf32>, vector<8x32xf32>, vector<25x32xf32> -> vector<25x32xf32>
    %155 = arith.addf %135, %154 : vector<25x32xf32>
    %156 = vector.extract_strided_slice %128 {offsets = [0, 8], sizes = [25, 8], strides = [1, 1]} : vector<25x32xf32> to vector<25x8xf32>
    %157 = vector.extract_strided_slice %129 {offsets = [0, 8], sizes = [25, 8], strides = [1, 1]} : vector<25x32xf32> to vector<25x8xf32>
    "tpu.trace_start"() <{level = 10 : i32, message = "qd,kd->qk"}> : () -> ()
    %cst_92 = arith.constant dense<0.000000e+00> : vector<25x25xf32>
    %158 = tpu.matmul %156, %157, %cst_92 {dimension_numbers = #tpu.dot_dimension_numbers<[1], [1], [0], [0], [0, 0, 1, 0], [], []>} : vector<25x8xf32>, vector<25x8xf32>, vector<25x25xf32> -> vector<25x25xf32>
    "tpu.trace_stop"() : () -> ()
    %cst_93 = arith.constant 0.353553385 : f32
    %159 = vector.broadcast %cst_93 : f32 to vector<25x25xf32>
    %160 = arith.mulf %158, %159 : vector<25x25xf32>
    %cst_94 = arith.constant dense<0xFF800000> : vector<25xf32>
    %161 = vector.multi_reduction <maximumf>, %160, %cst_94 [1] : vector<25x25xf32> to vector<25xf32>
    %162 = vector.shape_cast %161 : vector<25xf32> to vector<25x1xf32>
    %163 = vector.broadcast %162 : vector<25x1xf32> to vector<25x25xf32>
    %164 = arith.subf %160, %163 : vector<25x25xf32>
    %165 = math.exp %164 : vector<25x25xf32>
    %cst_95 = arith.constant dense<0.000000e+00> : vector<25xf32>
    %166 = vector.multi_reduction <add>, %165, %cst_95 [1] : vector<25x25xf32> to vector<25xf32>
    %167 = vector.shape_cast %166 : vector<25xf32> to vector<25x1xf32>
    %168 = tpu.reciprocal %167 {approx = true} : vector<25x1xf32> -> vector<25x1xf32>
    %169 = vector.broadcast %168 : vector<25x1xf32> to vector<25x25xf32>
    %170 = arith.mulf %165, %169 : vector<25x25xf32>
    %171 = vector.extract_strided_slice %130 {offsets = [0, 8], sizes = [25, 8], strides = [1, 1]} : vector<25x32xf32> to vector<25x8xf32>
    %cst_96 = arith.constant dense<0.000000e+00> : vector<25x8xf32>
    %172 = tpu.matmul %170, %171, %cst_96 {dimension_numbers = #tpu.dot_dimension_numbers<[1], [0], [0], [1], [0, 0, 1, 1], [], []>} : vector<25x25xf32>, vector<25x8xf32>, vector<25x8xf32> -> vector<25x8xf32>
    %173 = vector.extract_strided_slice %131 {offsets = [8, 0], sizes = [8, 32], strides = [1, 1]} : vector<32x32xf32> to vector<8x32xf32>
    %cst_97 = arith.constant dense<0.000000e+00> : vector<25x32xf32>
    %174 = tpu.matmul %172, %173, %cst_97 {dimension_numbers = #tpu.dot_dimension_numbers<[1], [0], [0], [1], [0, 0, 1, 1], [], []>} : vector<25x8xf32>, vector<8x32xf32>, vector<25x32xf32> -> vector<25x32xf32>
    %175 = arith.addf %155, %174 : vector<25x32xf32>
    %176 = vector.extract_strided_slice %128 {offsets = [0, 16], sizes = [25, 8], strides = [1, 1]} : vector<25x32xf32> to vector<25x8xf32>
    %177 = vector.extract_strided_slice %129 {offsets = [0, 16], sizes = [25, 8], strides = [1, 1]} : vector<25x32xf32> to vector<25x8xf32>
    "tpu.trace_start"() <{level = 10 : i32, message = "qd,kd->qk"}> : () -> ()
    %cst_98 = arith.constant dense<0.000000e+00> : vector<25x25xf32>
    %178 = tpu.matmul %176, %177, %cst_98 {dimension_numbers = #tpu.dot_dimension_numbers<[1], [1], [0], [0], [0, 0, 1, 0], [], []>} : vector<25x8xf32>, vector<25x8xf32>, vector<25x25xf32> -> vector<25x25xf32>
    "tpu.trace_stop"() : () -> ()
    %cst_99 = arith.constant 0.353553385 : f32
    %179 = vector.broadcast %cst_99 : f32 to vector<25x25xf32>
    %180 = arith.mulf %178, %179 : vector<25x25xf32>
    %cst_100 = arith.constant dense<0xFF800000> : vector<25xf32>
    %181 = vector.multi_reduction <maximumf>, %180, %cst_100 [1] : vector<25x25xf32> to vector<25xf32>
    %182 = vector.shape_cast %181 : vector<25xf32> to vector<25x1xf32>
    %183 = vector.broadcast %182 : vector<25x1xf32> to vector<25x25xf32>
    %184 = arith.subf %180, %183 : vector<25x25xf32>
    %185 = math.exp %184 : vector<25x25xf32>
    %cst_101 = arith.constant dense<0.000000e+00> : vector<25xf32>
    %186 = vector.multi_reduction <add>, %185, %cst_101 [1] : vector<25x25xf32> to vector<25xf32>
    %187 = vector.shape_cast %186 : vector<25xf32> to vector<25x1xf32>
    %188 = tpu.reciprocal %187 {approx = true} : vector<25x1xf32> -> vector<25x1xf32>
    %189 = vector.broadcast %188 : vector<25x1xf32> to vector<25x25xf32>
    %190 = arith.mulf %185, %189 : vector<25x25xf32>
    %191 = vector.extract_strided_slice %130 {offsets = [0, 16], sizes = [25, 8], strides = [1, 1]} : vector<25x32xf32> to vector<25x8xf32>
    %cst_102 = arith.constant dense<0.000000e+00> : vector<25x8xf32>
    %192 = tpu.matmul %190, %191, %cst_102 {dimension_numbers = #tpu.dot_dimension_numbers<[1], [0], [0], [1], [0, 0, 1, 1], [], []>} : vector<25x25xf32>, vector<25x8xf32>, vector<25x8xf32> -> vector<25x8xf32>
    %193 = vector.extract_strided_slice %131 {offsets = [16, 0], sizes = [8, 32], strides = [1, 1]} : vector<32x32xf32> to vector<8x32xf32>
    %cst_103 = arith.constant dense<0.000000e+00> : vector<25x32xf32>
    %194 = tpu.matmul %192, %193, %cst_103 {dimension_numbers = #tpu.dot_dimension_numbers<[1], [0], [0], [1], [0, 0, 1, 1], [], []>} : vector<25x8xf32>, vector<8x32xf32>, vector<25x32xf32> -> vector<25x32xf32>
    %195 = arith.addf %175, %194 : vector<25x32xf32>
    %196 = vector.extract_strided_slice %128 {offsets = [0, 24], sizes = [25, 8], strides = [1, 1]} : vector<25x32xf32> to vector<25x8xf32>
    %197 = vector.extract_strided_slice %129 {offsets = [0, 24], sizes = [25, 8], strides = [1, 1]} : vector<25x32xf32> to vector<25x8xf32>
    "tpu.trace_start"() <{level = 10 : i32, message = "qd,kd->qk"}> : () -> ()
    %cst_104 = arith.constant dense<0.000000e+00> : vector<25x25xf32>
    %198 = tpu.matmul %196, %197, %cst_104 {dimension_numbers = #tpu.dot_dimension_numbers<[1], [1], [0], [0], [0, 0, 1, 0], [], []>} : vector<25x8xf32>, vector<25x8xf32>, vector<25x25xf32> -> vector<25x25xf32>
    "tpu.trace_stop"() : () -> ()
    %cst_105 = arith.constant 0.353553385 : f32
    %199 = vector.broadcast %cst_105 : f32 to vector<25x25xf32>
    %200 = arith.mulf %198, %199 : vector<25x25xf32>
    %cst_106 = arith.constant dense<0xFF800000> : vector<25xf32>
    %201 = vector.multi_reduction <maximumf>, %200, %cst_106 [1] : vector<25x25xf32> to vector<25xf32>
    %202 = vector.shape_cast %201 : vector<25xf32> to vector<25x1xf32>
    %203 = vector.broadcast %202 : vector<25x1xf32> to vector<25x25xf32>
    %204 = arith.subf %200, %203 : vector<25x25xf32>
    %205 = math.exp %204 : vector<25x25xf32>
    %cst_107 = arith.constant dense<0.000000e+00> : vector<25xf32>
    %206 = vector.multi_reduction <add>, %205, %cst_107 [1] : vector<25x25xf32> to vector<25xf32>
    %207 = vector.shape_cast %206 : vector<25xf32> to vector<25x1xf32>
    %208 = tpu.reciprocal %207 {approx = true} : vector<25x1xf32> -> vector<25x1xf32>
    %209 = vector.broadcast %208 : vector<25x1xf32> to vector<25x25xf32>
    %210 = arith.mulf %205, %209 : vector<25x25xf32>
    %211 = vector.extract_strided_slice %130 {offsets = [0, 24], sizes = [25, 8], strides = [1, 1]} : vector<25x32xf32> to vector<25x8xf32>
    %cst_108 = arith.constant dense<0.000000e+00> : vector<25x8xf32>
    %212 = tpu.matmul %210, %211, %cst_108 {dimension_numbers = #tpu.dot_dimension_numbers<[1], [0], [0], [1], [0, 0, 1, 1], [], []>} : vector<25x25xf32>, vector<25x8xf32>, vector<25x8xf32> -> vector<25x8xf32>
    %213 = vector.extract_strided_slice %131 {offsets = [24, 0], sizes = [8, 32], strides = [1, 1]} : vector<32x32xf32> to vector<8x32xf32>
    %cst_109 = arith.constant dense<0.000000e+00> : vector<25x32xf32>
    %214 = tpu.matmul %212, %213, %cst_109 {dimension_numbers = #tpu.dot_dimension_numbers<[1], [0], [0], [1], [0, 0, 1, 1], [], []>} : vector<25x8xf32>, vector<8x32xf32>, vector<25x32xf32> -> vector<25x32xf32>
    %215 = arith.addf %195, %214 : vector<25x32xf32>
    %216 = arith.addf %117, %215 : vector<25x32xf32>
    %cst_110 = arith.constant dense<0.000000e+00> : vector<25xf32>
    %217 = vector.multi_reduction <add>, %216, %cst_110 [1] : vector<25x32xf32> to vector<25xf32>
    %218 = vector.shape_cast %217 : vector<25xf32> to vector<25x1xf32>
    %cst_111 = arith.constant 3.200000e+01 : f32
    %219 = vector.broadcast %cst_111 : f32 to vector<25x1xf32>
    %220 = arith.divf %218, %219 : vector<25x1xf32>
    %221 = vector.broadcast %220 : vector<25x1xf32> to vector<25x32xf32>
    %222 = arith.subf %216, %221 : vector<25x32xf32>
    %223 = arith.mulf %222, %222 : vector<25x32xf32>
    %cst_112 = arith.constant dense<0.000000e+00> : vector<25xf32>
    %224 = vector.multi_reduction <add>, %223, %cst_112 [1] : vector<25x32xf32> to vector<25xf32>
    %225 = vector.shape_cast %224 : vector<25xf32> to vector<25x1xf32>
    %cst_113 = arith.constant 3.200000e+01 : f32
    %226 = vector.broadcast %cst_113 : f32 to vector<25x1xf32>
    %227 = arith.divf %225, %226 : vector<25x1xf32>
    %cst_114 = arith.constant 9.99999974E-6 : f32
    %228 = vector.broadcast %cst_114 : f32 to vector<25x1xf32>
    %229 = arith.addf %227, %228 : vector<25x1xf32>
    %230 = math.rsqrt %229 : vector<25x1xf32>
    %231 = vector.broadcast %230 : vector<25x1xf32> to vector<25x32xf32>
    %232 = arith.mulf %222, %231 : vector<25x32xf32>
    %c0_115 = arith.constant 0 : index
    %c0_116 = arith.constant 0 : index
    %c0_117 = arith.constant 0 : index
    %233 = vector.load %arg17[%c0_115, %c0_116, %c0_117] : memref<14x1x32xf32, #tpu.memory_space<vmem>>, vector<1x1x32xf32>
    %234 = vector.shape_cast %233 : vector<1x1x32xf32> to vector<1x32xf32>
    %235 = vector.broadcast %234 : vector<1x32xf32> to vector<25x32xf32>
    %236 = arith.mulf %232, %235 : vector<25x32xf32>
    %c1_118 = arith.constant 1 : index
    %c0_119 = arith.constant 0 : index
    %c0_120 = arith.constant 0 : index
    %237 = vector.load %arg17[%c1_118, %c0_119, %c0_120] : memref<14x1x32xf32, #tpu.memory_space<vmem>>, vector<1x1x32xf32>
    %238 = vector.shape_cast %237 : vector<1x1x32xf32> to vector<1x32xf32>
    %239 = vector.broadcast %238 : vector<1x32xf32> to vector<25x32xf32>
    %240 = arith.addf %236, %239 : vector<25x32xf32>
    %c0_121 = arith.constant 0 : index
    %c0_122 = arith.constant 0 : index
    %c0_123 = arith.constant 0 : index
    %241 = vector.load %arg13[%c0_121, %c0_122, %c0_123] : memref<2x32x64xf32, #tpu.memory_space<vmem>>, vector<1x32x64xf32>
    %242 = vector.shape_cast %241 : vector<1x32x64xf32> to vector<32x64xf32>
    %cst_124 = arith.constant dense<0.000000e+00> : vector<25x64xf32>
    %243 = tpu.matmul %240, %242, %cst_124 {dimension_numbers = #tpu.dot_dimension_numbers<[1], [0], [0], [1], [0, 0, 1, 1], [], []>} : vector<25x32xf32>, vector<32x64xf32>, vector<25x64xf32> -> vector<25x64xf32>
    %c0_125 = arith.constant 0 : index
    %c0_126 = arith.constant 0 : index
    %c0_127 = arith.constant 0 : index
    %244 = vector.load %arg14[%c0_125, %c0_126, %c0_127] : memref<2x1x64xf32, #tpu.memory_space<vmem>>, vector<1x1x64xf32>
    %245 = vector.shape_cast %244 : vector<1x1x64xf32> to vector<1x64xf32>
    %246 = vector.broadcast %245 : vector<1x64xf32> to vector<25x64xf32>
    %247 = arith.addf %243, %246 : vector<25x64xf32>
    %cst_128 = arith.constant 0.000000e+00 : f32
    %248 = vector.broadcast %cst_128 : f32 to vector<25x64xf32>
    %249 = arith.maximumf %247, %248 : vector<25x64xf32>
    %c0_129 = arith.constant 0 : index
    %c0_130 = arith.constant 0 : index
    %c0_131 = arith.constant 0 : index
    %250 = vector.load %arg15[%c0_129, %c0_130, %c0_131] : memref<2x64x32xf32, #tpu.memory_space<vmem>>, vector<1x64x32xf32>
    %251 = vector.shape_cast %250 : vector<1x64x32xf32> to vector<64x32xf32>
    %cst_132 = arith.constant dense<0.000000e+00> : vector<25x32xf32>
    %252 = tpu.matmul %249, %251, %cst_132 {dimension_numbers = #tpu.dot_dimension_numbers<[1], [0], [0], [1], [0, 0, 1, 1], [], []>} : vector<25x64xf32>, vector<64x32xf32>, vector<25x32xf32> -> vector<25x32xf32>
    %c0_133 = arith.constant 0 : index
    %c0_134 = arith.constant 0 : index
    %c0_135 = arith.constant 0 : index
    %253 = vector.load %arg16[%c0_133, %c0_134, %c0_135] : memref<2x1x32xf32, #tpu.memory_space<vmem>>, vector<1x1x32xf32>
    %254 = vector.shape_cast %253 : vector<1x1x32xf32> to vector<1x32xf32>
    %255 = vector.broadcast %254 : vector<1x32xf32> to vector<25x32xf32>
    %256 = arith.addf %252, %255 : vector<25x32xf32>
    %257 = arith.addf %240, %256 : vector<25x32xf32>
    %cst_136 = arith.constant dense<0.000000e+00> : vector<25xf32>
    %258 = vector.multi_reduction <add>, %257, %cst_136 [1] : vector<25x32xf32> to vector<25xf32>
    %259 = vector.shape_cast %258 : vector<25xf32> to vector<25x1xf32>
    %cst_137 = arith.constant 3.200000e+01 : f32
    %260 = vector.broadcast %cst_137 : f32 to vector<25x1xf32>
    %261 = arith.divf %259, %260 : vector<25x1xf32>
    %262 = vector.broadcast %261 : vector<25x1xf32> to vector<25x32xf32>
    %263 = arith.subf %257, %262 : vector<25x32xf32>
    %264 = arith.mulf %263, %263 : vector<25x32xf32>
    %cst_138 = arith.constant dense<0.000000e+00> : vector<25xf32>
    %265 = vector.multi_reduction <add>, %264, %cst_138 [1] : vector<25x32xf32> to vector<25xf32>
    %266 = vector.shape_cast %265 : vector<25xf32> to vector<25x1xf32>
    %cst_139 = arith.constant 3.200000e+01 : f32
    %267 = vector.broadcast %cst_139 : f32 to vector<25x1xf32>
    %268 = arith.divf %266, %267 : vector<25x1xf32>
    %cst_140 = arith.constant 9.99999974E-6 : f32
    %269 = vector.broadcast %cst_140 : f32 to vector<25x1xf32>
    %270 = arith.addf %268, %269 : vector<25x1xf32>
    %271 = math.rsqrt %270 : vector<25x1xf32>
    %272 = vector.broadcast %271 : vector<25x1xf32> to vector<25x32xf32>
    %273 = arith.mulf %263, %272 : vector<25x32xf32>
    %c2_141 = arith.constant 2 : index
    %c0_142 = arith.constant 0 : index
    %c0_143 = arith.constant 0 : index
    %274 = vector.load %arg17[%c2_141, %c0_142, %c0_143] : memref<14x1x32xf32, #tpu.memory_space<vmem>>, vector<1x1x32xf32>
    %275 = vector.shape_cast %274 : vector<1x1x32xf32> to vector<1x32xf32>
    %276 = vector.broadcast %275 : vector<1x32xf32> to vector<25x32xf32>
    %277 = arith.mulf %273, %276 : vector<25x32xf32>
    %c3_144 = arith.constant 3 : index
    %c0_145 = arith.constant 0 : index
    %c0_146 = arith.constant 0 : index
    %278 = vector.load %arg17[%c3_144, %c0_145, %c0_146] : memref<14x1x32xf32, #tpu.memory_space<vmem>>, vector<1x1x32xf32>
    %279 = vector.shape_cast %278 : vector<1x1x32xf32> to vector<1x32xf32>
    %280 = vector.broadcast %279 : vector<1x32xf32> to vector<25x32xf32>
    %281 = arith.addf %277, %280 : vector<25x32xf32>
    %cst_147 = arith.constant dense<0.000000e+00> : vector<25xf32>
    %282 = vector.multi_reduction <add>, %281, %cst_147 [1] : vector<25x32xf32> to vector<25xf32>
    %283 = vector.shape_cast %282 : vector<25xf32> to vector<25x1xf32>
    %cst_148 = arith.constant 3.200000e+01 : f32
    %284 = vector.broadcast %cst_148 : f32 to vector<25x1xf32>
    %285 = arith.divf %283, %284 : vector<25x1xf32>
    %286 = vector.broadcast %285 : vector<25x1xf32> to vector<25x32xf32>
    %287 = arith.subf %281, %286 : vector<25x32xf32>
    %288 = arith.mulf %287, %287 : vector<25x32xf32>
    %cst_149 = arith.constant dense<0.000000e+00> : vector<25xf32>
    %289 = vector.multi_reduction <add>, %288, %cst_149 [1] : vector<25x32xf32> to vector<25xf32>
    %290 = vector.shape_cast %289 : vector<25xf32> to vector<25x1xf32>
    %cst_150 = arith.constant 3.200000e+01 : f32
    %291 = vector.broadcast %cst_150 : f32 to vector<25x1xf32>
    %292 = arith.divf %290, %291 : vector<25x1xf32>
    %cst_151 = arith.constant 9.99999974E-6 : f32
    %293 = vector.broadcast %cst_151 : f32 to vector<25x1xf32>
    %294 = arith.addf %292, %293 : vector<25x1xf32>
    %295 = math.rsqrt %294 : vector<25x1xf32>
    %296 = vector.broadcast %295 : vector<25x1xf32> to vector<25x32xf32>
    %297 = arith.mulf %287, %296 : vector<25x32xf32>
    %c10 = arith.constant 10 : index
    %c0_152 = arith.constant 0 : index
    %c0_153 = arith.constant 0 : index
    %298 = vector.load %arg17[%c10, %c0_152, %c0_153] : memref<14x1x32xf32, #tpu.memory_space<vmem>>, vector<1x1x32xf32>
    %299 = vector.shape_cast %298 : vector<1x1x32xf32> to vector<1x32xf32>
    %300 = vector.broadcast %299 : vector<1x32xf32> to vector<25x32xf32>
    %301 = arith.mulf %297, %300 : vector<25x32xf32>
    %c11 = arith.constant 11 : index
    %c0_154 = arith.constant 0 : index
    %c0_155 = arith.constant 0 : index
    %302 = vector.load %arg17[%c11, %c0_154, %c0_155] : memref<14x1x32xf32, #tpu.memory_space<vmem>>, vector<1x1x32xf32>
    %303 = vector.shape_cast %302 : vector<1x1x32xf32> to vector<1x32xf32>
    %304 = vector.broadcast %303 : vector<1x32xf32> to vector<25x32xf32>
    %305 = arith.addf %301, %304 : vector<25x32xf32>
    %c1_156 = arith.constant 1 : index
    %c0_157 = arith.constant 0 : index
    %c0_158 = arith.constant 0 : index
    %306 = vector.load %arg11[%c1_156, %c0_157, %c0_158] : memref<3x32x128xf32, #tpu.memory_space<vmem>>, vector<1x32x128xf32>
    %307 = vector.shape_cast %306 : vector<1x32x128xf32> to vector<32x128xf32>
    %c1_159 = arith.constant 1 : index
    %c0_160 = arith.constant 0 : index
    %c0_161 = arith.constant 0 : index
    %308 = vector.load %arg12[%c1_159, %c0_160, %c0_161] : memref<3x1x128xf32, #tpu.memory_space<vmem>>, vector<1x1x128xf32>
    %309 = vector.shape_cast %308 : vector<1x1x128xf32> to vector<1x128xf32>
    %310 = vector.extract_strided_slice %307 {offsets = [0, 0], sizes = [32, 96], strides = [1, 1]} : vector<32x128xf32> to vector<32x96xf32>
    %cst_162 = arith.constant dense<0.000000e+00> : vector<25x96xf32>
    %311 = tpu.matmul %118, %310, %cst_162 {dimension_numbers = #tpu.dot_dimension_numbers<[1], [0], [0], [1], [0, 0, 1, 1], [], []>} : vector<25x32xf32>, vector<32x96xf32>, vector<25x96xf32> -> vector<25x96xf32>
    %312 = vector.extract_strided_slice %309 {offsets = [0, 0], sizes = [1, 96], strides = [1, 1]} : vector<1x128xf32> to vector<1x96xf32>
    %313 = vector.broadcast %312 : vector<1x96xf32> to vector<25x96xf32>
    %314 = arith.addf %311, %313 : vector<25x96xf32>
    %315 = vector.extract_strided_slice %314 {offsets = [0, 0], sizes = [25, 32], strides = [1, 1]} : vector<25x96xf32> to vector<25x32xf32>
    %316 = vector.extract_strided_slice %314 {offsets = [0, 32], sizes = [25, 32], strides = [1, 1]} : vector<25x96xf32> to vector<25x32xf32>
    %317 = vector.extract_strided_slice %314 {offsets = [0, 64], sizes = [25, 32], strides = [1, 1]} : vector<25x96xf32> to vector<25x32xf32>
    %318 = vector.extract_strided_slice %307 {offsets = [0, 96], sizes = [32, 32], strides = [1, 1]} : vector<32x128xf32> to vector<32x32xf32>
    %cst_163 = arith.constant 0.000000e+00 : f32
    %319 = vector.broadcast %cst_163 : f32 to vector<25x32xf32>
    %320 = vector.extract_strided_slice %309 {offsets = [0, 96], sizes = [1, 32], strides = [1, 1]} : vector<1x128xf32> to vector<1x32xf32>
    %321 = vector.broadcast %320 : vector<1x32xf32> to vector<25x32xf32>
    %322 = arith.addf %319, %321 : vector<25x32xf32>
    %323 = vector.extract_strided_slice %315 {offsets = [0, 0], sizes = [25, 8], strides = [1, 1]} : vector<25x32xf32> to vector<25x8xf32>
    %324 = vector.extract_strided_slice %316 {offsets = [0, 0], sizes = [25, 8], strides = [1, 1]} : vector<25x32xf32> to vector<25x8xf32>
    "tpu.trace_start"() <{level = 10 : i32, message = "qd,kd->qk"}> : () -> ()
    %cst_164 = arith.constant dense<0.000000e+00> : vector<25x25xf32>
    %325 = tpu.matmul %323, %324, %cst_164 {dimension_numbers = #tpu.dot_dimension_numbers<[1], [1], [0], [0], [0, 0, 1, 0], [], []>} : vector<25x8xf32>, vector<25x8xf32>, vector<25x25xf32> -> vector<25x25xf32>
    "tpu.trace_stop"() : () -> ()
    %cst_165 = arith.constant 0.353553385 : f32
    %326 = vector.broadcast %cst_165 : f32 to vector<25x25xf32>
    %327 = arith.mulf %325, %326 : vector<25x25xf32>
    %cst_166 = arith.constant dense<0xFF800000> : vector<25xf32>
    %328 = vector.multi_reduction <maximumf>, %327, %cst_166 [1] : vector<25x25xf32> to vector<25xf32>
    %329 = vector.shape_cast %328 : vector<25xf32> to vector<25x1xf32>
    %330 = vector.broadcast %329 : vector<25x1xf32> to vector<25x25xf32>
    %331 = arith.subf %327, %330 : vector<25x25xf32>
    %332 = math.exp %331 : vector<25x25xf32>
    %cst_167 = arith.constant dense<0.000000e+00> : vector<25xf32>
    %333 = vector.multi_reduction <add>, %332, %cst_167 [1] : vector<25x25xf32> to vector<25xf32>
    %334 = vector.shape_cast %333 : vector<25xf32> to vector<25x1xf32>
    %335 = tpu.reciprocal %334 {approx = true} : vector<25x1xf32> -> vector<25x1xf32>
    %336 = vector.broadcast %335 : vector<25x1xf32> to vector<25x25xf32>
    %337 = arith.mulf %332, %336 : vector<25x25xf32>
    %338 = vector.extract_strided_slice %317 {offsets = [0, 0], sizes = [25, 8], strides = [1, 1]} : vector<25x32xf32> to vector<25x8xf32>
    %cst_168 = arith.constant dense<0.000000e+00> : vector<25x8xf32>
    %339 = tpu.matmul %337, %338, %cst_168 {dimension_numbers = #tpu.dot_dimension_numbers<[1], [0], [0], [1], [0, 0, 1, 1], [], []>} : vector<25x25xf32>, vector<25x8xf32>, vector<25x8xf32> -> vector<25x8xf32>
    %340 = vector.extract_strided_slice %318 {offsets = [0, 0], sizes = [8, 32], strides = [1, 1]} : vector<32x32xf32> to vector<8x32xf32>
    %cst_169 = arith.constant dense<0.000000e+00> : vector<25x32xf32>
    %341 = tpu.matmul %339, %340, %cst_169 {dimension_numbers = #tpu.dot_dimension_numbers<[1], [0], [0], [1], [0, 0, 1, 1], [], []>} : vector<25x8xf32>, vector<8x32xf32>, vector<25x32xf32> -> vector<25x32xf32>
    %342 = arith.addf %322, %341 : vector<25x32xf32>
    %343 = vector.extract_strided_slice %315 {offsets = [0, 8], sizes = [25, 8], strides = [1, 1]} : vector<25x32xf32> to vector<25x8xf32>
    %344 = vector.extract_strided_slice %316 {offsets = [0, 8], sizes = [25, 8], strides = [1, 1]} : vector<25x32xf32> to vector<25x8xf32>
    "tpu.trace_start"() <{level = 10 : i32, message = "qd,kd->qk"}> : () -> ()
    %cst_170 = arith.constant dense<0.000000e+00> : vector<25x25xf32>
    %345 = tpu.matmul %343, %344, %cst_170 {dimension_numbers = #tpu.dot_dimension_numbers<[1], [1], [0], [0], [0, 0, 1, 0], [], []>} : vector<25x8xf32>, vector<25x8xf32>, vector<25x25xf32> -> vector<25x25xf32>
    "tpu.trace_stop"() : () -> ()
    %cst_171 = arith.constant 0.353553385 : f32
    %346 = vector.broadcast %cst_171 : f32 to vector<25x25xf32>
    %347 = arith.mulf %345, %346 : vector<25x25xf32>
    %cst_172 = arith.constant dense<0xFF800000> : vector<25xf32>
    %348 = vector.multi_reduction <maximumf>, %347, %cst_172 [1] : vector<25x25xf32> to vector<25xf32>
    %349 = vector.shape_cast %348 : vector<25xf32> to vector<25x1xf32>
    %350 = vector.broadcast %349 : vector<25x1xf32> to vector<25x25xf32>
    %351 = arith.subf %347, %350 : vector<25x25xf32>
    %352 = math.exp %351 : vector<25x25xf32>
    %cst_173 = arith.constant dense<0.000000e+00> : vector<25xf32>
    %353 = vector.multi_reduction <add>, %352, %cst_173 [1] : vector<25x25xf32> to vector<25xf32>
    %354 = vector.shape_cast %353 : vector<25xf32> to vector<25x1xf32>
    %355 = tpu.reciprocal %354 {approx = true} : vector<25x1xf32> -> vector<25x1xf32>
    %356 = vector.broadcast %355 : vector<25x1xf32> to vector<25x25xf32>
    %357 = arith.mulf %352, %356 : vector<25x25xf32>
    %358 = vector.extract_strided_slice %317 {offsets = [0, 8], sizes = [25, 8], strides = [1, 1]} : vector<25x32xf32> to vector<25x8xf32>
    %cst_174 = arith.constant dense<0.000000e+00> : vector<25x8xf32>
    %359 = tpu.matmul %357, %358, %cst_174 {dimension_numbers = #tpu.dot_dimension_numbers<[1], [0], [0], [1], [0, 0, 1, 1], [], []>} : vector<25x25xf32>, vector<25x8xf32>, vector<25x8xf32> -> vector<25x8xf32>
    %360 = vector.extract_strided_slice %318 {offsets = [8, 0], sizes = [8, 32], strides = [1, 1]} : vector<32x32xf32> to vector<8x32xf32>
    %cst_175 = arith.constant dense<0.000000e+00> : vector<25x32xf32>
    %361 = tpu.matmul %359, %360, %cst_175 {dimension_numbers = #tpu.dot_dimension_numbers<[1], [0], [0], [1], [0, 0, 1, 1], [], []>} : vector<25x8xf32>, vector<8x32xf32>, vector<25x32xf32> -> vector<25x32xf32>
    %362 = arith.addf %342, %361 : vector<25x32xf32>
    %363 = vector.extract_strided_slice %315 {offsets = [0, 16], sizes = [25, 8], strides = [1, 1]} : vector<25x32xf32> to vector<25x8xf32>
    %364 = vector.extract_strided_slice %316 {offsets = [0, 16], sizes = [25, 8], strides = [1, 1]} : vector<25x32xf32> to vector<25x8xf32>
    "tpu.trace_start"() <{level = 10 : i32, message = "qd,kd->qk"}> : () -> ()
    %cst_176 = arith.constant dense<0.000000e+00> : vector<25x25xf32>
    %365 = tpu.matmul %363, %364, %cst_176 {dimension_numbers = #tpu.dot_dimension_numbers<[1], [1], [0], [0], [0, 0, 1, 0], [], []>} : vector<25x8xf32>, vector<25x8xf32>, vector<25x25xf32> -> vector<25x25xf32>
    "tpu.trace_stop"() : () -> ()
    %cst_177 = arith.constant 0.353553385 : f32
    %366 = vector.broadcast %cst_177 : f32 to vector<25x25xf32>
    %367 = arith.mulf %365, %366 : vector<25x25xf32>
    %cst_178 = arith.constant dense<0xFF800000> : vector<25xf32>
    %368 = vector.multi_reduction <maximumf>, %367, %cst_178 [1] : vector<25x25xf32> to vector<25xf32>
    %369 = vector.shape_cast %368 : vector<25xf32> to vector<25x1xf32>
    %370 = vector.broadcast %369 : vector<25x1xf32> to vector<25x25xf32>
    %371 = arith.subf %367, %370 : vector<25x25xf32>
    %372 = math.exp %371 : vector<25x25xf32>
    %cst_179 = arith.constant dense<0.000000e+00> : vector<25xf32>
    %373 = vector.multi_reduction <add>, %372, %cst_179 [1] : vector<25x25xf32> to vector<25xf32>
    %374 = vector.shape_cast %373 : vector<25xf32> to vector<25x1xf32>
    %375 = tpu.reciprocal %374 {approx = true} : vector<25x1xf32> -> vector<25x1xf32>
    %376 = vector.broadcast %375 : vector<25x1xf32> to vector<25x25xf32>
    %377 = arith.mulf %372, %376 : vector<25x25xf32>
    %378 = vector.extract_strided_slice %317 {offsets = [0, 16], sizes = [25, 8], strides = [1, 1]} : vector<25x32xf32> to vector<25x8xf32>
    %cst_180 = arith.constant dense<0.000000e+00> : vector<25x8xf32>
    %379 = tpu.matmul %377, %378, %cst_180 {dimension_numbers = #tpu.dot_dimension_numbers<[1], [0], [0], [1], [0, 0, 1, 1], [], []>} : vector<25x25xf32>, vector<25x8xf32>, vector<25x8xf32> -> vector<25x8xf32>
    %380 = vector.extract_strided_slice %318 {offsets = [16, 0], sizes = [8, 32], strides = [1, 1]} : vector<32x32xf32> to vector<8x32xf32>
    %cst_181 = arith.constant dense<0.000000e+00> : vector<25x32xf32>
    %381 = tpu.matmul %379, %380, %cst_181 {dimension_numbers = #tpu.dot_dimension_numbers<[1], [0], [0], [1], [0, 0, 1, 1], [], []>} : vector<25x8xf32>, vector<8x32xf32>, vector<25x32xf32> -> vector<25x32xf32>
    %382 = arith.addf %362, %381 : vector<25x32xf32>
    %383 = vector.extract_strided_slice %315 {offsets = [0, 24], sizes = [25, 8], strides = [1, 1]} : vector<25x32xf32> to vector<25x8xf32>
    %384 = vector.extract_strided_slice %316 {offsets = [0, 24], sizes = [25, 8], strides = [1, 1]} : vector<25x32xf32> to vector<25x8xf32>
    "tpu.trace_start"() <{level = 10 : i32, message = "qd,kd->qk"}> : () -> ()
    %cst_182 = arith.constant dense<0.000000e+00> : vector<25x25xf32>
    %385 = tpu.matmul %383, %384, %cst_182 {dimension_numbers = #tpu.dot_dimension_numbers<[1], [1], [0], [0], [0, 0, 1, 0], [], []>} : vector<25x8xf32>, vector<25x8xf32>, vector<25x25xf32> -> vector<25x25xf32>
    "tpu.trace_stop"() : () -> ()
    %cst_183 = arith.constant 0.353553385 : f32
    %386 = vector.broadcast %cst_183 : f32 to vector<25x25xf32>
    %387 = arith.mulf %385, %386 : vector<25x25xf32>
    %cst_184 = arith.constant dense<0xFF800000> : vector<25xf32>
    %388 = vector.multi_reduction <maximumf>, %387, %cst_184 [1] : vector<25x25xf32> to vector<25xf32>
    %389 = vector.shape_cast %388 : vector<25xf32> to vector<25x1xf32>
    %390 = vector.broadcast %389 : vector<25x1xf32> to vector<25x25xf32>
    %391 = arith.subf %387, %390 : vector<25x25xf32>
    %392 = math.exp %391 : vector<25x25xf32>
    %cst_185 = arith.constant dense<0.000000e+00> : vector<25xf32>
    %393 = vector.multi_reduction <add>, %392, %cst_185 [1] : vector<25x25xf32> to vector<25xf32>
    %394 = vector.shape_cast %393 : vector<25xf32> to vector<25x1xf32>
    %395 = tpu.reciprocal %394 {approx = true} : vector<25x1xf32> -> vector<25x1xf32>
    %396 = vector.broadcast %395 : vector<25x1xf32> to vector<25x25xf32>
    %397 = arith.mulf %392, %396 : vector<25x25xf32>
    %398 = vector.extract_strided_slice %317 {offsets = [0, 24], sizes = [25, 8], strides = [1, 1]} : vector<25x32xf32> to vector<25x8xf32>
    %cst_186 = arith.constant dense<0.000000e+00> : vector<25x8xf32>
    %399 = tpu.matmul %397, %398, %cst_186 {dimension_numbers = #tpu.dot_dimension_numbers<[1], [0], [0], [1], [0, 0, 1, 1], [], []>} : vector<25x25xf32>, vector<25x8xf32>, vector<25x8xf32> -> vector<25x8xf32>
    %400 = vector.extract_strided_slice %318 {offsets = [24, 0], sizes = [8, 32], strides = [1, 1]} : vector<32x32xf32> to vector<8x32xf32>
    %cst_187 = arith.constant dense<0.000000e+00> : vector<25x32xf32>
    %401 = tpu.matmul %399, %400, %cst_187 {dimension_numbers = #tpu.dot_dimension_numbers<[1], [0], [0], [1], [0, 0, 1, 1], [], []>} : vector<25x8xf32>, vector<8x32xf32>, vector<25x32xf32> -> vector<25x32xf32>
    %402 = arith.addf %382, %401 : vector<25x32xf32>
    %403 = arith.addf %118, %402 : vector<25x32xf32>
    %cst_188 = arith.constant dense<0.000000e+00> : vector<25xf32>
    %404 = vector.multi_reduction <add>, %403, %cst_188 [1] : vector<25x32xf32> to vector<25xf32>
    %405 = vector.shape_cast %404 : vector<25xf32> to vector<25x1xf32>
    %cst_189 = arith.constant 3.200000e+01 : f32
    %406 = vector.broadcast %cst_189 : f32 to vector<25x1xf32>
    %407 = arith.divf %405, %406 : vector<25x1xf32>
    %408 = vector.broadcast %407 : vector<25x1xf32> to vector<25x32xf32>
    %409 = arith.subf %403, %408 : vector<25x32xf32>
    %410 = arith.mulf %409, %409 : vector<25x32xf32>
    %cst_190 = arith.constant dense<0.000000e+00> : vector<25xf32>
    %411 = vector.multi_reduction <add>, %410, %cst_190 [1] : vector<25x32xf32> to vector<25xf32>
    %412 = vector.shape_cast %411 : vector<25xf32> to vector<25x1xf32>
    %cst_191 = arith.constant 3.200000e+01 : f32
    %413 = vector.broadcast %cst_191 : f32 to vector<25x1xf32>
    %414 = arith.divf %412, %413 : vector<25x1xf32>
    %cst_192 = arith.constant 9.99999974E-6 : f32
    %415 = vector.broadcast %cst_192 : f32 to vector<25x1xf32>
    %416 = arith.addf %414, %415 : vector<25x1xf32>
    %417 = math.rsqrt %416 : vector<25x1xf32>
    %418 = vector.broadcast %417 : vector<25x1xf32> to vector<25x32xf32>
    %419 = arith.mulf %409, %418 : vector<25x32xf32>
    %c4_193 = arith.constant 4 : index
    %c0_194 = arith.constant 0 : index
    %c0_195 = arith.constant 0 : index
    %420 = vector.load %arg17[%c4_193, %c0_194, %c0_195] : memref<14x1x32xf32, #tpu.memory_space<vmem>>, vector<1x1x32xf32>
    %421 = vector.shape_cast %420 : vector<1x1x32xf32> to vector<1x32xf32>
    %422 = vector.broadcast %421 : vector<1x32xf32> to vector<25x32xf32>
    %423 = arith.mulf %419, %422 : vector<25x32xf32>
    %c5_196 = arith.constant 5 : index
    %c0_197 = arith.constant 0 : index
    %c0_198 = arith.constant 0 : index
    %424 = vector.load %arg17[%c5_196, %c0_197, %c0_198] : memref<14x1x32xf32, #tpu.memory_space<vmem>>, vector<1x1x32xf32>
    %425 = vector.shape_cast %424 : vector<1x1x32xf32> to vector<1x32xf32>
    %426 = vector.broadcast %425 : vector<1x32xf32> to vector<25x32xf32>
    %427 = arith.addf %423, %426 : vector<25x32xf32>
    %c2_199 = arith.constant 2 : index
    %c0_200 = arith.constant 0 : index
    %c0_201 = arith.constant 0 : index
    %428 = vector.load %arg11[%c2_199, %c0_200, %c0_201] : memref<3x32x128xf32, #tpu.memory_space<vmem>>, vector<1x32x128xf32>
    %429 = vector.shape_cast %428 : vector<1x32x128xf32> to vector<32x128xf32>
    %c2_202 = arith.constant 2 : index
    %c0_203 = arith.constant 0 : index
    %c0_204 = arith.constant 0 : index
    %430 = vector.load %arg12[%c2_202, %c0_203, %c0_204] : memref<3x1x128xf32, #tpu.memory_space<vmem>>, vector<1x1x128xf32>
    %431 = vector.shape_cast %430 : vector<1x1x128xf32> to vector<1x128xf32>
    %432 = vector.extract_strided_slice %429 {offsets = [0, 0], sizes = [32, 32], strides = [1, 1]} : vector<32x128xf32> to vector<32x32xf32>
    %cst_205 = arith.constant dense<0.000000e+00> : vector<25x32xf32>
    %433 = tpu.matmul %427, %432, %cst_205 {dimension_numbers = #tpu.dot_dimension_numbers<[1], [0], [0], [1], [0, 0, 1, 1], [], []>} : vector<25x32xf32>, vector<32x32xf32>, vector<25x32xf32> -> vector<25x32xf32>
    %434 = vector.extract_strided_slice %431 {offsets = [0, 0], sizes = [1, 32], strides = [1, 1]} : vector<1x128xf32> to vector<1x32xf32>
    %435 = vector.broadcast %434 : vector<1x32xf32> to vector<25x32xf32>
    %436 = arith.addf %433, %435 : vector<25x32xf32>
    %437 = vector.extract_strided_slice %429 {offsets = [0, 32], sizes = [32, 64], strides = [1, 1]} : vector<32x128xf32> to vector<32x64xf32>
    %cst_206 = arith.constant dense<0.000000e+00> : vector<25x64xf32>
    %438 = tpu.matmul %305, %437, %cst_206 {dimension_numbers = #tpu.dot_dimension_numbers<[1], [0], [0], [1], [0, 0, 1, 1], [], []>} : vector<25x32xf32>, vector<32x64xf32>, vector<25x64xf32> -> vector<25x64xf32>
    %439 = vector.extract_strided_slice %431 {offsets = [0, 32], sizes = [1, 64], strides = [1, 1]} : vector<1x128xf32> to vector<1x64xf32>
    %440 = vector.broadcast %439 : vector<1x64xf32> to vector<25x64xf32>
    %441 = arith.addf %438, %440 : vector<25x64xf32>
    %442 = vector.extract_strided_slice %441 {offsets = [0, 0], sizes = [25, 32], strides = [1, 1]} : vector<25x64xf32> to vector<25x32xf32>
    %443 = vector.extract_strided_slice %441 {offsets = [0, 32], sizes = [25, 32], strides = [1, 1]} : vector<25x64xf32> to vector<25x32xf32>
    %444 = vector.extract_strided_slice %429 {offsets = [0, 96], sizes = [32, 32], strides = [1, 1]} : vector<32x128xf32> to vector<32x32xf32>
    %cst_207 = arith.constant 0.000000e+00 : f32
    %445 = vector.broadcast %cst_207 : f32 to vector<25x32xf32>
    %446 = vector.extract_strided_slice %431 {offsets = [0, 96], sizes = [1, 32], strides = [1, 1]} : vector<1x128xf32> to vector<1x32xf32>
    %447 = vector.broadcast %446 : vector<1x32xf32> to vector<25x32xf32>
    %448 = arith.addf %445, %447 : vector<25x32xf32>
    %449 = vector.extract_strided_slice %436 {offsets = [0, 0], sizes = [25, 8], strides = [1, 1]} : vector<25x32xf32> to vector<25x8xf32>
    %450 = vector.extract_strided_slice %442 {offsets = [0, 0], sizes = [25, 8], strides = [1, 1]} : vector<25x32xf32> to vector<25x8xf32>
    "tpu.trace_start"() <{level = 10 : i32, message = "qd,kd->qk"}> : () -> ()
    %cst_208 = arith.constant dense<0.000000e+00> : vector<25x25xf32>
    %451 = tpu.matmul %449, %450, %cst_208 {dimension_numbers = #tpu.dot_dimension_numbers<[1], [1], [0], [0], [0, 0, 1, 0], [], []>} : vector<25x8xf32>, vector<25x8xf32>, vector<25x25xf32> -> vector<25x25xf32>
    "tpu.trace_stop"() : () -> ()
    %cst_209 = arith.constant 0.353553385 : f32
    %452 = vector.broadcast %cst_209 : f32 to vector<25x25xf32>
    %453 = arith.mulf %451, %452 : vector<25x25xf32>
    %cst_210 = arith.constant dense<0xFF800000> : vector<25xf32>
    %454 = vector.multi_reduction <maximumf>, %453, %cst_210 [1] : vector<25x25xf32> to vector<25xf32>
    %455 = vector.shape_cast %454 : vector<25xf32> to vector<25x1xf32>
    %456 = vector.broadcast %455 : vector<25x1xf32> to vector<25x25xf32>
    %457 = arith.subf %453, %456 : vector<25x25xf32>
    %458 = math.exp %457 : vector<25x25xf32>
    %cst_211 = arith.constant dense<0.000000e+00> : vector<25xf32>
    %459 = vector.multi_reduction <add>, %458, %cst_211 [1] : vector<25x25xf32> to vector<25xf32>
    %460 = vector.shape_cast %459 : vector<25xf32> to vector<25x1xf32>
    %461 = tpu.reciprocal %460 {approx = true} : vector<25x1xf32> -> vector<25x1xf32>
    %462 = vector.broadcast %461 : vector<25x1xf32> to vector<25x25xf32>
    %463 = arith.mulf %458, %462 : vector<25x25xf32>
    %464 = vector.extract_strided_slice %443 {offsets = [0, 0], sizes = [25, 8], strides = [1, 1]} : vector<25x32xf32> to vector<25x8xf32>
    %cst_212 = arith.constant dense<0.000000e+00> : vector<25x8xf32>
    %465 = tpu.matmul %463, %464, %cst_212 {dimension_numbers = #tpu.dot_dimension_numbers<[1], [0], [0], [1], [0, 0, 1, 1], [], []>} : vector<25x25xf32>, vector<25x8xf32>, vector<25x8xf32> -> vector<25x8xf32>
    %466 = vector.extract_strided_slice %444 {offsets = [0, 0], sizes = [8, 32], strides = [1, 1]} : vector<32x32xf32> to vector<8x32xf32>
    %cst_213 = arith.constant dense<0.000000e+00> : vector<25x32xf32>
    %467 = tpu.matmul %465, %466, %cst_213 {dimension_numbers = #tpu.dot_dimension_numbers<[1], [0], [0], [1], [0, 0, 1, 1], [], []>} : vector<25x8xf32>, vector<8x32xf32>, vector<25x32xf32> -> vector<25x32xf32>
    %468 = arith.addf %448, %467 : vector<25x32xf32>
    %469 = vector.extract_strided_slice %436 {offsets = [0, 8], sizes = [25, 8], strides = [1, 1]} : vector<25x32xf32> to vector<25x8xf32>
    %470 = vector.extract_strided_slice %442 {offsets = [0, 8], sizes = [25, 8], strides = [1, 1]} : vector<25x32xf32> to vector<25x8xf32>
    "tpu.trace_start"() <{level = 10 : i32, message = "qd,kd->qk"}> : () -> ()
    %cst_214 = arith.constant dense<0.000000e+00> : vector<25x25xf32>
    %471 = tpu.matmul %469, %470, %cst_214 {dimension_numbers = #tpu.dot_dimension_numbers<[1], [1], [0], [0], [0, 0, 1, 0], [], []>} : vector<25x8xf32>, vector<25x8xf32>, vector<25x25xf32> -> vector<25x25xf32>
    "tpu.trace_stop"() : () -> ()
    %cst_215 = arith.constant 0.353553385 : f32
    %472 = vector.broadcast %cst_215 : f32 to vector<25x25xf32>
    %473 = arith.mulf %471, %472 : vector<25x25xf32>
    %cst_216 = arith.constant dense<0xFF800000> : vector<25xf32>
    %474 = vector.multi_reduction <maximumf>, %473, %cst_216 [1] : vector<25x25xf32> to vector<25xf32>
    %475 = vector.shape_cast %474 : vector<25xf32> to vector<25x1xf32>
    %476 = vector.broadcast %475 : vector<25x1xf32> to vector<25x25xf32>
    %477 = arith.subf %473, %476 : vector<25x25xf32>
    %478 = math.exp %477 : vector<25x25xf32>
    %cst_217 = arith.constant dense<0.000000e+00> : vector<25xf32>
    %479 = vector.multi_reduction <add>, %478, %cst_217 [1] : vector<25x25xf32> to vector<25xf32>
    %480 = vector.shape_cast %479 : vector<25xf32> to vector<25x1xf32>
    %481 = tpu.reciprocal %480 {approx = true} : vector<25x1xf32> -> vector<25x1xf32>
    %482 = vector.broadcast %481 : vector<25x1xf32> to vector<25x25xf32>
    %483 = arith.mulf %478, %482 : vector<25x25xf32>
    %484 = vector.extract_strided_slice %443 {offsets = [0, 8], sizes = [25, 8], strides = [1, 1]} : vector<25x32xf32> to vector<25x8xf32>
    %cst_218 = arith.constant dense<0.000000e+00> : vector<25x8xf32>
    %485 = tpu.matmul %483, %484, %cst_218 {dimension_numbers = #tpu.dot_dimension_numbers<[1], [0], [0], [1], [0, 0, 1, 1], [], []>} : vector<25x25xf32>, vector<25x8xf32>, vector<25x8xf32> -> vector<25x8xf32>
    %486 = vector.extract_strided_slice %444 {offsets = [8, 0], sizes = [8, 32], strides = [1, 1]} : vector<32x32xf32> to vector<8x32xf32>
    %cst_219 = arith.constant dense<0.000000e+00> : vector<25x32xf32>
    %487 = tpu.matmul %485, %486, %cst_219 {dimension_numbers = #tpu.dot_dimension_numbers<[1], [0], [0], [1], [0, 0, 1, 1], [], []>} : vector<25x8xf32>, vector<8x32xf32>, vector<25x32xf32> -> vector<25x32xf32>
    %488 = arith.addf %468, %487 : vector<25x32xf32>
    %489 = vector.extract_strided_slice %436 {offsets = [0, 16], sizes = [25, 8], strides = [1, 1]} : vector<25x32xf32> to vector<25x8xf32>
    %490 = vector.extract_strided_slice %442 {offsets = [0, 16], sizes = [25, 8], strides = [1, 1]} : vector<25x32xf32> to vector<25x8xf32>
    "tpu.trace_start"() <{level = 10 : i32, message = "qd,kd->qk"}> : () -> ()
    %cst_220 = arith.constant dense<0.000000e+00> : vector<25x25xf32>
    %491 = tpu.matmul %489, %490, %cst_220 {dimension_numbers = #tpu.dot_dimension_numbers<[1], [1], [0], [0], [0, 0, 1, 0], [], []>} : vector<25x8xf32>, vector<25x8xf32>, vector<25x25xf32> -> vector<25x25xf32>
    "tpu.trace_stop"() : () -> ()
    %cst_221 = arith.constant 0.353553385 : f32
    %492 = vector.broadcast %cst_221 : f32 to vector<25x25xf32>
    %493 = arith.mulf %491, %492 : vector<25x25xf32>
    %cst_222 = arith.constant dense<0xFF800000> : vector<25xf32>
    %494 = vector.multi_reduction <maximumf>, %493, %cst_222 [1] : vector<25x25xf32> to vector<25xf32>
    %495 = vector.shape_cast %494 : vector<25xf32> to vector<25x1xf32>
    %496 = vector.broadcast %495 : vector<25x1xf32> to vector<25x25xf32>
    %497 = arith.subf %493, %496 : vector<25x25xf32>
    %498 = math.exp %497 : vector<25x25xf32>
    %cst_223 = arith.constant dense<0.000000e+00> : vector<25xf32>
    %499 = vector.multi_reduction <add>, %498, %cst_223 [1] : vector<25x25xf32> to vector<25xf32>
    %500 = vector.shape_cast %499 : vector<25xf32> to vector<25x1xf32>
    %501 = tpu.reciprocal %500 {approx = true} : vector<25x1xf32> -> vector<25x1xf32>
    %502 = vector.broadcast %501 : vector<25x1xf32> to vector<25x25xf32>
    %503 = arith.mulf %498, %502 : vector<25x25xf32>
    %504 = vector.extract_strided_slice %443 {offsets = [0, 16], sizes = [25, 8], strides = [1, 1]} : vector<25x32xf32> to vector<25x8xf32>
    %cst_224 = arith.constant dense<0.000000e+00> : vector<25x8xf32>
    %505 = tpu.matmul %503, %504, %cst_224 {dimension_numbers = #tpu.dot_dimension_numbers<[1], [0], [0], [1], [0, 0, 1, 1], [], []>} : vector<25x25xf32>, vector<25x8xf32>, vector<25x8xf32> -> vector<25x8xf32>
    %506 = vector.extract_strided_slice %444 {offsets = [16, 0], sizes = [8, 32], strides = [1, 1]} : vector<32x32xf32> to vector<8x32xf32>
    %cst_225 = arith.constant dense<0.000000e+00> : vector<25x32xf32>
    %507 = tpu.matmul %505, %506, %cst_225 {dimension_numbers = #tpu.dot_dimension_numbers<[1], [0], [0], [1], [0, 0, 1, 1], [], []>} : vector<25x8xf32>, vector<8x32xf32>, vector<25x32xf32> -> vector<25x32xf32>
    %508 = arith.addf %488, %507 : vector<25x32xf32>
    %509 = vector.extract_strided_slice %436 {offsets = [0, 24], sizes = [25, 8], strides = [1, 1]} : vector<25x32xf32> to vector<25x8xf32>
    %510 = vector.extract_strided_slice %442 {offsets = [0, 24], sizes = [25, 8], strides = [1, 1]} : vector<25x32xf32> to vector<25x8xf32>
    "tpu.trace_start"() <{level = 10 : i32, message = "qd,kd->qk"}> : () -> ()
    %cst_226 = arith.constant dense<0.000000e+00> : vector<25x25xf32>
    %511 = tpu.matmul %509, %510, %cst_226 {dimension_numbers = #tpu.dot_dimension_numbers<[1], [1], [0], [0], [0, 0, 1, 0], [], []>} : vector<25x8xf32>, vector<25x8xf32>, vector<25x25xf32> -> vector<25x25xf32>
    "tpu.trace_stop"() : () -> ()
    %cst_227 = arith.constant 0.353553385 : f32
    %512 = vector.broadcast %cst_227 : f32 to vector<25x25xf32>
    %513 = arith.mulf %511, %512 : vector<25x25xf32>
    %cst_228 = arith.constant dense<0xFF800000> : vector<25xf32>
    %514 = vector.multi_reduction <maximumf>, %513, %cst_228 [1] : vector<25x25xf32> to vector<25xf32>
    %515 = vector.shape_cast %514 : vector<25xf32> to vector<25x1xf32>
    %516 = vector.broadcast %515 : vector<25x1xf32> to vector<25x25xf32>
    %517 = arith.subf %513, %516 : vector<25x25xf32>
    %518 = math.exp %517 : vector<25x25xf32>
    %cst_229 = arith.constant dense<0.000000e+00> : vector<25xf32>
    %519 = vector.multi_reduction <add>, %518, %cst_229 [1] : vector<25x25xf32> to vector<25xf32>
    %520 = vector.shape_cast %519 : vector<25xf32> to vector<25x1xf32>
    %521 = tpu.reciprocal %520 {approx = true} : vector<25x1xf32> -> vector<25x1xf32>
    %522 = vector.broadcast %521 : vector<25x1xf32> to vector<25x25xf32>
    %523 = arith.mulf %518, %522 : vector<25x25xf32>
    %524 = vector.extract_strided_slice %443 {offsets = [0, 24], sizes = [25, 8], strides = [1, 1]} : vector<25x32xf32> to vector<25x8xf32>
    %cst_230 = arith.constant dense<0.000000e+00> : vector<25x8xf32>
    %525 = tpu.matmul %523, %524, %cst_230 {dimension_numbers = #tpu.dot_dimension_numbers<[1], [0], [0], [1], [0, 0, 1, 1], [], []>} : vector<25x25xf32>, vector<25x8xf32>, vector<25x8xf32> -> vector<25x8xf32>
    %526 = vector.extract_strided_slice %444 {offsets = [24, 0], sizes = [8, 32], strides = [1, 1]} : vector<32x32xf32> to vector<8x32xf32>
    %cst_231 = arith.constant dense<0.000000e+00> : vector<25x32xf32>
    %527 = tpu.matmul %525, %526, %cst_231 {dimension_numbers = #tpu.dot_dimension_numbers<[1], [0], [0], [1], [0, 0, 1, 1], [], []>} : vector<25x8xf32>, vector<8x32xf32>, vector<25x32xf32> -> vector<25x32xf32>
    %528 = arith.addf %508, %527 : vector<25x32xf32>
    %529 = arith.addf %427, %528 : vector<25x32xf32>
    %cst_232 = arith.constant dense<0.000000e+00> : vector<25xf32>
    %530 = vector.multi_reduction <add>, %529, %cst_232 [1] : vector<25x32xf32> to vector<25xf32>
    %531 = vector.shape_cast %530 : vector<25xf32> to vector<25x1xf32>
    %cst_233 = arith.constant 3.200000e+01 : f32
    %532 = vector.broadcast %cst_233 : f32 to vector<25x1xf32>
    %533 = arith.divf %531, %532 : vector<25x1xf32>
    %534 = vector.broadcast %533 : vector<25x1xf32> to vector<25x32xf32>
    %535 = arith.subf %529, %534 : vector<25x32xf32>
    %536 = arith.mulf %535, %535 : vector<25x32xf32>
    %cst_234 = arith.constant dense<0.000000e+00> : vector<25xf32>
    %537 = vector.multi_reduction <add>, %536, %cst_234 [1] : vector<25x32xf32> to vector<25xf32>
    %538 = vector.shape_cast %537 : vector<25xf32> to vector<25x1xf32>
    %cst_235 = arith.constant 3.200000e+01 : f32
    %539 = vector.broadcast %cst_235 : f32 to vector<25x1xf32>
    %540 = arith.divf %538, %539 : vector<25x1xf32>
    %cst_236 = arith.constant 9.99999974E-6 : f32
    %541 = vector.broadcast %cst_236 : f32 to vector<25x1xf32>
    %542 = arith.addf %540, %541 : vector<25x1xf32>
    %543 = math.rsqrt %542 : vector<25x1xf32>
    %544 = vector.broadcast %543 : vector<25x1xf32> to vector<25x32xf32>
    %545 = arith.mulf %535, %544 : vector<25x32xf32>
    %c6_237 = arith.constant 6 : index
    %c0_238 = arith.constant 0 : index
    %c0_239 = arith.constant 0 : index
    %546 = vector.load %arg17[%c6_237, %c0_238, %c0_239] : memref<14x1x32xf32, #tpu.memory_space<vmem>>, vector<1x1x32xf32>
    %547 = vector.shape_cast %546 : vector<1x1x32xf32> to vector<1x32xf32>
    %548 = vector.broadcast %547 : vector<1x32xf32> to vector<25x32xf32>
    %549 = arith.mulf %545, %548 : vector<25x32xf32>
    %c7_240 = arith.constant 7 : index
    %c0_241 = arith.constant 0 : index
    %c0_242 = arith.constant 0 : index
    %550 = vector.load %arg17[%c7_240, %c0_241, %c0_242] : memref<14x1x32xf32, #tpu.memory_space<vmem>>, vector<1x1x32xf32>
    %551 = vector.shape_cast %550 : vector<1x1x32xf32> to vector<1x32xf32>
    %552 = vector.broadcast %551 : vector<1x32xf32> to vector<25x32xf32>
    %553 = arith.addf %549, %552 : vector<25x32xf32>
    %c1_243 = arith.constant 1 : index
    %c0_244 = arith.constant 0 : index
    %c0_245 = arith.constant 0 : index
    %554 = vector.load %arg13[%c1_243, %c0_244, %c0_245] : memref<2x32x64xf32, #tpu.memory_space<vmem>>, vector<1x32x64xf32>
    %555 = vector.shape_cast %554 : vector<1x32x64xf32> to vector<32x64xf32>
    %cst_246 = arith.constant dense<0.000000e+00> : vector<25x64xf32>
    %556 = tpu.matmul %553, %555, %cst_246 {dimension_numbers = #tpu.dot_dimension_numbers<[1], [0], [0], [1], [0, 0, 1, 1], [], []>} : vector<25x32xf32>, vector<32x64xf32>, vector<25x64xf32> -> vector<25x64xf32>
    %c1_247 = arith.constant 1 : index
    %c0_248 = arith.constant 0 : index
    %c0_249 = arith.constant 0 : index
    %557 = vector.load %arg14[%c1_247, %c0_248, %c0_249] : memref<2x1x64xf32, #tpu.memory_space<vmem>>, vector<1x1x64xf32>
    %558 = vector.shape_cast %557 : vector<1x1x64xf32> to vector<1x64xf32>
    %559 = vector.broadcast %558 : vector<1x64xf32> to vector<25x64xf32>
    %560 = arith.addf %556, %559 : vector<25x64xf32>
    %cst_250 = arith.constant 0.000000e+00 : f32
    %561 = vector.broadcast %cst_250 : f32 to vector<25x64xf32>
    %562 = arith.maximumf %560, %561 : vector<25x64xf32>
    %c1_251 = arith.constant 1 : index
    %c0_252 = arith.constant 0 : index
    %c0_253 = arith.constant 0 : index
    %563 = vector.load %arg15[%c1_251, %c0_252, %c0_253] : memref<2x64x32xf32, #tpu.memory_space<vmem>>, vector<1x64x32xf32>
    %564 = vector.shape_cast %563 : vector<1x64x32xf32> to vector<64x32xf32>
    %cst_254 = arith.constant dense<0.000000e+00> : vector<25x32xf32>
    %565 = tpu.matmul %562, %564, %cst_254 {dimension_numbers = #tpu.dot_dimension_numbers<[1], [0], [0], [1], [0, 0, 1, 1], [], []>} : vector<25x64xf32>, vector<64x32xf32>, vector<25x32xf32> -> vector<25x32xf32>
    %c1_255 = arith.constant 1 : index
    %c0_256 = arith.constant 0 : index
    %c0_257 = arith.constant 0 : index
    %566 = vector.load %arg16[%c1_255, %c0_256, %c0_257] : memref<2x1x32xf32, #tpu.memory_space<vmem>>, vector<1x1x32xf32>
    %567 = vector.shape_cast %566 : vector<1x1x32xf32> to vector<1x32xf32>
    %568 = vector.broadcast %567 : vector<1x32xf32> to vector<25x32xf32>
    %569 = arith.addf %565, %568 : vector<25x32xf32>
    %570 = arith.addf %553, %569 : vector<25x32xf32>
    %cst_258 = arith.constant dense<0.000000e+00> : vector<25xf32>
    %571 = vector.multi_reduction <add>, %570, %cst_258 [1] : vector<25x32xf32> to vector<25xf32>
    %572 = vector.shape_cast %571 : vector<25xf32> to vector<25x1xf32>
    %cst_259 = arith.constant 3.200000e+01 : f32
    %573 = vector.broadcast %cst_259 : f32 to vector<25x1xf32>
    %574 = arith.divf %572, %573 : vector<25x1xf32>
    %575 = vector.broadcast %574 : vector<25x1xf32> to vector<25x32xf32>
    %576 = arith.subf %570, %575 : vector<25x32xf32>
    %577 = arith.mulf %576, %576 : vector<25x32xf32>
    %cst_260 = arith.constant dense<0.000000e+00> : vector<25xf32>
    %578 = vector.multi_reduction <add>, %577, %cst_260 [1] : vector<25x32xf32> to vector<25xf32>
    %579 = vector.shape_cast %578 : vector<25xf32> to vector<25x1xf32>
    %cst_261 = arith.constant 3.200000e+01 : f32
    %580 = vector.broadcast %cst_261 : f32 to vector<25x1xf32>
    %581 = arith.divf %579, %580 : vector<25x1xf32>
    %cst_262 = arith.constant 9.99999974E-6 : f32
    %582 = vector.broadcast %cst_262 : f32 to vector<25x1xf32>
    %583 = arith.addf %581, %582 : vector<25x1xf32>
    %584 = math.rsqrt %583 : vector<25x1xf32>
    %585 = vector.broadcast %584 : vector<25x1xf32> to vector<25x32xf32>
    %586 = arith.mulf %576, %585 : vector<25x32xf32>
    %c8_263 = arith.constant 8 : index
    %c0_264 = arith.constant 0 : index
    %c0_265 = arith.constant 0 : index
    %587 = vector.load %arg17[%c8_263, %c0_264, %c0_265] : memref<14x1x32xf32, #tpu.memory_space<vmem>>, vector<1x1x32xf32>
    %588 = vector.shape_cast %587 : vector<1x1x32xf32> to vector<1x32xf32>
    %589 = vector.broadcast %588 : vector<1x32xf32> to vector<25x32xf32>
    %590 = arith.mulf %586, %589 : vector<25x32xf32>
    %c9 = arith.constant 9 : index
    %c0_266 = arith.constant 0 : index
    %c0_267 = arith.constant 0 : index
    %591 = vector.load %arg17[%c9, %c0_266, %c0_267] : memref<14x1x32xf32, #tpu.memory_space<vmem>>, vector<1x1x32xf32>
    %592 = vector.shape_cast %591 : vector<1x1x32xf32> to vector<1x32xf32>
    %593 = vector.broadcast %592 : vector<1x32xf32> to vector<25x32xf32>
    %594 = arith.addf %590, %593 : vector<25x32xf32>
    %cst_268 = arith.constant dense<0.000000e+00> : vector<25xf32>
    %595 = vector.multi_reduction <add>, %594, %cst_268 [1] : vector<25x32xf32> to vector<25xf32>
    %596 = vector.shape_cast %595 : vector<25xf32> to vector<25x1xf32>
    %cst_269 = arith.constant 3.200000e+01 : f32
    %597 = vector.broadcast %cst_269 : f32 to vector<25x1xf32>
    %598 = arith.divf %596, %597 : vector<25x1xf32>
    %599 = vector.broadcast %598 : vector<25x1xf32> to vector<25x32xf32>
    %600 = arith.subf %594, %599 : vector<25x32xf32>
    %601 = arith.mulf %600, %600 : vector<25x32xf32>
    %cst_270 = arith.constant dense<0.000000e+00> : vector<25xf32>
    %602 = vector.multi_reduction <add>, %601, %cst_270 [1] : vector<25x32xf32> to vector<25xf32>
    %603 = vector.shape_cast %602 : vector<25xf32> to vector<25x1xf32>
    %cst_271 = arith.constant 3.200000e+01 : f32
    %604 = vector.broadcast %cst_271 : f32 to vector<25x1xf32>
    %605 = arith.divf %603, %604 : vector<25x1xf32>
    %cst_272 = arith.constant 9.99999974E-6 : f32
    %606 = vector.broadcast %cst_272 : f32 to vector<25x1xf32>
    %607 = arith.addf %605, %606 : vector<25x1xf32>
    %608 = math.rsqrt %607 : vector<25x1xf32>
    %609 = vector.broadcast %608 : vector<25x1xf32> to vector<25x32xf32>
    %610 = arith.mulf %600, %609 : vector<25x32xf32>
    %c12 = arith.constant 12 : index
    %c0_273 = arith.constant 0 : index
    %c0_274 = arith.constant 0 : index
    %611 = vector.load %arg17[%c12, %c0_273, %c0_274] : memref<14x1x32xf32, #tpu.memory_space<vmem>>, vector<1x1x32xf32>
    %612 = vector.shape_cast %611 : vector<1x1x32xf32> to vector<1x32xf32>
    %613 = vector.broadcast %612 : vector<1x32xf32> to vector<25x32xf32>
    %614 = arith.mulf %610, %613 : vector<25x32xf32>
    %c13 = arith.constant 13 : index
    %c0_275 = arith.constant 0 : index
    %c0_276 = arith.constant 0 : index
    %615 = vector.load %arg17[%c13, %c0_275, %c0_276] : memref<14x1x32xf32, #tpu.memory_space<vmem>>, vector<1x1x32xf32>
    %616 = vector.shape_cast %615 : vector<1x1x32xf32> to vector<1x32xf32>
    %617 = vector.broadcast %616 : vector<1x32xf32> to vector<25x32xf32>
    %618 = arith.addf %614, %617 : vector<25x32xf32>
    %cst_277 = arith.constant dense<0.000000e+00> : vector<32xf32>
    %619 = vector.multi_reduction <add>, %618, %cst_277 [0] : vector<25x32xf32> to vector<32xf32>
    %620 = vector.shape_cast %619 : vector<32xf32> to vector<1x32xf32>
    %cst_278 = arith.constant 2.500000e+01 : f32
    %621 = vector.broadcast %cst_278 : f32 to vector<1x32xf32>
    %622 = arith.divf %620, %621 : vector<1x32xf32>
    %c0_279 = arith.constant 0 : index
    %c0_280 = arith.constant 0 : index
    %623 = vector.load %arg18[%c0_279, %c0_280] : memref<32x80xf32, #tpu.memory_space<vmem>>, vector<32x80xf32>
    %cst_281 = arith.constant dense<0.000000e+00> : vector<1x80xf32>
    %624 = tpu.matmul %622, %623, %cst_281 {dimension_numbers = #tpu.dot_dimension_numbers<[1], [0], [0], [1], [0, 0, 1, 1], [], []>} : vector<1x32xf32>, vector<32x80xf32>, vector<1x80xf32> -> vector<1x80xf32>
    %c0_282 = arith.constant 0 : index
    %c0_283 = arith.constant 0 : index
    %625 = vector.load %arg19[%c0_282, %c0_283] : memref<1x80xf32, #tpu.memory_space<vmem>>, vector<1x80xf32>
    %626 = arith.addf %624, %625 : vector<1x80xf32>
    %cst_284 = arith.constant 0.000000e+00 : f32
    %627 = vector.broadcast %cst_284 : f32 to vector<1x80xf32>
    %628 = arith.maximumf %626, %627 : vector<1x80xf32>
    %c0_285 = arith.constant 0 : index
    %c0_286 = arith.constant 0 : index
    %629 = vector.load %arg20[%c0_285, %c0_286] : memref<80x9xf32, #tpu.memory_space<vmem>>, vector<80x9xf32>
    %cst_287 = arith.constant dense<0.000000e+00> : vector<1x9xf32>
    %630 = tpu.matmul %628, %629, %cst_287 {dimension_numbers = #tpu.dot_dimension_numbers<[1], [0], [0], [1], [0, 0, 1, 1], [], []>} : vector<1x80xf32>, vector<80x9xf32>, vector<1x9xf32> -> vector<1x9xf32>
    %c0_288 = arith.constant 0 : index
    %c0_289 = arith.constant 0 : index
    %631 = vector.load %arg21[%c0_288, %c0_289] : memref<1x9xf32, #tpu.memory_space<vmem>>, vector<1x9xf32>
    %632 = arith.addf %630, %631 : vector<1x9xf32>
    %633 = tpu.iota {dimensions = array<i32: 1>} : vector<1x9xi32>
    %c4_i32 = arith.constant 4 : i32
    %634 = vector.broadcast %c4_i32 : i32 to vector<1x9xi32>
    %635 = arith.cmpi slt, %633, %634 : vector<1x9xi32>
    %636 = arith.negf %632 : vector<1x9xf32>
    %637 = math.exp %636 : vector<1x9xf32>
    %cst_290 = arith.constant 1.000000e+00 : f32
    %638 = vector.broadcast %cst_290 : f32 to vector<1x9xf32>
    %639 = arith.addf %638, %637 : vector<1x9xf32>
    %640 = arith.divf %638, %639 : vector<1x9xf32>
    %641 = arith.select %635, %640, %632 : vector<1x9xi1>, vector<1x9xf32>
    %c0_291 = arith.constant 0 : index
    %c0_292 = arith.constant 0 : index
    %c0_293 = arith.constant 0 : index
    %642 = vector.load %arg22[%c0_291, %c0_292, %c0_293] : memref<1x1x9xf32, #tpu.memory_space<vmem>>, vector<1x1x9xf32>
    %643 = vector.shape_cast %642 : vector<1x1x9xf32> to vector<1x9xf32>
    %644 = vector.shape_cast %641 : vector<1x9xf32> to vector<1x1x9xf32>
    tpu.vector_store %arg22[%c0_291, %c0_292, %c0_293], %644 {strides = array<i32>} : memref<1x1x9xf32, #tpu.memory_space<vmem>>, vector<1x1x9xf32>,
    return
  }
  func.func @transform_0(%arg0: i32) -> (i32, i32, i32) {
    %c0_i32 = arith.constant 0 : i32
    %c0_i32_0 = arith.constant 0 : i32
    %c0_i32_1 = arith.constant 0 : i32
    return %arg0, %c0_i32, %c0_i32_0 : i32, i32, i32
  }
  func.func @transform_1(%arg0: i32) -> (i32, i32, i32) {
    %c0_i32 = arith.constant 0 : i32
    %c0_i32_0 = arith.constant 0 : i32
    %c0_i32_1 = arith.constant 0 : i32
    %c0_i32_2 = arith.constant 0 : i32
    return %c0_i32, %c0_i32_0, %c0_i32_1 : i32, i32, i32
  }
  func.func @transform_2(%arg0: i32) -> (i32, i32) {
    %c0_i32 = arith.constant 0 : i32
    %c0_i32_0 = arith.constant 0 : i32
    %c0_i32_1 = arith.constant 0 : i32
    return %c0_i32, %c0_i32_0 : i32, i32
  }
  func.func @transform_3(%arg0: i32) -> (i32, i32) {
    %c0_i32 = arith.constant 0 : i32
    %c0_i32_0 = arith.constant 0 : i32
    %c0_i32_1 = arith.constant 0 : i32
    return %c0_i32, %c0_i32_0 : i32, i32
  }
  func.func @transform_4(%arg0: i32) -> (i32, i32) {
    %c0_i32 = arith.constant 0 : i32
    %c0_i32_0 = arith.constant 0 : i32
    %c0_i32_1 = arith.constant 0 : i32
    return %c0_i32, %c0_i32_0 : i32, i32
  }
  func.func @transform_5(%arg0: i32) -> (i32, i32) {
    %c0_i32 = arith.constant 0 : i32
    %c0_i32_0 = arith.constant 0 : i32
    %c0_i32_1 = arith.constant 0 : i32
    return %c0_i32, %c0_i32_0 : i32, i32
  }
  func.func @transform_6(%arg0: i32) -> (i32, i32) {
    %c0_i32 = arith.constant 0 : i32
    %c0_i32_0 = arith.constant 0 : i32
    %c0_i32_1 = arith.constant 0 : i32
    return %c0_i32, %c0_i32_0 : i32, i32
  }
  func.func @transform_7(%arg0: i32) -> (i32, i32) {
    %c0_i32 = arith.constant 0 : i32
    %c0_i32_0 = arith.constant 0 : i32
    %c0_i32_1 = arith.constant 0 : i32
    return %c0_i32, %c0_i32_0 : i32, i32
  }
  func.func @transform_8(%arg0: i32) -> (i32, i32) {
    %c0_i32 = arith.constant 0 : i32
    %c0_i32_0 = arith.constant 0 : i32
    %c0_i32_1 = arith.constant 0 : i32
    return %c0_i32, %c0_i32_0 : i32, i32
  }
  func.func @transform_9(%arg0: i32) -> (i32, i32) {
    %c0_i32 = arith.constant 0 : i32
    %c0_i32_0 = arith.constant 0 : i32
    %c0_i32_1 = arith.constant 0 : i32
    return %c0_i32, %c0_i32_0 : i32, i32
  }
  func.func @transform_10(%arg0: i32) -> (i32, i32, i32) {
    %c0_i32 = arith.constant 0 : i32
    %c0_i32_0 = arith.constant 0 : i32
    %c0_i32_1 = arith.constant 0 : i32
    %c0_i32_2 = arith.constant 0 : i32
    return %c0_i32, %c0_i32_0, %c0_i32_1 : i32, i32, i32
  }
  func.func @transform_11(%arg0: i32) -> (i32, i32, i32) {
    %c0_i32 = arith.constant 0 : i32
    %c0_i32_0 = arith.constant 0 : i32
    %c0_i32_1 = arith.constant 0 : i32
    %c0_i32_2 = arith.constant 0 : i32
    return %c0_i32, %c0_i32_0, %c0_i32_1 : i32, i32, i32
  }
  func.func @transform_12(%arg0: i32) -> (i32, i32, i32) {
    %c0_i32 = arith.constant 0 : i32
    %c0_i32_0 = arith.constant 0 : i32
    %c0_i32_1 = arith.constant 0 : i32
    %c0_i32_2 = arith.constant 0 : i32
    return %c0_i32, %c0_i32_0, %c0_i32_1 : i32, i32, i32
  }
  func.func @transform_13(%arg0: i32) -> (i32, i32, i32) {
    %c0_i32 = arith.constant 0 : i32
    %c0_i32_0 = arith.constant 0 : i32
    %c0_i32_1 = arith.constant 0 : i32
    %c0_i32_2 = arith.constant 0 : i32
    return %c0_i32, %c0_i32_0, %c0_i32_1 : i32, i32, i32
  }
  func.func @transform_14(%arg0: i32) -> (i32, i32, i32) {
    %c0_i32 = arith.constant 0 : i32
    %c0_i32_0 = arith.constant 0 : i32
    %c0_i32_1 = arith.constant 0 : i32
    %c0_i32_2 = arith.constant 0 : i32
    return %c0_i32, %c0_i32_0, %c0_i32_1 : i32, i32, i32
  }
  func.func @transform_15(%arg0: i32) -> (i32, i32, i32) {
    %c0_i32 = arith.constant 0 : i32
    %c0_i32_0 = arith.constant 0 : i32
    %c0_i32_1 = arith.constant 0 : i32
    %c0_i32_2 = arith.constant 0 : i32
    return %c0_i32, %c0_i32_0, %c0_i32_1 : i32, i32, i32
  }
  func.func @transform_16(%arg0: i32) -> (i32, i32, i32) {
    %c0_i32 = arith.constant 0 : i32
    %c0_i32_0 = arith.constant 0 : i32
    %c0_i32_1 = arith.constant 0 : i32
    %c0_i32_2 = arith.constant 0 : i32
    return %c0_i32, %c0_i32_0, %c0_i32_1 : i32, i32, i32
  }
  func.func @transform_17(%arg0: i32) -> (i32, i32) {
    %c0_i32 = arith.constant 0 : i32
    %c0_i32_0 = arith.constant 0 : i32
    %c0_i32_1 = arith.constant 0 : i32
    return %c0_i32, %c0_i32_0 : i32, i32
  }
  func.func @transform_18(%arg0: i32) -> (i32, i32) {
    %c0_i32 = arith.constant 0 : i32
    %c0_i32_0 = arith.constant 0 : i32
    %c0_i32_1 = arith.constant 0 : i32
    return %c0_i32, %c0_i32_0 : i32, i32
  }
  func.func @transform_19(%arg0: i32) -> (i32, i32) {
    %c0_i32 = arith.constant 0 : i32
    %c0_i32_0 = arith.constant 0 : i32
    %c0_i32_1 = arith.constant 0 : i32
    return %c0_i32, %c0_i32_0 : i32, i32
  }
  func.func @transform_20(%arg0: i32) -> (i32, i32) {
    %c0_i32 = arith.constant 0 : i32
    %c0_i32_0 = arith.constant 0 : i32
    %c0_i32_1 = arith.constant 0 : i32
    return %c0_i32, %c0_i32_0 : i32, i32
  }
  func.func @transform_21(%arg0: i32) -> (i32, i32, i32) {
    %c0_i32 = arith.constant 0 : i32
    %c0_i32_0 = arith.constant 0 : i32
    %c0_i32_1 = arith.constant 0 : i32
    return %arg0, %c0_i32, %c0_i32_0 : i32, i32, i32
  }
}

</mosaic_0001>

<llo_original>
// kernel: forward.1
$region0: #{forward.1}
  #allocation0 [shape = 'u32[]', space=smem, size = 0x4, offset = 0x4, fixed_abs, tag = 'smem constant byte address 0x4 - core index']
  #allocation1 [shape = 'u32[144,128]{1,0:T(1,128)}', space=vmem, size = 0x12000, scoped, tag = 'internal scratch']
  %s0 = inlined_call_operand.vmem [shape: f32[2,8,128], index: 0, kind: input, shape index: {}]
  %s1 = inlined_call_operand.vmem [shape: f32[9,1,128], index: 1, kind: input, shape index: {}]
  %s2 = inlined_call_operand.vmem [shape: f32[25,128], index: 2, kind: input, shape index: {}]
  %s3 = inlined_call_operand.vmem [shape: f32[25,64], index: 3, kind: input, shape index: {}]
  %s4 = inlined_call_operand.vmem [shape: f32[64,72], index: 4, kind: input, shape index: {}]
  %s5 = inlined_call_operand.vmem [shape: f32[64,1], index: 5, kind: input, shape index: {}]
  %s6 = inlined_call_operand.vmem [shape: f32[128,576], index: 6, kind: input, shape index: {}]
  %s7 = inlined_call_operand.vmem [shape: f32[128,1], index: 7, kind: input, shape index: {}]
  %s8 = inlined_call_operand.vmem [shape: f32[128,64], index: 8, kind: input, shape index: {}]
  %s9 = inlined_call_operand.vmem [shape: f32[1,64], index: 9, kind: input, shape index: {}]
  %s10 = inlined_call_operand.vmem [shape: f32[3,32,128], index: 10, kind: input, shape index: {}]
  %s11 = inlined_call_operand.vmem [shape: f32[3,1,128], index: 11, kind: input, shape index: {}]
  %s12 = inlined_call_operand.vmem [shape: f32[2,32,64], index: 12, kind: input, shape index: {}]
  %s13 = inlined_call_operand.vmem [shape: f32[2,1,64], index: 13, kind: input, shape index: {}]
  %s14 = inlined_call_operand.vmem [shape: f32[2,64,32], index: 14, kind: input, shape index: {}]
  %s15 = inlined_call_operand.vmem [shape: f32[2,1,32], index: 15, kind: input, shape index: {}]
  %s16 = inlined_call_operand.vmem [shape: f32[14,1,32], index: 16, kind: input, shape index: {}]
  %s17 = inlined_call_operand.vmem [shape: f32[32,80], index: 17, kind: input, shape index: {}]
  %s18 = inlined_call_operand.vmem [shape: f32[1,80], index: 18, kind: input, shape index: {}]
  %s19 = inlined_call_operand.vmem [shape: f32[80,9], index: 19, kind: input, shape index: {}]
  %s20 = inlined_call_operand.vmem [shape: f32[1,9], index: 20, kind: input, shape index: {}]
  %s21 = inlined_call_operand.vmem [shape: f32[2,1,9], index: 21, kind: output, shape index: {}]
  %s22 = sld [smem:[#allocation0]]
  $region117: #{forward.1} parent=0
    _
  %s24 = ssub.s32 1, %s22
  %s25 = scalar_select 0, %s24, %s22
  loop: start=0, step=1, limit=4
  $region2: #{forward.1} parent=0 // loop_pre_header
    _
  $region3: #{forward.1} parent=0 // loop_header
    %s27 = sphi 0, %s31
    %p28 = scmp.ge.s32.totalorder %s27, 4
    %s37 = sphi 0, %s39
    %s40 = sphi 0, %s37
    %s41 = sphi 0, %s40
    %s57 = sphi 0, %s41
    %s61 = sphi 0, %s61
    %s63 = sphi 0, %s61
    %s64 = sphi 0, %s63
    %s78 = sphi 0, %s64
    %s82 = sphi 0, %s82
    %s84 = sphi 0, %s82
    %s85 = sphi 0, %s84
    %s99 = sphi 0, %s85
    %s103 = sphi 0, %s103
    %s105 = sphi 0, %s103
    %s106 = sphi 0, %s105
    %s120 = sphi 0, %s106
    %s124 = sphi 0, %s124
    %s126 = sphi 0, %s124
    %s127 = sphi 0, %s126
    %s141 = sphi 0, %s127
    %s145 = sphi 0, %s145
    %s147 = sphi 0, %s145
    %s148 = sphi 0, %s147
    %s162 = sphi 0, %s148
    %s166 = sphi 0, %s166
    %s168 = sphi 0, %s166
    %s169 = sphi 0, %s168
    %s183 = sphi 0, %s169
    %s187 = sphi 0, %s187
    %s189 = sphi 0, %s187
    %s190 = sphi 0, %s189
    %s204 = sphi 0, %s190
    %s208 = sphi 0, %s208
    %s210 = sphi 0, %s208
    %s211 = sphi 0, %s210
    %s225 = sphi 0, %s211
    %s229 = sphi 0, %s229
    %s231 = sphi 0, %s229
    %s232 = sphi 0, %s231
    %s246 = sphi 0, %s232
    %s250 = sphi 0, %s250
    %s252 = sphi 0, %s250
    %s253 = sphi 0, %s252
    %s267 = sphi 0, %s253
    %s271 = sphi 0, %s271
    %s273 = sphi 0, %s271
    %s274 = sphi 0, %s273
    %s288 = sphi 0, %s274
    %s292 = sphi 0, %s292
    %s294 = sphi 0, %s292
    %s295 = sphi 0, %s294
    %s309 = sphi 0, %s295
    %s313 = sphi 0, %s313
    %s315 = sphi 0, %s313
    %s316 = sphi 0, %s315
    %s330 = sphi 0, %s316
    %s334 = sphi 0, %s334
    %s336 = sphi 0, %s334
    %s337 = sphi 0, %s336
    %s351 = sphi 0, %s337
    %s355 = sphi 0, %s355
    %s357 = sphi 0, %s355
    %s358 = sphi 0, %s357
    %s372 = sphi 0, %s358
    %s376 = sphi 0, %s376
    %s378 = sphi 0, %s376
    %s379 = sphi 0, %s378
    %s393 = sphi 0, %s379
    %s397 = sphi 0, %s397
    %s399 = sphi 0, %s397
    %s400 = sphi 0, %s399
    %s414 = sphi 0, %s400
    %s418 = sphi 0, %s418
    %s420 = sphi 0, %s418
    %s421 = sphi 0, %s420
    %s435 = sphi 0, %s421
    %s439 = sphi 0, %s439
    %s441 = sphi 0, %s439
    %s442 = sphi 0, %s441
    %s456 = sphi 0, %s442
    %s460 = sphi 0, %s460
    %s462 = sphi 0, %s460
    %s463 = sphi 0, %s462
    %s477 = sphi 0, %s463
    %s483 = sphi 0, %s485
    %s486 = sphi 0, %s483
    %s487 = sphi 0, %s486
    %s503 = sphi 0, %s487
  $region4: #{forward.1} parent=0 // loop_header_branch
    %30 = sbr.rel (%p28) target = $region8
  $region5: #{forward.1} parent=0 // loop_body
    %s32 = ssub.s32 %s27, 1
    %s33 = ssub.s32 %s27, 2
    %s34 = sadd.s32 %s27, 1
    %s35 = ssub.s32 %s27, %s34
    %p36 = scmp.eq.s32.totalorder %s35, 0
    %s38 = sadd.s32 %s37, 1
    %s39 = scalar_select %p36, %s37, %s38
    %p42 = pneg %p36
    %p43 = scmp.eq.s32.totalorder %s27, 1
    %p44 = por %p42, %p43
    %p45 = scmp.ne.s32.totalorder %s37, %s40
    %p46 = scmp.eq.s32.totalorder %s27, 0
    %p47 = por %p45, %p46
    %p48 = scmp.ne.s32.totalorder %s37, %s40
    %p49 = scmp.eq.s32.totalorder %s32, 1
    %p50 = por %p48, %p49
    %p51 = scmp.ne.s32.totalorder %s40, %s41
    %p52 = scmp.eq.s32.totalorder %s32, 0
    %p53 = por %p51, %p52
    %p54 = scmp.ne.s32.totalorder %s40, %s41
    %p55 = scmp.eq.s32.totalorder %s33, 1
    %p56 = por %p54, %p55
    %p58 = scmp.ne.s32.totalorder %s41, %s57
    %p59 = scmp.eq.s32.totalorder %s33, 0
    %p60 = por %p58, %p59
    %s62 = sadd.s32 %s61, 1
    %p65 = scmp.eq.s32.totalorder %s27, 1
    %p66 = scmp.ne.s32.totalorder %s61, %s63
    %p67 = scmp.eq.s32.totalorder %s27, 0
    %p68 = por %p66, %p67
    %p69 = scmp.ne.s32.totalorder %s61, %s63
    %p70 = scmp.eq.s32.totalorder %s32, 1
    %p71 = por %p69, %p70
    %p72 = scmp.ne.s32.totalorder %s63, %s64
    %p73 = scmp.eq.s32.totalorder %s32, 0
    %p74 = por %p72, %p73
    %p75 = scmp.ne.s32.totalorder %s63, %s64
    %p76 = scmp.eq.s32.totalorder %s33, 1
    %p77 = por %p75, %p76
    %p79 = scmp.ne.s32.totalorder %s64, %s78
    %p80 = scmp.eq.s32.totalorder %s33, 0
    %p81 = por %p79, %p80
    %s83 = sadd.s32 %s82, 1
    %p86 = scmp.eq.s32.totalorder %s27, 1
    %p87 = scmp.ne.s32.totalorder %s82, %s84
    %p88 = scmp.eq.s32.totalorder %s27, 0
    %p89 = por %p87, %p88
    %p90 = scmp.ne.s32.totalorder %s82, %s84
    %p91 = scmp.eq.s32.totalorder %s32, 1
    %p92 = por %p90, %p91
    %p93 = scmp.ne.s32.totalorder %s84, %s85
    %p94 = scmp.eq.s32.totalorder %s32, 0
    %p95 = por %p93, %p94
    %p96 = scmp.ne.s32.totalorder %s84, %s85
    %p97 = scmp.eq.s32.totalorder %s33, 1
    %p98 = por %p96, %p97
    %p100 = scmp.ne.s32.totalorder %s85, %s99
    %p101 = scmp.eq.s32.totalorder %s33, 0
    %p102 = por %p100, %p101
    %s104 = sadd.s32 %s103, 1
    %p107 = scmp.eq.s32.totalorder %s27, 1
    %p108 = scmp.ne.s32.totalorder %s103, %s105
    %p109 = scmp.eq.s32.totalorder %s27, 0
    %p110 = por %p108, %p109
    %p111 = scmp.ne.s32.totalorder %s103, %s105
    %p112 = scmp.eq.s32.totalorder %s32, 1
    %p113 = por %p111, %p112
    %p114 = scmp.ne.s32.totalorder %s105, %s106
    %p115 = scmp.eq.s32.totalorder %s32, 0
    %p116 = por %p114, %p115
    %p117 = scmp.ne.s32.totalorder %s105, %s106
    %p118 = scmp.eq.s32.totalorder %s33, 1
    %p119 = por %p117, %p118
    %p121 = scmp.ne.s32.totalorder %s106, %s120
    %p122 = scmp.eq.s32.totalorder %s33, 0
    %p123 = por %p121, %p122
    %s125 = sadd.s32 %s124, 1
    %p128 = scmp.eq.s32.totalorder %s27, 1
    %p129 = scmp.ne.s32.totalorder %s124, %s126
    %p130 = scmp.eq.s32.totalorder %s27, 0
    %p131 = por %p129, %p130
    %p132 = scmp.ne.s32.totalorder %s124, %s126
    %p133 = scmp.eq.s32.totalorder %s32, 1
    %p134 = por %p132, %p133
    %p135 = scmp.ne.s32.totalorder %s126, %s127
    %p136 = scmp.eq.s32.totalorder %s32, 0
    %p137 = por %p135, %p136
    %p138 = scmp.ne.s32.totalorder %s126, %s127
    %p139 = scmp.eq.s32.totalorder %s33, 1
    %p140 = por %p138, %p139
    %p142 = scmp.ne.s32.totalorder %s127, %s141
    %p143 = scmp.eq.s32.totalorder %s33, 0
    %p144 = por %p142, %p143
    %s146 = sadd.s32 %s145, 1
    %p149 = scmp.eq.s32.totalorder %s27, 1
    %p150 = scmp.ne.s32.totalorder %s145, %s147
    %p151 = scmp.eq.s32.totalorder %s27, 0
    %p152 = por %p150, %p151
    %p153 = scmp.ne.s32.totalorder %s145, %s147
    %p154 = scmp.eq.s32.totalorder %s32, 1
    %p155 = por %p153, %p154
    %p156 = scmp.ne.s32.totalorder %s147, %s148
    %p157 = scmp.eq.s32.totalorder %s32, 0
    %p158 = por %p156, %p157
    %p159 = scmp.ne.s32.totalorder %s147, %s148
    %p160 = scmp.eq.s32.totalorder %s33, 1
    %p161 = por %p159, %p160
    %p163 = scmp.ne.s32.totalorder %s148, %s162
    %p164 = scmp.eq.s32.totalorder %s33, 0
    %p165 = por %p163, %p164
    %s167 = sadd.s32 %s166, 1
    %p170 = scmp.eq.s32.totalorder %s27, 1
    %p171 = scmp.ne.s32.totalorder %s166, %s168
    %p172 = scmp.eq.s32.totalorder %s27, 0
    %p173 = por %p171, %p172
    %p174 = scmp.ne.s32.totalorder %s166, %s168
    %p175 = scmp.eq.s32.totalorder %s32, 1
    %p176 = por %p174, %p175
    %p177 = scmp.ne.s32.totalorder %s168, %s169
    %p178 = scmp.eq.s32.totalorder %s32, 0
    %p179 = por %p177, %p178
    %p180 = scmp.ne.s32.totalorder %s168, %s169
    %p181 = scmp.eq.s32.totalorder %s33, 1
    %p182 = por %p180, %p181
    %p184 = scmp.ne.s32.totalorder %s169, %s183
    %p185 = scmp.eq.s32.totalorder %s33, 0
    %p186 = por %p184, %p185
    %s188 = sadd.s32 %s187, 1
    %p191 = scmp.eq.s32.totalorder %s27, 1
    %p192 = scmp.ne.s32.totalorder %s187, %s189
    %p193 = scmp.eq.s32.totalorder %s27, 0
    %p194 = por %p192, %p193
    %p195 = scmp.ne.s32.totalorder %s187, %s189
    %p196 = scmp.eq.s32.totalorder %s32, 1
    %p197 = por %p195, %p196
    %p198 = scmp.ne.s32.totalorder %s189, %s190
    %p199 = scmp.eq.s32.totalorder %s32, 0
    %p200 = por %p198, %p199
    %p201 = scmp.ne.s32.totalorder %s189, %s190
    %p202 = scmp.eq.s32.totalorder %s33, 1
    %p203 = por %p201, %p202
    %p205 = scmp.ne.s32.totalorder %s190, %s204
    %p206 = scmp.eq.s32.totalorder %s33, 0
    %p207 = por %p205, %p206
    %s209 = sadd.s32 %s208, 1
    %p212 = scmp.eq.s32.totalorder %s27, 1
    %p213 = scmp.ne.s32.totalorder %s208, %s210
    %p214 = scmp.eq.s32.totalorder %s27, 0
    %p215 = por %p213, %p214
    %p216 = scmp.ne.s32.totalorder %s208, %s210
    %p217 = scmp.eq.s32.totalorder %s32, 1
    %p218 = por %p216, %p217
    %p219 = scmp.ne.s32.totalorder %s210, %s211
    %p220 = scmp.eq.s32.totalorder %s32, 0
    %p221 = por %p219, %p220
    %p222 = scmp.ne.s32.totalorder %s210, %s211
    %p223 = scmp.eq.s32.totalorder %s33, 1
    %p224 = por %p222, %p223
    %p226 = scmp.ne.s32.totalorder %s211, %s225
    %p227 = scmp.eq.s32.totalorder %s33, 0
    %p228 = por %p226, %p227
    %s230 = sadd.s32 %s229, 1
    %p233 = scmp.eq.s32.totalorder %s27, 1
    %p234 = scmp.ne.s32.totalorder %s229, %s231
    %p235 = scmp.eq.s32.totalorder %s27, 0
    %p236 = por %p234, %p235
    %p237 = scmp.ne.s32.totalorder %s229, %s231
    %p238 = scmp.eq.s32.totalorder %s32, 1
    %p239 = por %p237, %p238
    %p240 = scmp.ne.s32.totalorder %s231, %s232
    %p241 = scmp.eq.s32.totalorder %s32, 0
    %p242 = por %p240, %p241
    %p243 = scmp.ne.s32.totalorder %s231, %s232
    %p244 = scmp.eq.s32.totalorder %s33, 1
    %p245 = por %p243, %p244
    %p247 = scmp.ne.s32.totalorder %s232, %s246
    %p248 = scmp.eq.s32.totalorder %s33, 0
    %p249 = por %p247, %p248
    %s251 = sadd.s32 %s250, 1
    %p254 = scmp.eq.s32.totalorder %s27, 1
    %p255 = scmp.ne.s32.totalorder %s250, %s252
    %p256 = scmp.eq.s32.totalorder %s27, 0
    %p257 = por %p255, %p256
    %p258 = scmp.ne.s32.totalorder %s250, %s252
    %p259 = scmp.eq.s32.totalorder %s32, 1
    %p260 = por %p258, %p259
    %p261 = scmp.ne.s32.totalorder %s252, %s253
    %p262 = scmp.eq.s32.totalorder %s32, 0
    %p263 = por %p261, %p262
    %p264 = scmp.ne.s32.totalorder %s252, %s253
    %p265 = scmp.eq.s32.totalorder %s33, 1
    %p266 = por %p264, %p265
    %p268 = scmp.ne.s32.totalorder %s253, %s267
    %p269 = scmp.eq.s32.totalorder %s33, 0
    %p270 = por %p268, %p269
    %s272 = sadd.s32 %s271, 1
    %p275 = scmp.eq.s32.totalorder %s27, 1
    %p276 = scmp.ne.s32.totalorder %s271, %s273
    %p277 = scmp.eq.s32.totalorder %s27, 0
    %p278 = por %p276, %p277
    %p279 = scmp.ne.s32.totalorder %s271, %s273
    %p280 = scmp.eq.s32.totalorder %s32, 1
    %p281 = por %p279, %p280
    %p282 = scmp.ne.s32.totalorder %s273, %s274
    %p283 = scmp.eq.s32.totalorder %s32, 0
    %p284 = por %p282, %p283
    %p285 = scmp.ne.s32.totalorder %s273, %s274
    %p286 = scmp.eq.s32.totalorder %s33, 1
    %p287 = por %p285, %p286
    %p289 = scmp.ne.s32.totalorder %s274, %s288
    %p290 = scmp.eq.s32.totalorder %s33, 0
    %p291 = por %p289, %p290
    %s293 = sadd.s32 %s292, 1
    %p296 = scmp.eq.s32.totalorder %s27, 1
    %p297 = scmp.ne.s32.totalorder %s292, %s294
    %p298 = scmp.eq.s32.totalorder %s27, 0
    %p299 = por %p297, %p298
    %p300 = scmp.ne.s32.totalorder %s292, %s294
    %p301 = scmp.eq.s32.totalorder %s32, 1
    %p302 = por %p300, %p301
    %p303 = scmp.ne.s32.totalorder %s294, %s295
    %p304 = scmp.eq.s32.totalorder %s32, 0
    %p305 = por %p303, %p304
    %p306 = scmp.ne.s32.totalorder %s294, %s295
    %p307 = scmp.eq.s32.totalorder %s33, 1
    %p308 = por %p306, %p307
    %p310 = scmp.ne.s32.totalorder %s295, %s309
    %p311 = scmp.eq.s32.totalorder %s33, 0
    %p312 = por %p310, %p311
    %s314 = sadd.s32 %s313, 1
    %p317 = scmp.eq.s32.totalorder %s27, 1
    %p318 = scmp.ne.s32.totalorder %s313, %s315
    %p319 = scmp.eq.s32.totalorder %s27, 0
    %p320 = por %p318, %p319
    %p321 = scmp.ne.s32.totalorder %s313, %s315
    %p322 = scmp.eq.s32.totalorder %s32, 1
    %p323 = por %p321, %p322
    %p324 = scmp.ne.s32.totalorder %s315, %s316
    %p325 = scmp.eq.s32.totalorder %s32, 0
    %p326 = por %p324, %p325
    %p327 = scmp.ne.s32.totalorder %s315, %s316
    %p328 = scmp.eq.s32.totalorder %s33, 1
    %p329 = por %p327, %p328
    %p331 = scmp.ne.s32.totalorder %s316, %s330
    %p332 = scmp.eq.s32.totalorder %s33, 0
    %p333 = por %p331, %p332
    %s335 = sadd.s32 %s334, 1
    %p338 = scmp.eq.s32.totalorder %s27, 1
    %p339 = scmp.ne.s32.totalorder %s334, %s336
    %p340 = scmp.eq.s32.totalorder %s27, 0
    %p341 = por %p339, %p340
    %p342 = scmp.ne.s32.totalorder %s334, %s336
    %p343 = scmp.eq.s32.totalorder %s32, 1
    %p344 = por %p342, %p343
    %p345 = scmp.ne.s32.totalorder %s336, %s337
    %p346 = scmp.eq.s32.totalorder %s32, 0
    %p347 = por %p345, %p346
    %p348 = scmp.ne.s32.totalorder %s336, %s337
    %p349 = scmp.eq.s32.totalorder %s33, 1
    %p350 = por %p348, %p349
    %p352 = scmp.ne.s32.totalorder %s337, %s351
    %p353 = scmp.eq.s32.totalorder %s33, 0
    %p354 = por %p352, %p353
    %s356 = sadd.s32 %s355, 1
    %p359 = scmp.eq.s32.totalorder %s27, 1
    %p360 = scmp.ne.s32.totalorder %s355, %s357
    %p361 = scmp.eq.s32.totalorder %s27, 0
    %p362 = por %p360, %p361
    %p363 = scmp.ne.s32.totalorder %s355, %s357
    %p364 = scmp.eq.s32.totalorder %s32, 1
    %p365 = por %p363, %p364
    %p366 = scmp.ne.s32.totalorder %s357, %s358
    %p367 = scmp.eq.s32.totalorder %s32, 0
    %p368 = por %p366, %p367
    %p369 = scmp.ne.s32.totalorder %s357, %s358
    %p370 = scmp.eq.s32.totalorder %s33, 1
    %p371 = por %p369, %p370
    %p373 = scmp.ne.s32.totalorder %s358, %s372
    %p374 = scmp.eq.s32.totalorder %s33, 0
    %p375 = por %p373, %p374
    %s377 = sadd.s32 %s376, 1
    %p380 = scmp.eq.s32.totalorder %s27, 1
    %p381 = scmp.ne.s32.totalorder %s376, %s378
    %p382 = scmp.eq.s32.totalorder %s27, 0
    %p383 = por %p381, %p382
    %p384 = scmp.ne.s32.totalorder %s376, %s378
    %p385 = scmp.eq.s32.totalorder %s32, 1
    %p386 = por %p384, %p385
    %p387 = scmp.ne.s32.totalorder %s378, %s379
    %p388 = scmp.eq.s32.totalorder %s32, 0
    %p389 = por %p387, %p388
    %p390 = scmp.ne.s32.totalorder %s378, %s379
    %p391 = scmp.eq.s32.totalorder %s33, 1
    %p392 = por %p390, %p391
    %p394 = scmp.ne.s32.totalorder %s379, %s393
    %p395 = scmp.eq.s32.totalorder %s33, 0
    %p396 = por %p394, %p395
    %s398 = sadd.s32 %s397, 1
    %p401 = scmp.eq.s32.totalorder %s27, 1
    %p402 = scmp.ne.s32.totalorder %s397, %s399
    %p403 = scmp.eq.s32.totalorder %s27, 0
    %p404 = por %p402, %p403
    %p405 = scmp.ne.s32.totalorder %s397, %s399
    %p406 = scmp.eq.s32.totalorder %s32, 1
    %p407 = por %p405, %p406
    %p408 = scmp.ne.s32.totalorder %s399, %s400
    %p409 = scmp.eq.s32.totalorder %s32, 0
    %p410 = por %p408, %p409
    %p411 = scmp.ne.s32.totalorder %s399, %s400
    %p412 = scmp.eq.s32.totalorder %s33, 1
    %p413 = por %p411, %p412
    %p415 = scmp.ne.s32.totalorder %s400, %s414
    %p416 = scmp.eq.s32.totalorder %s33, 0
    %p417 = por %p415, %p416
    %s419 = sadd.s32 %s418, 1
    %p422 = scmp.eq.s32.totalorder %s27, 1
    %p423 = scmp.ne.s32.totalorder %s418, %s420
    %p424 = scmp.eq.s32.totalorder %s27, 0
    %p425 = por %p423, %p424
    %p426 = scmp.ne.s32.totalorder %s418, %s420
    %p427 = scmp.eq.s32.totalorder %s32, 1
    %p428 = por %p426, %p427
    %p429 = scmp.ne.s32.totalorder %s420, %s421
    %p430 = scmp.eq.s32.totalorder %s32, 0
    %p431 = por %p429, %p430
    %p432 = scmp.ne.s32.totalorder %s420, %s421
    %p433 = scmp.eq.s32.totalorder %s33, 1
    %p434 = por %p432, %p433
    %p436 = scmp.ne.s32.totalorder %s421, %s435
    %p437 = scmp.eq.s32.totalorder %s33, 0
    %p438 = por %p436, %p437
    %s440 = sadd.s32 %s439, 1
    %p443 = scmp.eq.s32.totalorder %s27, 1
    %p444 = scmp.ne.s32.totalorder %s439, %s441
    %p445 = scmp.eq.s32.totalorder %s27, 0
    %p446 = por %p444, %p445
    %p447 = scmp.ne.s32.totalorder %s439, %s441
    %p448 = scmp.eq.s32.totalorder %s32, 1
    %p449 = por %p447, %p448
    %p450 = scmp.ne.s32.totalorder %s441, %s442
    %p451 = scmp.eq.s32.totalorder %s32, 0
    %p452 = por %p450, %p451
    %p453 = scmp.ne.s32.totalorder %s441, %s442
    %p454 = scmp.eq.s32.totalorder %s33, 1
    %p455 = por %p453, %p454
    %p457 = scmp.ne.s32.totalorder %s442, %s456
    %p458 = scmp.eq.s32.totalorder %s33, 0
    %p459 = por %p457, %p458
    %s461 = sadd.s32 %s460, 1
    %p464 = scmp.eq.s32.totalorder %s27, 1
    %p465 = scmp.ne.s32.totalorder %s460, %s462
    %p466 = scmp.eq.s32.totalorder %s27, 0
    %p467 = por %p465, %p466
    %p468 = scmp.ne.s32.totalorder %s460, %s462
    %p469 = scmp.eq.s32.totalorder %s32, 1
    %p470 = por %p468, %p469
    %p471 = scmp.ne.s32.totalorder %s462, %s463
    %p472 = scmp.eq.s32.totalorder %s32, 0
    %p473 = por %p471, %p472
    %p474 = scmp.ne.s32.totalorder %s462, %s463
    %p475 = scmp.eq.s32.totalorder %s33, 1
    %p476 = por %p474, %p475
    %p478 = scmp.ne.s32.totalorder %s463, %s477
    %p479 = scmp.eq.s32.totalorder %s33, 0
    %p480 = por %p478, %p479
    %s481 = ssub.s32 %s27, %s34
    %p482 = scmp.eq.s32.totalorder %s481, 0
    %s484 = sadd.s32 %s483, 1
    %s485 = scalar_select %p482, %s483, %s484
    %p488 = pneg %p482
    %p489 = scmp.eq.s32.totalorder %s27, 1
    %p490 = por %p488, %p489
    %p491 = scmp.ne.s32.totalorder %s483, %s486
    %p492 = scmp.eq.s32.totalorder %s27, 0
    %p493 = por %p491, %p492
    %p494 = scmp.ne.s32.totalorder %s483, %s486
    %p495 = scmp.eq.s32.totalorder %s32, 1
    %p496 = por %p494, %p495
    %p497 = scmp.ne.s32.totalorder %s486, %s487
    %p498 = scmp.eq.s32.totalorder %s32, 0
    %p499 = por %p497, %p498
    %p500 = scmp.ne.s32.totalorder %s486, %s487
    %p501 = scmp.eq.s32.totalorder %s33, 1
    %p502 = por %p500, %p501
    %p504 = scmp.ne.s32.totalorder %s487, %s503
    %p505 = scmp.eq.s32.totalorder %s33, 0
    %p506 = por %p504, %p505
    %p507 = scmp.le.s32.totalorder 1, %s27
    %p508 = scmp.lt.s32.totalorder %s27, 3
    %p509 = pnand %p507, %p508
    %p510 = pneg %p509
    // Predicated region
    $region9: #{forward.1} parent=5 // pred_check
      _
    $region10: #{forward.1} parent=5 // pred_check_branch
      %512 = sbr.rel (%p509) target = $region12
    $region11: #{forward.1} parent=5 // pred_region
      %s513 = ssub.s32 %s27, 1
      // Predicated region
      $region13: #{forward.1} parent=11 // pred_check
        %p514 = pneg %p74
      $region14: #{forward.1} parent=11 // pred_check_branch
        %516 = sbr.rel (%p514) target = $region16
      $region15: #{forward.1} parent=11 // pred_region
        _
      $region16: #{forward.1} parent=11 // pred_fallthru
        _
      // Predicated region
      $region17: #{forward.1} parent=11 // pred_check
        %p517 = pneg %p95
      $region18: #{forward.1} parent=11 // pred_check_branch
        %519 = sbr.rel (%p517) target = $region20
      $region19: #{forward.1} parent=11 // pred_region
        _
      $region20: #{forward.1} parent=11 // pred_fallthru
        _
      // Predicated region
      $region21: #{forward.1} parent=11 // pred_check
        %p520 = pneg %p116
      $region22: #{forward.1} parent=11 // pred_check_branch
        %522 = sbr.rel (%p520) target = $region24
      $region23: #{forward.1} parent=11 // pred_region
        _
      $region24: #{forward.1} parent=11 // pred_fallthru
        _
      // Predicated region
      $region25: #{forward.1} parent=11 // pred_check
        %p523 = pneg %p137
      $region26: #{forward.1} parent=11 // pred_check_branch
        %525 = sbr.rel (%p523) target = $region28
      $region27: #{forward.1} parent=11 // pred_region
        _
      $region28: #{forward.1} parent=11 // pred_fallthru
        _
      // Predicated region
      $region29: #{forward.1} parent=11 // pred_check
        %p526 = pneg %p158
      $region30: #{forward.1} parent=11 // pred_check_branch
        %528 = sbr.rel (%p526) target = $region32
      $region31: #{forward.1} parent=11 // pred_region
        _
      $region32: #{forward.1} parent=11 // pred_fallthru
        _
      // Predicated region
      $region33: #{forward.1} parent=11 // pred_check
        %p529 = pneg %p179
      $region34: #{forward.1} parent=11 // pred_check_branch
        %531 = sbr.rel (%p529) target = $region36
      $region35: #{forward.1} parent=11 // pred_region
        _
      $region36: #{forward.1} parent=11 // pred_fallthru
        _
      // Predicated region
      $region37: #{forward.1} parent=11 // pred_check
        %p532 = pneg %p200
      $region38: #{forward.1} parent=11 // pred_check_branch
        %534 = sbr.rel (%p532) target = $region40
      $region39: #{forward.1} parent=11 // pred_region
        _
      $region40: #{forward.1} parent=11 // pred_fallthru
        _
      // Predicated region
      $region41: #{forward.1} parent=11 // pred_check
        %p535 = pneg %p221
      $region42: #{forward.1} parent=11 // pred_check_branch
        %537 = sbr.rel (%p535) target = $region44
      $region43: #{forward.1} parent=11 // pred_region
        _
      $region44: #{forward.1} parent=11 // pred_fallthru
        _
      // Predicated region
      $region45: #{forward.1} parent=11 // pred_check
        %p538 = pneg %p242
      $region46: #{forward.1} parent=11 // pred_check_branch
        %540 = sbr.rel (%p538) target = $region48
      $region47: #{forward.1} parent=11 // pred_region
        _
      $region48: #{forward.1} parent=11 // pred_fallthru
        _
      // Predicated region
      $region49: #{forward.1} parent=11 // pred_check
        %p541 = pneg %p263
      $region50: #{forward.1} parent=11 // pred_check_branch
        %543 = sbr.rel (%p541) target = $region52
      $region51: #{forward.1} parent=11 // pred_region
        _
      $region52: #{forward.1} parent=11 // pred_fallthru
        _
      // Predicated region
      $region53: #{forward.1} parent=11 // pred_check
        %p544 = pneg %p284
      $region54: #{forward.1} parent=11 // pred_check_branch
        %546 = sbr.rel (%p544) target = $region56
      $region55: #{forward.1} parent=11 // pred_region
        _
      $region56: #{forward.1} parent=11 // pred_fallthru
        _
      // Predicated region
      $region57: #{forward.1} parent=11 // pred_check
        %p547 = pneg %p305
      $region58: #{forward.1} parent=11 // pred_check_branch
        %549 = sbr.rel (%p547) target = $region60
      $region59: #{forward.1} parent=11 // pred_region
        _
      $region60: #{forward.1} parent=11 // pred_fallthru
        _
      // Predicated region
      $region61: #{forward.1} parent=11 // pred_check
        %p550 = pneg %p326
      $region62: #{forward.1} parent=11 // pred_check_branch
        %552 = sbr.rel (%p550) target = $region64
      $region63: #{forward.1} parent=11 // pred_region
        _
      $region64: #{forward.1} parent=11 // pred_fallthru
        _
      // Predicated region
      $region65: #{forward.1} parent=11 // pred_check
        %p553 = pneg %p347
      $region66: #{forward.1} parent=11 // pred_check_branch
        %555 = sbr.rel (%p553) target = $region68
      $region67: #{forward.1} parent=11 // pred_region
        _
      $region68: #{forward.1} parent=11 // pred_fallthru
        _
      // Predicated region
      $region69: #{forward.1} parent=11 // pred_check
        %p556 = pneg %p368
      $region70: #{forward.1} parent=11 // pred_check_branch
        %558 = sbr.rel (%p556) target = $region72
      $region71: #{forward.1} parent=11 // pred_region
        _
      $region72: #{forward.1} parent=11 // pred_fallthru
        _
      // Predicated region
      $region73: #{forward.1} parent=11 // pred_check
        %p559 = pneg %p389
      $region74: #{forward.1} parent=11 // pred_check_branch
        %561 = sbr.rel (%p559) target = $region76
      $region75: #{forward.1} parent=11 // pred_region
        _
      $region76: #{forward.1} parent=11 // pred_fallthru
        _
      // Predicated region
      $region77: #{forward.1} parent=11 // pred_check
        %p562 = pneg %p410
      $region78: #{forward.1} parent=11 // pred_check_branch
        %564 = sbr.rel (%p562) target = $region80
      $region79: #{forward.1} parent=11 // pred_region
        _
      $region80: #{forward.1} parent=11 // pred_fallthru
        _
      // Predicated region
      $region81: #{forward.1} parent=11 // pred_check
        %p565 = pneg %p431
      $region82: #{forward.1} parent=11 // pred_check_branch
        %567 = sbr.rel (%p565) target = $region84
      $region83: #{forward.1} parent=11 // pred_region
        _
      $region84: #{forward.1} parent=11 // pred_fallthru
        _
      // Predicated region
      $region85: #{forward.1} parent=11 // pred_check
        %p568 = pneg %p452
      $region86: #{forward.1} parent=11 // pred_check_branch
        %570 = sbr.rel (%p568) target = $region88
      $region87: #{forward.1} parent=11 // pred_region
        _
      $region88: #{forward.1} parent=11 // pred_fallthru
        _
      // Predicated region
      $region89: #{forward.1} parent=11 // pred_check
        %p571 = pneg %p473
      $region90: #{forward.1} parent=11 // pred_check_branch
        %573 = sbr.rel (%p571) target = $region92
      $region91: #{forward.1} parent=11 // pred_region
        _
      $region92: #{forward.1} parent=11 // pred_fallthru
        _
    $region12: #{forward.1} parent=5 // pred_fallthru
      _
    %p574 = scmp.lt.s32.totalorder %s27, 2
    // Predicated region
    $region93: #{forward.1} parent=5 // pred_check
      %p575 = pneg %p574
    $region94: #{forward.1} parent=5 // pred_check_branch
      %577 = sbr.rel (%p575) target = $region96
    $region95: #{forward.1} parent=5 // pred_region
      // Predicated region
      $region97: #{forward.1} parent=95 // pred_check
        %p578 = pneg %p47
      $region98: #{forward.1} parent=95 // pred_check_branch
        %580 = sbr.rel (%p578) target = $region100
      $region99: #{forward.1} parent=95 // pred_region
        %p581 = scmp.lt.s32.totalorder %s27, 1
        %s582 = scalar_select %p581, %s27, 1
        %s583 = smul.addr %s582, 8
        %s584 = scalar_lea.vmem %s0, %s583
      $region100: #{forward.1} parent=95 // pred_fallthru
        _
    $region96: #{forward.1} parent=5 // pred_fallthru
      _
    %p585 = scmp.le.s32.totalorder 1, %s27
    %p586 = scmp.lt.s32.totalorder %s27, 3
    %p587 = pnand %p585, %p586
    %p588 = pneg %p587
    // Predicated region
    $region101: #{forward.1} parent=5 // pred_check
      _
    $region102: #{forward.1} parent=5 // pred_check_branch
      %590 = sbr.rel (%p587) target = $region104
    $region103: #{forward.1} parent=5 // pred_region
      %s591 = ssub.s32 %s27, 1
      %p592 = scmp.lt.s32.totalorder %s32, 1
      %s593 = scalar_select %p592, %s32, 1
      %s594 = smul.addr %s593, 8
      %s595 = scalar_lea.vmem %s0, %s594
      %p596 = pneg %p53
      %p597 = pneg %p50
      %p598 = pneg %p74
      %p599 = pneg %p71
      %p600 = pneg %p95
      %p601 = pneg %p92
      %p602 = pneg %p116
      %p603 = pneg %p113
      %p604 = pneg %p137
      %p605 = pneg %p134
      %p606 = pneg %p158
      %p607 = pneg %p155
      %p608 = pneg %p179
      %p609 = pneg %p176
      %p610 = pneg %p200
      %p611 = pneg %p197
      %p612 = pneg %p221
      %p613 = pneg %p218
      %p614 = pneg %p242
      %p615 = pneg %p239
      %p616 = pneg %p263
      %p617 = pneg %p260
      %p618 = pneg %p284
      %p619 = pneg %p281
      %p620 = pneg %p305
      %p621 = pneg %p302
      %p622 = pneg %p326
      %p623 = pneg %p323
      %p624 = pneg %p347
      %p625 = pneg %p344
      %p626 = pneg %p368
      %p627 = pneg %p365
      %p628 = pneg %p389
      %p629 = pneg %p386
      %p630 = pneg %p410
      %p631 = pneg %p407
      %p632 = pneg %p431
      %p633 = pneg %p428
      %p634 = pneg %p452
      %p635 = pneg %p449
      %p636 = pneg %p473
      %p637 = pneg %p470
      %p638 = pneg %p499
      %p639 = pneg %p496
      %p640 = scmp.lt.s32.totalorder %s32, 1
      %s641 = scalar_select %p640, %s32, 1
      %s642 = scalar_lea.vmem %s21, %s641
      %p643 = scmp.lt.s32.totalorder %s32, 1
      %s644 = scalar_select %p643, %s32, 1
      %s645 = smul.addr %s644, 8
      %s646 = scalar_lea.vmem %s0, %s645
      %p647 = scmp.lt.s32.totalorder %s32, 1
      %s648 = scalar_select %p647, %s32, 1
      %s649 = scalar_lea.vmem %s21, %s648
      %v650 = vld [vmem:[%s646] sm:$0xff]
      %651 = vrot.lane.b32.xlu0 %v650, 11
      %v652 = vpop.permute.xlu0 %651
      %v653 = vld [vmem:[%s1] sm:$0x1]
      %v655 = vlaneseq
      %v656 = vshrl.u32 %v655, 7
      %v657 = vsub.s32 0, %v656
      %v658 = vrot.slane %v653, %v657
      %v660 = vmul.f32 %v652, %v658
      %661 = vrot.lane.b32.xlu0 %v650, 10
      %v662 = vpop.permute.xlu0 %661
      %s663 = scalar_lea.vmem %s1, 1
      %v664 = vld [vmem:[%s663] sm:$0x1]
      %v666 = vlaneseq
      %v667 = vshrl.u32 %v666, 7
      %v668 = vsub.s32 0, %v667
      %v669 = vrot.slane %v664, %v668
      %v671 = vmul.f32 %v662, %v669
      %672 = vrot.lane.b32.xlu0 %v650, 9
      %v673 = vpop.permute.xlu0 %672
      %s674 = scalar_lea.vmem %s1, 2
      %v675 = vld [vmem:[%s674] sm:$0x1]
      %v677 = vlaneseq
      %v678 = vshrl.u32 %v677, 7
      %v679 = vsub.s32 0, %v678
      %v680 = vrot.slane %v675, %v679
      %v682 = vmul.f32 %v673, %v680
      %683 = vrot.lane.b32.xlu0 %v650, 1
      %v684 = vpop.permute.xlu0 %683
      %s685 = scalar_lea.vmem %s1, 3
      %v686 = vld [vmem:[%s685] sm:$0x1]
      %v688 = vlaneseq
      %v689 = vshrl.u32 %v688, 7
      %v690 = vsub.s32 0, %v689
      %v691 = vrot.slane %v686, %v690
      %v693 = vmul.f32 %v684, %v691
      %s694 = scalar_lea.vmem %s1, 4
      %v695 = vld [vmem:[%s694] sm:$0x1]
      %v697 = vlaneseq
      %v698 = vshrl.u32 %v697, 7
      %v699 = vsub.s32 0, %v698
      %v700 = vrot.slane %v695, %v699
      %v702 = vmul.f32 %v650, %v700
      %703 = vrot.lane.b32.xlu0 %v650, 127
      %v704 = vpop.permute.xlu0 %703
      %s705 = scalar_lea.vmem %s1, 5
      %v706 = vld [vmem:[%s705] sm:$0x1]
      %v708 = vlaneseq
      %v709 = vshrl.u32 %v708, 7
      %v710 = vsub.s32 0, %v709
      %v711 = vrot.slane %v706, %v710
      %v713 = vmul.f32 %v704, %v711
      %714 = vrot.lane.b32.xlu0 %v650, 119
      %v715 = vpop.permute.xlu0 %714
      %s716 = scalar_lea.vmem %s1, 6
      %v717 = vld [vmem:[%s716] sm:$0x1]
      %v719 = vlaneseq
      %v720 = vshrl.u32 %v719, 7
      %v721 = vsub.s32 0, %v720
      %v722 = vrot.slane %v717, %v721
      %v724 = vmul.f32 %v715, %v722
      %725 = vrot.lane.b32.xlu0 %v650, 118
      %v726 = vpop.permute.xlu0 %725
      %s727 = scalar_lea.vmem %s1, 7
      %v728 = vld [vmem:[%s727] sm:$0x1]
      %v730 = vlaneseq
      %v731 = vshrl.u32 %v730, 7
      %v732 = vsub.s32 0, %v731
      %v733 = vrot.slane %v728, %v732
      %v735 = vmul.f32 %v726, %v733
      %736 = vrot.lane.b32.xlu0 %v650, 117
      %v737 = vpop.permute.xlu0 %736
      %s738 = scalar_lea.vmem %s1, 8
      %v739 = vld [vmem:[%s738] sm:$0x1]
      %v741 = vlaneseq
      %v742 = vshrl.u32 %v741, 7
      %v743 = vsub.s32 0, %v742
      %v744 = vrot.slane %v739, %v743
      %v746 = vmul.f32 %v737, %v744
      %v747 = vld [vmem:[%s4] sm:$0xff]
      %v748 = vld [vmem:[%s4 + $0x8] sm:$0xff]
      %v749 = vld [vmem:[%s4 + $0x10] sm:$0xff]
      %v750 = vld [vmem:[%s4 + $0x18] sm:$0xff]
      %v751 = vld [vmem:[%s4 + $0x20] sm:$0xff]
      %v752 = vld [vmem:[%s4 + $0x28] sm:$0xff]
      %v753 = vld [vmem:[%s4 + $0x30] sm:$0xff]
      %v754 = vld [vmem:[%s4 + $0x38] sm:$0xff]
      %v755 = vld [vmem:[%s5] sm:$0xff]
      %v756 = vld [vmem:[%s5 + $0x8] sm:$0xff]
      %v757 = vld [vmem:[%s5 + $0x10] sm:$0xff]
      %v758 = vld [vmem:[%s5 + $0x18] sm:$0xff]
      %v759 = vld [vmem:[%s5 + $0x20] sm:$0xff]
      %v760 = vld [vmem:[%s5 + $0x28] sm:$0xff]
      %v761 = vld [vmem:[%s5 + $0x30] sm:$0xff]
      %v762 = vld [vmem:[%s5 + $0x38] sm:$0xff]
      %764 = vset.pattern.permute.xlu0 0
      %765 = vperm.xlu0 %764, %v755
      %v766 = vpop.permute.xlu0 %765
      %769 = vset.pattern.permute.xlu0 0
      %770 = vperm.xlu0 %769, %v756
      %v771 = vpop.permute.xlu0 %770
      %774 = vset.pattern.permute.xlu0 0
      %775 = vperm.xlu0 %774, %v757
      %v776 = vpop.permute.xlu0 %775
      %779 = vset.pattern.permute.xlu0 0
      %780 = vperm.xlu0 %779, %v758
      %v781 = vpop.permute.xlu0 %780
      %784 = vset.pattern.permute.xlu0 0
      %785 = vperm.xlu0 %784, %v759
      %v786 = vpop.permute.xlu0 %785
      %789 = vset.pattern.permute.xlu0 0
      %790 = vperm.xlu0 %789, %v760
      %v791 = vpop.permute.xlu0 %790
      %794 = vset.pattern.permute.xlu0 0
      %795 = vperm.xlu0 %794, %v761
      %v796 = vpop.permute.xlu0 %795
      %799 = vset.pattern.permute.xlu0 0
      %800 = vperm.xlu0 %799, %v762
      %v801 = vpop.permute.xlu0 %800
      %vm803 = vcmask 588800
      %v805 = vsel %vm803, %v747, 0
      %v808 = vsel %vm803, %v748, 0
      %v811 = vsel %vm803, %v749, 0
      %v814 = vsel %vm803, %v750, 0
      %v817 = vsel %vm803, %v751, 0
      %v820 = vsel %vm803, %v752, 0
      %v823 = vsel %vm803, %v753, 0
      %v826 = vsel %vm803, %v754, 0
      %828 = vmatprep.subr.mxu0 0.0
      %829 = vmatpush1.msra.mxu0 %v660
      %830 = vmatprep.subr.mxu0 0.0
      %831 = vmatpush1.msra.mxu0 %v671
      %832 = vmatprep.subr.mxu0 0.0
      %833 = vmatpush1.msra.mxu0 %v682
      %834 = vmatprep.subr.mxu0 0.0
      %835 = vmatpush1.msra.mxu0 %v693
      %836 = vmatprep.subr.mxu0 0.0
      %837 = vmatpush1.msra.mxu0 %v702
      %838 = vmatprep.subr.mxu0 0.0
      %839 = vmatpush1.msra.mxu0 %v713
      %840 = vmatprep.subr.mxu0 0.0
      %841 = vmatpush1.msra.mxu0 %v724
      %842 = vmatprep.subr.mxu0 0.0
      %843 = vmatpush1.msra.mxu0 %v735
      %844 = vmatprep.subr.mxu0 0.0
      %845 = vmatpush1.msra.mxu0 %v746
      %846 = vmatprep.subr.mxu0 0.0
      %847 = vmatpush1.msra.mxu0 0.0
      %848 = vmatprep.subr.mxu0 0.0
      %849 = vmatpush1.msra.mxu0 0.0
      %850 = vmatprep.subr.mxu0 0.0
      %851 = vmatpush1.msra.mxu0 0.0
      %852 = vmatprep.subr.mxu0 0.0
      %853 = vmatpush1.msra.mxu0 0.0
      %854 = vmatprep.subr.mxu0 0.0
      %855 = vmatpush1.msra.mxu0 0.0
      %856 = vmatprep.subr.mxu0 0.0
      %857 = vmatpush1.msra.mxu0 0.0
      %858 = vmatprep.subr.mxu0 0.0
      %859 = vmatpush1.msra.mxu0 0.0
      %860 = vmatprep.subr.mxu0 0.0
      %861 = vmatpush1.msra.mxu0 0.0
      %862 = vmatprep.subr.mxu0 0.0
      %863 = vmatpush1.msra.mxu0 0.0
      %864 = vmatprep.subr.mxu0 0.0
      %865 = vmatpush1.msra.mxu0 0.0
      %866 = vmatprep.subr.mxu0 0.0
      %867 = vmatpush1.msra.mxu0 0.0
      %868 = vmatprep.subr.mxu0 0.0
      %869 = vmatpush1.msra.mxu0 0.0
      %870 = vmatprep.subr.mxu0 0.0
      %871 = vmatpush1.msra.mxu0 0.0
      %872 = vmatprep.subr.mxu0 0.0
      %873 = vmatpush1.msra.mxu0 0.0
      %874 = vmatprep.subr.mxu0 0.0
      %875 = vmatpush1.msra.mxu0 0.0
      %876 = vmatprep.subr.mxu0 0.0
      %877 = vmatpush1.msra.mxu0 0.0
      %878 = vmatprep.subr.mxu0 0.0
      %879 = vmatpush1.msra.mxu0 0.0
      %880 = vmatprep.subr.mxu0 0.0
      %881 = vmatpush1.msra.mxu0 0.0
      %882 = vmatprep.subr.mxu0 0.0
      %883 = vmatpush1.msra.mxu0 0.0
      %884 = vmatprep.subr.mxu0 0.0
      %885 = vmatpush1.msra.mxu0 0.0
      %886 = vmatprep.subr.mxu0 0.0
      %887 = vmatpush1.msra.mxu0 0.0
      %888 = vmatprep.subr.mxu0 0.0
      %889 = vmatpush1.msra.mxu0 0.0
      %890 = vmatprep.subr.mxu0 0.0
      %891 = vmatpush1.msra.mxu0 0.0
      %892 = vmatprep.mubr.f32.mxu0 0.0
      %893 = vmatmul.mubr.f32.gmra.mrb[0].mxu0 %v805
      %v894 = vpop.f32.mrb[0].mxu0
      %v895 = vadd.f32 %v766, %v894
      %v896 = vpop.f32.mrb[0].mxu0
      %897 = vmatprep.mubr.f32.mxu0 0.0
      %898 = vmatmul.mubr.f32.gmra.mrb[0].mxu0 %v808
      %v899 = vpop.f32.mrb[0].mxu0
      %v900 = vadd.f32 %v771, %v899
      %v901 = vpop.f32.mrb[0].mxu0
      %902 = vmatprep.mubr.f32.mxu0 0.0
      %903 = vmatmul.mubr.f32.gmra.mrb[0].mxu0 %v811
      %v904 = vpop.f32.mrb[0].mxu0
      %v905 = vadd.f32 %v776, %v904
      %v906 = vpop.f32.mrb[0].mxu0
      %907 = vmatprep.mubr.f32.mxu0 0.0
      %908 = vmatmul.mubr.f32.gmra.mrb[0].mxu0 %v814
      %v909 = vpop.f32.mrb[0].mxu0
      %v910 = vadd.f32 %v781, %v909
      %v911 = vpop.f32.mrb[0].mxu0
      %912 = vmatprep.mubr.f32.mxu0 0.0
      %913 = vmatmul.mubr.f32.gmra.mrb[0].mxu0 %v817
      %v914 = vpop.f32.mrb[0].mxu0
      %v915 = vadd.f32 %v786, %v914
      %v916 = vpop.f32.mrb[0].mxu0
      %917 = vmatprep.mubr.f32.mxu0 0.0
      %918 = vmatmul.mubr.f32.gmra.mrb[0].mxu0 %v820
      %v919 = vpop.f32.mrb[0].mxu0
      %v920 = vadd.f32 %v791, %v919
      %v921 = vpop.f32.mrb[0].mxu0
      %922 = vmatprep.mubr.f32.mxu0 0.0
      %923 = vmatmul.mubr.f32.gmra.mrb[0].mxu0 %v823
      %v924 = vpop.f32.mrb[0].mxu0
      %v925 = vadd.f32 %v796, %v924
      %v926 = vpop.f32.mrb[0].mxu0
      %927 = vmatprep.mubr.f32.mxu0 0.0
      %928 = vmatmul.mubr.f32.gmra.mrb[0].mxu0 %v826
      %v929 = vpop.f32.mrb[0].mxu0
      %v930 = vadd.f32 %v801, %v929
      %v931 = vpop.f32.mrb[0].mxu0
      %932 = vdwg.mxu0
      %v933 = vmax.f32 %v895, 0.0
      %v934 = vmax.f32 %v900, 0.0
      %v935 = vmax.f32 %v905, 0.0
      %v936 = vmax.f32 %v910, 0.0
      %v937 = vmax.f32 %v915, 0.0
      %v938 = vmax.f32 %v920, 0.0
      %v939 = vmax.f32 %v925, 0.0
      %v940 = vmax.f32 %v930, 0.0
      %941 = vrot.lane.b32.xlu0 %v933, 11
      %v942 = vpop.permute.xlu0 %941
      %943 = vrot.lane.b32.xlu0 %v934, 11
      %v944 = vpop.permute.xlu0 %943
      %945 = vrot.lane.b32.xlu0 %v935, 11
      %v946 = vpop.permute.xlu0 %945
      %947 = vrot.lane.b32.xlu0 %v936, 11
      %v948 = vpop.permute.xlu0 %947
      %949 = vrot.lane.b32.xlu0 %v937, 11
      %v950 = vpop.permute.xlu0 %949
      %951 = vrot.lane.b32.xlu0 %v938, 11
      %v952 = vpop.permute.xlu0 %951
      %953 = vrot.lane.b32.xlu0 %v939, 11
      %v954 = vpop.permute.xlu0 %953
      %955 = vrot.lane.b32.xlu0 %v940, 11
      %v956 = vpop.permute.xlu0 %955
      %v957 = vmul.f32 %v942, %v658
      %v958 = vmul.f32 %v944, %v658
      %v959 = vmul.f32 %v946, %v658
      %v960 = vmul.f32 %v948, %v658
      %v961 = vmul.f32 %v950, %v658
      %v962 = vmul.f32 %v952, %v658
      %v963 = vmul.f32 %v954, %v658
      %v964 = vmul.f32 %v956, %v658
      %965 = vrot.lane.b32.xlu0 %v933, 10
      %v966 = vpop.permute.xlu0 %965
      %967 = vrot.lane.b32.xlu0 %v934, 10
      %v968 = vpop.permute.xlu0 %967
      %969 = vrot.lane.b32.xlu0 %v935, 10
      %v970 = vpop.permute.xlu0 %969
      %971 = vrot.lane.b32.xlu0 %v936, 10
      %v972 = vpop.permute.xlu0 %971
      %973 = vrot.lane.b32.xlu0 %v937, 10
      %v974 = vpop.permute.xlu0 %973
      %975 = vrot.lane.b32.xlu0 %v938, 10
      %v976 = vpop.permute.xlu0 %975
      %977 = vrot.lane.b32.xlu0 %v939, 10
      %v978 = vpop.permute.xlu0 %977
      %979 = vrot.lane.b32.xlu0 %v940, 10
      %v980 = vpop.permute.xlu0 %979
      %v981 = vmul.f32 %v966, %v669
      %v982 = vmul.f32 %v968, %v669
      %v983 = vmul.f32 %v970, %v669
      %v984 = vmul.f32 %v972, %v669
      %v985 = vmul.f32 %v974, %v669
      %v986 = vmul.f32 %v976, %v669
      %v987 = vmul.f32 %v978, %v669
      %v988 = vmul.f32 %v980, %v669
      %989 = vrot.lane.b32.xlu0 %v933, 9
      %v990 = vpop.permute.xlu0 %989
      %991 = vrot.lane.b32.xlu0 %v934, 9
      %v992 = vpop.permute.xlu0 %991
      %993 = vrot.lane.b32.xlu0 %v935, 9
      %v994 = vpop.permute.xlu0 %993
      %995 = vrot.lane.b32.xlu0 %v936, 9
      %v996 = vpop.permute.xlu0 %995
      %997 = vrot.lane.b32.xlu0 %v937, 9
      %v998 = vpop.permute.xlu0 %997
      %999 = vrot.lane.b32.xlu0 %v938, 9
      %v1000 = vpop.permute.xlu0 %999
      %1001 = vrot.lane.b32.xlu0 %v939, 9
      %v1002 = vpop.permute.xlu0 %1001
      %1003 = vrot.lane.b32.xlu0 %v940, 9
      %v1004 = vpop.permute.xlu0 %1003
      %v1005 = vmul.f32 %v990, %v680
      %v1006 = vmul.f32 %v992, %v680
      %v1007 = vmul.f32 %v994, %v680
      %v1008 = vmul.f32 %v996, %v680
      %v1009 = vmul.f32 %v998, %v680
      %v1010 = vmul.f32 %v1000, %v680
      %v1011 = vmul.f32 %v1002, %v680
      %v1012 = vmul.f32 %v1004, %v680
      %1013 = vrot.lane.b32.xlu0 %v933, 1
      %v1014 = vpop.permute.xlu0 %1013
      %1015 = vrot.lane.b32.xlu0 %v934, 1
      %v1016 = vpop.permute.xlu0 %1015
      %1017 = vrot.lane.b32.xlu0 %v935, 1
      %v1018 = vpop.permute.xlu0 %1017
      %1019 = vrot.lane.b32.xlu0 %v936, 1
      %v1020 = vpop.permute.xlu0 %1019
      %1021 = vrot.lane.b32.xlu0 %v937, 1
      %v1022 = vpop.permute.xlu0 %1021
      %1023 = vrot.lane.b32.xlu0 %v938, 1
      %v1024 = vpop.permute.xlu0 %1023
      %1025 = vrot.lane.b32.xlu0 %v939, 1
      %v1026 = vpop.permute.xlu0 %1025
      %1027 = vrot.lane.b32.xlu0 %v940, 1
      %v1028 = vpop.permute.xlu0 %1027
      %v1029 = vmul.f32 %v1014, %v691
      %v1030 = vmul.f32 %v1016, %v691
      %v1031 = vmul.f32 %v1018, %v691
      %v1032 = vmul.f32 %v1020, %v691
      %v1033 = vmul.f32 %v1022, %v691
      %v1034 = vmul.f32 %v1024, %v691
      %v1035 = vmul.f32 %v1026, %v691
      %v1036 = vmul.f32 %v1028, %v691
      %v1037 = vmul.f32 %v933, %v700
      %v1038 = vmul.f32 %v934, %v700
      %v1039 = vmul.f32 %v935, %v700
      %v1040 = vmul.f32 %v936, %v700
      %v1041 = vmul.f32 %v937, %v700
      %v1042 = vmul.f32 %v938, %v700
      %v1043 = vmul.f32 %v939, %v700
      %v1044 = vmul.f32 %v940, %v700
      %1045 = vrot.lane.b32.xlu0 %v933, 127
      %v1046 = vpop.permute.xlu0 %1045
      %1047 = vrot.lane.b32.xlu0 %v934, 127
      %v1048 = vpop.permute.xlu0 %1047
      %1049 = vrot.lane.b32.xlu0 %v935, 127
      %v1050 = vpop.permute.xlu0 %1049
      %1051 = vrot.lane.b32.xlu0 %v936, 127
      %v1052 = vpop.permute.xlu0 %1051
      %1053 = vrot.lane.b32.xlu0 %v937, 127
      %v1054 = vpop.permute.xlu0 %1053
      %1055 = vrot.lane.b32.xlu0 %v938, 127
      %v1056 = vpop.permute.xlu0 %1055
      %1057 = vrot.lane.b32.xlu0 %v939, 127
      %v1058 = vpop.permute.xlu0 %1057
      %1059 = vrot.lane.b32.xlu0 %v940, 127
      %v1060 = vpop.permute.xlu0 %1059
      %v1061 = vmul.f32 %v1046, %v711
      %v1062 = vmul.f32 %v1048, %v711
      %v1063 = vmul.f32 %v1050, %v711
      %v1064 = vmul.f32 %v1052, %v711
      %v1065 = vmul.f32 %v1054, %v711
      %v1066 = vmul.f32 %v1056, %v711
      %v1067 = vmul.f32 %v1058, %v711
      %v1068 = vmul.f32 %v1060, %v711
      %1069 = vrot.lane.b32.xlu0 %v933, 119
      %v1070 = vpop.permute.xlu0 %1069
      %1071 = vrot.lane.b32.xlu0 %v934, 119
      %v1072 = vpop.permute.xlu0 %1071
      %1073 = vrot.lane.b32.xlu0 %v935, 119
      %v1074 = vpop.permute.xlu0 %1073
      %1075 = vrot.lane.b32.xlu0 %v936, 119
      %v1076 = vpop.permute.xlu0 %1075
      %1077 = vrot.lane.b32.xlu0 %v937, 119
      %v1078 = vpop.permute.xlu0 %1077
      %1079 = vrot.lane.b32.xlu0 %v938, 119
      %v1080 = vpop.permute.xlu0 %1079
      %1081 = vrot.lane.b32.xlu0 %v939, 119
      %v1082 = vpop.permute.xlu0 %1081
      %1083 = vrot.lane.b32.xlu0 %v940, 119
      %v1084 = vpop.permute.xlu0 %1083
      %v1085 = vmul.f32 %v1070, %v722
      %v1086 = vmul.f32 %v1072, %v722
      %v1087 = vmul.f32 %v1074, %v722
      %v1088 = vmul.f32 %v1076, %v722
      %v1089 = vmul.f32 %v1078, %v722
      %v1090 = vmul.f32 %v1080, %v722
      %v1091 = vmul.f32 %v1082, %v722
      %v1092 = vmul.f32 %v1084, %v722
      %1093 = vrot.lane.b32.xlu0 %v933, 118
      %v1094 = vpop.permute.xlu0 %1093
      %1095 = vrot.lane.b32.xlu0 %v934, 118
      %v1096 = vpop.permute.xlu0 %1095
      %1097 = vrot.lane.b32.xlu0 %v935, 118
      %v1098 = vpop.permute.xlu0 %1097
      %1099 = vrot.lane.b32.xlu0 %v936, 118
      %v1100 = vpop.permute.xlu0 %1099
      %1101 = vrot.lane.b32.xlu0 %v937, 118
      %v1102 = vpop.permute.xlu0 %1101
      %1103 = vrot.lane.b32.xlu0 %v938, 118
      %v1104 = vpop.permute.xlu0 %1103
      %1105 = vrot.lane.b32.xlu0 %v939, 118
      %v1106 = vpop.permute.xlu0 %1105
      %1107 = vrot.lane.b32.xlu0 %v940, 118
      %v1108 = vpop.permute.xlu0 %1107
      %v1109 = vmul.f32 %v1094, %v733
      %v1110 = vmul.f32 %v1096, %v733
      %v1111 = vmul.f32 %v1098, %v733
      %v1112 = vmul.f32 %v1100, %v733
      %v1113 = vmul.f32 %v1102, %v733
      %v1114 = vmul.f32 %v1104, %v733
      %v1115 = vmul.f32 %v1106, %v733
      %v1116 = vmul.f32 %v1108, %v733
      %1117 = vrot.lane.b32.xlu0 %v933, 117
      %v1118 = vpop.permute.xlu0 %1117
      %1119 = vrot.lane.b32.xlu0 %v934, 117
      %v1120 = vpop.permute.xlu0 %1119
      %1121 = vrot.lane.b32.xlu0 %v935, 117
      %v1122 = vpop.permute.xlu0 %1121
      %1123 = vrot.lane.b32.xlu0 %v936, 117
      %v1124 = vpop.permute.xlu0 %1123
      %1125 = vrot.lane.b32.xlu0 %v937, 117
      %v1126 = vpop.permute.xlu0 %1125
      %1127 = vrot.lane.b32.xlu0 %v938, 117
      %v1128 = vpop.permute.xlu0 %1127
      %1129 = vrot.lane.b32.xlu0 %v939, 117
      %v1130 = vpop.permute.xlu0 %1129
      %1131 = vrot.lane.b32.xlu0 %v940, 117
      %v1132 = vpop.permute.xlu0 %1131
      %v1133 = vmul.f32 %v1118, %v744
      %v1134 = vmul.f32 %v1120, %v744
      %v1135 = vmul.f32 %v1122, %v744
      %v1136 = vmul.f32 %v1124, %v744
      %v1137 = vmul.f32 %v1126, %v744
      %v1138 = vmul.f32 %v1128, %v744
      %v1139 = vmul.f32 %v1130, %v744
      %v1140 = vmul.f32 %v1132, %v744
      %v1141 = vld [vmem:[%s6] sm:$0xff]
      %v1142 = vld [vmem:[%s6 + $0x8] sm:$0xff]
      %v1143 = vld [vmem:[%s6 + $0x10] sm:$0xff]
      %v1144 = vld [vmem:[%s6 + $0x18] sm:$0xff]
      %v1145 = vld [vmem:[%s6 + $0x20] sm:$0xff]
      %v1146 = vld [vmem:[%s6 + $0x28] sm:$0xff]
      %v1147 = vld [vmem:[%s6 + $0x30] sm:$0xff]
      %v1148 = vld [vmem:[%s6 + $0x38] sm:$0xff]
      %v1149 = vld [vmem:[%s6 + $0x40] sm:$0xff]
      %v1150 = vld [vmem:[%s6 + $0x48] sm:$0xff]
      %v1151 = vld [vmem:[%s6 + $0x50] sm:$0xff]
      %v1152 = vld [vmem:[%s6 + $0x58] sm:$0xff]
      %v1153 = vld [vmem:[%s6 + $0x60] sm:$0xff]
      %v1154 = vld [vmem:[%s6 + $0x68] sm:$0xff]
      %v1155 = vld [vmem:[%s6 + $0x70] sm:$0xff]
      %v1156 = vld [vmem:[%s6 + $0x78] sm:$0xff]
      %v1157 = vld [vmem:[%s6 + $0x80] sm:$0xff]
      %v1158 = vld [vmem:[%s6 + $0x88] sm:$0xff]
      %v1159 = vld [vmem:[%s6 + $0x90] sm:$0xff]
      %v1160 = vld [vmem:[%s6 + $0x98] sm:$0xff]
      %v1161 = vld [vmem:[%s6 + $0xa0] sm:$0xff]
      %v1162 = vld [vmem:[%s6 + $0xa8] sm:$0xff]
      %v1163 = vld [vmem:[%s6 + $0xb0] sm:$0xff]
      %v1164 = vld [vmem:[%s6 + $0xb8] sm:$0xff]
      %v1165 = vld [vmem:[%s6 + $0xc0] sm:$0xff]
      %v1166 = vld [vmem:[%s6 + $0xc8] sm:$0xff]
      %v1167 = vld [vmem:[%s6 + $0xd0] sm:$0xff]
      %v1168 = vld [vmem:[%s6 + $0xd8] sm:$0xff]
      %v1169 = vld [vmem:[%s6 + $0xe0] sm:$0xff]
      %v1170 = vld [vmem:[%s6 + $0xe8] sm:$0xff]
      %v1171 = vld [vmem:[%s6 + $0xf0] sm:$0xff]
      %v1172 = vld [vmem:[%s6 + $0xf8] sm:$0xff]
      %v1173 = vld [vmem:[%s6 + $0x100] sm:$0xff]
      %v1174 = vld [vmem:[%s6 + $0x108] sm:$0xff]
      %v1175 = vld [vmem:[%s6 + $0x110] sm:$0xff]
      %v1176 = vld [vmem:[%s6 + $0x118] sm:$0xff]
      %v1177 = vld [vmem:[%s6 + $0x120] sm:$0xff]
      %v1178 = vld [vmem:[%s6 + $0x128] sm:$0xff]
      %v1179 = vld [vmem:[%s6 + $0x130] sm:$0xff]
      %v1180 = vld [vmem:[%s6 + $0x138] sm:$0xff]
      %v1181 = vld [vmem:[%s6 + $0x140] sm:$0xff]
      %v1182 = vld [vmem:[%s6 + $0x148] sm:$0xff]
      %v1183 = vld [vmem:[%s6 + $0x150] sm:$0xff]
      %v1184 = vld [vmem:[%s6 + $0x158] sm:$0xff]
      %v1185 = vld [vmem:[%s6 + $0x160] sm:$0xff]
      %v1186 = vld [vmem:[%s6 + $0x168] sm:$0xff]
      %v1187 = vld [vmem:[%s6 + $0x170] sm:$0xff]
      %v1188 = vld [vmem:[%s6 + $0x178] sm:$0xff]
      %v1189 = vld [vmem:[%s6 + $0x180] sm:$0xff]
      %v1190 = vld [vmem:[%s6 + $0x188] sm:$0xff]
      %v1191 = vld [vmem:[%s6 + $0x190] sm:$0xff]
      %v1192 = vld [vmem:[%s6 + $0x198] sm:$0xff]
      %v1193 = vld [vmem:[%s6 + $0x1a0] sm:$0xff]
      %v1194 = vld [vmem:[%s6 + $0x1a8] sm:$0xff]
      %v1195 = vld [vmem:[%s6 + $0x1b0] sm:$0xff]
      %v1196 = vld [vmem:[%s6 + $0x1b8] sm:$0xff]
      %v1197 = vld [vmem:[%s6 + $0x1c0] sm:$0xff]
      %v1198 = vld [vmem:[%s6 + $0x1c8] sm:$0xff]
      %v1199 = vld [vmem:[%s6 + $0x1d0] sm:$0xff]
      %v1200 = vld [vmem:[%s6 + $0x1d8] sm:$0xff]
      %v1201 = vld [vmem:[%s6 + $0x1e0] sm:$0xff]
      %v1202 = vld [vmem:[%s6 + $0x1e8] sm:$0xff]
      %v1203 = vld [vmem:[%s6 + $0x1f0] sm:$0xff]
      %v1204 = vld [vmem:[%s6 + $0x1f8] sm:$0xff]
      %v1205 = vld [vmem:[%s6 + $0x200] sm:$0xff]
      %v1206 = vld [vmem:[%s6 + $0x208] sm:$0xff]
      %v1207 = vld [vmem:[%s6 + $0x210] sm:$0xff]
      %v1208 = vld [vmem:[%s6 + $0x218] sm:$0xff]
      %v1209 = vld [vmem:[%s6 + $0x220] sm:$0xff]
      %v1210 = vld [vmem:[%s6 + $0x228] sm:$0xff]
      %v1211 = vld [vmem:[%s6 + $0x230] sm:$0xff]
      %v1212 = vld [vmem:[%s6 + $0x238] sm:$0xff]
      %v1213 = vld [vmem:[%s6 + $0x240] sm:$0xff]
      %v1214 = vld [vmem:[%s6 + $0x248] sm:$0xff]
      %v1215 = vld [vmem:[%s6 + $0x250] sm:$0xff]
      %v1216 = vld [vmem:[%s6 + $0x258] sm:$0xff]
      %v1217 = vld [vmem:[%s6 + $0x260] sm:$0xff]
      %v1218 = vld [vmem:[%s6 + $0x268] sm:$0xff]
      %v1219 = vld [vmem:[%s6 + $0x270] sm:$0xff]
      %v1220 = vld [vmem:[%s6 + $0x278] sm:$0xff]
      %v1221 = vld [vmem:[%s7] sm:$0xff]
      %v1222 = vld [vmem:[%s7 + $0x8] sm:$0xff]
      %v1223 = vld [vmem:[%s7 + $0x10] sm:$0xff]
      %v1224 = vld [vmem:[%s7 + $0x18] sm:$0xff]
      %v1225 = vld [vmem:[%s7 + $0x20] sm:$0xff]
      %v1226 = vld [vmem:[%s7 + $0x28] sm:$0xff]
      %v1227 = vld [vmem:[%s7 + $0x30] sm:$0xff]
      %v1228 = vld [vmem:[%s7 + $0x38] sm:$0xff]
      %v1229 = vld [vmem:[%s7 + $0x40] sm:$0xff]
      %v1230 = vld [vmem:[%s7 + $0x48] sm:$0xff]
      %v1231 = vld [vmem:[%s7 + $0x50] sm:$0xff]
      %v1232 = vld [vmem:[%s7 + $0x58] sm:$0xff]
      %v1233 = vld [vmem:[%s7 + $0x60] sm:$0xff]
      %v1234 = vld [vmem:[%s7 + $0x68] sm:$0xff]
      %v1235 = vld [vmem:[%s7 + $0x70] sm:$0xff]
      %v1236 = vld [vmem:[%s7 + $0x78] sm:$0xff]
      %1238 = vset.pattern.permute.xlu0 0
      %1239 = vperm.xlu0 %1238, %v1221
      %v1240 = vpop.permute.xlu0 %1239
      %1243 = vset.pattern.permute.xlu0 0
      %1244 = vperm.xlu0 %1243, %v1222
      %v1245 = vpop.permute.xlu0 %1244
      %1248 = vset.pattern.permute.xlu0 0
      %1249 = vperm.xlu0 %1248, %v1223
      %v1250 = vpop.permute.xlu0 %1249
      %1253 = vset.pattern.permute.xlu0 0
      %1254 = vperm.xlu0 %1253, %v1224
      %v1255 = vpop.permute.xlu0 %1254
      %1258 = vset.pattern.permute.xlu0 0
      %1259 = vperm.xlu0 %1258, %v1225
      %v1260 = vpop.permute.xlu0 %1259
      %1263 = vset.pattern.permute.xlu0 0
      %1264 = vperm.xlu0 %1263, %v1226
      %v1265 = vpop.permute.xlu0 %1264
      %1268 = vset.pattern.permute.xlu0 0
      %1269 = vperm.xlu0 %1268, %v1227
      %v1270 = vpop.permute.xlu0 %1269
      %1273 = vset.pattern.permute.xlu0 0
      %1274 = vperm.xlu0 %1273, %v1228
      %v1275 = vpop.permute.xlu0 %1274
      %1278 = vset.pattern.permute.xlu0 0
      %1279 = vperm.xlu0 %1278, %v1229
      %v1280 = vpop.permute.xlu0 %1279
      %1283 = vset.pattern.permute.xlu0 0
      %1284 = vperm.xlu0 %1283, %v1230
      %v1285 = vpop.permute.xlu0 %1284
      %1288 = vset.pattern.permute.xlu0 0
      %1289 = vperm.xlu0 %1288, %v1231
      %v1290 = vpop.permute.xlu0 %1289
      %1293 = vset.pattern.permute.xlu0 0
      %1294 = vperm.xlu0 %1293, %v1232
      %v1295 = vpop.permute.xlu0 %1294
      %1298 = vset.pattern.permute.xlu0 0
      %1299 = vperm.xlu0 %1298, %v1233
      %v1300 = vpop.permute.xlu0 %1299
      %1303 = vset.pattern.permute.xlu0 0
      %1304 = vperm.xlu0 %1303, %v1234
      %v1305 = vpop.permute.xlu0 %1304
      %1308 = vset.pattern.permute.xlu0 0
      %1309 = vperm.xlu0 %1308, %v1235
      %v1310 = vpop.permute.xlu0 %1309
      %1313 = vset.pattern.permute.xlu0 0
      %1314 = vperm.xlu0 %1313, %v1236
      %v1315 = vpop.permute.xlu0 %1314
      %vm1317 = vcmask 523264
      %v1319 = vsel %vm1317, %v1145, 0
      %v1322 = vsel %vm1317, %v1150, 0
      %v1325 = vsel %vm1317, %v1155, 0
      %v1328 = vsel %vm1317, %v1160, 0
      %v1331 = vsel %vm1317, %v1165, 0
      %v1334 = vsel %vm1317, %v1170, 0
      %v1337 = vsel %vm1317, %v1175, 0
      %v1340 = vsel %vm1317, %v1180, 0
      %v1343 = vsel %vm1317, %v1185, 0
      %v1346 = vsel %vm1317, %v1190, 0
      %v1349 = vsel %vm1317, %v1195, 0
      %v1352 = vsel %vm1317, %v1200, 0
      %v1355 = vsel %vm1317, %v1205, 0
      %v1358 = vsel %vm1317, %v1210, 0
      %v1361 = vsel %vm1317, %v1215, 0
      %v1364 = vsel %vm1317, %v1220, 0
      %1366 = vmatprep.subr.mxu0 0.0
      %1367 = vmatpush1.msra.mxu0 %v957
      %1368 = vmatprep.subr.mxu0 0.0
      %1369 = vmatpush1.msra.mxu0 %v958
      %1370 = vmatprep.subr.mxu0 0.0
      %1371 = vmatpush1.msra.mxu0 %v959
      %1372 = vmatprep.subr.mxu0 0.0
      %1373 = vmatpush1.msra.mxu0 %v960
      %1374 = vmatprep.subr.mxu0 0.0
      %1375 = vmatpush1.msra.mxu0 %v961
      %1376 = vmatprep.subr.mxu0 0.0
      %1377 = vmatpush1.msra.mxu0 %v962
      %1378 = vmatprep.subr.mxu0 0.0
      %1379 = vmatpush1.msra.mxu0 %v963
      %1380 = vmatprep.subr.mxu0 0.0
      %1381 = vmatpush1.msra.mxu0 %v964
      %1382 = vmatprep.subr.mxu0 0.0
      %1383 = vmatpush1.msra.mxu0 %v981
      %1384 = vmatprep.subr.mxu0 0.0
      %1385 = vmatpush1.msra.mxu0 %v982
      %1386 = vmatprep.subr.mxu0 0.0
      %1387 = vmatpush1.msra.mxu0 %v983
      %1388 = vmatprep.subr.mxu0 0.0
      %1389 = vmatpush1.msra.mxu0 %v984
      %1390 = vmatprep.subr.mxu0 0.0
      %1391 = vmatpush1.msra.mxu0 %v985
      %1392 = vmatprep.subr.mxu0 0.0
      %1393 = vmatpush1.msra.mxu0 %v986
      %1394 = vmatprep.subr.mxu0 0.0
      %1395 = vmatpush1.msra.mxu0 %v987
      %1396 = vmatprep.subr.mxu0 0.0
      %1397 = vmatpush1.msra.mxu0 %v988
      %1398 = vmatprep.subr.mxu0 0.0
      %1399 = vmatpush1.msra.mxu0 %v1005
      %1400 = vmatprep.subr.mxu0 0.0
      %1401 = vmatpush1.msra.mxu0 %v1006
      %1402 = vmatprep.subr.mxu0 0.0
      %1403 = vmatpush1.msra.mxu0 %v1007
      %1404 = vmatprep.subr.mxu0 0.0
      %1405 = vmatpush1.msra.mxu0 %v1008
      %1406 = vmatprep.subr.mxu0 0.0
      %1407 = vmatpush1.msra.mxu0 %v1009
      %1408 = vmatprep.subr.mxu0 0.0
      %1409 = vmatpush1.msra.mxu0 %v1010
      %1410 = vmatprep.subr.mxu0 0.0
      %1411 = vmatpush1.msra.mxu0 %v1011
      %1412 = vmatprep.subr.mxu0 0.0
      %1413 = vmatpush1.msra.mxu0 %v1012
      %1414 = vmatprep.subr.mxu0 0.0
      %1415 = vmatpush1.msra.mxu0 %v1029
      %1416 = vmatprep.subr.mxu0 0.0
      %1417 = vmatpush1.msra.mxu0 %v1030
      %1418 = vmatprep.subr.mxu0 0.0
      %1419 = vmatpush1.msra.mxu0 %v1031
      %1420 = vmatprep.subr.mxu0 0.0
      %1421 = vmatpush1.msra.mxu0 %v1032
      %1422 = vmatprep.subr.mxu0 0.0
      %1423 = vmatpush1.msra.mxu0 %v1033
      %1424 = vmatprep.subr.mxu0 0.0
      %1425 = vmatpush1.msra.mxu0 %v1034
      %1426 = vmatprep.subr.mxu0 0.0
      %1427 = vmatpush1.msra.mxu0 %v1035
      %1428 = vmatprep.subr.mxu0 0.0
      %1429 = vmatpush1.msra.mxu0 %v1036
      %1430 = vmatprep.mubr.f32.mxu0 %v1142
      %1431 = vmatmul.mubr.f32.gmra.mrb[0].mxu0 %v1141
      %v1432 = vpop.f32.mrb[0].mxu0
      %v1433 = vadd.f32 %v1240, %v1432
      %v1434 = vpop.f32.mrb[0].mxu0
      %1435 = vmatprep.mubr.f32.mxu0 %v1147
      %1436 = vmatmul.mubr.f32.gmra.mrb[0].mxu0 %v1146
      %v1437 = vpop.f32.mrb[0].mxu0
      %v1438 = vadd.f32 %v1245, %v1437
      %v1439 = vpop.f32.mrb[0].mxu0
      %1440 = vmatprep.mubr.f32.mxu0 %v1152
      %1441 = vmatmul.mubr.f32.gmra.mrb[0].mxu0 %v1151
      %v1442 = vpop.f32.mrb[0].mxu0
      %v1443 = vadd.f32 %v1250, %v1442
      %v1444 = vpop.f32.mrb[0].mxu0
      %1445 = vmatprep.mubr.f32.mxu0 %v1157
      %1446 = vmatmul.mubr.f32.gmra.mrb[0].mxu0 %v1156
      %v1447 = vpop.f32.mrb[0].mxu0
      %v1448 = vadd.f32 %v1255, %v1447
      %v1449 = vpop.f32.mrb[0].mxu0
      %1450 = vmatprep.mubr.f32.mxu0 %v1162
      %1451 = vmatmul.mubr.f32.gmra.mrb[0].mxu0 %v1161
      %v1452 = vpop.f32.mrb[0].mxu0
      %v1453 = vadd.f32 %v1260, %v1452
      %v1454 = vpop.f32.mrb[0].mxu0
      %1455 = vmatprep.mubr.f32.mxu0 %v1167
      %1456 = vmatmul.mubr.f32.gmra.mrb[0].mxu0 %v1166
      %v1457 = vpop.f32.mrb[0].mxu0
      %v1458 = vadd.f32 %v1265, %v1457
      %v1459 = vpop.f32.mrb[0].mxu0
      %1460 = vmatprep.mubr.f32.mxu0 %v1172
      %1461 = vmatmul.mubr.f32.gmra.mrb[0].mxu0 %v1171
      %v1462 = vpop.f32.mrb[0].mxu0
      %v1463 = vadd.f32 %v1270, %v1462
      %v1464 = vpop.f32.mrb[0].mxu0
      %1465 = vmatprep.mubr.f32.mxu0 %v1177
      %1466 = vmatmul.mubr.f32.gmra.mrb[0].mxu0 %v1176
      %v1467 = vpop.f32.mrb[0].mxu0
      %v1468 = vadd.f32 %v1275, %v1467
      %v1469 = vpop.f32.mrb[0].mxu0
      %1470 = vmatprep.mubr.f32.mxu0 %v1182
      %1471 = vmatmul.mubr.f32.gmra.mrb[0].mxu0 %v1181
      %v1472 = vpop.f32.mrb[0].mxu0
      %v1473 = vadd.f32 %v1280, %v1472
      %v1474 = vpop.f32.mrb[0].mxu0
      %1475 = vmatprep.mubr.f32.mxu0 %v1187
      %1476 = vmatmul.mubr.f32.gmra.mrb[0].mxu0 %v1186
      %v1477 = vpop.f32.mrb[0].mxu0
      %v1478 = vadd.f32 %v1285, %v1477
      %v1479 = vpop.f32.mrb[0].mxu0
      %1480 = vmatprep.mubr.f32.mxu0 %v1192
      %1481 = vmatmul.mubr.f32.gmra.mrb[0].mxu0 %v1191
      %v1482 = vpop.f32.mrb[0].mxu0
      %v1483 = vadd.f32 %v1290, %v1482
      %v1484 = vpop.f32.mrb[0].mxu0
      %1485 = vmatprep.mubr.f32.mxu0 %v1197
      %1486 = vmatmul.mubr.f32.gmra.mrb[0].mxu0 %v1196
      %v1487 = vpop.f32.mrb[0].mxu0
      %v1488 = vadd.f32 %v1295, %v1487
      %v1489 = vpop.f32.mrb[0].mxu0
      %1490 = vmatprep.mubr.f32.mxu0 %v1202
      %1491 = vmatmul.mubr.f32.gmra.mrb[0].mxu0 %v1201
      %v1492 = vpop.f32.mrb[0].mxu0
      %v1493 = vadd.f32 %v1300, %v1492
      %v1494 = vpop.f32.mrb[0].mxu0
      %1495 = vmatprep.mubr.f32.mxu0 %v1207
      %1496 = vmatmul.mubr.f32.gmra.mrb[0].mxu0 %v1206
      %v1497 = vpop.f32.mrb[0].mxu0
      %v1498 = vadd.f32 %v1305, %v1497
      %v1499 = vpop.f32.mrb[0].mxu0
      %1500 = vmatprep.mubr.f32.mxu0 %v1212
      %1501 = vmatmul.mubr.f32.gmra.mrb[0].mxu0 %v1211
      %v1502 = vpop.f32.mrb[0].mxu0
      %v1503 = vadd.f32 %v1310, %v1502
      %v1504 = vpop.f32.mrb[0].mxu0
      %1505 = vmatprep.mubr.f32.mxu0 %v1217
      %1506 = vmatmul.mubr.f32.gmra.mrb[0].mxu0 %v1216
      %v1507 = vpop.f32.mrb[0].mxu0
      %v1508 = vadd.f32 %v1315, %v1507
      %v1509 = vpop.f32.mrb[0].mxu0
      %1510 = vdwg.mxu0
      %1511 = vmatprep.subr.mxu0 0.0
      %1512 = vmatpush1.msra.mxu0 %v1037
      %1513 = vmatprep.subr.mxu0 0.0
      %1514 = vmatpush1.msra.mxu0 %v1038
      %1515 = vmatprep.subr.mxu0 0.0
      %1516 = vmatpush1.msra.mxu0 %v1039
      %1517 = vmatprep.subr.mxu0 0.0
      %1518 = vmatpush1.msra.mxu0 %v1040
      %1519 = vmatprep.subr.mxu0 0.0
      %1520 = vmatpush1.msra.mxu0 %v1041
      %1521 = vmatprep.subr.mxu0 0.0
      %1522 = vmatpush1.msra.mxu0 %v1042
      %1523 = vmatprep.subr.mxu0 0.0
      %1524 = vmatpush1.msra.mxu0 %v1043
      %1525 = vmatprep.subr.mxu0 0.0
      %1526 = vmatpush1.msra.mxu0 %v1044
      %1527 = vmatprep.subr.mxu0 0.0
      %1528 = vmatpush1.msra.mxu0 %v1061
      %1529 = vmatprep.subr.mxu0 0.0
      %1530 = vmatpush1.msra.mxu0 %v1062
      %1531 = vmatprep.subr.mxu0 0.0
      %1532 = vmatpush1.msra.mxu0 %v1063
      %1533 = vmatprep.subr.mxu0 0.0
      %1534 = vmatpush1.msra.mxu0 %v1064
      %1535 = vmatprep.subr.mxu0 0.0
      %1536 = vmatpush1.msra.mxu0 %v1065
      %1537 = vmatprep.subr.mxu0 0.0
      %1538 = vmatpush1.msra.mxu0 %v1066
      %1539 = vmatprep.subr.mxu0 0.0
      %1540 = vmatpush1.msra.mxu0 %v1067
      %1541 = vmatprep.subr.mxu0 0.0
      %1542 = vmatpush1.msra.mxu0 %v1068
      %1543 = vmatprep.subr.mxu0 0.0
      %1544 = vmatpush1.msra.mxu0 %v1085
      %1545 = vmatprep.subr.mxu0 0.0
      %1546 = vmatpush1.msra.mxu0 %v1086
      %1547 = vmatprep.subr.mxu0 0.0
      %1548 = vmatpush1.msra.mxu0 %v1087
      %1549 = vmatprep.subr.mxu0 0.0
      %1550 = vmatpush1.msra.mxu0 %v1088
      %1551 = vmatprep.subr.mxu0 0.0
      %1552 = vmatpush1.msra.mxu0 %v1089
      %1553 = vmatprep.subr.mxu0 0.0
      %1554 = vmatpush1.msra.mxu0 %v1090
      %1555 = vmatprep.subr.mxu0 0.0
      %1556 = vmatpush1.msra.mxu0 %v1091
      %1557 = vmatprep.subr.mxu0 0.0
      %1558 = vmatpush1.msra.mxu0 %v1092
      %1559 = vmatprep.subr.mxu0 0.0
      %1560 = vmatpush1.msra.mxu0 %v1109
      %1561 = vmatprep.subr.mxu0 0.0
      %1562 = vmatpush1.msra.mxu0 %v1110
      %1563 = vmatprep.subr.mxu0 0.0
      %1564 = vmatpush1.msra.mxu0 %v1111
      %1565 = vmatprep.subr.mxu0 0.0
      %1566 = vmatpush1.msra.mxu0 %v1112
      %1567 = vmatprep.subr.mxu0 0.0
      %1568 = vmatpush1.msra.mxu0 %v1113
      %1569 = vmatprep.subr.mxu0 0.0
      %1570 = vmatpush1.msra.mxu0 %v1114
      %1571 = vmatprep.subr.mxu0 0.0
      %1572 = vmatpush1.msra.mxu0 %v1115
      %1573 = vmatprep.subr.mxu0 0.0
      %1574 = vmatpush1.msra.mxu0 %v1116
      %1575 = vmatprep.mubr.f32.mxu0 %v1144
      %1576 = vmatmul.mubr.f32.gmra.mrb[0].mxu0 %v1143
      %v1577 = vpop.f32.mrb[0].mxu0
      %v1578 = vadd.f32 %v1433, %v1577
      %v1579 = vpop.f32.mrb[0].mxu0
      %1580 = vmatprep.mubr.f32.mxu0 %v1149
      %1581 = vmatmul.mubr.f32.gmra.mrb[0].mxu0 %v1148
      %v1582 = vpop.f32.mrb[0].mxu0
      %v1583 = vadd.f32 %v1438, %v1582
      %v1584 = vpop.f32.mrb[0].mxu0
      %1585 = vmatprep.mubr.f32.mxu0 %v1154
      %1586 = vmatmul.mubr.f32.gmra.mrb[0].mxu0 %v1153
      %v1587 = vpop.f32.mrb[0].mxu0
      %v1588 = vadd.f32 %v1443, %v1587
      %v1589 = vpop.f32.mrb[0].mxu0
      %1590 = vmatprep.mubr.f32.mxu0 %v1159
      %1591 = vmatmul.mubr.f32.gmra.mrb[0].mxu0 %v1158
      %v1592 = vpop.f32.mrb[0].mxu0
      %v1593 = vadd.f32 %v1448, %v1592
      %v1594 = vpop.f32.mrb[0].mxu0
      %1595 = vmatprep.mubr.f32.mxu0 %v1164
      %1596 = vmatmul.mubr.f32.gmra.mrb[0].mxu0 %v1163
      %v1597 = vpop.f32.mrb[0].mxu0
      %v1598 = vadd.f32 %v1453, %v1597
      %v1599 = vpop.f32.mrb[0].mxu0
      %1600 = vmatprep.mubr.f32.mxu0 %v1169
      %1601 = vmatmul.mubr.f32.gmra.mrb[0].mxu0 %v1168
      %v1602 = vpop.f32.mrb[0].mxu0
      %v1603 = vadd.f32 %v1458, %v1602
      %v1604 = vpop.f32.mrb[0].mxu0
      %1605 = vmatprep.mubr.f32.mxu0 %v1174
      %1606 = vmatmul.mubr.f32.gmra.mrb[0].mxu0 %v1173
      %v1607 = vpop.f32.mrb[0].mxu0
      %v1608 = vadd.f32 %v1463, %v1607
      %v1609 = vpop.f32.mrb[0].mxu0
      %1610 = vmatprep.mubr.f32.mxu0 %v1179
      %1611 = vmatmul.mubr.f32.gmra.mrb[0].mxu0 %v1178
      %v1612 = vpop.f32.mrb[0].mxu0
      %v1613 = vadd.f32 %v1468, %v1612
      %v1614 = vpop.f32.mrb[0].mxu0
      %1615 = vmatprep.mubr.f32.mxu0 %v1184
      %1616 = vmatmul.mubr.f32.gmra.mrb[0].mxu0 %v1183
      %v1617 = vpop.f32.mrb[0].mxu0
      %v1618 = vadd.f32 %v1473, %v1617
      %v1619 = vpop.f32.mrb[0].mxu0
      %1620 = vmatprep.mubr.f32.mxu0 %v1189
      %1621 = vmatmul.mubr.f32.gmra.mrb[0].mxu0 %v1188
      %v1622 = vpop.f32.mrb[0].mxu0
      %v1623 = vadd.f32 %v1478, %v1622
      %v1624 = vpop.f32.mrb[0].mxu0
      %1625 = vmatprep.mubr.f32.mxu0 %v1194
      %1626 = vmatmul.mubr.f32.gmra.mrb[0].mxu0 %v1193
      %v1627 = vpop.f32.mrb[0].mxu0
      %v1628 = vadd.f32 %v1483, %v1627
      %v1629 = vpop.f32.mrb[0].mxu0
      %1630 = vmatprep.mubr.f32.mxu0 %v1199
      %1631 = vmatmul.mubr.f32.gmra.mrb[0].mxu0 %v1198
      %v1632 = vpop.f32.mrb[0].mxu0
      %v1633 = vadd.f32 %v1488, %v1632
      %v1634 = vpop.f32.mrb[0].mxu0
      %1635 = vmatprep.mubr.f32.mxu0 %v1204
      %1636 = vmatmul.mubr.f32.gmra.mrb[0].mxu0 %v1203
      %v1637 = vpop.f32.mrb[0].mxu0
      %v1638 = vadd.f32 %v1493, %v1637
      %v1639 = vpop.f32.mrb[0].mxu0
      %1640 = vmatprep.mubr.f32.mxu0 %v1209
      %1641 = vmatmul.mubr.f32.gmra.mrb[0].mxu0 %v1208
      %v1642 = vpop.f32.mrb[0].mxu0
      %v1643 = vadd.f32 %v1498, %v1642
      %v1644 = vpop.f32.mrb[0].mxu0
      %1645 = vmatprep.mubr.f32.mxu0 %v1214
      %1646 = vmatmul.mubr.f32.gmra.mrb[0].mxu0 %v1213
      %v1647 = vpop.f32.mrb[0].mxu0
      %v1648 = vadd.f32 %v1503, %v1647
      %v1649 = vpop.f32.mrb[0].mxu0
      %1650 = vmatprep.mubr.f32.mxu0 %v1219
      %1651 = vmatmul.mubr.f32.gmra.mrb[0].mxu0 %v1218
      %v1652 = vpop.f32.mrb[0].mxu0
      %v1653 = vadd.f32 %v1508, %v1652
      %v1654 = vpop.f32.mrb[0].mxu0
      %1655 = vdwg.mxu0
      %1656 = vmatprep.subr.mxu0 0.0
      %1657 = vmatpush1.msra.mxu0 %v1133
      %1658 = vmatprep.subr.mxu0 0.0
      %1659 = vmatpush1.msra.mxu0 %v1134
      %1660 = vmatprep.subr.mxu0 0.0
      %1661 = vmatpush1.msra.mxu0 %v1135
      %1662 = vmatprep.subr.mxu0 0.0
      %1663 = vmatpush1.msra.mxu0 %v1136
      %1664 = vmatprep.subr.mxu0 0.0
      %1665 = vmatpush1.msra.mxu0 %v1137
      %1666 = vmatprep.subr.mxu0 0.0
      %1667 = vmatpush1.msra.mxu0 %v1138
      %1668 = vmatprep.subr.mxu0 0.0
      %1669 = vmatpush1.msra.mxu0 %v1139
      %1670 = vmatprep.subr.mxu0 0.0
      %1671 = vmatpush1.msra.mxu0 %v1140
      %1672 = vmatprep.subr.mxu0 0.0
      %1673 = vmatpush1.msra.mxu0 0.0
      %1674 = vmatprep.subr.mxu0 0.0
      %1675 = vmatpush1.msra.mxu0 0.0
      %1676 = vmatprep.subr.mxu0 0.0
      %1677 = vmatpush1.msra.mxu0 0.0
      %1678 = vmatprep.subr.mxu0 0.0
      %1679 = vmatpush1.msra.mxu0 0.0
      %1680 = vmatprep.subr.mxu0 0.0
      %1681 = vmatpush1.msra.mxu0 0.0
      %1682 = vmatprep.subr.mxu0 0.0
      %1683 = vmatpush1.msra.mxu0 0.0
      %1684 = vmatprep.subr.mxu0 0.0
      %1685 = vmatpush1.msra.mxu0 0.0
      %1686 = vmatprep.subr.mxu0 0.0
      %1687 = vmatpush1.msra.mxu0 0.0
      %1688 = vmatprep.subr.mxu0 0.0
      %1689 = vmatpush1.msra.mxu0 0.0
      %1690 = vmatprep.subr.mxu0 0.0
      %1691 = vmatpush1.msra.mxu0 0.0
      %1692 = vmatprep.subr.mxu0 0.0
      %1693 = vmatpush1.msra.mxu0 0.0
      %1694 = vmatprep.subr.mxu0 0.0
      %1695 = vmatpush1.msra.mxu0 0.0
      %1696 = vmatprep.subr.mxu0 0.0
      %1697 = vmatpush1.msra.mxu0 0.0
      %1698 = vmatprep.subr.mxu0 0.0
      %1699 = vmatpush1.msra.mxu0 0.0
      %1700 = vmatprep.subr.mxu0 0.0
      %1701 = vmatpush1.msra.mxu0 0.0
      %1702 = vmatprep.subr.mxu0 0.0
      %1703 = vmatpush1.msra.mxu0 0.0
      %1704 = vmatprep.subr.mxu0 0.0
      %1705 = vmatpush1.msra.mxu0 0.0
      %1706 = vmatprep.subr.mxu0 0.0
      %1707 = vmatpush1.msra.mxu0 0.0
      %1708 = vmatprep.subr.mxu0 0.0
      %1709 = vmatpush1.msra.mxu0 0.0
      %1710 = vmatprep.subr.mxu0 0.0
      %1711 = vmatpush1.msra.mxu0 0.0
      %1712 = vmatprep.subr.mxu0 0.0
      %1713 = vmatpush1.msra.mxu0 0.0
      %1714 = vmatprep.subr.mxu0 0.0
      %1715 = vmatpush1.msra.mxu0 0.0
      %1716 = vmatprep.subr.mxu0 0.0
      %1717 = vmatpush1.msra.mxu0 0.0
      %1718 = vmatprep.subr.mxu0 0.0
      %1719 = vmatpush1.msra.mxu0 0.0
      %1720 = vmatprep.mubr.f32.mxu0 0.0
      %1721 = vmatmul.mubr.f32.gmra.mrb[0].mxu0 %v1319
      %v1722 = vpop.f32.mrb[0].mxu0
      %v1723 = vadd.f32 %v1578, %v1722
      %v1724 = vpop.f32.mrb[0].mxu0
      %1725 = vmatprep.mubr.f32.mxu0 0.0
      %1726 = vmatmul.mubr.f32.gmra.mrb[0].mxu0 %v1322
      %v1727 = vpop.f32.mrb[0].mxu0
      %v1728 = vadd.f32 %v1583, %v1727
      %v1729 = vpop.f32.mrb[0].mxu0
      %1730 = vmatprep.mubr.f32.mxu0 0.0
      %1731 = vmatmul.mubr.f32.gmra.mrb[0].mxu0 %v1325
      %v1732 = vpop.f32.mrb[0].mxu0
      %v1733 = vadd.f32 %v1588, %v1732
      %v1734 = vpop.f32.mrb[0].mxu0
      %1735 = vmatprep.mubr.f32.mxu0 0.0
      %1736 = vmatmul.mubr.f32.gmra.mrb[0].mxu0 %v1328
      %v1737 = vpop.f32.mrb[0].mxu0
      %v1738 = vadd.f32 %v1593, %v1737
      %v1739 = vpop.f32.mrb[0].mxu0
      %1740 = vmatprep.mubr.f32.mxu0 0.0
      %1741 = vmatmul.mubr.f32.gmra.mrb[0].mxu0 %v1331
      %v1742 = vpop.f32.mrb[0].mxu0
      %v1743 = vadd.f32 %v1598, %v1742
      %v1744 = vpop.f32.mrb[0].mxu0
      %1745 = vmatprep.mubr.f32.mxu0 0.0
      %1746 = vmatmul.mubr.f32.gmra.mrb[0].mxu0 %v1334
      %v1747 = vpop.f32.mrb[0].mxu0
      %v1748 = vadd.f32 %v1603, %v1747
      %v1749 = vpop.f32.mrb[0].mxu0
      %1750 = vmatprep.mubr.f32.mxu0 0.0
      %1751 = vmatmul.mubr.f32.gmra.mrb[0].mxu0 %v1337
      %v1752 = vpop.f32.mrb[0].mxu0
      %v1753 = vadd.f32 %v1608, %v1752
      %v1754 = vpop.f32.mrb[0].mxu0
      %1755 = vmatprep.mubr.f32.mxu0 0.0
      %1756 = vmatmul.mubr.f32.gmra.mrb[0].mxu0 %v1340
      %v1757 = vpop.f32.mrb[0].mxu0
      %v1758 = vadd.f32 %v1613, %v1757
      %v1759 = vpop.f32.mrb[0].mxu0
      %1760 = vmatprep.mubr.f32.mxu0 0.0
      %1761 = vmatmul.mubr.f32.gmra.mrb[0].mxu0 %v1343
      %v1762 = vpop.f32.mrb[0].mxu0
      %v1763 = vadd.f32 %v1618, %v1762
      %v1764 = vpop.f32.mrb[0].mxu0
      %1765 = vmatprep.mubr.f32.mxu0 0.0
      %1766 = vmatmul.mubr.f32.gmra.mrb[0].mxu0 %v1346
      %v1767 = vpop.f32.mrb[0].mxu0
      %v1768 = vadd.f32 %v1623, %v1767
      %v1769 = vpop.f32.mrb[0].mxu0
      %1770 = vmatprep.mubr.f32.mxu0 0.0
      %1771 = vmatmul.mubr.f32.gmra.mrb[0].mxu0 %v1349
      %v1772 = vpop.f32.mrb[0].mxu0
      %v1773 = vadd.f32 %v1628, %v1772
      %v1774 = vpop.f32.mrb[0].mxu0
      %1775 = vmatprep.mubr.f32.mxu0 0.0
      %1776 = vmatmul.mubr.f32.gmra.mrb[0].mxu0 %v1352
      %v1777 = vpop.f32.mrb[0].mxu0
      %v1778 = vadd.f32 %v1633, %v1777
      %v1779 = vpop.f32.mrb[0].mxu0
      %1780 = vmatprep.mubr.f32.mxu0 0.0
      %1781 = vmatmul.mubr.f32.gmra.mrb[0].mxu0 %v1355
      %v1782 = vpop.f32.mrb[0].mxu0
      %v1783 = vadd.f32 %v1638, %v1782
      %v1784 = vpop.f32.mrb[0].mxu0
      %1785 = vmatprep.mubr.f32.mxu0 0.0
      %1786 = vmatmul.mubr.f32.gmra.mrb[0].mxu0 %v1358
      %v1787 = vpop.f32.mrb[0].mxu0
      %v1788 = vadd.f32 %v1643, %v1787
      %v1789 = vpop.f32.mrb[0].mxu0
      %1790 = vmatprep.mubr.f32.mxu0 0.0
      %1791 = vmatmul.mubr.f32.gmra.mrb[0].mxu0 %v1361
      %v1792 = vpop.f32.mrb[0].mxu0
      %v1793 = vadd.f32 %v1648, %v1792
      %v1794 = vpop.f32.mrb[0].mxu0
      %1795 = vmatprep.mubr.f32.mxu0 0.0
      %1796 = vmatmul.mubr.f32.gmra.mrb[0].mxu0 %v1364
      %v1797 = vpop.f32.mrb[0].mxu0
      %v1798 = vadd.f32 %v1653, %v1797
      %v1799 = vpop.f32.mrb[0].mxu0
      %1800 = vdwg.mxu0
      %v1801 = vmax.f32 %v1723, 0.0
      %v1802 = vmax.f32 %v1728, 0.0
      %v1803 = vmax.f32 %v1733, 0.0
      %v1804 = vmax.f32 %v1738, 0.0
      %v1805 = vmax.f32 %v1743, 0.0
      %v1806 = vmax.f32 %v1748, 0.0
      %v1807 = vmax.f32 %v1753, 0.0
      %v1808 = vmax.f32 %v1758, 0.0
      %v1809 = vmax.f32 %v1763, 0.0
      %v1810 = vmax.f32 %v1768, 0.0
      %v1811 = vmax.f32 %v1773, 0.0
      %v1812 = vmax.f32 %v1778, 0.0
      %v1813 = vmax.f32 %v1783, 0.0
      %v1814 = vmax.f32 %v1788, 0.0
      %v1815 = vmax.f32 %v1793, 0.0
      %v1816 = vmax.f32 %v1798, 0.0
      %v1817 = vld [vmem:[%s2] sm:$0xff]
      %v1818 = vld [vmem:[%s2 + $0x8] sm:$0xff]
      %v1819 = vld [vmem:[%s2 + $0x10] sm:$0xff]
      %v1820 = vld [vmem:[%s2 + $0x18] sm:$0x1]
      %1821 = vmatprep.subr.mxu0 0.0
      %1822 = vmatpush1.xpose.msra.mxu0 %v1801
      %1823 = vmatprep.subr.mxu0 0.0
      %1824 = vmatpush1.xpose.msra.mxu0 %v1802
      %1825 = vmatprep.subr.mxu0 0.0
      %1826 = vmatpush1.xpose.msra.mxu0 %v1803
      %1827 = vmatprep.subr.mxu0 0.0
      %1828 = vmatpush1.xpose.msra.mxu0 %v1804
      %1829 = vmatprep.subr.mxu0 0.0
      %1830 = vmatpush1.xpose.msra.mxu0 %v1805
      %1831 = vmatprep.subr.mxu0 0.0
      %1832 = vmatpush1.xpose.msra.mxu0 %v1806
      %1833 = vmatprep.subr.mxu0 0.0
      %1834 = vmatpush1.xpose.msra.mxu0 %v1807
      %1835 = vmatprep.subr.mxu0 0.0
      %1836 = vmatpush1.xpose.msra.mxu0 %v1808
      %1837 = vmatprep.subr.mxu0 0.0
      %1838 = vmatpush1.xpose.msra.mxu0 %v1809
      %1839 = vmatprep.subr.mxu0 0.0
      %1840 = vmatpush1.xpose.msra.mxu0 %v1810
      %1841 = vmatprep.subr.mxu0 0.0
      %1842 = vmatpush1.xpose.msra.mxu0 %v1811
      %1843 = vmatprep.subr.mxu0 0.0
      %1844 = vmatpush1.xpose.msra.mxu0 %v1812
      %1845 = vmatprep.subr.mxu0 0.0
      %1846 = vmatpush1.xpose.msra.mxu0 %v1813
      %1847 = vmatprep.subr.mxu0 0.0
      %1848 = vmatpush1.xpose.msra.mxu0 %v1814
      %1849 = vmatprep.subr.mxu0 0.0
      %1850 = vmatpush1.xpose.msra.mxu0 %v1815
      %1851 = vmatprep.subr.mxu0 0.0
      %1852 = vmatpush1.xpose.msra.mxu0 %v1816
      %1853 = vmatprep.subr.mxu0 0.0
      %1854 = vmatpush1.xpose.msra.mxu0 0.0
      %1855 = vmatprep.subr.mxu0 0.0
      %1856 = vmatpush1.xpose.msra.mxu0 0.0
      %1857 = vmatprep.subr.mxu0 0.0
      %1858 = vmatpush1.xpose.msra.mxu0 0.0
      %1859 = vmatprep.subr.mxu0 0.0
      %1860 = vmatpush1.xpose.msra.mxu0 0.0
      %1861 = vmatprep.subr.mxu0 0.0
      %1862 = vmatpush1.xpose.msra.mxu0 0.0
      %1863 = vmatprep.subr.mxu0 0.0
      %1864 = vmatpush1.xpose.msra.mxu0 0.0
      %1865 = vmatprep.subr.mxu0 0.0
      %1866 = vmatpush1.xpose.msra.mxu0 0.0
      %1867 = vmatprep.subr.mxu0 0.0
      %1868 = vmatpush1.xpose.msra.mxu0 0.0
      %1869 = vmatprep.subr.mxu0 0.0
      %1870 = vmatpush1.xpose.msra.mxu0 0.0
      %1871 = vmatprep.subr.mxu0 0.0
      %1872 = vmatpush1.xpose.msra.mxu0 0.0
      %1873 = vmatprep.subr.mxu0 0.0
      %1874 = vmatpush1.xpose.msra.mxu0 0.0
      %1875 = vmatprep.subr.mxu0 0.0
      %1876 = vmatpush1.xpose.msra.mxu0 0.0
      %1877 = vmatprep.subr.mxu0 0.0
      %1878 = vmatpush1.xpose.msra.mxu0 0.0
      %1879 = vmatprep.subr.mxu0 0.0
      %1880 = vmatpush1.xpose.msra.mxu0 0.0
      %1881 = vmatprep.subr.mxu0 0.0
      %1882 = vmatpush1.xpose.msra.mxu0 0.0
      %1883 = vmatprep.subr.mxu0 0.0
      %1884 = vmatpush1.xpose.msra.mxu0 0.0
      %1885 = vmatprep.mubr.f32.mxu0 0.0
      %1886 = vmatmul.mubr.f32.gmra.mrb[0].mxu0 %v1817
      %v1887 = vpop.f32.mrb[0].mxu0
      %v1888 = vadd.f32 0.0, %v1887
      %v1889 = vpop.f32.mrb[0].mxu0
      %1890 = vmatprep.mubr.f32.mxu0 0.0
      %1891 = vmatmul.mubr.f32.gmra.mrb[0].mxu0 %v1818
      %v1892 = vpop.f32.mrb[0].mxu0
      %v1893 = vadd.f32 0.0, %v1892
      %v1894 = vpop.f32.mrb[0].mxu0
      %1895 = vmatprep.mubr.f32.mxu0 0.0
      %1896 = vmatmul.mubr.f32.gmra.mrb[0].mxu0 %v1819
      %v1897 = vpop.f32.mrb[0].mxu0
      %v1898 = vadd.f32 0.0, %v1897
      %v1899 = vpop.f32.mrb[0].mxu0
      %1900 = vmatprep.mubr.f32.mxu0 0.0
      %1901 = vmatmul.mubr.f32.gmra.mrb[0].mxu0 %v1820
      %v1902 = vpop.f32.mrb[0].mxu0
      %v1903 = vadd.f32 0.0, %v1902
      %v1904 = vpop.f32.mrb[0].mxu0
      %1905 = vdwg.mxu0
      %v1906 = vld [vmem:[%s8] sm:$0xff]
      %v1907 = vld [vmem:[%s8 + $0x8] sm:$0xff]
      %v1908 = vld [vmem:[%s8 + $0x10] sm:$0xff]
      %v1909 = vld [vmem:[%s8 + $0x18] sm:$0xff]
      %v1910 = vld [vmem:[%s8 + $0x20] sm:$0xff]
      %v1911 = vld [vmem:[%s8 + $0x28] sm:$0xff]
      %v1912 = vld [vmem:[%s8 + $0x30] sm:$0xff]
      %v1913 = vld [vmem:[%s8 + $0x38] sm:$0xff]
      %v1914 = vld [vmem:[%s8 + $0x40] sm:$0xff]
      %v1915 = vld [vmem:[%s8 + $0x48] sm:$0xff]
      %v1916 = vld [vmem:[%s8 + $0x50] sm:$0xff]
      %v1917 = vld [vmem:[%s8 + $0x58] sm:$0xff]
      %v1918 = vld [vmem:[%s8 + $0x60] sm:$0xff]
      %v1919 = vld [vmem:[%s8 + $0x68] sm:$0xff]
      %v1920 = vld [vmem:[%s8 + $0x70] sm:$0xff]
      %v1921 = vld [vmem:[%s8 + $0x78] sm:$0xff]
      %v1922 = vld [vmem:[%s9] sm:$0x1]
      %v1924 = vlaneseq
      %v1925 = vshrl.u32 %v1924, 7
      %v1926 = vsub.s32 0, %v1925
      %v1927 = vrot.slane %v1922, %v1926
      %1929 = vmatprep.subr.mxu0 0.0
      %1930 = vmatpush1.msra.mxu0 %v1906
      %1931 = vmatprep.subr.mxu0 0.0
      %1932 = vmatpush1.msra.mxu0 %v1907
      %1933 = vmatprep.subr.mxu0 0.0
      %1934 = vmatpush1.msra.mxu0 %v1908
      %1935 = vmatprep.subr.mxu0 0.0
      %1936 = vmatpush1.msra.mxu0 %v1909
      %1937 = vmatprep.subr.mxu0 0.0
      %1938 = vmatpush1.msra.mxu0 %v1910
      %1939 = vmatprep.subr.mxu0 0.0
      %1940 = vmatpush1.msra.mxu0 %v1911
      %1941 = vmatprep.subr.mxu0 0.0
      %1942 = vmatpush1.msra.mxu0 %v1912
      %1943 = vmatprep.subr.mxu0 0.0
      %1944 = vmatpush1.msra.mxu0 %v1913
      %1945 = vmatprep.subr.mxu0 0.0
      %1946 = vmatpush1.msra.mxu0 %v1914
      %1947 = vmatprep.subr.mxu0 0.0
      %1948 = vmatpush1.msra.mxu0 %v1915
      %1949 = vmatprep.subr.mxu0 0.0
      %1950 = vmatpush1.msra.mxu0 %v1916
      %1951 = vmatprep.subr.mxu0 0.0
      %1952 = vmatpush1.msra.mxu0 %v1917
      %1953 = vmatprep.subr.mxu0 0.0
      %1954 = vmatpush1.msra.mxu0 %v1918
      %1955 = vmatprep.subr.mxu0 0.0
      %1956 = vmatpush1.msra.mxu0 %v1919
      %1957 = vmatprep.subr.mxu0 0.0
      %1958 = vmatpush1.msra.mxu0 %v1920
      %1959 = vmatprep.subr.mxu0 0.0
      %1960 = vmatpush1.msra.mxu0 %v1921
      %1961 = vmatprep.subr.mxu0 0.0
      %1962 = vmatpush1.msra.mxu0 0.0
      %1963 = vmatprep.subr.mxu0 0.0
      %1964 = vmatpush1.msra.mxu0 0.0
      %1965 = vmatprep.subr.mxu0 0.0
      %1966 = vmatpush1.msra.mxu0 0.0
      %1967 = vmatprep.subr.mxu0 0.0
      %1968 = vmatpush1.msra.mxu0 0.0
      %1969 = vmatprep.subr.mxu0 0.0
      %1970 = vmatpush1.msra.mxu0 0.0
      %1971 = vmatprep.subr.mxu0 0.0
      %1972 = vmatpush1.msra.mxu0 0.0
      %1973 = vmatprep.subr.mxu0 0.0
      %1974 = vmatpush1.msra.mxu0 0.0
      %1975 = vmatprep.subr.mxu0 0.0
      %1976 = vmatpush1.msra.mxu0 0.0
      %1977 = vmatprep.subr.mxu0 0.0
      %1978 = vmatpush1.msra.mxu0 0.0
      %1979 = vmatprep.subr.mxu0 0.0
      %1980 = vmatpush1.msra.mxu0 0.0
      %1981 = vmatprep.subr.mxu0 0.0
      %1982 = vmatpush1.msra.mxu0 0.0
      %1983 = vmatprep.subr.mxu0 0.0
      %1984 = vmatpush1.msra.mxu0 0.0
      %1985 = vmatprep.subr.mxu0 0.0
      %1986 = vmatpush1.msra.mxu0 0.0
      %1987 = vmatprep.subr.mxu0 0.0
      %1988 = vmatpush1.msra.mxu0 0.0
      %1989 = vmatprep.subr.mxu0 0.0
      %1990 = vmatpush1.msra.mxu0 0.0
      %1991 = vmatprep.subr.mxu0 0.0
      %1992 = vmatpush1.msra.mxu0 0.0
      %1993 = vmatprep.mubr.f32.mxu0 0.0
      %1994 = vmatmul.mubr.f32.gmra.mrb[0].mxu0 %v1888
      %v1995 = vpop.f32.mrb[0].mxu0
      %v1996 = vadd.f32 %v1927, %v1995
      %v1997 = vpop.f32.mrb[0].mxu0
      %1998 = vmatprep.mubr.f32.mxu0 0.0
      %1999 = vmatmul.mubr.f32.gmra.mrb[0].mxu0 %v1893
      %v2000 = vpop.f32.mrb[0].mxu0
      %v2001 = vadd.f32 %v1927, %v2000
      %v2002 = vpop.f32.mrb[0].mxu0
      %2003 = vmatprep.mubr.f32.mxu0 0.0
      %2004 = vmatmul.mubr.f32.gmra.mrb[0].mxu0 %v1898
      %v2005 = vpop.f32.mrb[0].mxu0
      %v2006 = vadd.f32 %v1927, %v2005
      %v2007 = vpop.f32.mrb[0].mxu0
      %2008 = vmatprep.mubr.f32.mxu0 0.0
      %2009 = vmatmul.mubr.f32.gmra.mrb[0].mxu0 %v1903
      %v2010 = vpop.f32.mrb[0].mxu0
      %v2011 = vadd.f32 %v1927, %v2010
      %v2012 = vpop.f32.mrb[0].mxu0
      %2013 = vdwg.mxu0
      %v2014 = vmax.f32 %v1996, 0.0
      %v2015 = vmax.f32 %v2001, 0.0
      %v2016 = vmax.f32 %v2006, 0.0
      %v2017 = vmax.f32 %v2011, 0.0
      %v2018 = vld [vmem:[%s3] sm:$0xff]
      %v2019 = vld [vmem:[%s3 + $0x8] sm:$0xff]
      %v2020 = vld [vmem:[%s3 + $0x10] sm:$0xff]
      %v2021 = vld [vmem:[%s3 + $0x18] sm:$0x1]
      %v2022 = vadd.f32 %v2014, %v2018
      %v2023 = vadd.f32 %v2015, %v2019
      %v2024 = vadd.f32 %v2016, %v2020
      %v2025 = vadd.f32 %v2017, %v2021
      %v2026 = vld [vmem:[%s10] sm:$0xff]
      %v2027 = vld [vmem:[%s10 + $0x8] sm:$0xff]
      %v2028 = vld [vmem:[%s10 + $0x10] sm:$0xff]
      %v2029 = vld [vmem:[%s10 + $0x18] sm:$0xff]
      %v2030 = vld [vmem:[%s11] sm:$0x1]
      %v2032 = vlaneseq
      %v2033 = vshrl.u32 %v2032, 7
      %v2034 = vsub.s32 0, %v2033
      %v2035 = vrot.slane %v2030, %v2034
      %vm2037 = vcmask 261120
      %v2039 = vsel %vm2037, %v2022, 0
      %v2042 = vsel %vm2037, %v2023, 0
      %v2045 = vsel %vm2037, %v2024, 0
      %v2048 = vsel %vm2037, %v2025, 0
      %2050 = vmatprep.subr.mxu0 0.0
      %2051 = vmatpush1.msra.mxu0 %v2026
      %2052 = vmatprep.subr.mxu0 0.0
      %2053 = vmatpush1.msra.mxu0 %v2027
      %2054 = vmatprep.subr.mxu0 0.0
      %2055 = vmatpush1.msra.mxu0 %v2028
      %2056 = vmatprep.subr.mxu0 0.0
      %2057 = vmatpush1.msra.mxu0 %v2029
      %2058 = vmatprep.subr.mxu0 0.0
      %2059 = vmatpush1.msra.mxu0 0.0
      %2060 = vmatprep.subr.mxu0 0.0
      %2061 = vmatpush1.msra.mxu0 0.0
      %2062 = vmatprep.subr.mxu0 0.0
      %2063 = vmatpush1.msra.mxu0 0.0
      %2064 = vmatprep.subr.mxu0 0.0
      %2065 = vmatpush1.msra.mxu0 0.0
      %2066 = vmatprep.subr.mxu0 0.0
      %2067 = vmatpush1.msra.mxu0 0.0
      %2068 = vmatprep.subr.mxu0 0.0
      %2069 = vmatpush1.msra.mxu0 0.0
      %2070 = vmatprep.subr.mxu0 0.0
      %2071 = vmatpush1.msra.mxu0 0.0
      %2072 = vmatprep.subr.mxu0 0.0
      %2073 = vmatpush1.msra.mxu0 0.0
      %2074 = vmatprep.subr.mxu0 0.0
      %2075 = vmatpush1.msra.mxu0 0.0
      %2076 = vmatprep.subr.mxu0 0.0
      %2077 = vmatpush1.msra.mxu0 0.0
      %2078 = vmatprep.subr.mxu0 0.0
      %2079 = vmatpush1.msra.mxu0 0.0
      %2080 = vmatprep.subr.mxu0 0.0
      %2081 = vmatpush1.msra.mxu0 0.0
      %2082 = vmatprep.subr.mxu0 0.0
      %2083 = vmatpush1.msra.mxu0 0.0
      %2084 = vmatprep.subr.mxu0 0.0
      %2085 = vmatpush1.msra.mxu0 0.0
      %2086 = vmatprep.subr.mxu0 0.0
      %2087 = vmatpush1.msra.mxu0 0.0
      %2088 = vmatprep.subr.mxu0 0.0
      %2089 = vmatpush1.msra.mxu0 0.0
      %2090 = vmatprep.subr.mxu0 0.0
      %2091 = vmatpush1.msra.mxu0 0.0
      %2092 = vmatprep.subr.mxu0 0.0
      %2093 = vmatpush1.msra.mxu0 0.0
      %2094 = vmatprep.subr.mxu0 0.0
      %2095 = vmatpush1.msra.mxu0 0.0
      %2096 = vmatprep.subr.mxu0 0.0
      %2097 = vmatpush1.msra.mxu0 0.0
      %2098 = vmatprep.subr.mxu0 0.0
      %2099 = vmatpush1.msra.mxu0 0.0
      %2100 = vmatprep.subr.mxu0 0.0
      %2101 = vmatpush1.msra.mxu0 0.0
      %2102 = vmatprep.subr.mxu0 0.0
      %2103 = vmatpush1.msra.mxu0 0.0
      %2104 = vmatprep.subr.mxu0 0.0
      %2105 = vmatpush1.msra.mxu0 0.0
      %2106 = vmatprep.subr.mxu0 0.0
      %2107 = vmatpush1.msra.mxu0 0.0
      %2108 = vmatprep.subr.mxu0 0.0
      %2109 = vmatpush1.msra.mxu0 0.0
      %2110 = vmatprep.subr.mxu0 0.0
      %2111 = vmatpush1.msra.mxu0 0.0
      %2112 = vmatprep.subr.mxu0 0.0
      %2113 = vmatpush1.msra.mxu0 0.0
      %2114 = vmatprep.mubr.f32.mxu0 0.0
      %2115 = vmatmul.mubr.f32.gmra.mrb[0].mxu0 %v2039
      %v2116 = vpop.f32.mrb[0].mxu0
      %v2117 = vadd.f32 %v2035, %v2116
      %v2118 = vpop.f32.mrb[0].mxu0
      %2119 = vmatprep.mubr.f32.mxu0 0.0
      %2120 = vmatmul.mubr.f32.gmra.mrb[0].mxu0 %v2042
      %v2121 = vpop.f32.mrb[0].mxu0
      %v2122 = vadd.f32 %v2035, %v2121
      %v2123 = vpop.f32.mrb[0].mxu0
      %2124 = vmatprep.mubr.f32.mxu0 0.0
      %2125 = vmatmul.mubr.f32.gmra.mrb[0].mxu0 %v2045
      %v2126 = vpop.f32.mrb[0].mxu0
      %v2127 = vadd.f32 %v2035, %v2126
      %v2128 = vpop.f32.mrb[0].mxu0
      %2129 = vmatprep.mubr.f32.mxu0 0.0
      %2130 = vmatmul.mubr.f32.gmra.mrb[0].mxu0 %v2048
      %v2131 = vpop.f32.mrb[0].mxu0
      %v2132 = vadd.f32 %v2035, %v2131
      %v2133 = vpop.f32.mrb[0].mxu0
      %2134 = vdwg.mxu0
      %v2135 = vadd.f32 %v2035, 0.0
      %2140 = vrot.lane.b32.xlu0 %v2117, 96
      %v2141 = vpop.permute.xlu0 %2140
      %2142 = vrot.lane.b32.xlu0 %v2122, 96
      %v2143 = vpop.permute.xlu0 %2142
      %2144 = vrot.lane.b32.xlu0 %v2127, 96
      %v2145 = vpop.permute.xlu0 %2144
      %2146 = vrot.lane.b32.xlu0 %v2132, 96
      %v2147 = vpop.permute.xlu0 %2146
      %vm2148 = vcmask 64512
      %v2149 = vsel %vm2148, %v2117, 0
      %v2151 = vsel %vm2148, %v2122, 0
      %v2153 = vsel %vm2148, %v2127, 0
      %v2155 = vsel %vm2148, %v2132, 0
      %v2157 = vsel %vm2148, %v2141, 0
      %v2159 = vsel %vm2148, %v2143, 0
      %v2161 = vsel %vm2148, %v2145, 0
      %v2163 = vsel %vm2148, %v2147, 0
      %2165 = vmatprep.subr.mxu0 0.0
      %2166 = vmatpush1.xpose.msra.mxu0 %v2157
      %2167 = vmatprep.subr.mxu0 0.0
      %2168 = vmatpush1.xpose.msra.mxu0 %v2159
      %2169 = vmatprep.subr.mxu0 0.0
      %2170 = vmatpush1.xpose.msra.mxu0 %v2161
      %2171 = vmatprep.subr.mxu0 0.0
      %2172 = vmatpush1.xpose.msra.mxu0 %v2163
      %2173 = vmatprep.subr.mxu0 0.0
      %2174 = vmatpush1.xpose.msra.mxu0 0.0
      %2175 = vmatprep.subr.mxu0 0.0
      %2176 = vmatpush1.xpose.msra.mxu0 0.0
      %2177 = vmatprep.subr.mxu0 0.0
      %2178 = vmatpush1.xpose.msra.mxu0 0.0
      %2179 = vmatprep.subr.mxu0 0.0
      %2180 = vmatpush1.xpose.msra.mxu0 0.0
      %2181 = vmatprep.subr.mxu0 0.0
      %2182 = vmatpush1.xpose.msra.mxu0 0.0
      %2183 = vmatprep.subr.mxu0 0.0
      %2184 = vmatpush1.xpose.msra.mxu0 0.0
      %2185 = vmatprep.subr.mxu0 0.0
      %2186 = vmatpush1.xpose.msra.mxu0 0.0
      %2187 = vmatprep.subr.mxu0 0.0
      %2188 = vmatpush1.xpose.msra.mxu0 0.0
      %2189 = vmatprep.subr.mxu0 0.0
      %2190 = vmatpush1.xpose.msra.mxu0 0.0
      %2191 = vmatprep.subr.mxu0 0.0
      %2192 = vmatpush1.xpose.msra.mxu0 0.0
      %2193 = vmatprep.subr.mxu0 0.0
      %2194 = vmatpush1.xpose.msra.mxu0 0.0
      %2195 = vmatprep.subr.mxu0 0.0
      %2196 = vmatpush1.xpose.msra.mxu0 0.0
      %2197 = vmatprep.subr.mxu0 0.0
      %2198 = vmatpush1.xpose.msra.mxu0 0.0
      %2199 = vmatprep.subr.mxu0 0.0
      %2200 = vmatpush1.xpose.msra.mxu0 0.0
      %2201 = vmatprep.subr.mxu0 0.0
      %2202 = vmatpush1.xpose.msra.mxu0 0.0
      %2203 = vmatprep.subr.mxu0 0.0
      %2204 = vmatpush1.xpose.msra.mxu0 0.0
      %2205 = vmatprep.subr.mxu0 0.0
      %2206 = vmatpush1.xpose.msra.mxu0 0.0
      %2207 = vmatprep.subr.mxu0 0.0
      %2208 = vmatpush1.xpose.msra.mxu0 0.0
      %2209 = vmatprep.subr.mxu0 0.0
      %2210 = vmatpush1.xpose.msra.mxu0 0.0
      %2211 = vmatprep.subr.mxu0 0.0
      %2212 = vmatpush1.xpose.msra.mxu0 0.0
      %2213 = vmatprep.subr.mxu0 0.0
      %2214 = vmatpush1.xpose.msra.mxu0 0.0
      %2215 = vmatprep.subr.mxu0 0.0
      %2216 = vmatpush1.xpose.msra.mxu0 0.0
      %2217 = vmatprep.subr.mxu0 0.0
      %2218 = vmatpush1.xpose.msra.mxu0 0.0
      %2219 = vmatprep.subr.mxu0 0.0
      %2220 = vmatpush1.xpose.msra.mxu0 0.0
      %2221 = vmatprep.subr.mxu0 0.0
      %2222 = vmatpush1.xpose.msra.mxu0 0.0
      %2223 = vmatprep.subr.mxu0 0.0
      %2224 = vmatpush1.xpose.msra.mxu0 0.0
      %2225 = vmatprep.subr.mxu0 0.0
      %2226 = vmatpush1.xpose.msra.mxu0 0.0
      %2227 = vmatprep.subr.mxu0 0.0
      %2228 = vmatpush1.xpose.msra.mxu0 0.0
      %2229 = vmatprep.mubr.f32.mxu0 0.0
      %2230 = vmatmul.mubr.f32.gmra.mrb[0].mxu0 %v2149
      %v2231 = vpop.f32.mrb[0].mxu0
      %v2232 = vadd.f32 0.0, %v2231
      %v2233 = vpop.f32.mrb[0].mxu0
      %2234 = vmatprep.mubr.f32.mxu0 0.0
      %2235 = vmatmul.mubr.f32.gmra.mrb[0].mxu0 %v2151
      %v2236 = vpop.f32.mrb[0].mxu0
      %v2237 = vadd.f32 0.0, %v2236
      %v2238 = vpop.f32.mrb[0].mxu0
      %2239 = vmatprep.mubr.f32.mxu0 0.0
      %2240 = vmatmul.mubr.f32.gmra.mrb[0].mxu0 %v2153
      %v2241 = vpop.f32.mrb[0].mxu0
      %v2242 = vadd.f32 0.0, %v2241
      %v2243 = vpop.f32.mrb[0].mxu0
      %2244 = vmatprep.mubr.f32.mxu0 0.0
      %2245 = vmatmul.mubr.f32.gmra.mrb[0].mxu0 %v2155
      %v2246 = vpop.f32.mrb[0].mxu0
      %v2247 = vadd.f32 0.0, %v2246
      %v2248 = vpop.f32.mrb[0].mxu0
      %2249 = vdwg.mxu0
      %v2250 = vmul.f32 %v2232, 0.35355338
      %v2251 = vmul.f32 %v2237, 0.35355338
      %v2252 = vmul.f32 %v2242, 0.35355338
      %v2253 = vmul.f32 %v2247, 0.35355338
      %vm2254 = vcmask 203776
      %v2255 = vsel %vm2254, %v2250, -inf
      %2256 = vmax.xlane.f32.xlu0 %v2255
      %v2257 = vpop.xlane.xlu0 %2256
      %v2258 = vsel %vm2254, %v2251, -inf
      %2259 = vmax.xlane.f32.xlu0 %v2258
      %v2260 = vpop.xlane.xlu0 %2259
      %v2261 = vsel %vm2254, %v2252, -inf
      %2262 = vmax.xlane.f32.xlu0 %v2261
      %v2263 = vpop.xlane.xlu0 %2262
      %vm2264 = vcmask 196608
      %v2265 = vsel %vm2264, %v2253, -inf
      %2266 = vmax.xlane.f32.xlu0 %v2265
      %v2267 = vpop.xlane.xlu0 %2266
      %v2268 = vsub.f32 %v2250, %v2257
      %v2269 = vsub.f32 %v2251, %v2260
      %v2270 = vsub.f32 %v2252, %v2263
      %v2271 = vsub.f32 %v2253, %v2267
      %v2272 = vmul.f32 %v2268, 1.442695
      %v2273 = vpow.pop %v2272
      %v2274 = vmul.f32 %v2269, 1.442695
      %v2275 = vpow.pop %v2274
      %v2276 = vmul.f32 %v2270, 1.442695
      %v2277 = vpow.pop %v2276
      %v2278 = vmul.f32 %v2271, 1.442695
      %v2279 = vpow.pop %v2278
      %v2280 = vsel %vm2254, %v2273, 0.0
      %2281 = vadd.xlane.f32.xlu0 %v2280
      %v2282 = vpop.xlane.xlu0 %2281
      %v2283 = vsel %vm2254, %v2275, 0.0
      %2284 = vadd.xlane.f32.xlu0 %v2283
      %v2285 = vpop.xlane.xlu0 %2284
      %v2286 = vsel %vm2254, %v2277, 0.0
      %2287 = vadd.xlane.f32.xlu0 %v2286
      %v2288 = vpop.xlane.xlu0 %2287
      %v2289 = vsel %vm2264, %v2279, 0.0
      %2290 = vadd.xlane.f32.xlu0 %v2289
      %v2291 = vpop.xlane.xlu0 %2290
      %v2292 = vrcp.pop %v2282
      %v2293 = vrcp.pop %v2285
      %v2294 = vrcp.pop %v2288
      %v2295 = vrcp.pop %v2291
      %v2296 = vmul.f32 %v2273, %v2292
      %v2297 = vmul.f32 %v2275, %v2293
      %v2298 = vmul.f32 %v2277, %v2294
      %v2299 = vmul.f32 %v2279, %v2295
      %2300 = vrot.lane.b32.xlu0 %v2117, 64
      %v2301 = vpop.permute.xlu0 %2300
      %2302 = vrot.lane.b32.xlu0 %v2122, 64
      %v2303 = vpop.permute.xlu0 %2302
      %2304 = vrot.lane.b32.xlu0 %v2127, 64
      %v2305 = vpop.permute.xlu0 %2304
      %2306 = vrot.lane.b32.xlu0 %v2132, 64
      %v2307 = vpop.permute.xlu0 %2306
      %v2312 = vsel %vm2254, %v2296, 0
      %v2315 = vsel %vm2254, %v2297, 0
      %v2318 = vsel %vm2254, %v2298, 0
      %v2321 = vsel %vm2254, %v2299, 0
      %vm2323 = vcmask 1040384
      %v2324 = vsel %vm2323, %v2307, 0
      %2326 = vmatprep.subr.mxu0 0.0
      %2327 = vmatpush1.msra.mxu0 %v2301
      %2328 = vmatprep.subr.mxu0 0.0
      %2329 = vmatpush1.msra.mxu0 %v2303
      %2330 = vmatprep.subr.mxu0 0.0
      %2331 = vmatpush1.msra.mxu0 %v2305
      %2332 = vmatprep.subr.mxu0 0.0
      %2333 = vmatpush1.msra.mxu0 %v2324
      %2334 = vmatprep.subr.mxu0 0.0
      %2335 = vmatpush1.msra.mxu0 0.0
      %2336 = vmatprep.subr.mxu0 0.0
      %2337 = vmatpush1.msra.mxu0 0.0
      %2338 = vmatprep.subr.mxu0 0.0
      %2339 = vmatpush1.msra.mxu0 0.0
      %2340 = vmatprep.subr.mxu0 0.0
      %2341 = vmatpush1.msra.mxu0 0.0
      %2342 = vmatprep.subr.mxu0 0.0
      %2343 = vmatpush1.msra.mxu0 0.0
      %2344 = vmatprep.subr.mxu0 0.0
      %2345 = vmatpush1.msra.mxu0 0.0
      %2346 = vmatprep.subr.mxu0 0.0
      %2347 = vmatpush1.msra.mxu0 0.0
      %2348 = vmatprep.subr.mxu0 0.0
      %2349 = vmatpush1.msra.mxu0 0.0
      %2350 = vmatprep.subr.mxu0 0.0
      %2351 = vmatpush1.msra.mxu0 0.0
      %2352 = vmatprep.subr.mxu0 0.0
      %2353 = vmatpush1.msra.mxu0 0.0
      %2354 = vmatprep.subr.mxu0 0.0
      %2355 = vmatpush1.msra.mxu0 0.0
      %2356 = vmatprep.subr.mxu0 0.0
      %2357 = vmatpush1.msra.mxu0 0.0
      %2358 = vmatprep.subr.mxu0 0.0
      %2359 = vmatpush1.msra.mxu0 0.0
      %2360 = vmatprep.subr.mxu0 0.0
      %2361 = vmatpush1.msra.mxu0 0.0
      %2362 = vmatprep.subr.mxu0 0.0
      %2363 = vmatpush1.msra.mxu0 0.0
      %2364 = vmatprep.subr.mxu0 0.0
      %2365 = vmatpush1.msra.mxu0 0.0
      %2366 = vmatprep.subr.mxu0 0.0
      %2367 = vmatpush1.msra.mxu0 0.0
      %2368 = vmatprep.subr.mxu0 0.0
      %2369 = vmatpush1.msra.mxu0 0.0
      %2370 = vmatprep.subr.mxu0 0.0
      %2371 = vmatpush1.msra.mxu0 0.0
      %2372 = vmatprep.subr.mxu0 0.0
      %2373 = vmatpush1.msra.mxu0 0.0
      %2374 = vmatprep.subr.mxu0 0.0
      %2375 = vmatpush1.msra.mxu0 0.0
      %2376 = vmatprep.subr.mxu0 0.0
      %2377 = vmatpush1.msra.mxu0 0.0
      %2378 = vmatprep.subr.mxu0 0.0
      %2379 = vmatpush1.msra.mxu0 0.0
      %2380 = vmatprep.subr.mxu0 0.0
      %2381 = vmatpush1.msra.mxu0 0.0
      %2382 = vmatprep.subr.mxu0 0.0
      %2383 = vmatpush1.msra.mxu0 0.0
      %2384 = vmatprep.subr.mxu0 0.0
      %2385 = vmatpush1.msra.mxu0 0.0
      %2386 = vmatprep.subr.mxu0 0.0
      %2387 = vmatpush1.msra.mxu0 0.0
      %2388 = vmatprep.subr.mxu0 0.0
      %2389 = vmatpush1.msra.mxu0 0.0
      %2390 = vmatprep.mubr.f32.mxu0 0.0
      %2391 = vmatmul.mubr.f32.gmra.mrb[0].mxu0 %v2312
      %v2392 = vpop.f32.mrb[0].mxu0
      %v2393 = vadd.f32 0.0, %v2392
      %v2394 = vpop.f32.mrb[0].mxu0
      %2395 = vmatprep.mubr.f32.mxu0 0.0
      %2396 = vmatmul.mubr.f32.gmra.mrb[0].mxu0 %v2315
      %v2397 = vpop.f32.mrb[0].mxu0
      %v2398 = vadd.f32 0.0, %v2397
      %v2399 = vpop.f32.mrb[0].mxu0
      %2400 = vmatprep.mubr.f32.mxu0 0.0
      %2401 = vmatmul.mubr.f32.gmra.mrb[0].mxu0 %v2318
      %v2402 = vpop.f32.mrb[0].mxu0
      %v2403 = vadd.f32 0.0, %v2402
      %v2404 = vpop.f32.mrb[0].mxu0
      %2405 = vmatprep.mubr.f32.mxu0 0.0
      %2406 = vmatmul.mubr.f32.gmra.mrb[0].mxu0 %v2321
      %v2407 = vpop.f32.mrb[0].mxu0
      %v2408 = vadd.f32 0.0, %v2407
      %v2409 = vpop.f32.mrb[0].mxu0
      %2410 = vdwg.mxu0
      %2412 = vrot.lane.b32.xlu0 %v2026, 32
      %v2413 = vpop.permute.xlu0 %2412
      %v2416 = vsel %vm2148, %v2393, 0
      %v2419 = vsel %vm2148, %v2398, 0
      %v2422 = vsel %vm2148, %v2403, 0
      %v2425 = vsel %vm2148, %v2408, 0
      %2427 = vmatprep.subr.mxu0 0.0
      %2428 = vmatpush1.msra.mxu0 %v2413
      %2429 = vmatprep.subr.mxu0 0.0
      %2430 = vmatpush1.msra.mxu0 0.0
      %2431 = vmatprep.subr.mxu0 0.0
      %2432 = vmatpush1.msra.mxu0 0.0
      %2433 = vmatprep.subr.mxu0 0.0
      %2434 = vmatpush1.msra.mxu0 0.0
      %2435 = vmatprep.subr.mxu0 0.0
      %2436 = vmatpush1.msra.mxu0 0.0
      %2437 = vmatprep.subr.mxu0 0.0
      %2438 = vmatpush1.msra.mxu0 0.0
      %2439 = vmatprep.subr.mxu0 0.0
      %2440 = vmatpush1.msra.mxu0 0.0
      %2441 = vmatprep.subr.mxu0 0.0
      %2442 = vmatpush1.msra.mxu0 0.0
      %2443 = vmatprep.subr.mxu0 0.0
      %2444 = vmatpush1.msra.mxu0 0.0
      %2445 = vmatprep.subr.mxu0 0.0
      %2446 = vmatpush1.msra.mxu0 0.0
      %2447 = vmatprep.subr.mxu0 0.0
      %2448 = vmatpush1.msra.mxu0 0.0
      %2449 = vmatprep.subr.mxu0 0.0
      %2450 = vmatpush1.msra.mxu0 0.0
      %2451 = vmatprep.subr.mxu0 0.0
      %2452 = vmatpush1.msra.mxu0 0.0
      %2453 = vmatprep.subr.mxu0 0.0
      %2454 = vmatpush1.msra.mxu0 0.0
      %2455 = vmatprep.subr.mxu0 0.0
      %2456 = vmatpush1.msra.mxu0 0.0
      %2457 = vmatprep.subr.mxu0 0.0
      %2458 = vmatpush1.msra.mxu0 0.0
      %2459 = vmatprep.subr.mxu0 0.0
      %2460 = vmatpush1.msra.mxu0 0.0
      %2461 = vmatprep.subr.mxu0 0.0
      %2462 = vmatpush1.msra.mxu0 0.0
      %2463 = vmatprep.subr.mxu0 0.0
      %2464 = vmatpush1.msra.mxu0 0.0
      %2465 = vmatprep.subr.mxu0 0.0
      %2466 = vmatpush1.msra.mxu0 0.0
      %2467 = vmatprep.subr.mxu0 0.0
      %2468 = vmatpush1.msra.mxu0 0.0
      %2469 = vmatprep.subr.mxu0 0.0
      %2470 = vmatpush1.msra.mxu0 0.0
      %2471 = vmatprep.subr.mxu0 0.0
      %2472 = vmatpush1.msra.mxu0 0.0
      %2473 = vmatprep.subr.mxu0 0.0
      %2474 = vmatpush1.msra.mxu0 0.0
      %2475 = vmatprep.subr.mxu0 0.0
      %2476 = vmatpush1.msra.mxu0 0.0
      %2477 = vmatprep.subr.mxu0 0.0
      %2478 = vmatpush1.msra.mxu0 0.0
      %2479 = vmatprep.subr.mxu0 0.0
      %2480 = vmatpush1.msra.mxu0 0.0
      %2481 = vmatprep.subr.mxu0 0.0
      %2482 = vmatpush1.msra.mxu0 0.0
      %2483 = vmatprep.subr.mxu0 0.0
      %2484 = vmatpush1.msra.mxu0 0.0
      %2485 = vmatprep.subr.mxu0 0.0
      %2486 = vmatpush1.msra.mxu0 0.0
      %2487 = vmatprep.subr.mxu0 0.0
      %2488 = vmatpush1.msra.mxu0 0.0
      %2489 = vmatprep.subr.mxu0 0.0
      %2490 = vmatpush1.msra.mxu0 0.0
      %2491 = vmatprep.mubr.f32.mxu0 0.0
      %2492 = vmatmul.mubr.f32.gmra.mrb[0].mxu0 %v2416
      %v2493 = vpop.f32.mrb[0].mxu0
      %v2494 = vadd.f32 0.0, %v2493
      %v2495 = vpop.f32.mrb[0].mxu0
      %2496 = vmatprep.mubr.f32.mxu0 0.0
      %2497 = vmatmul.mubr.f32.gmra.mrb[0].mxu0 %v2419
      %v2498 = vpop.f32.mrb[0].mxu0
      %v2499 = vadd.f32 0.0, %v2498
      %v2500 = vpop.f32.mrb[0].mxu0
      %2501 = vmatprep.mubr.f32.mxu0 0.0
      %2502 = vmatmul.mubr.f32.gmra.mrb[0].mxu0 %v2422
      %v2503 = vpop.f32.mrb[0].mxu0
      %v2504 = vadd.f32 0.0, %v2503
      %v2505 = vpop.f32.mrb[0].mxu0
      %2506 = vmatprep.mubr.f32.mxu0 0.0
      %2507 = vmatmul.mubr.f32.gmra.mrb[0].mxu0 %v2425
      %v2508 = vpop.f32.mrb[0].mxu0
      %v2509 = vadd.f32 0.0, %v2508
      %v2510 = vpop.f32.mrb[0].mxu0
      %2511 = vdwg.mxu0
      %2516 = vrot.lane.b32.xlu0 %v2494, 96
      %v2517 = vpop.permute.xlu0 %2516
      %2518 = vrot.lane.b32.xlu0 %v2499, 96
      %v2519 = vpop.permute.xlu0 %2518
      %2520 = vrot.lane.b32.xlu0 %v2504, 96
      %v2521 = vpop.permute.xlu0 %2520
      %2522 = vrot.lane.b32.xlu0 %v2509, 96
      %v2523 = vpop.permute.xlu0 %2522
      %v2528 = vadd.f32 %v2135, %v2517
      %v2529 = vadd.f32 %v2135, %v2519
      %v2530 = vadd.f32 %v2135, %v2521
      %v2531 = vadd.f32 %v2135, %v2523
      %2532 = vrot.lane.b32.xlu0 %v2117, 120
      %v2533 = vpop.permute.xlu0 %2532
      %2534 = vrot.lane.b32.xlu0 %v2122, 120
      %v2535 = vpop.permute.xlu0 %2534
      %2536 = vrot.lane.b32.xlu0 %v2127, 120
      %v2537 = vpop.permute.xlu0 %2536
      %2538 = vrot.lane.b32.xlu0 %v2132, 120
      %v2539 = vpop.permute.xlu0 %2538
      %2540 = vrot.lane.b32.xlu0 %v2117, 88
      %v2541 = vpop.permute.xlu0 %2540
      %2542 = vrot.lane.b32.xlu0 %v2122, 88
      %v2543 = vpop.permute.xlu0 %2542
      %2544 = vrot.lane.b32.xlu0 %v2127, 88
      %v2545 = vpop.permute.xlu0 %2544
      %2546 = vrot.lane.b32.xlu0 %v2132, 88
      %v2547 = vpop.permute.xlu0 %2546
      %v2548 = vsel %vm2148, %v2533, 0
      %v2550 = vsel %vm2148, %v2535, 0
      %v2552 = vsel %vm2148, %v2537, 0
      %v2554 = vsel %vm2148, %v2539, 0
      %v2556 = vsel %vm2148, %v2541, 0
      %v2558 = vsel %vm2148, %v2543, 0
      %v2560 = vsel %vm2148, %v2545, 0
      %v2562 = vsel %vm2148, %v2547, 0
      %2564 = vmatprep.subr.mxu0 0.0
      %2565 = vmatpush1.xpose.msra.mxu0 %v2556
      %2566 = vmatprep.subr.mxu0 0.0
      %2567 = vmatpush1.xpose.msra.mxu0 %v2558
      %2568 = vmatprep.subr.mxu0 0.0
      %2569 = vmatpush1.xpose.msra.mxu0 %v2560
      %2570 = vmatprep.subr.mxu0 0.0
      %2571 = vmatpush1.xpose.msra.mxu0 %v2562
      %2572 = vmatprep.subr.mxu0 0.0
      %2573 = vmatpush1.xpose.msra.mxu0 0.0
      %2574 = vmatprep.subr.mxu0 0.0
      %2575 = vmatpush1.xpose.msra.mxu0 0.0
      %2576 = vmatprep.subr.mxu0 0.0
      %2577 = vmatpush1.xpose.msra.mxu0 0.0
      %2578 = vmatprep.subr.mxu0 0.0
      %2579 = vmatpush1.xpose.msra.mxu0 0.0
      %2580 = vmatprep.subr.mxu0 0.0
      %2581 = vmatpush1.xpose.msra.mxu0 0.0
      %2582 = vmatprep.subr.mxu0 0.0
      %2583 = vmatpush1.xpose.msra.mxu0 0.0
      %2584 = vmatprep.subr.mxu0 0.0
      %2585 = vmatpush1.xpose.msra.mxu0 0.0
      %2586 = vmatprep.subr.mxu0 0.0
      %2587 = vmatpush1.xpose.msra.mxu0 0.0
      %2588 = vmatprep.subr.mxu0 0.0
      %2589 = vmatpush1.xpose.msra.mxu0 0.0
      %2590 = vmatprep.subr.mxu0 0.0
      %2591 = vmatpush1.xpose.msra.mxu0 0.0
      %2592 = vmatprep.subr.mxu0 0.0
      %2593 = vmatpush1.xpose.msra.mxu0 0.0
      %2594 = vmatprep.subr.mxu0 0.0
      %2595 = vmatpush1.xpose.msra.mxu0 0.0
      %2596 = vmatprep.subr.mxu0 0.0
      %2597 = vmatpush1.xpose.msra.mxu0 0.0
      %2598 = vmatprep.subr.mxu0 0.0
      %2599 = vmatpush1.xpose.msra.mxu0 0.0
      %2600 = vmatprep.subr.mxu0 0.0
      %2601 = vmatpush1.xpose.msra.mxu0 0.0
      %2602 = vmatprep.subr.mxu0 0.0
      %2603 = vmatpush1.xpose.msra.mxu0 0.0
      %2604 = vmatprep.subr.mxu0 0.0
      %2605 = vmatpush1.xpose.msra.mxu0 0.0
      %2606 = vmatprep.subr.mxu0 0.0
      %2607 = vmatpush1.xpose.msra.mxu0 0.0
      %2608 = vmatprep.subr.mxu0 0.0
      %2609 = vmatpush1.xpose.msra.mxu0 0.0
      %2610 = vmatprep.subr.mxu0 0.0
      %2611 = vmatpush1.xpose.msra.mxu0 0.0
      %2612 = vmatprep.subr.mxu0 0.0
      %2613 = vmatpush1.xpose.msra.mxu0 0.0
      %2614 = vmatprep.subr.mxu0 0.0
      %2615 = vmatpush1.xpose.msra.mxu0 0.0
      %2616 = vmatprep.subr.mxu0 0.0
      %2617 = vmatpush1.xpose.msra.mxu0 0.0
      %2618 = vmatprep.subr.mxu0 0.0
      %2619 = vmatpush1.xpose.msra.mxu0 0.0
      %2620 = vmatprep.subr.mxu0 0.0
      %2621 = vmatpush1.xpose.msra.mxu0 0.0
      %2622 = vmatprep.subr.mxu0 0.0
      %2623 = vmatpush1.xpose.msra.mxu0 0.0
      %2624 = vmatprep.subr.mxu0 0.0
      %2625 = vmatpush1.xpose.msra.mxu0 0.0
      %2626 = vmatprep.subr.mxu0 0.0
      %2627 = vmatpush1.xpose.msra.mxu0 0.0
      %2628 = vmatprep.mubr.f32.mxu0 0.0
      %2629 = vmatmul.mubr.f32.gmra.mrb[0].mxu0 %v2548
      %v2630 = vpop.f32.mrb[0].mxu0
      %v2631 = vadd.f32 0.0, %v2630
      %v2632 = vpop.f32.mrb[0].mxu0
      %2633 = vmatprep.mubr.f32.mxu0 0.0
      %2634 = vmatmul.mubr.f32.gmra.mrb[0].mxu0 %v2550
      %v2635 = vpop.f32.mrb[0].mxu0
      %v2636 = vadd.f32 0.0, %v2635
      %v2637 = vpop.f32.mrb[0].mxu0
      %2638 = vmatprep.mubr.f32.mxu0 0.0
      %2639 = vmatmul.mubr.f32.gmra.mrb[0].mxu0 %v2552
      %v2640 = vpop.f32.mrb[0].mxu0
      %v2641 = vadd.f32 0.0, %v2640
      %v2642 = vpop.f32.mrb[0].mxu0
      %2643 = vmatprep.mubr.f32.mxu0 0.0
      %2644 = vmatmul.mubr.f32.gmra.mrb[0].mxu0 %v2554
      %v2645 = vpop.f32.mrb[0].mxu0
      %v2646 = vadd.f32 0.0, %v2645
      %v2647 = vpop.f32.mrb[0].mxu0
      %2648 = vdwg.mxu0
      %v2649 = vmul.f32 %v2631, 0.35355338
      %v2650 = vmul.f32 %v2636, 0.35355338
      %v2651 = vmul.f32 %v2641, 0.35355338
      %v2652 = vmul.f32 %v2646, 0.35355338
      %v2653 = vsel %vm2254, %v2649, -inf
      %2654 = vmax.xlane.f32.xlu0 %v2653
      %v2655 = vpop.xlane.xlu0 %2654
      %v2656 = vsel %vm2254, %v2650, -inf
      %2657 = vmax.xlane.f32.xlu0 %v2656
      %v2658 = vpop.xlane.xlu0 %2657
      %v2659 = vsel %vm2254, %v2651, -inf
      %2660 = vmax.xlane.f32.xlu0 %v2659
      %v2661 = vpop.xlane.xlu0 %2660
      %v2662 = vsel %vm2264, %v2652, -inf
      %2663 = vmax.xlane.f32.xlu0 %v2662
      %v2664 = vpop.xlane.xlu0 %2663
      %v2665 = vsub.f32 %v2649, %v2655
      %v2666 = vsub.f32 %v2650, %v2658
      %v2667 = vsub.f32 %v2651, %v2661
      %v2668 = vsub.f32 %v2652, %v2664
      %v2669 = vmul.f32 %v2665, 1.442695
      %v2670 = vpow.pop %v2669
      %v2671 = vmul.f32 %v2666, 1.442695
      %v2672 = vpow.pop %v2671
      %v2673 = vmul.f32 %v2667, 1.442695
      %v2674 = vpow.pop %v2673
      %v2675 = vmul.f32 %v2668, 1.442695
      %v2676 = vpow.pop %v2675
      %v2677 = vsel %vm2254, %v2670, 0.0
      %2678 = vadd.xlane.f32.xlu0 %v2677
      %v2679 = vpop.xlane.xlu0 %2678
      %v2680 = vsel %vm2254, %v2672, 0.0
      %2681 = vadd.xlane.f32.xlu0 %v2680
      %v2682 = vpop.xlane.xlu0 %2681
      %v2683 = vsel %vm2254, %v2674, 0.0
      %2684 = vadd.xlane.f32.xlu0 %v2683
      %v2685 = vpop.xlane.xlu0 %2684
      %v2686 = vsel %vm2264, %v2676, 0.0
      %2687 = vadd.xlane.f32.xlu0 %v2686
      %v2688 = vpop.xlane.xlu0 %2687
      %v2689 = vrcp.pop %v2679
      %v2690 = vrcp.pop %v2682
      %v2691 = vrcp.pop %v2685
      %v2692 = vrcp.pop %v2688
      %v2693 = vmul.f32 %v2670, %v2689
      %v2694 = vmul.f32 %v2672, %v2690
      %v2695 = vmul.f32 %v2674, %v2691
      %v2696 = vmul.f32 %v2676, %v2692
      %2697 = vrot.lane.b32.xlu0 %v2117, 56
      %v2698 = vpop.permute.xlu0 %2697
      %2699 = vrot.lane.b32.xlu0 %v2122, 56
      %v2700 = vpop.permute.xlu0 %2699
      %2701 = vrot.lane.b32.xlu0 %v2127, 56
      %v2702 = vpop.permute.xlu0 %2701
      %2703 = vrot.lane.b32.xlu0 %v2132, 56
      %v2704 = vpop.permute.xlu0 %2703
      %v2709 = vsel %vm2254, %v2693, 0
      %v2712 = vsel %vm2254, %v2694, 0
      %v2715 = vsel %vm2254, %v2695, 0
      %v2718 = vsel %vm2254, %v2696, 0
      %v2720 = vsel %vm2323, %v2704, 0
      %2722 = vmatprep.subr.mxu0 0.0
      %2723 = vmatpush1.msra.mxu0 %v2698
      %2724 = vmatprep.subr.mxu0 0.0
      %2725 = vmatpush1.msra.mxu0 %v2700
      %2726 = vmatprep.subr.mxu0 0.0
      %2727 = vmatpush1.msra.mxu0 %v2702
      %2728 = vmatprep.subr.mxu0 0.0
      %2729 = vmatpush1.msra.mxu0 %v2720
      %2730 = vmatprep.subr.mxu0 0.0
      %2731 = vmatpush1.msra.mxu0 0.0
      %2732 = vmatprep.subr.mxu0 0.0
      %2733 = vmatpush1.msra.mxu0 0.0
      %2734 = vmatprep.subr.mxu0 0.0
      %2735 = vmatpush1.msra.mxu0 0.0
      %2736 = vmatprep.subr.mxu0 0.0
      %2737 = vmatpush1.msra.mxu0 0.0
      %2738 = vmatprep.subr.mxu0 0.0
      %2739 = vmatpush1.msra.mxu0 0.0
      %2740 = vmatprep.subr.mxu0 0.0
      %2741 = vmatpush1.msra.mxu0 0.0
      %2742 = vmatprep.subr.mxu0 0.0
      %2743 = vmatpush1.msra.mxu0 0.0
      %2744 = vmatprep.subr.mxu0 0.0
      %2745 = vmatpush1.msra.mxu0 0.0
      %2746 = vmatprep.subr.mxu0 0.0
      %2747 = vmatpush1.msra.mxu0 0.0
      %2748 = vmatprep.subr.mxu0 0.0
      %2749 = vmatpush1.msra.mxu0 0.0
      %2750 = vmatprep.subr.mxu0 0.0
      %2751 = vmatpush1.msra.mxu0 0.0
      %2752 = vmatprep.subr.mxu0 0.0
      %2753 = vmatpush1.msra.mxu0 0.0
      %2754 = vmatprep.subr.mxu0 0.0
      %2755 = vmatpush1.msra.mxu0 0.0
      %2756 = vmatprep.subr.mxu0 0.0
      %2757 = vmatpush1.msra.mxu0 0.0
      %2758 = vmatprep.subr.mxu0 0.0
      %2759 = vmatpush1.msra.mxu0 0.0
      %2760 = vmatprep.subr.mxu0 0.0
      %2761 = vmatpush1.msra.mxu0 0.0
      %2762 = vmatprep.subr.mxu0 0.0
      %2763 = vmatpush1.msra.mxu0 0.0
      %2764 = vmatprep.subr.mxu0 0.0
      %2765 = vmatpush1.msra.mxu0 0.0
      %2766 = vmatprep.subr.mxu0 0.0
      %2767 = vmatpush1.msra.mxu0 0.0
      %2768 = vmatprep.subr.mxu0 0.0
      %2769 = vmatpush1.msra.mxu0 0.0
      %2770 = vmatprep.subr.mxu0 0.0
      %2771 = vmatpush1.msra.mxu0 0.0
      %2772 = vmatprep.subr.mxu0 0.0
      %2773 = vmatpush1.msra.mxu0 0.0
      %2774 = vmatprep.subr.mxu0 0.0
      %2775 = vmatpush1.msra.mxu0 0.0
      %2776 = vmatprep.subr.mxu0 0.0
      %2777 = vmatpush1.msra.mxu0 0.0
      %2778 = vmatprep.subr.mxu0 0.0
      %2779 = vmatpush1.msra.mxu0 0.0
      %2780 = vmatprep.subr.mxu0 0.0
      %2781 = vmatpush1.msra.mxu0 0.0
      %2782 = vmatprep.subr.mxu0 0.0
      %2783 = vmatpush1.msra.mxu0 0.0
      %2784 = vmatprep.subr.mxu0 0.0
      %2785 = vmatpush1.msra.mxu0 0.0
      %2786 = vmatprep.mubr.f32.mxu0 0.0
      %2787 = vmatmul.mubr.f32.gmra.mrb[0].mxu0 %v2709
      %v2788 = vpop.f32.mrb[0].mxu0
      %v2789 = vadd.f32 0.0, %v2788
      %v2790 = vpop.f32.mrb[0].mxu0
      %2791 = vmatprep.mubr.f32.mxu0 0.0
      %2792 = vmatmul.mubr.f32.gmra.mrb[0].mxu0 %v2712
      %v2793 = vpop.f32.mrb[0].mxu0
      %v2794 = vadd.f32 0.0, %v2793
      %v2795 = vpop.f32.mrb[0].mxu0
      %2796 = vmatprep.mubr.f32.mxu0 0.0
      %2797 = vmatmul.mubr.f32.gmra.mrb[0].mxu0 %v2715
      %v2798 = vpop.f32.mrb[0].mxu0
      %v2799 = vadd.f32 0.0, %v2798
      %v2800 = vpop.f32.mrb[0].mxu0
      %2801 = vmatprep.mubr.f32.mxu0 0.0
      %2802 = vmatmul.mubr.f32.gmra.mrb[0].mxu0 %v2718
      %v2803 = vpop.f32.mrb[0].mxu0
      %v2804 = vadd.f32 0.0, %v2803
      %v2805 = vpop.f32.mrb[0].mxu0
      %2806 = vdwg.mxu0
      %2808 = vrot.lane.b32.xlu0 %v2027, 32
      %v2809 = vpop.permute.xlu0 %2808
      %v2812 = vsel %vm2148, %v2789, 0
      %v2815 = vsel %vm2148, %v2794, 0
      %v2818 = vsel %vm2148, %v2799, 0
      %v2821 = vsel %vm2148, %v2804, 0
      %2823 = vmatprep.subr.mxu0 0.0
      %2824 = vmatpush1.msra.mxu0 %v2809
      %2825 = vmatprep.subr.mxu0 0.0
      %2826 = vmatpush1.msra.mxu0 0.0
      %2827 = vmatprep.subr.mxu0 0.0
      %2828 = vmatpush1.msra.mxu0 0.0
      %2829 = vmatprep.subr.mxu0 0.0
      %2830 = vmatpush1.msra.mxu0 0.0
      %2831 = vmatprep.subr.mxu0 0.0
      %2832 = vmatpush1.msra.mxu0 0.0
      %2833 = vmatprep.subr.mxu0 0.0
      %2834 = vmatpush1.msra.mxu0 0.0
      %2835 = vmatprep.subr.mxu0 0.0
      %2836 = vmatpush1.msra.mxu0 0.0
      %2837 = vmatprep.subr.mxu0 0.0
      %2838 = vmatpush1.msra.mxu0 0.0
      %2839 = vmatprep.subr.mxu0 0.0
      %2840 = vmatpush1.msra.mxu0 0.0
      %2841 = vmatprep.subr.mxu0 0.0
      %2842 = vmatpush1.msra.mxu0 0.0
      %2843 = vmatprep.subr.mxu0 0.0
      %2844 = vmatpush1.msra.mxu0 0.0
      %2845 = vmatprep.subr.mxu0 0.0
      %2846 = vmatpush1.msra.mxu0 0.0
      %2847 = vmatprep.subr.mxu0 0.0
      %2848 = vmatpush1.msra.mxu0 0.0
      %2849 = vmatprep.subr.mxu0 0.0
      %2850 = vmatpush1.msra.mxu0 0.0
      %2851 = vmatprep.subr.mxu0 0.0
      %2852 = vmatpush1.msra.mxu0 0.0
      %2853 = vmatprep.subr.mxu0 0.0
      %2854 = vmatpush1.msra.mxu0 0.0
      %2855 = vmatprep.subr.mxu0 0.0
      %2856 = vmatpush1.msra.mxu0 0.0
      %2857 = vmatprep.subr.mxu0 0.0
      %2858 = vmatpush1.msra.mxu0 0.0
      %2859 = vmatprep.subr.mxu0 0.0
      %2860 = vmatpush1.msra.mxu0 0.0
      %2861 = vmatprep.subr.mxu0 0.0
      %2862 = vmatpush1.msra.mxu0 0.0
      %2863 = vmatprep.subr.mxu0 0.0
      %2864 = vmatpush1.msra.mxu0 0.0
      %2865 = vmatprep.subr.mxu0 0.0
      %2866 = vmatpush1.msra.mxu0 0.0
      %2867 = vmatprep.subr.mxu0 0.0
      %2868 = vmatpush1.msra.mxu0 0.0
      %2869 = vmatprep.subr.mxu0 0.0
      %2870 = vmatpush1.msra.mxu0 0.0
      %2871 = vmatprep.subr.mxu0 0.0
      %2872 = vmatpush1.msra.mxu0 0.0
      %2873 = vmatprep.subr.mxu0 0.0
      %2874 = vmatpush1.msra.mxu0 0.0
      %2875 = vmatprep.subr.mxu0 0.0
      %2876 = vmatpush1.msra.mxu0 0.0
      %2877 = vmatprep.subr.mxu0 0.0
      %2878 = vmatpush1.msra.mxu0 0.0
      %2879 = vmatprep.subr.mxu0 0.0
      %2880 = vmatpush1.msra.mxu0 0.0
      %2881 = vmatprep.subr.mxu0 0.0
      %2882 = vmatpush1.msra.mxu0 0.0
      %2883 = vmatprep.subr.mxu0 0.0
      %2884 = vmatpush1.msra.mxu0 0.0
      %2885 = vmatprep.subr.mxu0 0.0
      %2886 = vmatpush1.msra.mxu0 0.0
      %2887 = vmatprep.mubr.f32.mxu0 0.0
      %2888 = vmatmul.mubr.f32.gmra.mrb[0].mxu0 %v2812
      %v2889 = vpop.f32.mrb[0].mxu0
      %v2890 = vadd.f32 0.0, %v2889
      %v2891 = vpop.f32.mrb[0].mxu0
      %2892 = vmatprep.mubr.f32.mxu0 0.0
      %2893 = vmatmul.mubr.f32.gmra.mrb[0].mxu0 %v2815
      %v2894 = vpop.f32.mrb[0].mxu0
      %v2895 = vadd.f32 0.0, %v2894
      %v2896 = vpop.f32.mrb[0].mxu0
      %2897 = vmatprep.mubr.f32.mxu0 0.0
      %2898 = vmatmul.mubr.f32.gmra.mrb[0].mxu0 %v2818
      %v2899 = vpop.f32.mrb[0].mxu0
      %v2900 = vadd.f32 0.0, %v2899
      %v2901 = vpop.f32.mrb[0].mxu0
      %2902 = vmatprep.mubr.f32.mxu0 0.0
      %2903 = vmatmul.mubr.f32.gmra.mrb[0].mxu0 %v2821
      %v2904 = vpop.f32.mrb[0].mxu0
      %v2905 = vadd.f32 0.0, %v2904
      %v2906 = vpop.f32.mrb[0].mxu0
      %2907 = vdwg.mxu0
      %2912 = vrot.lane.b32.xlu0 %v2890, 96
      %v2913 = vpop.permute.xlu0 %2912
      %2914 = vrot.lane.b32.xlu0 %v2895, 96
      %v2915 = vpop.permute.xlu0 %2914
      %2916 = vrot.lane.b32.xlu0 %v2900, 96
      %v2917 = vpop.permute.xlu0 %2916
      %2918 = vrot.lane.b32.xlu0 %v2905, 96
      %v2919 = vpop.permute.xlu0 %2918
      %v2924 = vadd.f32 %v2528, %v2913
      %v2925 = vadd.f32 %v2529, %v2915
      %v2926 = vadd.f32 %v2530, %v2917
      %v2927 = vadd.f32 %v2531, %v2919
      %2928 = vrot.lane.b32.xlu0 %v2117, 112
      %v2929 = vpop.permute.xlu0 %2928
      %2930 = vrot.lane.b32.xlu0 %v2122, 112
      %v2931 = vpop.permute.xlu0 %2930
      %2932 = vrot.lane.b32.xlu0 %v2127, 112
      %v2933 = vpop.permute.xlu0 %2932
      %2934 = vrot.lane.b32.xlu0 %v2132, 112
      %v2935 = vpop.permute.xlu0 %2934
      %2936 = vrot.lane.b32.xlu0 %v2117, 80
      %v2937 = vpop.permute.xlu0 %2936
      %2938 = vrot.lane.b32.xlu0 %v2122, 80
      %v2939 = vpop.permute.xlu0 %2938
      %2940 = vrot.lane.b32.xlu0 %v2127, 80
      %v2941 = vpop.permute.xlu0 %2940
      %2942 = vrot.lane.b32.xlu0 %v2132, 80
      %v2943 = vpop.permute.xlu0 %2942
      %v2944 = vsel %vm2148, %v2929, 0
      %v2946 = vsel %vm2148, %v2931, 0
      %v2948 = vsel %vm2148, %v2933, 0
      %v2950 = vsel %vm2148, %v2935, 0
      %v2952 = vsel %vm2148, %v2937, 0
      %v2954 = vsel %vm2148, %v2939, 0
      %v2956 = vsel %vm2148, %v2941, 0
      %v2958 = vsel %vm2148, %v2943, 0
      %2960 = vmatprep.subr.mxu0 0.0
      %2961 = vmatpush1.xpose.msra.mxu0 %v2952
      %2962 = vmatprep.subr.mxu0 0.0
      %2963 = vmatpush1.xpose.msra.mxu0 %v2954
      %2964 = vmatprep.subr.mxu0 0.0
      %2965 = vmatpush1.xpose.msra.mxu0 %v2956
      %2966 = vmatprep.subr.mxu0 0.0
      %2967 = vmatpush1.xpose.msra.mxu0 %v2958
      %2968 = vmatprep.subr.mxu0 0.0
      %2969 = vmatpush1.xpose.msra.mxu0 0.0
      %2970 = vmatprep.subr.mxu0 0.0
      %2971 = vmatpush1.xpose.msra.mxu0 0.0
      %2972 = vmatprep.subr.mxu0 0.0
      %2973 = vmatpush1.xpose.msra.mxu0 0.0
      %2974 = vmatprep.subr.mxu0 0.0
      %2975 = vmatpush1.xpose.msra.mxu0 0.0
      %2976 = vmatprep.subr.mxu0 0.0
      %2977 = vmatpush1.xpose.msra.mxu0 0.0
      %2978 = vmatprep.subr.mxu0 0.0
      %2979 = vmatpush1.xpose.msra.mxu0 0.0
      %2980 = vmatprep.subr.mxu0 0.0
      %2981 = vmatpush1.xpose.msra.mxu0 0.0
      %2982 = vmatprep.subr.mxu0 0.0
      %2983 = vmatpush1.xpose.msra.mxu0 0.0
      %2984 = vmatprep.subr.mxu0 0.0
      %2985 = vmatpush1.xpose.msra.mxu0 0.0
      %2986 = vmatprep.subr.mxu0 0.0
      %2987 = vmatpush1.xpose.msra.mxu0 0.0
      %2988 = vmatprep.subr.mxu0 0.0
      %2989 = vmatpush1.xpose.msra.mxu0 0.0
      %2990 = vmatprep.subr.mxu0 0.0
      %2991 = vmatpush1.xpose.msra.mxu0 0.0
      %2992 = vmatprep.subr.mxu0 0.0
      %2993 = vmatpush1.xpose.msra.mxu0 0.0
      %2994 = vmatprep.subr.mxu0 0.0
      %2995 = vmatpush1.xpose.msra.mxu0 0.0
      %2996 = vmatprep.subr.mxu0 0.0
      %2997 = vmatpush1.xpose.msra.mxu0 0.0
      %2998 = vmatprep.subr.mxu0 0.0
      %2999 = vmatpush1.xpose.msra.mxu0 0.0
      %3000 = vmatprep.subr.mxu0 0.0
      %3001 = vmatpush1.xpose.msra.mxu0 0.0
      %3002 = vmatprep.subr.mxu0 0.0
      %3003 = vmatpush1.xpose.msra.mxu0 0.0
      %3004 = vmatprep.subr.mxu0 0.0
      %3005 = vmatpush1.xpose.msra.mxu0 0.0
      %3006 = vmatprep.subr.mxu0 0.0
      %3007 = vmatpush1.xpose.msra.mxu0 0.0
      %3008 = vmatprep.subr.mxu0 0.0
      %3009 = vmatpush1.xpose.msra.mxu0 0.0
      %3010 = vmatprep.subr.mxu0 0.0
      %3011 = vmatpush1.xpose.msra.mxu0 0.0
      %3012 = vmatprep.subr.mxu0 0.0
      %3013 = vmatpush1.xpose.msra.mxu0 0.0
      %3014 = vmatprep.subr.mxu0 0.0
      %3015 = vmatpush1.xpose.msra.mxu0 0.0
      %3016 = vmatprep.subr.mxu0 0.0
      %3017 = vmatpush1.xpose.msra.mxu0 0.0
      %3018 = vmatprep.subr.mxu0 0.0
      %3019 = vmatpush1.xpose.msra.mxu0 0.0
      %3020 = vmatprep.subr.mxu0 0.0
      %3021 = vmatpush1.xpose.msra.mxu0 0.0
      %3022 = vmatprep.subr.mxu0 0.0
      %3023 = vmatpush1.xpose.msra.mxu0 0.0
      %3024 = vmatprep.mubr.f32.mxu0 0.0
      %3025 = vmatmul.mubr.f32.gmra.mrb[0].mxu0 %v2944
      %v3026 = vpop.f32.mrb[0].mxu0
      %v3027 = vadd.f32 0.0, %v3026
      %v3028 = vpop.f32.mrb[0].mxu0
      %3029 = vmatprep.mubr.f32.mxu0 0.0
      %3030 = vmatmul.mubr.f32.gmra.mrb[0].mxu0 %v2946
      %v3031 = vpop.f32.mrb[0].mxu0
      %v3032 = vadd.f32 0.0, %v3031
      %v3033 = vpop.f32.mrb[0].mxu0
      %3034 = vmatprep.mubr.f32.mxu0 0.0
      %3035 = vmatmul.mubr.f32.gmra.mrb[0].mxu0 %v2948
      %v3036 = vpop.f32.mrb[0].mxu0
      %v3037 = vadd.f32 0.0, %v3036
      %v3038 = vpop.f32.mrb[0].mxu0
      %3039 = vmatprep.mubr.f32.mxu0 0.0
      %3040 = vmatmul.mubr.f32.gmra.mrb[0].mxu0 %v2950
      %v3041 = vpop.f32.mrb[0].mxu0
      %v3042 = vadd.f32 0.0, %v3041
      %v3043 = vpop.f32.mrb[0].mxu0
      %3044 = vdwg.mxu0
      %v3045 = vmul.f32 %v3027, 0.35355338
      %v3046 = vmul.f32 %v3032, 0.35355338
      %v3047 = vmul.f32 %v3037, 0.35355338
      %v3048 = vmul.f32 %v3042, 0.35355338
      %v3049 = vsel %vm2254, %v3045, -inf
      %3050 = vmax.xlane.f32.xlu0 %v3049
      %v3051 = vpop.xlane.xlu0 %3050
      %v3052 = vsel %vm2254, %v3046, -inf
      %3053 = vmax.xlane.f32.xlu0 %v3052
      %v3054 = vpop.xlane.xlu0 %3053
      %v3055 = vsel %vm2254, %v3047, -inf
      %3056 = vmax.xlane.f32.xlu0 %v3055
      %v3057 = vpop.xlane.xlu0 %3056
      %v3058 = vsel %vm2264, %v3048, -inf
      %3059 = vmax.xlane.f32.xlu0 %v3058
      %v3060 = vpop.xlane.xlu0 %3059
      %v3061 = vsub.f32 %v3045, %v3051
      %v3062 = vsub.f32 %v3046, %v3054
      %v3063 = vsub.f32 %v3047, %v3057
      %v3064 = vsub.f32 %v3048, %v3060
      %v3065 = vmul.f32 %v3061, 1.442695
      %v3066 = vpow.pop %v3065
      %v3067 = vmul.f32 %v3062, 1.442695
      %v3068 = vpow.pop %v3067
      %v3069 = vmul.f32 %v3063, 1.442695
      %v3070 = vpow.pop %v3069
      %v3071 = vmul.f32 %v3064, 1.442695
      %v3072 = vpow.pop %v3071
      %v3073 = vsel %vm2254, %v3066, 0.0
      %3074 = vadd.xlane.f32.xlu0 %v3073
      %v3075 = vpop.xlane.xlu0 %3074
      %v3076 = vsel %vm2254, %v3068, 0.0
      %3077 = vadd.xlane.f32.xlu0 %v3076
      %v3078 = vpop.xlane.xlu0 %3077
      %v3079 = vsel %vm2254, %v3070, 0.0
      %3080 = vadd.xlane.f32.xlu0 %v3079
      %v3081 = vpop.xlane.xlu0 %3080
      %v3082 = vsel %vm2264, %v3072, 0.0
      %3083 = vadd.xlane.f32.xlu0 %v3082
      %v3084 = vpop.xlane.xlu0 %3083
      %v3085 = vrcp.pop %v3075
      %v3086 = vrcp.pop %v3078
      %v3087 = vrcp.pop %v3081
      %v3088 = vrcp.pop %v3084
      %v3089 = vmul.f32 %v3066, %v3085
      %v3090 = vmul.f32 %v3068, %v3086
      %v3091 = vmul.f32 %v3070, %v3087
      %v3092 = vmul.f32 %v3072, %v3088
      %3093 = vrot.lane.b32.xlu0 %v2117, 48
      %v3094 = vpop.permute.xlu0 %3093
      %3095 = vrot.lane.b32.xlu0 %v2122, 48
      %v3096 = vpop.permute.xlu0 %3095
      %3097 = vrot.lane.b32.xlu0 %v2127, 48
      %v3098 = vpop.permute.xlu0 %3097
      %3099 = vrot.lane.b32.xlu0 %v2132, 48
      %v3100 = vpop.permute.xlu0 %3099
      %v3105 = vsel %vm2254, %v3089, 0
      %v3108 = vsel %vm2254, %v3090, 0
      %v3111 = vsel %vm2254, %v3091, 0
      %v3114 = vsel %vm2254, %v3092, 0
      %v3116 = vsel %vm2323, %v3100, 0
      %3118 = vmatprep.subr.mxu0 0.0
      %3119 = vmatpush1.msra.mxu0 %v3094
      %3120 = vmatprep.subr.mxu0 0.0
      %3121 = vmatpush1.msra.mxu0 %v3096
      %3122 = vmatprep.subr.mxu0 0.0
      %3123 = vmatpush1.msra.mxu0 %v3098
      %3124 = vmatprep.subr.mxu0 0.0
      %3125 = vmatpush1.msra.mxu0 %v3116
      %3126 = vmatprep.subr.mxu0 0.0
      %3127 = vmatpush1.msra.mxu0 0.0
      %3128 = vmatprep.subr.mxu0 0.0
      %3129 = vmatpush1.msra.mxu0 0.0
      %3130 = vmatprep.subr.mxu0 0.0
      %3131 = vmatpush1.msra.mxu0 0.0
      %3132 = vmatprep.subr.mxu0 0.0
      %3133 = vmatpush1.msra.mxu0 0.0
      %3134 = vmatprep.subr.mxu0 0.0
      %3135 = vmatpush1.msra.mxu0 0.0
      %3136 = vmatprep.subr.mxu0 0.0
      %3137 = vmatpush1.msra.mxu0 0.0
      %3138 = vmatprep.subr.mxu0 0.0
      %3139 = vmatpush1.msra.mxu0 0.0
      %3140 = vmatprep.subr.mxu0 0.0
      %3141 = vmatpush1.msra.mxu0 0.0
      %3142 = vmatprep.subr.mxu0 0.0
      %3143 = vmatpush1.msra.mxu0 0.0
      %3144 = vmatprep.subr.mxu0 0.0
      %3145 = vmatpush1.msra.mxu0 0.0
      %3146 = vmatprep.subr.mxu0 0.0
      %3147 = vmatpush1.msra.mxu0 0.0
      %3148 = vmatprep.subr.mxu0 0.0
      %3149 = vmatpush1.msra.mxu0 0.0
      %3150 = vmatprep.subr.mxu0 0.0
      %3151 = vmatpush1.msra.mxu0 0.0
      %3152 = vmatprep.subr.mxu0 0.0
      %3153 = vmatpush1.msra.mxu0 0.0
      %3154 = vmatprep.subr.mxu0 0.0
      %3155 = vmatpush1.msra.mxu0 0.0
      %3156 = vmatprep.subr.mxu0 0.0
      %3157 = vmatpush1.msra.mxu0 0.0
      %3158 = vmatprep.subr.mxu0 0.0
      %3159 = vmatpush1.msra.mxu0 0.0
      %3160 = vmatprep.subr.mxu0 0.0
      %3161 = vmatpush1.msra.mxu0 0.0
      %3162 = vmatprep.subr.mxu0 0.0
      %3163 = vmatpush1.msra.mxu0 0.0
      %3164 = vmatprep.subr.mxu0 0.0
      %3165 = vmatpush1.msra.mxu0 0.0
      %3166 = vmatprep.subr.mxu0 0.0
      %3167 = vmatpush1.msra.mxu0 0.0
      %3168 = vmatprep.subr.mxu0 0.0
      %3169 = vmatpush1.msra.mxu0 0.0
      %3170 = vmatprep.subr.mxu0 0.0
      %3171 = vmatpush1.msra.mxu0 0.0
      %3172 = vmatprep.subr.mxu0 0.0
      %3173 = vmatpush1.msra.mxu0 0.0
      %3174 = vmatprep.subr.mxu0 0.0
      %3175 = vmatpush1.msra.mxu0 0.0
      %3176 = vmatprep.subr.mxu0 0.0
      %3177 = vmatpush1.msra.mxu0 0.0
      %3178 = vmatprep.subr.mxu0 0.0
      %3179 = vmatpush1.msra.mxu0 0.0
      %3180 = vmatprep.subr.mxu0 0.0
      %3181 = vmatpush1.msra.mxu0 0.0
      %3182 = vmatprep.mubr.f32.mxu0 0.0
      %3183 = vmatmul.mubr.f32.gmra.mrb[0].mxu0 %v3105
      %v3184 = vpop.f32.mrb[0].mxu0
      %v3185 = vadd.f32 0.0, %v3184
      %v3186 = vpop.f32.mrb[0].mxu0
      %3187 = vmatprep.mubr.f32.mxu0 0.0
      %3188 = vmatmul.mubr.f32.gmra.mrb[0].mxu0 %v3108
      %v3189 = vpop.f32.mrb[0].mxu0
      %v3190 = vadd.f32 0.0, %v3189
      %v3191 = vpop.f32.mrb[0].mxu0
      %3192 = vmatprep.mubr.f32.mxu0 0.0
      %3193 = vmatmul.mubr.f32.gmra.mrb[0].mxu0 %v3111
      %v3194 = vpop.f32.mrb[0].mxu0
      %v3195 = vadd.f32 0.0, %v3194
      %v3196 = vpop.f32.mrb[0].mxu0
      %3197 = vmatprep.mubr.f32.mxu0 0.0
      %3198 = vmatmul.mubr.f32.gmra.mrb[0].mxu0 %v3114
      %v3199 = vpop.f32.mrb[0].mxu0
      %v3200 = vadd.f32 0.0, %v3199
      %v3201 = vpop.f32.mrb[0].mxu0
      %3202 = vdwg.mxu0
      %3204 = vrot.lane.b32.xlu0 %v2028, 32
      %v3205 = vpop.permute.xlu0 %3204
      %v3208 = vsel %vm2148, %v3185, 0
      %v3211 = vsel %vm2148, %v3190, 0
      %v3214 = vsel %vm2148, %v3195, 0
      %v3217 = vsel %vm2148, %v3200, 0
      %3219 = vmatprep.subr.mxu0 0.0
      %3220 = vmatpush1.msra.mxu0 %v3205
      %3221 = vmatprep.subr.mxu0 0.0
      %3222 = vmatpush1.msra.mxu0 0.0
      %3223 = vmatprep.subr.mxu0 0.0
      %3224 = vmatpush1.msra.mxu0 0.0
      %3225 = vmatprep.subr.mxu0 0.0
      %3226 = vmatpush1.msra.mxu0 0.0
      %3227 = vmatprep.subr.mxu0 0.0
      %3228 = vmatpush1.msra.mxu0 0.0
      %3229 = vmatprep.subr.mxu0 0.0
      %3230 = vmatpush1.msra.mxu0 0.0
      %3231 = vmatprep.subr.mxu0 0.0
      %3232 = vmatpush1.msra.mxu0 0.0
      %3233 = vmatprep.subr.mxu0 0.0
      %3234 = vmatpush1.msra.mxu0 0.0
      %3235 = vmatprep.subr.mxu0 0.0
      %3236 = vmatpush1.msra.mxu0 0.0
      %3237 = vmatprep.subr.mxu0 0.0
      %3238 = vmatpush1.msra.mxu0 0.0
      %3239 = vmatprep.subr.mxu0 0.0
      %3240 = vmatpush1.msra.mxu0 0.0
      %3241 = vmatprep.subr.mxu0 0.0
      %3242 = vmatpush1.msra.mxu0 0.0
      %3243 = vmatprep.subr.mxu0 0.0
      %3244 = vmatpush1.msra.mxu0 0.0
      %3245 = vmatprep.subr.mxu0 0.0
      %3246 = vmatpush1.msra.mxu0 0.0
      %3247 = vmatprep.subr.mxu0 0.0
      %3248 = vmatpush1.msra.mxu0 0.0
      %3249 = vmatprep.subr.mxu0 0.0
      %3250 = vmatpush1.msra.mxu0 0.0
      %3251 = vmatprep.subr.mxu0 0.0
      %3252 = vmatpush1.msra.mxu0 0.0
      %3253 = vmatprep.subr.mxu0 0.0
      %3254 = vmatpush1.msra.mxu0 0.0
      %3255 = vmatprep.subr.mxu0 0.0
      %3256 = vmatpush1.msra.mxu0 0.0
      %3257 = vmatprep.subr.mxu0 0.0
      %3258 = vmatpush1.msra.mxu0 0.0
      %3259 = vmatprep.subr.mxu0 0.0
      %3260 = vmatpush1.msra.mxu0 0.0
      %3261 = vmatprep.subr.mxu0 0.0
      %3262 = vmatpush1.msra.mxu0 0.0
      %3263 = vmatprep.subr.mxu0 0.0
      %3264 = vmatpush1.msra.mxu0 0.0
      %3265 = vmatprep.subr.mxu0 0.0
      %3266 = vmatpush1.msra.mxu0 0.0
      %3267 = vmatprep.subr.mxu0 0.0
      %3268 = vmatpush1.msra.mxu0 0.0
      %3269 = vmatprep.subr.mxu0 0.0
      %3270 = vmatpush1.msra.mxu0 0.0
      %3271 = vmatprep.subr.mxu0 0.0
      %3272 = vmatpush1.msra.mxu0 0.0
      %3273 = vmatprep.subr.mxu0 0.0
      %3274 = vmatpush1.msra.mxu0 0.0
      %3275 = vmatprep.subr.mxu0 0.0
      %3276 = vmatpush1.msra.mxu0 0.0
      %3277 = vmatprep.subr.mxu0 0.0
      %3278 = vmatpush1.msra.mxu0 0.0
      %3279 = vmatprep.subr.mxu0 0.0
      %3280 = vmatpush1.msra.mxu0 0.0
      %3281 = vmatprep.subr.mxu0 0.0
      %3282 = vmatpush1.msra.mxu0 0.0
      %3283 = vmatprep.mubr.f32.mxu0 0.0
      %3284 = vmatmul.mubr.f32.gmra.mrb[0].mxu0 %v3208
      %v3285 = vpop.f32.mrb[0].mxu0
      %v3286 = vadd.f32 0.0, %v3285
      %v3287 = vpop.f32.mrb[0].mxu0
      %3288 = vmatprep.mubr.f32.mxu0 0.0
      %3289 = vmatmul.mubr.f32.gmra.mrb[0].mxu0 %v3211
      %v3290 = vpop.f32.mrb[0].mxu0
      %v3291 = vadd.f32 0.0, %v3290
      %v3292 = vpop.f32.mrb[0].mxu0
      %3293 = vmatprep.mubr.f32.mxu0 0.0
      %3294 = vmatmul.mubr.f32.gmra.mrb[0].mxu0 %v3214
      %v3295 = vpop.f32.mrb[0].mxu0
      %v3296 = vadd.f32 0.0, %v3295
      %v3297 = vpop.f32.mrb[0].mxu0
      %3298 = vmatprep.mubr.f32.mxu0 0.0
      %3299 = vmatmul.mubr.f32.gmra.mrb[0].mxu0 %v3217
      %v3300 = vpop.f32.mrb[0].mxu0
      %v3301 = vadd.f32 0.0, %v3300
      %v3302 = vpop.f32.mrb[0].mxu0
      %3303 = vdwg.mxu0
      %3308 = vrot.lane.b32.xlu0 %v3286, 96
      %v3309 = vpop.permute.xlu0 %3308
      %3310 = vrot.lane.b32.xlu0 %v3291, 96
      %v3311 = vpop.permute.xlu0 %3310
      %3312 = vrot.lane.b32.xlu0 %v3296, 96
      %v3313 = vpop.permute.xlu0 %3312
      %3314 = vrot.lane.b32.xlu0 %v3301, 96
      %v3315 = vpop.permute.xlu0 %3314
      %v3320 = vadd.f32 %v2924, %v3309
      %v3321 = vadd.f32 %v2925, %v3311
      %v3322 = vadd.f32 %v2926, %v3313
      %v3323 = vadd.f32 %v2927, %v3315
      %3324 = vrot.lane.b32.xlu0 %v2117, 104
      %v3325 = vpop.permute.xlu0 %3324
      %3326 = vrot.lane.b32.xlu0 %v2122, 104
      %v3327 = vpop.permute.xlu0 %3326
      %3328 = vrot.lane.b32.xlu0 %v2127, 104
      %v3329 = vpop.permute.xlu0 %3328
      %3330 = vrot.lane.b32.xlu0 %v2132, 104
      %v3331 = vpop.permute.xlu0 %3330
      %3332 = vrot.lane.b32.xlu0 %v2117, 72
      %v3333 = vpop.permute.xlu0 %3332
      %3334 = vrot.lane.b32.xlu0 %v2122, 72
      %v3335 = vpop.permute.xlu0 %3334
      %3336 = vrot.lane.b32.xlu0 %v2127, 72
      %v3337 = vpop.permute.xlu0 %3336
      %3338 = vrot.lane.b32.xlu0 %v2132, 72
      %v3339 = vpop.permute.xlu0 %3338
      %v3340 = vsel %vm2148, %v3325, 0
      %v3342 = vsel %vm2148, %v3327, 0
      %v3344 = vsel %vm2148, %v3329, 0
      %v3346 = vsel %vm2148, %v3331, 0
      %v3348 = vsel %vm2148, %v3333, 0
      %v3350 = vsel %vm2148, %v3335, 0
      %v3352 = vsel %vm2148, %v3337, 0
      %v3354 = vsel %vm2148, %v3339, 0
      %3356 = vmatprep.subr.mxu0 0.0
      %3357 = vmatpush1.xpose.msra.mxu0 %v3348
      %3358 = vmatprep.subr.mxu0 0.0
      %3359 = vmatpush1.xpose.msra.mxu0 %v3350
      %3360 = vmatprep.subr.mxu0 0.0
      %3361 = vmatpush1.xpose.msra.mxu0 %v3352
      %3362 = vmatprep.subr.mxu0 0.0
      %3363 = vmatpush1.xpose.msra.mxu0 %v3354
      %3364 = vmatprep.subr.mxu0 0.0
      %3365 = vmatpush1.xpose.msra.mxu0 0.0
      %3366 = vmatprep.subr.mxu0 0.0
      %3367 = vmatpush1.xpose.msra.mxu0 0.0
      %3368 = vmatprep.subr.mxu0 0.0
      %3369 = vmatpush1.xpose.msra.mxu0 0.0
      %3370 = vmatprep.subr.mxu0 0.0
      %3371 = vmatpush1.xpose.msra.mxu0 0.0
      %3372 = vmatprep.subr.mxu0 0.0
      %3373 = vmatpush1.xpose.msra.mxu0 0.0
      %3374 = vmatprep.subr.mxu0 0.0
      %3375 = vmatpush1.xpose.msra.mxu0 0.0
      %3376 = vmatprep.subr.mxu0 0.0
      %3377 = vmatpush1.xpose.msra.mxu0 0.0
      %3378 = vmatprep.subr.mxu0 0.0
      %3379 = vmatpush1.xpose.msra.mxu0 0.0
      %3380 = vmatprep.subr.mxu0 0.0
      %3381 = vmatpush1.xpose.msra.mxu0 0.0
      %3382 = vmatprep.subr.mxu0 0.0
      %3383 = vmatpush1.xpose.msra.mxu0 0.0
      %3384 = vmatprep.subr.mxu0 0.0
      %3385 = vmatpush1.xpose.msra.mxu0 0.0
      %3386 = vmatprep.subr.mxu0 0.0
      %3387 = vmatpush1.xpose.msra.mxu0 0.0
      %3388 = vmatprep.subr.mxu0 0.0
      %3389 = vmatpush1.xpose.msra.mxu0 0.0
      %3390 = vmatprep.subr.mxu0 0.0
      %3391 = vmatpush1.xpose.msra.mxu0 0.0
      %3392 = vmatprep.subr.mxu0 0.0
      %3393 = vmatpush1.xpose.msra.mxu0 0.0
      %3394 = vmatprep.subr.mxu0 0.0
      %3395 = vmatpush1.xpose.msra.mxu0 0.0
      %3396 = vmatprep.subr.mxu0 0.0
      %3397 = vmatpush1.xpose.msra.mxu0 0.0
      %3398 = vmatprep.subr.mxu0 0.0
      %3399 = vmatpush1.xpose.msra.mxu0 0.0
      %3400 = vmatprep.subr.mxu0 0.0
      %3401 = vmatpush1.xpose.msra.mxu0 0.0
      %3402 = vmatprep.subr.mxu0 0.0
      %3403 = vmatpush1.xpose.msra.mxu0 0.0
      %3404 = vmatprep.subr.mxu0 0.0
      %3405 = vmatpush1.xpose.msra.mxu0 0.0
      %3406 = vmatprep.subr.mxu0 0.0
      %3407 = vmatpush1.xpose.msra.mxu0 0.0
      %3408 = vmatprep.subr.mxu0 0.0
      %3409 = vmatpush1.xpose.msra.mxu0 0.0
      %3410 = vmatprep.subr.mxu0 0.0
      %3411 = vmatpush1.xpose.msra.mxu0 0.0
      %3412 = vmatprep.subr.mxu0 0.0
      %3413 = vmatpush1.xpose.msra.mxu0 0.0
      %3414 = vmatprep.subr.mxu0 0.0
      %3415 = vmatpush1.xpose.msra.mxu0 0.0
      %3416 = vmatprep.subr.mxu0 0.0
      %3417 = vmatpush1.xpose.msra.mxu0 0.0
      %3418 = vmatprep.subr.mxu0 0.0
      %3419 = vmatpush1.xpose.msra.mxu0 0.0
      %3420 = vmatprep.mubr.f32.mxu0 0.0
      %3421 = vmatmul.mubr.f32.gmra.mrb[0].mxu0 %v3340
      %v3422 = vpop.f32.mrb[0].mxu0
      %v3423 = vadd.f32 0.0, %v3422
      %v3424 = vpop.f32.mrb[0].mxu0
      %3425 = vmatprep.mubr.f32.mxu0 0.0
      %3426 = vmatmul.mubr.f32.gmra.mrb[0].mxu0 %v3342
      %v3427 = vpop.f32.mrb[0].mxu0
      %v3428 = vadd.f32 0.0, %v3427
      %v3429 = vpop.f32.mrb[0].mxu0
      %3430 = vmatprep.mubr.f32.mxu0 0.0
      %3431 = vmatmul.mubr.f32.gmra.mrb[0].mxu0 %v3344
      %v3432 = vpop.f32.mrb[0].mxu0
      %v3433 = vadd.f32 0.0, %v3432
      %v3434 = vpop.f32.mrb[0].mxu0
      %3435 = vmatprep.mubr.f32.mxu0 0.0
      %3436 = vmatmul.mubr.f32.gmra.mrb[0].mxu0 %v3346
      %v3437 = vpop.f32.mrb[0].mxu0
      %v3438 = vadd.f32 0.0, %v3437
      %v3439 = vpop.f32.mrb[0].mxu0
      %3440 = vdwg.mxu0
      %v3441 = vmul.f32 %v3423, 0.35355338
      %v3442 = vmul.f32 %v3428, 0.35355338
      %v3443 = vmul.f32 %v3433, 0.35355338
      %v3444 = vmul.f32 %v3438, 0.35355338
      %v3445 = vsel %vm2254, %v3441, -inf
      %3446 = vmax.xlane.f32.xlu0 %v3445
      %v3447 = vpop.xlane.xlu0 %3446
      %v3448 = vsel %vm2254, %v3442, -inf
      %3449 = vmax.xlane.f32.xlu0 %v3448
      %v3450 = vpop.xlane.xlu0 %3449
      %v3451 = vsel %vm2254, %v3443, -inf
      %3452 = vmax.xlane.f32.xlu0 %v3451
      %v3453 = vpop.xlane.xlu0 %3452
      %v3454 = vsel %vm2264, %v3444, -inf
      %3455 = vmax.xlane.f32.xlu0 %v3454
      %v3456 = vpop.xlane.xlu0 %3455
      %v3457 = vsub.f32 %v3441, %v3447
      %v3458 = vsub.f32 %v3442, %v3450
      %v3459 = vsub.f32 %v3443, %v3453
      %v3460 = vsub.f32 %v3444, %v3456
      %v3461 = vmul.f32 %v3457, 1.442695
      %v3462 = vpow.pop %v3461
      %v3463 = vmul.f32 %v3458, 1.442695
      %v3464 = vpow.pop %v3463
      %v3465 = vmul.f32 %v3459, 1.442695
      %v3466 = vpow.pop %v3465
      %v3467 = vmul.f32 %v3460, 1.442695
      %v3468 = vpow.pop %v3467
      %v3469 = vsel %vm2254, %v3462, 0.0
      %3470 = vadd.xlane.f32.xlu0 %v3469
      %v3471 = vpop.xlane.xlu0 %3470
      %v3472 = vsel %vm2254, %v3464, 0.0
      %3473 = vadd.xlane.f32.xlu0 %v3472
      %v3474 = vpop.xlane.xlu0 %3473
      %v3475 = vsel %vm2254, %v3466, 0.0
      %3476 = vadd.xlane.f32.xlu0 %v3475
      %v3477 = vpop.xlane.xlu0 %3476
      %v3478 = vsel %vm2264, %v3468, 0.0
      %3479 = vadd.xlane.f32.xlu0 %v3478
      %v3480 = vpop.xlane.xlu0 %3479
      %v3481 = vrcp.pop %v3471
      %v3482 = vrcp.pop %v3474
      %v3483 = vrcp.pop %v3477
      %v3484 = vrcp.pop %v3480
      %v3485 = vmul.f32 %v3462, %v3481
      %v3486 = vmul.f32 %v3464, %v3482
      %v3487 = vmul.f32 %v3466, %v3483
      %v3488 = vmul.f32 %v3468, %v3484
      %3489 = vrot.lane.b32.xlu0 %v2117, 40
      %v3490 = vpop.permute.xlu0 %3489
      %3491 = vrot.lane.b32.xlu0 %v2122, 40
      %v3492 = vpop.permute.xlu0 %3491
      %3493 = vrot.lane.b32.xlu0 %v2127, 40
      %v3494 = vpop.permute.xlu0 %3493
      %3495 = vrot.lane.b32.xlu0 %v2132, 40
      %v3496 = vpop.permute.xlu0 %3495
      %v3501 = vsel %vm2254, %v3485, 0
      %v3504 = vsel %vm2254, %v3486, 0
      %v3507 = vsel %vm2254, %v3487, 0
      %v3510 = vsel %vm2254, %v3488, 0
      %v3512 = vsel %vm2323, %v3496, 0
      %3514 = vmatprep.subr.mxu0 0.0
      %3515 = vmatpush1.msra.mxu0 %v3490
      %3516 = vmatprep.subr.mxu0 0.0
      %3517 = vmatpush1.msra.mxu0 %v3492
      %3518 = vmatprep.subr.mxu0 0.0
      %3519 = vmatpush1.msra.mxu0 %v3494
      %3520 = vmatprep.subr.mxu0 0.0
      %3521 = vmatpush1.msra.mxu0 %v3512
      %3522 = vmatprep.subr.mxu0 0.0
      %3523 = vmatpush1.msra.mxu0 0.0
      %3524 = vmatprep.subr.mxu0 0.0
      %3525 = vmatpush1.msra.mxu0 0.0
      %3526 = vmatprep.subr.mxu0 0.0
      %3527 = vmatpush1.msra.mxu0 0.0
      %3528 = vmatprep.subr.mxu0 0.0
      %3529 = vmatpush1.msra.mxu0 0.0
      %3530 = vmatprep.subr.mxu0 0.0
      %3531 = vmatpush1.msra.mxu0 0.0
      %3532 = vmatprep.subr.mxu0 0.0
      %3533 = vmatpush1.msra.mxu0 0.0
      %3534 = vmatprep.subr.mxu0 0.0
      %3535 = vmatpush1.msra.mxu0 0.0
      %3536 = vmatprep.subr.mxu0 0.0
      %3537 = vmatpush1.msra.mxu0 0.0
      %3538 = vmatprep.subr.mxu0 0.0
      %3539 = vmatpush1.msra.mxu0 0.0
      %3540 = vmatprep.subr.mxu0 0.0
      %3541 = vmatpush1.msra.mxu0 0.0
      %3542 = vmatprep.subr.mxu0 0.0
      %3543 = vmatpush1.msra.mxu0 0.0
      %3544 = vmatprep.subr.mxu0 0.0
      %3545 = vmatpush1.msra.mxu0 0.0
      %3546 = vmatprep.subr.mxu0 0.0
      %3547 = vmatpush1.msra.mxu0 0.0
      %3548 = vmatprep.subr.mxu0 0.0
      %3549 = vmatpush1.msra.mxu0 0.0
      %3550 = vmatprep.subr.mxu0 0.0
      %3551 = vmatpush1.msra.mxu0 0.0
      %3552 = vmatprep.subr.mxu0 0.0
      %3553 = vmatpush1.msra.mxu0 0.0
      %3554 = vmatprep.subr.mxu0 0.0
      %3555 = vmatpush1.msra.mxu0 0.0
      %3556 = vmatprep.subr.mxu0 0.0
      %3557 = vmatpush1.msra.mxu0 0.0
      %3558 = vmatprep.subr.mxu0 0.0
      %3559 = vmatpush1.msra.mxu0 0.0
      %3560 = vmatprep.subr.mxu0 0.0
      %3561 = vmatpush1.msra.mxu0 0.0
      %3562 = vmatprep.subr.mxu0 0.0
      %3563 = vmatpush1.msra.mxu0 0.0
      %3564 = vmatprep.subr.mxu0 0.0
      %3565 = vmatpush1.msra.mxu0 0.0
      %3566 = vmatprep.subr.mxu0 0.0
      %3567 = vmatpush1.msra.mxu0 0.0
      %3568 = vmatprep.subr.mxu0 0.0
      %3569 = vmatpush1.msra.mxu0 0.0
      %3570 = vmatprep.subr.mxu0 0.0
      %3571 = vmatpush1.msra.mxu0 0.0
      %3572 = vmatprep.subr.mxu0 0.0
      %3573 = vmatpush1.msra.mxu0 0.0
      %3574 = vmatprep.subr.mxu0 0.0
      %3575 = vmatpush1.msra.mxu0 0.0
      %3576 = vmatprep.subr.mxu0 0.0
      %3577 = vmatpush1.msra.mxu0 0.0
      %3578 = vmatprep.mubr.f32.mxu0 0.0
      %3579 = vmatmul.mubr.f32.gmra.mrb[0].mxu0 %v3501
      %v3580 = vpop.f32.mrb[0].mxu0
      %v3581 = vadd.f32 0.0, %v3580
      %v3582 = vpop.f32.mrb[0].mxu0
      %3583 = vmatprep.mubr.f32.mxu0 0.0
      %3584 = vmatmul.mubr.f32.gmra.mrb[0].mxu0 %v3504
      %v3585 = vpop.f32.mrb[0].mxu0
      %v3586 = vadd.f32 0.0, %v3585
      %v3587 = vpop.f32.mrb[0].mxu0
      %3588 = vmatprep.mubr.f32.mxu0 0.0
      %3589 = vmatmul.mubr.f32.gmra.mrb[0].mxu0 %v3507
      %v3590 = vpop.f32.mrb[0].mxu0
      %v3591 = vadd.f32 0.0, %v3590
      %v3592 = vpop.f32.mrb[0].mxu0
      %3593 = vmatprep.mubr.f32.mxu0 0.0
      %3594 = vmatmul.mubr.f32.gmra.mrb[0].mxu0 %v3510
      %v3595 = vpop.f32.mrb[0].mxu0
      %v3596 = vadd.f32 0.0, %v3595
      %v3597 = vpop.f32.mrb[0].mxu0
      %3598 = vdwg.mxu0
      %3600 = vrot.lane.b32.xlu0 %v2029, 32
      %v3601 = vpop.permute.xlu0 %3600
      %v3604 = vsel %vm2148, %v3581, 0
      %v3607 = vsel %vm2148, %v3586, 0
      %v3610 = vsel %vm2148, %v3591, 0
      %v3613 = vsel %vm2148, %v3596, 0
      %3615 = vmatprep.subr.mxu0 0.0
      %3616 = vmatpush1.msra.mxu0 %v3601
      %3617 = vmatprep.subr.mxu0 0.0
      %3618 = vmatpush1.msra.mxu0 0.0
      %3619 = vmatprep.subr.mxu0 0.0
      %3620 = vmatpush1.msra.mxu0 0.0
      %3621 = vmatprep.subr.mxu0 0.0
      %3622 = vmatpush1.msra.mxu0 0.0
      %3623 = vmatprep.subr.mxu0 0.0
      %3624 = vmatpush1.msra.mxu0 0.0
      %3625 = vmatprep.subr.mxu0 0.0
      %3626 = vmatpush1.msra.mxu0 0.0
      %3627 = vmatprep.subr.mxu0 0.0
      %3628 = vmatpush1.msra.mxu0 0.0
      %3629 = vmatprep.subr.mxu0 0.0
      %3630 = vmatpush1.msra.mxu0 0.0
      %3631 = vmatprep.subr.mxu0 0.0
      %3632 = vmatpush1.msra.mxu0 0.0
      %3633 = vmatprep.subr.mxu0 0.0
      %3634 = vmatpush1.msra.mxu0 0.0
      %3635 = vmatprep.subr.mxu0 0.0
      %3636 = vmatpush1.msra.mxu0 0.0
      %3637 = vmatprep.subr.mxu0 0.0
      %3638 = vmatpush1.msra.mxu0 0.0
      %3639 = vmatprep.subr.mxu0 0.0
      %3640 = vmatpush1.msra.mxu0 0.0
      %3641 = vmatprep.subr.mxu0 0.0
      %3642 = vmatpush1.msra.mxu0 0.0
      %3643 = vmatprep.subr.mxu0 0.0
      %3644 = vmatpush1.msra.mxu0 0.0
      %3645 = vmatprep.subr.mxu0 0.0
      %3646 = vmatpush1.msra.mxu0 0.0
      %3647 = vmatprep.subr.mxu0 0.0
      %3648 = vmatpush1.msra.mxu0 0.0
      %3649 = vmatprep.subr.mxu0 0.0
      %3650 = vmatpush1.msra.mxu0 0.0
      %3651 = vmatprep.subr.mxu0 0.0
      %3652 = vmatpush1.msra.mxu0 0.0
      %3653 = vmatprep.subr.mxu0 0.0
      %3654 = vmatpush1.msra.mxu0 0.0
      %3655 = vmatprep.subr.mxu0 0.0
      %3656 = vmatpush1.msra.mxu0 0.0
      %3657 = vmatprep.subr.mxu0 0.0
      %3658 = vmatpush1.msra.mxu0 0.0
      %3659 = vmatprep.subr.mxu0 0.0
      %3660 = vmatpush1.msra.mxu0 0.0
      %3661 = vmatprep.subr.mxu0 0.0
      %3662 = vmatpush1.msra.mxu0 0.0
      %3663 = vmatprep.subr.mxu0 0.0
      %3664 = vmatpush1.msra.mxu0 0.0
      %3665 = vmatprep.subr.mxu0 0.0
      %3666 = vmatpush1.msra.mxu0 0.0
      %3667 = vmatprep.subr.mxu0 0.0
      %3668 = vmatpush1.msra.mxu0 0.0
      %3669 = vmatprep.subr.mxu0 0.0
      %3670 = vmatpush1.msra.mxu0 0.0
      %3671 = vmatprep.subr.mxu0 0.0
      %3672 = vmatpush1.msra.mxu0 0.0
      %3673 = vmatprep.subr.mxu0 0.0
      %3674 = vmatpush1.msra.mxu0 0.0
      %3675 = vmatprep.subr.mxu0 0.0
      %3676 = vmatpush1.msra.mxu0 0.0
      %3677 = vmatprep.subr.mxu0 0.0
      %3678 = vmatpush1.msra.mxu0 0.0
      %3679 = vmatprep.mubr.f32.mxu0 0.0
      %3680 = vmatmul.mubr.f32.gmra.mrb[0].mxu0 %v3604
      %v3681 = vpop.f32.mrb[0].mxu0
      %v3682 = vadd.f32 0.0, %v3681
      %v3683 = vpop.f32.mrb[0].mxu0
      %3684 = vmatprep.mubr.f32.mxu0 0.0
      %3685 = vmatmul.mubr.f32.gmra.mrb[0].mxu0 %v3607
      %v3686 = vpop.f32.mrb[0].mxu0
      %v3687 = vadd.f32 0.0, %v3686
      %v3688 = vpop.f32.mrb[0].mxu0
      %3689 = vmatprep.mubr.f32.mxu0 0.0
      %3690 = vmatmul.mubr.f32.gmra.mrb[0].mxu0 %v3610
      %v3691 = vpop.f32.mrb[0].mxu0
      %v3692 = vadd.f32 0.0, %v3691
      %v3693 = vpop.f32.mrb[0].mxu0
      %3694 = vmatprep.mubr.f32.mxu0 0.0
      %3695 = vmatmul.mubr.f32.gmra.mrb[0].mxu0 %v3613
      %v3696 = vpop.f32.mrb[0].mxu0
      %v3697 = vadd.f32 0.0, %v3696
      %v3698 = vpop.f32.mrb[0].mxu0
      %3699 = vdwg.mxu0
      %3704 = vrot.lane.b32.xlu0 %v3682, 96
      %v3705 = vpop.permute.xlu0 %3704
      %3706 = vrot.lane.b32.xlu0 %v3687, 96
      %v3707 = vpop.permute.xlu0 %3706
      %3708 = vrot.lane.b32.xlu0 %v3692, 96
      %v3709 = vpop.permute.xlu0 %3708
      %3710 = vrot.lane.b32.xlu0 %v3697, 96
      %v3711 = vpop.permute.xlu0 %3710
      %v3716 = vadd.f32 %v3320, %v3705
      %v3717 = vadd.f32 %v3321, %v3707
      %v3718 = vadd.f32 %v3322, %v3709
      %v3719 = vadd.f32 %v3323, %v3711
      %3724 = vrot.lane.b32.xlu0 %v3716, 32
      %v3725 = vpop.permute.xlu0 %3724
      %3726 = vrot.lane.b32.xlu0 %v3717, 32
      %v3727 = vpop.permute.xlu0 %3726
      %3728 = vrot.lane.b32.xlu0 %v3718, 32
      %v3729 = vpop.permute.xlu0 %3728
      %3730 = vrot.lane.b32.xlu0 %v3719, 32
      %v3731 = vpop.permute.xlu0 %3730
      %v3736 = vadd.f32 %v2022, %v3725
      %v3737 = vadd.f32 %v2023, %v3727
      %v3738 = vadd.f32 %v2024, %v3729
      %v3739 = vadd.f32 %v2025, %v3731
      %v3740 = vsel %vm2037, %v3736, 0.0
      %3741 = vadd.xlane.f32.xlu0 %v3740
      %v3742 = vpop.xlane.xlu0 %3741
      %v3743 = vsel %vm2037, %v3737, 0.0
      %3744 = vadd.xlane.f32.xlu0 %v3743
      %v3745 = vpop.xlane.xlu0 %3744
      %v3746 = vsel %vm2037, %v3738, 0.0
      %3747 = vadd.xlane.f32.xlu0 %v3746
      %v3748 = vpop.xlane.xlu0 %3747
      %vm3749 = vcmask 253952
      %v3750 = vsel %vm3749, %v3739, 0.0
      %3751 = vadd.xlane.f32.xlu0 %v3750
      %v3752 = vpop.xlane.xlu0 %3751
      %v3753 = vrcp.pop 32.0
      %v3754 = vmul.f32 %v3742, %v3753
      %v3755 = vmul.f32 %v3745, %v3753
      %v3756 = vmul.f32 %v3748, %v3753
      %v3757 = vmul.f32 %v3752, %v3753
      %v3758 = vsub.f32 %v3736, %v3754
      %v3759 = vsub.f32 %v3737, %v3755
      %v3760 = vsub.f32 %v3738, %v3756
      %v3761 = vsub.f32 %v3739, %v3757
      %v3762 = vmul.f32 %v3758, %v3758
      %v3763 = vmul.f32 %v3759, %v3759
      %v3764 = vmul.f32 %v3760, %v3760
      %v3765 = vmul.f32 %v3761, %v3761
      %v3766 = vsel %vm2037, %v3762, 0.0
      %3767 = vadd.xlane.f32.xlu0 %v3766
      %v3768 = vpop.xlane.xlu0 %3767
      %v3769 = vsel %vm2037, %v3763, 0.0
      %3770 = vadd.xlane.f32.xlu0 %v3769
      %v3771 = vpop.xlane.xlu0 %3770
      %v3772 = vsel %vm2037, %v3764, 0.0
      %3773 = vadd.xlane.f32.xlu0 %v3772
      %v3774 = vpop.xlane.xlu0 %3773
      %v3775 = vsel %vm3749, %v3765, 0.0
      %3776 = vadd.xlane.f32.xlu0 %v3775
      %v3777 = vpop.xlane.xlu0 %3776
      %v3778 = vmul.f32 %v3768, %v3753
      %v3779 = vmul.f32 %v3771, %v3753
      %v3780 = vmul.f32 %v3774, %v3753
      %v3781 = vmul.f32 %v3777, %v3753
      %v3782 = vadd.f32 %v3778, 1e-05
      %v3783 = vadd.f32 %v3779, 1e-05
      %v3784 = vadd.f32 %v3780, 1e-05
      %v3785 = vadd.f32 %v3781, 1e-05
      %v3786 = vrsqrt.pop %v3782
      %v3787 = vrsqrt.pop %v3783
      %v3788 = vrsqrt.pop %v3784
      %v3789 = vrsqrt.pop %v3785
      %v3790 = vmul.f32 %v3758, %v3786
      %v3791 = vmul.f32 %v3759, %v3787
      %v3792 = vmul.f32 %v3760, %v3788
      %v3793 = vmul.f32 %v3761, %v3789
      %v3794 = vld [vmem:[%s16] sm:$0x1]
      %v3796 = vlaneseq
      %v3797 = vshrl.u32 %v3796, 7
      %v3798 = vsub.s32 0, %v3797
      %v3799 = vrot.slane %v3794, %v3798
      %v3801 = vmul.f32 %v3790, %v3799
      %v3802 = vmul.f32 %v3791, %v3799
      %v3803 = vmul.f32 %v3792, %v3799
      %v3804 = vmul.f32 %v3793, %v3799
      %s3805 = scalar_lea.vmem %s16, 1
      %v3806 = vld [vmem:[%s3805] sm:$0x1]
      %v3808 = vlaneseq
      %v3809 = vshrl.u32 %v3808, 7
      %v3810 = vsub.s32 0, %v3809
      %v3811 = vrot.slane %v3806, %v3810
      %v3813 = vadd.f32 %v3801, %v3811
      %v3814 = vadd.f32 %v3802, %v3811
      %v3815 = vadd.f32 %v3803, %v3811
      %v3816 = vadd.f32 %v3804, %v3811
      %v3817 = vld [vmem:[%s12] sm:$0xff]
      %v3818 = vld [vmem:[%s12 + $0x8] sm:$0xff]
      %v3819 = vld [vmem:[%s12 + $0x10] sm:$0xff]
      %v3820 = vld [vmem:[%s12 + $0x18] sm:$0xff]
      %v3821 = vld [vmem:[%s13] sm:$0x1]
      %v3823 = vlaneseq
      %v3824 = vshrl.u32 %v3823, 7
      %v3825 = vsub.s32 0, %v3824
      %v3826 = vrot.slane %v3821, %v3825
      %v3829 = vsel %vm2037, %v3813, 0
      %v3832 = vsel %vm2037, %v3814, 0
      %v3835 = vsel %vm2037, %v3815, 0
      %v3838 = vsel %vm2037, %v3816, 0
      %3840 = vmatprep.subr.mxu0 0.0
      %3841 = vmatpush1.msra.mxu0 %v3817
      %3842 = vmatprep.subr.mxu0 0.0
      %3843 = vmatpush1.msra.mxu0 %v3818
      %3844 = vmatprep.subr.mxu0 0.0
      %3845 = vmatpush1.msra.mxu0 %v3819
      %3846 = vmatprep.subr.mxu0 0.0
      %3847 = vmatpush1.msra.mxu0 %v3820
      %3848 = vmatprep.subr.mxu0 0.0
      %3849 = vmatpush1.msra.mxu0 0.0
      %3850 = vmatprep.subr.mxu0 0.0
      %3851 = vmatpush1.msra.mxu0 0.0
      %3852 = vmatprep.subr.mxu0 0.0
      %3853 = vmatpush1.msra.mxu0 0.0
      %3854 = vmatprep.subr.mxu0 0.0
      %3855 = vmatpush1.msra.mxu0 0.0
      %3856 = vmatprep.subr.mxu0 0.0
      %3857 = vmatpush1.msra.mxu0 0.0
      %3858 = vmatprep.subr.mxu0 0.0
      %3859 = vmatpush1.msra.mxu0 0.0
      %3860 = vmatprep.subr.mxu0 0.0
      %3861 = vmatpush1.msra.mxu0 0.0
      %3862 = vmatprep.subr.mxu0 0.0
      %3863 = vmatpush1.msra.mxu0 0.0
      %3864 = vmatprep.subr.mxu0 0.0
      %3865 = vmatpush1.msra.mxu0 0.0
      %3866 = vmatprep.subr.mxu0 0.0
      %3867 = vmatpush1.msra.mxu0 0.0
      %3868 = vmatprep.subr.mxu0 0.0
      %3869 = vmatpush1.msra.mxu0 0.0
      %3870 = vmatprep.subr.mxu0 0.0
      %3871 = vmatpush1.msra.mxu0 0.0
      %3872 = vmatprep.subr.mxu0 0.0
      %3873 = vmatpush1.msra.mxu0 0.0
      %3874 = vmatprep.subr.mxu0 0.0
      %3875 = vmatpush1.msra.mxu0 0.0
      %3876 = vmatprep.subr.mxu0 0.0
      %3877 = vmatpush1.msra.mxu0 0.0
      %3878 = vmatprep.subr.mxu0 0.0
      %3879 = vmatpush1.msra.mxu0 0.0
      %3880 = vmatprep.subr.mxu0 0.0
      %3881 = vmatpush1.msra.mxu0 0.0
      %3882 = vmatprep.subr.mxu0 0.0
      %3883 = vmatpush1.msra.mxu0 0.0
      %3884 = vmatprep.subr.mxu0 0.0
      %3885 = vmatpush1.msra.mxu0 0.0
      %3886 = vmatprep.subr.mxu0 0.0
      %3887 = vmatpush1.msra.mxu0 0.0
      %3888 = vmatprep.subr.mxu0 0.0
      %3889 = vmatpush1.msra.mxu0 0.0
      %3890 = vmatprep.subr.mxu0 0.0
      %3891 = vmatpush1.msra.mxu0 0.0
      %3892 = vmatprep.subr.mxu0 0.0
      %3893 = vmatpush1.msra.mxu0 0.0
      %3894 = vmatprep.subr.mxu0 0.0
      %3895 = vmatpush1.msra.mxu0 0.0
      %3896 = vmatprep.subr.mxu0 0.0
      %3897 = vmatpush1.msra.mxu0 0.0
      %3898 = vmatprep.subr.mxu0 0.0
      %3899 = vmatpush1.msra.mxu0 0.0
      %3900 = vmatprep.subr.mxu0 0.0
      %3901 = vmatpush1.msra.mxu0 0.0
      %3902 = vmatprep.subr.mxu0 0.0
      %3903 = vmatpush1.msra.mxu0 0.0
      %3904 = vmatprep.mubr.f32.mxu0 0.0
      %3905 = vmatmul.mubr.f32.gmra.mrb[0].mxu0 %v3829
      %v3906 = vpop.f32.mrb[0].mxu0
      %v3907 = vadd.f32 %v3826, %v3906
      %v3908 = vpop.f32.mrb[0].mxu0
      %3909 = vmatprep.mubr.f32.mxu0 0.0
      %3910 = vmatmul.mubr.f32.gmra.mrb[0].mxu0 %v3832
      %v3911 = vpop.f32.mrb[0].mxu0
      %v3912 = vadd.f32 %v3826, %v3911
      %v3913 = vpop.f32.mrb[0].mxu0
      %3914 = vmatprep.mubr.f32.mxu0 0.0
      %3915 = vmatmul.mubr.f32.gmra.mrb[0].mxu0 %v3835
      %v3916 = vpop.f32.mrb[0].mxu0
      %v3917 = vadd.f32 %v3826, %v3916
      %v3918 = vpop.f32.mrb[0].mxu0
      %3919 = vmatprep.mubr.f32.mxu0 0.0
      %3920 = vmatmul.mubr.f32.gmra.mrb[0].mxu0 %v3838
      %v3921 = vpop.f32.mrb[0].mxu0
      %v3922 = vadd.f32 %v3826, %v3921
      %v3923 = vpop.f32.mrb[0].mxu0
      %3924 = vdwg.mxu0
      %v3925 = vmax.f32 %v3907, 0.0
      %v3926 = vmax.f32 %v3912, 0.0
      %v3927 = vmax.f32 %v3917, 0.0
      %v3928 = vmax.f32 %v3922, 0.0
      %v3929 = vld [vmem:[%s14] sm:$0xff]
      %v3930 = vld [vmem:[%s14 + $0x8] sm:$0xff]
      %v3931 = vld [vmem:[%s14 + $0x10] sm:$0xff]
      %v3932 = vld [vmem:[%s14 + $0x18] sm:$0xff]
      %v3933 = vld [vmem:[%s14 + $0x20] sm:$0xff]
      %v3934 = vld [vmem:[%s14 + $0x28] sm:$0xff]
      %v3935 = vld [vmem:[%s14 + $0x30] sm:$0xff]
      %v3936 = vld [vmem:[%s14 + $0x38] sm:$0xff]
      %v3937 = vld [vmem:[%s15] sm:$0x1]
      %v3939 = vlaneseq
      %v3940 = vshrl.u32 %v3939, 7
      %v3941 = vsub.s32 0, %v3940
      %v3942 = vrot.slane %v3937, %v3941
      %v3945 = vsel %vm1317, %v3925, 0
      %v3948 = vsel %vm1317, %v3926, 0
      %v3951 = vsel %vm1317, %v3927, 0
      %v3954 = vsel %vm1317, %v3928, 0
      %3956 = vmatprep.subr.mxu0 0.0
      %3957 = vmatpush1.msra.mxu0 %v3929
      %3958 = vmatprep.subr.mxu0 0.0
      %3959 = vmatpush1.msra.mxu0 %v3930
      %3960 = vmatprep.subr.mxu0 0.0
      %3961 = vmatpush1.msra.mxu0 %v3931
      %3962 = vmatprep.subr.mxu0 0.0
      %3963 = vmatpush1.msra.mxu0 %v3932
      %3964 = vmatprep.subr.mxu0 0.0
      %3965 = vmatpush1.msra.mxu0 %v3933
      %3966 = vmatprep.subr.mxu0 0.0
      %3967 = vmatpush1.msra.mxu0 %v3934
      %3968 = vmatprep.subr.mxu0 0.0
      %3969 = vmatpush1.msra.mxu0 %v3935
      %3970 = vmatprep.subr.mxu0 0.0
      %3971 = vmatpush1.msra.mxu0 %v3936
      %3972 = vmatprep.subr.mxu0 0.0
      %3973 = vmatpush1.msra.mxu0 0.0
      %3974 = vmatprep.subr.mxu0 0.0
      %3975 = vmatpush1.msra.mxu0 0.0
      %3976 = vmatprep.subr.mxu0 0.0
      %3977 = vmatpush1.msra.mxu0 0.0
      %3978 = vmatprep.subr.mxu0 0.0
      %3979 = vmatpush1.msra.mxu0 0.0
      %3980 = vmatprep.subr.mxu0 0.0
      %3981 = vmatpush1.msra.mxu0 0.0
      %3982 = vmatprep.subr.mxu0 0.0
      %3983 = vmatpush1.msra.mxu0 0.0
      %3984 = vmatprep.subr.mxu0 0.0
      %3985 = vmatpush1.msra.mxu0 0.0
      %3986 = vmatprep.subr.mxu0 0.0
      %3987 = vmatpush1.msra.mxu0 0.0
      %3988 = vmatprep.subr.mxu0 0.0
      %3989 = vmatpush1.msra.mxu0 0.0
      %3990 = vmatprep.subr.mxu0 0.0
      %3991 = vmatpush1.msra.mxu0 0.0
      %3992 = vmatprep.subr.mxu0 0.0
      %3993 = vmatpush1.msra.mxu0 0.0
      %3994 = vmatprep.subr.mxu0 0.0
      %3995 = vmatpush1.msra.mxu0 0.0
      %3996 = vmatprep.subr.mxu0 0.0
      %3997 = vmatpush1.msra.mxu0 0.0
      %3998 = vmatprep.subr.mxu0 0.0
      %3999 = vmatpush1.msra.mxu0 0.0
      %4000 = vmatprep.subr.mxu0 0.0
      %4001 = vmatpush1.msra.mxu0 0.0
      %4002 = vmatprep.subr.mxu0 0.0
      %4003 = vmatpush1.msra.mxu0 0.0
      %4004 = vmatprep.subr.mxu0 0.0
      %4005 = vmatpush1.msra.mxu0 0.0
      %4006 = vmatprep.subr.mxu0 0.0
      %4007 = vmatpush1.msra.mxu0 0.0
      %4008 = vmatprep.subr.mxu0 0.0
      %4009 = vmatpush1.msra.mxu0 0.0
      %4010 = vmatprep.subr.mxu0 0.0
      %4011 = vmatpush1.msra.mxu0 0.0
      %4012 = vmatprep.subr.mxu0 0.0
      %4013 = vmatpush1.msra.mxu0 0.0
      %4014 = vmatprep.subr.mxu0 0.0
      %4015 = vmatpush1.msra.mxu0 0.0
      %4016 = vmatprep.subr.mxu0 0.0
      %4017 = vmatpush1.msra.mxu0 0.0
      %4018 = vmatprep.subr.mxu0 0.0
      %4019 = vmatpush1.msra.mxu0 0.0
      %4020 = vmatprep.mubr.f32.mxu0 0.0
      %4021 = vmatmul.mubr.f32.gmra.mrb[0].mxu0 %v3945
      %v4022 = vpop.f32.mrb[0].mxu0
      %v4023 = vadd.f32 %v3942, %v4022
      %v4024 = vpop.f32.mrb[0].mxu0
      %4025 = vmatprep.mubr.f32.mxu0 0.0
      %4026 = vmatmul.mubr.f32.gmra.mrb[0].mxu0 %v3948
      %v4027 = vpop.f32.mrb[0].mxu0
      %v4028 = vadd.f32 %v3942, %v4027
      %v4029 = vpop.f32.mrb[0].mxu0
      %4030 = vmatprep.mubr.f32.mxu0 0.0
      %4031 = vmatmul.mubr.f32.gmra.mrb[0].mxu0 %v3951
      %v4032 = vpop.f32.mrb[0].mxu0
      %v4033 = vadd.f32 %v3942, %v4032
      %v4034 = vpop.f32.mrb[0].mxu0
      %4035 = vmatprep.mubr.f32.mxu0 0.0
      %4036 = vmatmul.mubr.f32.gmra.mrb[0].mxu0 %v3954
      %v4037 = vpop.f32.mrb[0].mxu0
      %v4038 = vadd.f32 %v3942, %v4037
      %v4039 = vpop.f32.mrb[0].mxu0
      %4040 = vdwg.mxu0
      %v4041 = vadd.f32 %v3813, %v4023
      %v4042 = vadd.f32 %v3814, %v4028
      %v4043 = vadd.f32 %v3815, %v4033
      %v4044 = vadd.f32 %v3816, %v4038
      %v4045 = vsel %vm2037, %v4041, 0.0
      %4046 = vadd.xlane.f32.xlu0 %v4045
      %v4047 = vpop.xlane.xlu0 %4046
      %v4048 = vsel %vm2037, %v4042, 0.0
      %4049 = vadd.xlane.f32.xlu0 %v4048
      %v4050 = vpop.xlane.xlu0 %4049
      %v4051 = vsel %vm2037, %v4043, 0.0
      %4052 = vadd.xlane.f32.xlu0 %v4051
      %v4053 = vpop.xlane.xlu0 %4052
      %v4054 = vsel %vm3749, %v4044, 0.0
      %4055 = vadd.xlane.f32.xlu0 %v4054
      %v4056 = vpop.xlane.xlu0 %4055
      %v4057 = vmul.f32 %v4047, %v3753
      %v4058 = vmul.f32 %v4050, %v3753
      %v4059 = vmul.f32 %v4053, %v3753
      %v4060 = vmul.f32 %v4056, %v3753
      %v4061 = vsub.f32 %v4041, %v4057
      %v4062 = vsub.f32 %v4042, %v4058
      %v4063 = vsub.f32 %v4043, %v4059
      %v4064 = vsub.f32 %v4044, %v4060
      %v4065 = vmul.f32 %v4061, %v4061
      %v4066 = vmul.f32 %v4062, %v4062
      %v4067 = vmul.f32 %v4063, %v4063
      %v4068 = vmul.f32 %v4064, %v4064
      %v4069 = vsel %vm2037, %v4065, 0.0
      %4070 = vadd.xlane.f32.xlu0 %v4069
      %v4071 = vpop.xlane.xlu0 %4070
      %v4072 = vsel %vm2037, %v4066, 0.0
      %4073 = vadd.xlane.f32.xlu0 %v4072
      %v4074 = vpop.xlane.xlu0 %4073
      %v4075 = vsel %vm2037, %v4067, 0.0
      %4076 = vadd.xlane.f32.xlu0 %v4075
      %v4077 = vpop.xlane.xlu0 %4076
      %v4078 = vsel %vm3749, %v4068, 0.0
      %4079 = vadd.xlane.f32.xlu0 %v4078
      %v4080 = vpop.xlane.xlu0 %4079
      %v4081 = vmul.f32 %v4071, %v3753
      %v4082 = vmul.f32 %v4074, %v3753
      %v4083 = vmul.f32 %v4077, %v3753
      %v4084 = vmul.f32 %v4080, %v3753
      %v4085 = vadd.f32 %v4081, 1e-05
      %v4086 = vadd.f32 %v4082, 1e-05
      %v4087 = vadd.f32 %v4083, 1e-05
      %v4088 = vadd.f32 %v4084, 1e-05
      %v4089 = vrsqrt.pop %v4085
      %v4090 = vrsqrt.pop %v4086
      %v4091 = vrsqrt.pop %v4087
      %v4092 = vrsqrt.pop %v4088
      %v4093 = vmul.f32 %v4061, %v4089
      %v4094 = vmul.f32 %v4062, %v4090
      %v4095 = vmul.f32 %v4063, %v4091
      %v4096 = vmul.f32 %v4064, %v4092
      %s4097 = scalar_lea.vmem %s16, 2
      %v4098 = vld [vmem:[%s4097] sm:$0x1]
      %v4100 = vlaneseq
      %v4101 = vshrl.u32 %v4100, 7
      %v4102 = vsub.s32 0, %v4101
      %v4103 = vrot.slane %v4098, %v4102
      %v4105 = vmul.f32 %v4093, %v4103
      %v4106 = vmul.f32 %v4094, %v4103
      %v4107 = vmul.f32 %v4095, %v4103
      %v4108 = vmul.f32 %v4096, %v4103
      %s4109 = scalar_lea.vmem %s16, 3
      %v4110 = vld [vmem:[%s4109] sm:$0x1]
      %v4112 = vlaneseq
      %v4113 = vshrl.u32 %v4112, 7
      %v4114 = vsub.s32 0, %v4113
      %v4115 = vrot.slane %v4110, %v4114
      %v4117 = vadd.f32 %v4105, %v4115
      %v4118 = vadd.f32 %v4106, %v4115
      %v4119 = vadd.f32 %v4107, %v4115
      %v4120 = vadd.f32 %v4108, %v4115
      %v4121 = vsel %vm2037, %v4117, 0.0
      %4122 = vadd.xlane.f32.xlu0 %v4121
      %v4123 = vpop.xlane.xlu0 %4122
      %v4124 = vsel %vm2037, %v4118, 0.0
      %4125 = vadd.xlane.f32.xlu0 %v4124
      %v4126 = vpop.xlane.xlu0 %4125
      %v4127 = vsel %vm2037, %v4119, 0.0
      %4128 = vadd.xlane.f32.xlu0 %v4127
      %v4129 = vpop.xlane.xlu0 %4128
      %v4130 = vsel %vm3749, %v4120, 0.0
      %4131 = vadd.xlane.f32.xlu0 %v4130
      %v4132 = vpop.xlane.xlu0 %4131
      %v4133 = vmul.f32 %v4123, %v3753
      %v4134 = vmul.f32 %v4126, %v3753
      %v4135 = vmul.f32 %v4129, %v3753
      %v4136 = vmul.f32 %v4132, %v3753
      %v4137 = vsub.f32 %v4117, %v4133
      %v4138 = vsub.f32 %v4118, %v4134
      %v4139 = vsub.f32 %v4119, %v4135
      %v4140 = vsub.f32 %v4120, %v4136
      %v4141 = vmul.f32 %v4137, %v4137
      %v4142 = vmul.f32 %v4138, %v4138
      %v4143 = vmul.f32 %v4139, %v4139
      %v4144 = vmul.f32 %v4140, %v4140
      %v4145 = vsel %vm2037, %v4141, 0.0
      %4146 = vadd.xlane.f32.xlu0 %v4145
      %v4147 = vpop.xlane.xlu0 %4146
      %v4148 = vsel %vm2037, %v4142, 0.0
      %4149 = vadd.xlane.f32.xlu0 %v4148
      %v4150 = vpop.xlane.xlu0 %4149
      %v4151 = vsel %vm2037, %v4143, 0.0
      %4152 = vadd.xlane.f32.xlu0 %v4151
      %v4153 = vpop.xlane.xlu0 %4152
      %v4154 = vsel %vm3749, %v4144, 0.0
      %4155 = vadd.xlane.f32.xlu0 %v4154
      %v4156 = vpop.xlane.xlu0 %4155
      %v4157 = vmul.f32 %v4147, %v3753
      %v4158 = vmul.f32 %v4150, %v3753
      %v4159 = vmul.f32 %v4153, %v3753
      %v4160 = vmul.f32 %v4156, %v3753
      %v4161 = vadd.f32 %v4157, 1e-05
      %v4162 = vadd.f32 %v4158, 1e-05
      %v4163 = vadd.f32 %v4159, 1e-05
      %v4164 = vadd.f32 %v4160, 1e-05
      %v4165 = vrsqrt.pop %v4161
      %v4166 = vrsqrt.pop %v4162
      %v4167 = vrsqrt.pop %v4163
      %v4168 = vrsqrt.pop %v4164
      %v4169 = vmul.f32 %v4137, %v4165
      %v4170 = vmul.f32 %v4138, %v4166
      %v4171 = vmul.f32 %v4139, %v4167
      %v4172 = vmul.f32 %v4140, %v4168
      %s4173 = scalar_lea.vmem %s16, 10
      %v4174 = vld [vmem:[%s4173] sm:$0x1]
      %v4176 = vlaneseq
      %v4177 = vshrl.u32 %v4176, 7
      %v4178 = vsub.s32 0, %v4177
      %v4179 = vrot.slane %v4174, %v4178
      %v4181 = vmul.f32 %v4169, %v4179
      %v4182 = vmul.f32 %v4170, %v4179
      %v4183 = vmul.f32 %v4171, %v4179
      %v4184 = vmul.f32 %v4172, %v4179
      %s4185 = scalar_lea.vmem %s16, 11
      %v4186 = vld [vmem:[%s4185] sm:$0x1]
      %v4188 = vlaneseq
      %v4189 = vshrl.u32 %v4188, 7
      %v4190 = vsub.s32 0, %v4189
      %v4191 = vrot.slane %v4186, %v4190
      %v4193 = vadd.f32 %v4181, %v4191
      %v4194 = vadd.f32 %v4182, %v4191
      %v4195 = vadd.f32 %v4183, %v4191
      %v4196 = vadd.f32 %v4184, %v4191
      %s4197 = scalar_lea.vmem %s10, 32
      %v4198 = vld [vmem:[%s4197] sm:$0xff]
      %v4199 = vld [vmem:[%s4197 + $0x8] sm:$0xff]
      %v4200 = vld [vmem:[%s4197 + $0x10] sm:$0xff]
      %v4201 = vld [vmem:[%s4197 + $0x18] sm:$0xff]
      %s4202 = scalar_lea.vmem %s11, 1
      %v4203 = vld [vmem:[%s4202] sm:$0x1]
      %v4205 = vlaneseq
      %v4206 = vshrl.u32 %v4205, 7
      %v4207 = vsub.s32 0, %v4206
      %v4208 = vrot.slane %v4203, %v4207
      %4210 = vrot.lane.b32.xlu0 %v2022, 96
      %v4211 = vpop.permute.xlu0 %4210
      %4212 = vrot.lane.b32.xlu0 %v2023, 96
      %v4213 = vpop.permute.xlu0 %4212
      %4214 = vrot.lane.b32.xlu0 %v2024, 96
      %v4215 = vpop.permute.xlu0 %4214
      %4216 = vrot.lane.b32.xlu0 %v2025, 96
      %v4217 = vpop.permute.xlu0 %4216
      %v4218 = vsel %vm2037, %v4211, 0
      %v4220 = vsel %vm2037, %v4213, 0
      %v4222 = vsel %vm2037, %v4215, 0
      %v4224 = vsel %vm2037, %v4217, 0
      %4226 = vmatprep.subr.mxu0 0.0
      %4227 = vmatpush1.msra.mxu0 %v4198
      %4228 = vmatprep.subr.mxu0 0.0
      %4229 = vmatpush1.msra.mxu0 %v4199
      %4230 = vmatprep.subr.mxu0 0.0
      %4231 = vmatpush1.msra.mxu0 %v4200
      %4232 = vmatprep.subr.mxu0 0.0
      %4233 = vmatpush1.msra.mxu0 %v4201
      %4234 = vmatprep.subr.mxu0 0.0
      %4235 = vmatpush1.msra.mxu0 0.0
      %4236 = vmatprep.subr.mxu0 0.0
      %4237 = vmatpush1.msra.mxu0 0.0
      %4238 = vmatprep.subr.mxu0 0.0
      %4239 = vmatpush1.msra.mxu0 0.0
      %4240 = vmatprep.subr.mxu0 0.0
      %4241 = vmatpush1.msra.mxu0 0.0
      %4242 = vmatprep.subr.mxu0 0.0
      %4243 = vmatpush1.msra.mxu0 0.0
      %4244 = vmatprep.subr.mxu0 0.0
      %4245 = vmatpush1.msra.mxu0 0.0
      %4246 = vmatprep.subr.mxu0 0.0
      %4247 = vmatpush1.msra.mxu0 0.0
      %4248 = vmatprep.subr.mxu0 0.0
      %4249 = vmatpush1.msra.mxu0 0.0
      %4250 = vmatprep.subr.mxu0 0.0
      %4251 = vmatpush1.msra.mxu0 0.0
      %4252 = vmatprep.subr.mxu0 0.0
      %4253 = vmatpush1.msra.mxu0 0.0
      %4254 = vmatprep.subr.mxu0 0.0
      %4255 = vmatpush1.msra.mxu0 0.0
      %4256 = vmatprep.subr.mxu0 0.0
      %4257 = vmatpush1.msra.mxu0 0.0
      %4258 = vmatprep.subr.mxu0 0.0
      %4259 = vmatpush1.msra.mxu0 0.0
      %4260 = vmatprep.subr.mxu0 0.0
      %4261 = vmatpush1.msra.mxu0 0.0
      %4262 = vmatprep.subr.mxu0 0.0
      %4263 = vmatpush1.msra.mxu0 0.0
      %4264 = vmatprep.subr.mxu0 0.0
      %4265 = vmatpush1.msra.mxu0 0.0
      %4266 = vmatprep.subr.mxu0 0.0
      %4267 = vmatpush1.msra.mxu0 0.0
      %4268 = vmatprep.subr.mxu0 0.0
      %4269 = vmatpush1.msra.mxu0 0.0
      %4270 = vmatprep.subr.mxu0 0.0
      %4271 = vmatpush1.msra.mxu0 0.0
      %4272 = vmatprep.subr.mxu0 0.0
      %4273 = vmatpush1.msra.mxu0 0.0
      %4274 = vmatprep.subr.mxu0 0.0
      %4275 = vmatpush1.msra.mxu0 0.0
      %4276 = vmatprep.subr.mxu0 0.0
      %4277 = vmatpush1.msra.mxu0 0.0
      %4278 = vmatprep.subr.mxu0 0.0
      %4279 = vmatpush1.msra.mxu0 0.0
      %4280 = vmatprep.subr.mxu0 0.0
      %4281 = vmatpush1.msra.mxu0 0.0
      %4282 = vmatprep.subr.mxu0 0.0
      %4283 = vmatpush1.msra.mxu0 0.0
      %4284 = vmatprep.subr.mxu0 0.0
      %4285 = vmatpush1.msra.mxu0 0.0
      %4286 = vmatprep.subr.mxu0 0.0
      %4287 = vmatpush1.msra.mxu0 0.0
      %4288 = vmatprep.subr.mxu0 0.0
      %4289 = vmatpush1.msra.mxu0 0.0
      %4290 = vmatprep.mubr.f32.mxu0 0.0
      %4291 = vmatmul.mubr.f32.gmra.mrb[0].mxu0 %v4218
      %v4292 = vpop.f32.mrb[0].mxu0
      %v4293 = vadd.f32 %v4208, %v4292
      %v4294 = vpop.f32.mrb[0].mxu0
      %4295 = vmatprep.mubr.f32.mxu0 0.0
      %4296 = vmatmul.mubr.f32.gmra.mrb[0].mxu0 %v4220
      %v4297 = vpop.f32.mrb[0].mxu0
      %v4298 = vadd.f32 %v4208, %v4297
      %v4299 = vpop.f32.mrb[0].mxu0
      %4300 = vmatprep.mubr.f32.mxu0 0.0
      %4301 = vmatmul.mubr.f32.gmra.mrb[0].mxu0 %v4222
      %v4302 = vpop.f32.mrb[0].mxu0
      %v4303 = vadd.f32 %v4208, %v4302
      %v4304 = vpop.f32.mrb[0].mxu0
      %4305 = vmatprep.mubr.f32.mxu0 0.0
      %4306 = vmatmul.mubr.f32.gmra.mrb[0].mxu0 %v4224
      %v4307 = vpop.f32.mrb[0].mxu0
      %v4308 = vadd.f32 %v4208, %v4307
      %v4309 = vpop.f32.mrb[0].mxu0
      %4310 = vdwg.mxu0
      %v4311 = vadd.f32 %v4208, 0.0
      %4316 = vrot.lane.b32.xlu0 %v4293, 96
      %v4317 = vpop.permute.xlu0 %4316
      %4318 = vrot.lane.b32.xlu0 %v4298, 96
      %v4319 = vpop.permute.xlu0 %4318
      %4320 = vrot.lane.b32.xlu0 %v4303, 96
      %v4321 = vpop.permute.xlu0 %4320
      %4322 = vrot.lane.b32.xlu0 %v4308, 96
      %v4323 = vpop.permute.xlu0 %4322
      %v4324 = vsel %vm2148, %v4293, 0
      %v4326 = vsel %vm2148, %v4298, 0
      %v4328 = vsel %vm2148, %v4303, 0
      %v4330 = vsel %vm2148, %v4308, 0
      %v4332 = vsel %vm2148, %v4317, 0
      %v4334 = vsel %vm2148, %v4319, 0
      %v4336 = vsel %vm2148, %v4321, 0
      %v4338 = vsel %vm2148, %v4323, 0
      %4340 = vmatprep.subr.mxu0 0.0
      %4341 = vmatpush1.xpose.msra.mxu0 %v4332
      %4342 = vmatprep.subr.mxu0 0.0
      %4343 = vmatpush1.xpose.msra.mxu0 %v4334
      %4344 = vmatprep.subr.mxu0 0.0
      %4345 = vmatpush1.xpose.msra.mxu0 %v4336
      %4346 = vmatprep.subr.mxu0 0.0
      %4347 = vmatpush1.xpose.msra.mxu0 %v4338
      %4348 = vmatprep.subr.mxu0 0.0
      %4349 = vmatpush1.xpose.msra.mxu0 0.0
      %4350 = vmatprep.subr.mxu0 0.0
      %4351 = vmatpush1.xpose.msra.mxu0 0.0
      %4352 = vmatprep.subr.mxu0 0.0
      %4353 = vmatpush1.xpose.msra.mxu0 0.0
      %4354 = vmatprep.subr.mxu0 0.0
      %4355 = vmatpush1.xpose.msra.mxu0 0.0
      %4356 = vmatprep.subr.mxu0 0.0
      %4357 = vmatpush1.xpose.msra.mxu0 0.0
      %4358 = vmatprep.subr.mxu0 0.0
      %4359 = vmatpush1.xpose.msra.mxu0 0.0
      %4360 = vmatprep.subr.mxu0 0.0
      %4361 = vmatpush1.xpose.msra.mxu0 0.0
      %4362 = vmatprep.subr.mxu0 0.0
      %4363 = vmatpush1.xpose.msra.mxu0 0.0
      %4364 = vmatprep.subr.mxu0 0.0
      %4365 = vmatpush1.xpose.msra.mxu0 0.0
      %4366 = vmatprep.subr.mxu0 0.0
      %4367 = vmatpush1.xpose.msra.mxu0 0.0
      %4368 = vmatprep.subr.mxu0 0.0
      %4369 = vmatpush1.xpose.msra.mxu0 0.0
      %4370 = vmatprep.subr.mxu0 0.0
      %4371 = vmatpush1.xpose.msra.mxu0 0.0
      %4372 = vmatprep.subr.mxu0 0.0
      %4373 = vmatpush1.xpose.msra.mxu0 0.0
      %4374 = vmatprep.subr.mxu0 0.0
      %4375 = vmatpush1.xpose.msra.mxu0 0.0
      %4376 = vmatprep.subr.mxu0 0.0
      %4377 = vmatpush1.xpose.msra.mxu0 0.0
      %4378 = vmatprep.subr.mxu0 0.0
      %4379 = vmatpush1.xpose.msra.mxu0 0.0
      %4380 = vmatprep.subr.mxu0 0.0
      %4381 = vmatpush1.xpose.msra.mxu0 0.0
      %4382 = vmatprep.subr.mxu0 0.0
      %4383 = vmatpush1.xpose.msra.mxu0 0.0
      %4384 = vmatprep.subr.mxu0 0.0
      %4385 = vmatpush1.xpose.msra.mxu0 0.0
      %4386 = vmatprep.subr.mxu0 0.0
      %4387 = vmatpush1.xpose.msra.mxu0 0.0
      %4388 = vmatprep.subr.mxu0 0.0
      %4389 = vmatpush1.xpose.msra.mxu0 0.0
      %4390 = vmatprep.subr.mxu0 0.0
      %4391 = vmatpush1.xpose.msra.mxu0 0.0
      %4392 = vmatprep.subr.mxu0 0.0
      %4393 = vmatpush1.xpose.msra.mxu0 0.0
      %4394 = vmatprep.subr.mxu0 0.0
      %4395 = vmatpush1.xpose.msra.mxu0 0.0
      %4396 = vmatprep.subr.mxu0 0.0
      %4397 = vmatpush1.xpose.msra.mxu0 0.0
      %4398 = vmatprep.subr.mxu0 0.0
      %4399 = vmatpush1.xpose.msra.mxu0 0.0
      %4400 = vmatprep.subr.mxu0 0.0
      %4401 = vmatpush1.xpose.msra.mxu0 0.0
      %4402 = vmatprep.subr.mxu0 0.0
      %4403 = vmatpush1.xpose.msra.mxu0 0.0
      %4404 = vmatprep.mubr.f32.mxu0 0.0
      %4405 = vmatmul.mubr.f32.gmra.mrb[0].mxu0 %v4324
      %v4406 = vpop.f32.mrb[0].mxu0
      %v4407 = vadd.f32 0.0, %v4406
      %v4408 = vpop.f32.mrb[0].mxu0
      %4409 = vmatprep.mubr.f32.mxu0 0.0
      %4410 = vmatmul.mubr.f32.gmra.mrb[0].mxu0 %v4326
      %v4411 = vpop.f32.mrb[0].mxu0
      %v4412 = vadd.f32 0.0, %v4411
      %v4413 = vpop.f32.mrb[0].mxu0
      %4414 = vmatprep.mubr.f32.mxu0 0.0
      %4415 = vmatmul.mubr.f32.gmra.mrb[0].mxu0 %v4328
      %v4416 = vpop.f32.mrb[0].mxu0
      %v4417 = vadd.f32 0.0, %v4416
      %v4418 = vpop.f32.mrb[0].mxu0
      %4419 = vmatprep.mubr.f32.mxu0 0.0
      %4420 = vmatmul.mubr.f32.gmra.mrb[0].mxu0 %v4330
      %v4421 = vpop.f32.mrb[0].mxu0
      %v4422 = vadd.f32 0.0, %v4421
      %v4423 = vpop.f32.mrb[0].mxu0
      %4424 = vdwg.mxu0
      %v4425 = vmul.f32 %v4407, 0.35355338
      %v4426 = vmul.f32 %v4412, 0.35355338
      %v4427 = vmul.f32 %v4417, 0.35355338
      %v4428 = vmul.f32 %v4422, 0.35355338
      %v4429 = vsel %vm2254, %v4425, -inf
      %4430 = vmax.xlane.f32.xlu0 %v4429
      %v4431 = vpop.xlane.xlu0 %4430
      %v4432 = vsel %vm2254, %v4426, -inf
      %4433 = vmax.xlane.f32.xlu0 %v4432
      %v4434 = vpop.xlane.xlu0 %4433
      %v4435 = vsel %vm2254, %v4427, -inf
      %4436 = vmax.xlane.f32.xlu0 %v4435
      %v4437 = vpop.xlane.xlu0 %4436
      %v4438 = vsel %vm2264, %v4428, -inf
      %4439 = vmax.xlane.f32.xlu0 %v4438
      %v4440 = vpop.xlane.xlu0 %4439
      %v4441 = vsub.f32 %v4425, %v4431
      %v4442 = vsub.f32 %v4426, %v4434
      %v4443 = vsub.f32 %v4427, %v4437
      %v4444 = vsub.f32 %v4428, %v4440
      %v4445 = vmul.f32 %v4441, 1.442695
      %v4446 = vpow.pop %v4445
      %v4447 = vmul.f32 %v4442, 1.442695
      %v4448 = vpow.pop %v4447
      %v4449 = vmul.f32 %v4443, 1.442695
      %v4450 = vpow.pop %v4449
      %v4451 = vmul.f32 %v4444, 1.442695
      %v4452 = vpow.pop %v4451
      %v4453 = vsel %vm2254, %v4446, 0.0
      %4454 = vadd.xlane.f32.xlu0 %v4453
      %v4455 = vpop.xlane.xlu0 %4454
      %v4456 = vsel %vm2254, %v4448, 0.0
      %4457 = vadd.xlane.f32.xlu0 %v4456
      %v4458 = vpop.xlane.xlu0 %4457
      %v4459 = vsel %vm2254, %v4450, 0.0
      %4460 = vadd.xlane.f32.xlu0 %v4459
      %v4461 = vpop.xlane.xlu0 %4460
      %v4462 = vsel %vm2264, %v4452, 0.0
      %4463 = vadd.xlane.f32.xlu0 %v4462
      %v4464 = vpop.xlane.xlu0 %4463
      %v4465 = vrcp.pop %v4455
      %v4466 = vrcp.pop %v4458
      %v4467 = vrcp.pop %v4461
      %v4468 = vrcp.pop %v4464
      %v4469 = vmul.f32 %v4446, %v4465
      %v4470 = vmul.f32 %v4448, %v4466
      %v4471 = vmul.f32 %v4450, %v4467
      %v4472 = vmul.f32 %v4452, %v4468
      %4473 = vrot.lane.b32.xlu0 %v4293, 64
      %v4474 = vpop.permute.xlu0 %4473
      %4475 = vrot.lane.b32.xlu0 %v4298, 64
      %v4476 = vpop.permute.xlu0 %4475
      %4477 = vrot.lane.b32.xlu0 %v4303, 64
      %v4478 = vpop.permute.xlu0 %4477
      %4479 = vrot.lane.b32.xlu0 %v4308, 64
      %v4480 = vpop.permute.xlu0 %4479
      %v4485 = vsel %vm2254, %v4469, 0
      %v4488 = vsel %vm2254, %v4470, 0
      %v4491 = vsel %vm2254, %v4471, 0
      %v4494 = vsel %vm2254, %v4472, 0
      %v4496 = vsel %vm2323, %v4480, 0
      %4498 = vmatprep.subr.mxu0 0.0
      %4499 = vmatpush1.msra.mxu0 %v4474
      %4500 = vmatprep.subr.mxu0 0.0
      %4501 = vmatpush1.msra.mxu0 %v4476
      %4502 = vmatprep.subr.mxu0 0.0
      %4503 = vmatpush1.msra.mxu0 %v4478
      %4504 = vmatprep.subr.mxu0 0.0
      %4505 = vmatpush1.msra.mxu0 %v4496
      %4506 = vmatprep.subr.mxu0 0.0
      %4507 = vmatpush1.msra.mxu0 0.0
      %4508 = vmatprep.subr.mxu0 0.0
      %4509 = vmatpush1.msra.mxu0 0.0
      %4510 = vmatprep.subr.mxu0 0.0
      %4511 = vmatpush1.msra.mxu0 0.0
      %4512 = vmatprep.subr.mxu0 0.0
      %4513 = vmatpush1.msra.mxu0 0.0
      %4514 = vmatprep.subr.mxu0 0.0
      %4515 = vmatpush1.msra.mxu0 0.0
      %4516 = vmatprep.subr.mxu0 0.0
      %4517 = vmatpush1.msra.mxu0 0.0
      %4518 = vmatprep.subr.mxu0 0.0
      %4519 = vmatpush1.msra.mxu0 0.0
      %4520 = vmatprep.subr.mxu0 0.0
      %4521 = vmatpush1.msra.mxu0 0.0
      %4522 = vmatprep.subr.mxu0 0.0
      %4523 = vmatpush1.msra.mxu0 0.0
      %4524 = vmatprep.subr.mxu0 0.0
      %4525 = vmatpush1.msra.mxu0 0.0
      %4526 = vmatprep.subr.mxu0 0.0
      %4527 = vmatpush1.msra.mxu0 0.0
      %4528 = vmatprep.subr.mxu0 0.0
      %4529 = vmatpush1.msra.mxu0 0.0
      %4530 = vmatprep.subr.mxu0 0.0
      %4531 = vmatpush1.msra.mxu0 0.0
      %4532 = vmatprep.subr.mxu0 0.0
      %4533 = vmatpush1.msra.mxu0 0.0
      %4534 = vmatprep.subr.mxu0 0.0
      %4535 = vmatpush1.msra.mxu0 0.0
      %4536 = vmatprep.subr.mxu0 0.0
      %4537 = vmatpush1.msra.mxu0 0.0
      %4538 = vmatprep.subr.mxu0 0.0
      %4539 = vmatpush1.msra.mxu0 0.0
      %4540 = vmatprep.subr.mxu0 0.0
      %4541 = vmatpush1.msra.mxu0 0.0
      %4542 = vmatprep.subr.mxu0 0.0
      %4543 = vmatpush1.msra.mxu0 0.0
      %4544 = vmatprep.subr.mxu0 0.0
      %4545 = vmatpush1.msra.mxu0 0.0
      %4546 = vmatprep.subr.mxu0 0.0
      %4547 = vmatpush1.msra.mxu0 0.0
      %4548 = vmatprep.subr.mxu0 0.0
      %4549 = vmatpush1.msra.mxu0 0.0
      %4550 = vmatprep.subr.mxu0 0.0
      %4551 = vmatpush1.msra.mxu0 0.0
      %4552 = vmatprep.subr.mxu0 0.0
      %4553 = vmatpush1.msra.mxu0 0.0
      %4554 = vmatprep.subr.mxu0 0.0
      %4555 = vmatpush1.msra.mxu0 0.0
      %4556 = vmatprep.subr.mxu0 0.0
      %4557 = vmatpush1.msra.mxu0 0.0
      %4558 = vmatprep.subr.mxu0 0.0
      %4559 = vmatpush1.msra.mxu0 0.0
      %4560 = vmatprep.subr.mxu0 0.0
      %4561 = vmatpush1.msra.mxu0 0.0
      %4562 = vmatprep.mubr.f32.mxu0 0.0
      %4563 = vmatmul.mubr.f32.gmra.mrb[0].mxu0 %v4485
      %v4564 = vpop.f32.mrb[0].mxu0
      %v4565 = vadd.f32 0.0, %v4564
      %v4566 = vpop.f32.mrb[0].mxu0
      %4567 = vmatprep.mubr.f32.mxu0 0.0
      %4568 = vmatmul.mubr.f32.gmra.mrb[0].mxu0 %v4488
      %v4569 = vpop.f32.mrb[0].mxu0
      %v4570 = vadd.f32 0.0, %v4569
      %v4571 = vpop.f32.mrb[0].mxu0
      %4572 = vmatprep.mubr.f32.mxu0 0.0
      %4573 = vmatmul.mubr.f32.gmra.mrb[0].mxu0 %v4491
      %v4574 = vpop.f32.mrb[0].mxu0
      %v4575 = vadd.f32 0.0, %v4574
      %v4576 = vpop.f32.mrb[0].mxu0
      %4577 = vmatprep.mubr.f32.mxu0 0.0
      %4578 = vmatmul.mubr.f32.gmra.mrb[0].mxu0 %v4494
      %v4579 = vpop.f32.mrb[0].mxu0
      %v4580 = vadd.f32 0.0, %v4579
      %v4581 = vpop.f32.mrb[0].mxu0
      %4582 = vdwg.mxu0
      %4584 = vrot.lane.b32.xlu0 %v4198, 32
      %v4585 = vpop.permute.xlu0 %4584
      %v4588 = vsel %vm2148, %v4565, 0
      %v4591 = vsel %vm2148, %v4570, 0
      %v4594 = vsel %vm2148, %v4575, 0
      %v4597 = vsel %vm2148, %v4580, 0
      %4599 = vmatprep.subr.mxu0 0.0
      %4600 = vmatpush1.msra.mxu0 %v4585
      %4601 = vmatprep.subr.mxu0 0.0
      %4602 = vmatpush1.msra.mxu0 0.0
      %4603 = vmatprep.subr.mxu0 0.0
      %4604 = vmatpush1.msra.mxu0 0.0
      %4605 = vmatprep.subr.mxu0 0.0
      %4606 = vmatpush1.msra.mxu0 0.0
      %4607 = vmatprep.subr.mxu0 0.0
      %4608 = vmatpush1.msra.mxu0 0.0
      %4609 = vmatprep.subr.mxu0 0.0
      %4610 = vmatpush1.msra.mxu0 0.0
      %4611 = vmatprep.subr.mxu0 0.0
      %4612 = vmatpush1.msra.mxu0 0.0
      %4613 = vmatprep.subr.mxu0 0.0
      %4614 = vmatpush1.msra.mxu0 0.0
      %4615 = vmatprep.subr.mxu0 0.0
      %4616 = vmatpush1.msra.mxu0 0.0
      %4617 = vmatprep.subr.mxu0 0.0
      %4618 = vmatpush1.msra.mxu0 0.0
      %4619 = vmatprep.subr.mxu0 0.0
      %4620 = vmatpush1.msra.mxu0 0.0
      %4621 = vmatprep.subr.mxu0 0.0
      %4622 = vmatpush1.msra.mxu0 0.0
      %4623 = vmatprep.subr.mxu0 0.0
      %4624 = vmatpush1.msra.mxu0 0.0
      %4625 = vmatprep.subr.mxu0 0.0
      %4626 = vmatpush1.msra.mxu0 0.0
      %4627 = vmatprep.subr.mxu0 0.0
      %4628 = vmatpush1.msra.mxu0 0.0
      %4629 = vmatprep.subr.mxu0 0.0
      %4630 = vmatpush1.msra.mxu0 0.0
      %4631 = vmatprep.subr.mxu0 0.0
      %4632 = vmatpush1.msra.mxu0 0.0
      %4633 = vmatprep.subr.mxu0 0.0
      %4634 = vmatpush1.msra.mxu0 0.0
      %4635 = vmatprep.subr.mxu0 0.0
      %4636 = vmatpush1.msra.mxu0 0.0
      %4637 = vmatprep.subr.mxu0 0.0
      %4638 = vmatpush1.msra.mxu0 0.0
      %4639 = vmatprep.subr.mxu0 0.0
      %4640 = vmatpush1.msra.mxu0 0.0
      %4641 = vmatprep.subr.mxu0 0.0
      %4642 = vmatpush1.msra.mxu0 0.0
      %4643 = vmatprep.subr.mxu0 0.0
      %4644 = vmatpush1.msra.mxu0 0.0
      %4645 = vmatprep.subr.mxu0 0.0
      %4646 = vmatpush1.msra.mxu0 0.0
      %4647 = vmatprep.subr.mxu0 0.0
      %4648 = vmatpush1.msra.mxu0 0.0
      %4649 = vmatprep.subr.mxu0 0.0
      %4650 = vmatpush1.msra.mxu0 0.0
      %4651 = vmatprep.subr.mxu0 0.0
      %4652 = vmatpush1.msra.mxu0 0.0
      %4653 = vmatprep.subr.mxu0 0.0
      %4654 = vmatpush1.msra.mxu0 0.0
      %4655 = vmatprep.subr.mxu0 0.0
      %4656 = vmatpush1.msra.mxu0 0.0
      %4657 = vmatprep.subr.mxu0 0.0
      %4658 = vmatpush1.msra.mxu0 0.0
      %4659 = vmatprep.subr.mxu0 0.0
      %4660 = vmatpush1.msra.mxu0 0.0
      %4661 = vmatprep.subr.mxu0 0.0
      %4662 = vmatpush1.msra.mxu0 0.0
      %4663 = vmatprep.mubr.f32.mxu0 0.0
      %4664 = vmatmul.mubr.f32.gmra.mrb[0].mxu0 %v4588
      %v4665 = vpop.f32.mrb[0].mxu0
      %v4666 = vadd.f32 0.0, %v4665
      %v4667 = vpop.f32.mrb[0].mxu0
      %4668 = vmatprep.mubr.f32.mxu0 0.0
      %4669 = vmatmul.mubr.f32.gmra.mrb[0].mxu0 %v4591
      %v4670 = vpop.f32.mrb[0].mxu0
      %v4671 = vadd.f32 0.0, %v4670
      %v4672 = vpop.f32.mrb[0].mxu0
      %4673 = vmatprep.mubr.f32.mxu0 0.0
      %4674 = vmatmul.mubr.f32.gmra.mrb[0].mxu0 %v4594
      %v4675 = vpop.f32.mrb[0].mxu0
      %v4676 = vadd.f32 0.0, %v4675
      %v4677 = vpop.f32.mrb[0].mxu0
      %4678 = vmatprep.mubr.f32.mxu0 0.0
      %4679 = vmatmul.mubr.f32.gmra.mrb[0].mxu0 %v4597
      %v4680 = vpop.f32.mrb[0].mxu0
      %v4681 = vadd.f32 0.0, %v4680
      %v4682 = vpop.f32.mrb[0].mxu0
      %4683 = vdwg.mxu0
      %4688 = vrot.lane.b32.xlu0 %v4666, 96
      %v4689 = vpop.permute.xlu0 %4688
      %4690 = vrot.lane.b32.xlu0 %v4671, 96
      %v4691 = vpop.permute.xlu0 %4690
      %4692 = vrot.lane.b32.xlu0 %v4676, 96
      %v4693 = vpop.permute.xlu0 %4692
      %4694 = vrot.lane.b32.xlu0 %v4681, 96
      %v4695 = vpop.permute.xlu0 %4694
      %v4700 = vadd.f32 %v4311, %v4689
      %v4701 = vadd.f32 %v4311, %v4691
      %v4702 = vadd.f32 %v4311, %v4693
      %v4703 = vadd.f32 %v4311, %v4695
      %4704 = vrot.lane.b32.xlu0 %v4293, 120
      %v4705 = vpop.permute.xlu0 %4704
      %4706 = vrot.lane.b32.xlu0 %v4298, 120
      %v4707 = vpop.permute.xlu0 %4706
      %4708 = vrot.lane.b32.xlu0 %v4303, 120
      %v4709 = vpop.permute.xlu0 %4708
      %4710 = vrot.lane.b32.xlu0 %v4308, 120
      %v4711 = vpop.permute.xlu0 %4710
      %4712 = vrot.lane.b32.xlu0 %v4293, 88
      %v4713 = vpop.permute.xlu0 %4712
      %4714 = vrot.lane.b32.xlu0 %v4298, 88
      %v4715 = vpop.permute.xlu0 %4714
      %4716 = vrot.lane.b32.xlu0 %v4303, 88
      %v4717 = vpop.permute.xlu0 %4716
      %4718 = vrot.lane.b32.xlu0 %v4308, 88
      %v4719 = vpop.permute.xlu0 %4718
      %v4720 = vsel %vm2148, %v4705, 0
      %v4722 = vsel %vm2148, %v4707, 0
      %v4724 = vsel %vm2148, %v4709, 0
      %v4726 = vsel %vm2148, %v4711, 0
      %v4728 = vsel %vm2148, %v4713, 0
      %v4730 = vsel %vm2148, %v4715, 0
      %v4732 = vsel %vm2148, %v4717, 0
      %v4734 = vsel %vm2148, %v4719, 0
      %4736 = vmatprep.subr.mxu0 0.0
      %4737 = vmatpush1.xpose.msra.mxu0 %v4728
      %4738 = vmatprep.subr.mxu0 0.0
      %4739 = vmatpush1.xpose.msra.mxu0 %v4730
      %4740 = vmatprep.subr.mxu0 0.0
      %4741 = vmatpush1.xpose.msra.mxu0 %v4732
      %4742 = vmatprep.subr.mxu0 0.0
      %4743 = vmatpush1.xpose.msra.mxu0 %v4734
      %4744 = vmatprep.subr.mxu0 0.0
      %4745 = vmatpush1.xpose.msra.mxu0 0.0
      %4746 = vmatprep.subr.mxu0 0.0
      %4747 = vmatpush1.xpose.msra.mxu0 0.0
      %4748 = vmatprep.subr.mxu0 0.0
      %4749 = vmatpush1.xpose.msra.mxu0 0.0
      %4750 = vmatprep.subr.mxu0 0.0
      %4751 = vmatpush1.xpose.msra.mxu0 0.0
      %4752 = vmatprep.subr.mxu0 0.0
      %4753 = vmatpush1.xpose.msra.mxu0 0.0
      %4754 = vmatprep.subr.mxu0 0.0
      %4755 = vmatpush1.xpose.msra.mxu0 0.0
      %4756 = vmatprep.subr.mxu0 0.0
      %4757 = vmatpush1.xpose.msra.mxu0 0.0
      %4758 = vmatprep.subr.mxu0 0.0
      %4759 = vmatpush1.xpose.msra.mxu0 0.0
      %4760 = vmatprep.subr.mxu0 0.0
      %4761 = vmatpush1.xpose.msra.mxu0 0.0
      %4762 = vmatprep.subr.mxu0 0.0
      %4763 = vmatpush1.xpose.msra.mxu0 0.0
      %4764 = vmatprep.subr.mxu0 0.0
      %4765 = vmatpush1.xpose.msra.mxu0 0.0
      %4766 = vmatprep.subr.mxu0 0.0
      %4767 = vmatpush1.xpose.msra.mxu0 0.0
      %4768 = vmatprep.subr.mxu0 0.0
      %4769 = vmatpush1.xpose.msra.mxu0 0.0
      %4770 = vmatprep.subr.mxu0 0.0
      %4771 = vmatpush1.xpose.msra.mxu0 0.0
      %4772 = vmatprep.subr.mxu0 0.0
      %4773 = vmatpush1.xpose.msra.mxu0 0.0
      %4774 = vmatprep.subr.mxu0 0.0
      %4775 = vmatpush1.xpose.msra.mxu0 0.0
      %4776 = vmatprep.subr.mxu0 0.0
      %4777 = vmatpush1.xpose.msra.mxu0 0.0
      %4778 = vmatprep.subr.mxu0 0.0
      %4779 = vmatpush1.xpose.msra.mxu0 0.0
      %4780 = vmatprep.subr.mxu0 0.0
      %4781 = vmatpush1.xpose.msra.mxu0 0.0
      %4782 = vmatprep.subr.mxu0 0.0
      %4783 = vmatpush1.xpose.msra.mxu0 0.0
      %4784 = vmatprep.subr.mxu0 0.0
      %4785 = vmatpush1.xpose.msra.mxu0 0.0
      %4786 = vmatprep.subr.mxu0 0.0
      %4787 = vmatpush1.xpose.msra.mxu0 0.0
      %4788 = vmatprep.subr.mxu0 0.0
      %4789 = vmatpush1.xpose.msra.mxu0 0.0
      %4790 = vmatprep.subr.mxu0 0.0
      %4791 = vmatpush1.xpose.msra.mxu0 0.0
      %4792 = vmatprep.subr.mxu0 0.0
      %4793 = vmatpush1.xpose.msra.mxu0 0.0
      %4794 = vmatprep.subr.mxu0 0.0
      %4795 = vmatpush1.xpose.msra.mxu0 0.0
      %4796 = vmatprep.subr.mxu0 0.0
      %4797 = vmatpush1.xpose.msra.mxu0 0.0
      %4798 = vmatprep.subr.mxu0 0.0
      %4799 = vmatpush1.xpose.msra.mxu0 0.0
      %4800 = vmatprep.mubr.f32.mxu0 0.0
      %4801 = vmatmul.mubr.f32.gmra.mrb[0].mxu0 %v4720
      %v4802 = vpop.f32.mrb[0].mxu0
      %v4803 = vadd.f32 0.0, %v4802
      %v4804 = vpop.f32.mrb[0].mxu0
      %4805 = vmatprep.mubr.f32.mxu0 0.0
      %4806 = vmatmul.mubr.f32.gmra.mrb[0].mxu0 %v4722
      %v4807 = vpop.f32.mrb[0].mxu0
      %v4808 = vadd.f32 0.0, %v4807
      %v4809 = vpop.f32.mrb[0].mxu0
      %4810 = vmatprep.mubr.f32.mxu0 0.0
      %4811 = vmatmul.mubr.f32.gmra.mrb[0].mxu0 %v4724
      %v4812 = vpop.f32.mrb[0].mxu0
      %v4813 = vadd.f32 0.0, %v4812
      %v4814 = vpop.f32.mrb[0].mxu0
      %4815 = vmatprep.mubr.f32.mxu0 0.0
      %4816 = vmatmul.mubr.f32.gmra.mrb[0].mxu0 %v4726
      %v4817 = vpop.f32.mrb[0].mxu0
      %v4818 = vadd.f32 0.0, %v4817
      %v4819 = vpop.f32.mrb[0].mxu0
      %4820 = vdwg.mxu0
      %v4821 = vmul.f32 %v4803, 0.35355338
      %v4822 = vmul.f32 %v4808, 0.35355338
      %v4823 = vmul.f32 %v4813, 0.35355338
      %v4824 = vmul.f32 %v4818, 0.35355338
      %v4825 = vsel %vm2254, %v4821, -inf
      %4826 = vmax.xlane.f32.xlu0 %v4825
      %v4827 = vpop.xlane.xlu0 %4826
      %v4828 = vsel %vm2254, %v4822, -inf
      %4829 = vmax.xlane.f32.xlu0 %v4828
      %v4830 = vpop.xlane.xlu0 %4829
      %v4831 = vsel %vm2254, %v4823, -inf
      %4832 = vmax.xlane.f32.xlu0 %v4831
      %v4833 = vpop.xlane.xlu0 %4832
      %v4834 = vsel %vm2264, %v4824, -inf
      %4835 = vmax.xlane.f32.xlu0 %v4834
      %v4836 = vpop.xlane.xlu0 %4835
      %v4837 = vsub.f32 %v4821, %v4827
      %v4838 = vsub.f32 %v4822, %v4830
      %v4839 = vsub.f32 %v4823, %v4833
      %v4840 = vsub.f32 %v4824, %v4836
      %v4841 = vmul.f32 %v4837, 1.442695
      %v4842 = vpow.pop %v4841
      %v4843 = vmul.f32 %v4838, 1.442695
      %v4844 = vpow.pop %v4843
      %v4845 = vmul.f32 %v4839, 1.442695
      %v4846 = vpow.pop %v4845
      %v4847 = vmul.f32 %v4840, 1.442695
      %v4848 = vpow.pop %v4847
      %v4849 = vsel %vm2254, %v4842, 0.0
      %4850 = vadd.xlane.f32.xlu0 %v4849
      %v4851 = vpop.xlane.xlu0 %4850
      %v4852 = vsel %vm2254, %v4844, 0.0
      %4853 = vadd.xlane.f32.xlu0 %v4852
      %v4854 = vpop.xlane.xlu0 %4853
      %v4855 = vsel %vm2254, %v4846, 0.0
      %4856 = vadd.xlane.f32.xlu0 %v4855
      %v4857 = vpop.xlane.xlu0 %4856
      %v4858 = vsel %vm2264, %v4848, 0.0
      %4859 = vadd.xlane.f32.xlu0 %v4858
      %v4860 = vpop.xlane.xlu0 %4859
      %v4861 = vrcp.pop %v4851
      %v4862 = vrcp.pop %v4854
      %v4863 = vrcp.pop %v4857
      %v4864 = vrcp.pop %v4860
      %v4865 = vmul.f32 %v4842, %v4861
      %v4866 = vmul.f32 %v4844, %v4862
      %v4867 = vmul.f32 %v4846, %v4863
      %v4868 = vmul.f32 %v4848, %v4864
      %4869 = vrot.lane.b32.xlu0 %v4293, 56
      %v4870 = vpop.permute.xlu0 %4869
      %4871 = vrot.lane.b32.xlu0 %v4298, 56
      %v4872 = vpop.permute.xlu0 %4871
      %4873 = vrot.lane.b32.xlu0 %v4303, 56
      %v4874 = vpop.permute.xlu0 %4873
      %4875 = vrot.lane.b32.xlu0 %v4308, 56
      %v4876 = vpop.permute.xlu0 %4875
      %v4881 = vsel %vm2254, %v4865, 0
      %v4884 = vsel %vm2254, %v4866, 0
      %v4887 = vsel %vm2254, %v4867, 0
      %v4890 = vsel %vm2254, %v4868, 0
      %v4892 = vsel %vm2323, %v4876, 0
      %4894 = vmatprep.subr.mxu0 0.0
      %4895 = vmatpush1.msra.mxu0 %v4870
      %4896 = vmatprep.subr.mxu0 0.0
      %4897 = vmatpush1.msra.mxu0 %v4872
      %4898 = vmatprep.subr.mxu0 0.0
      %4899 = vmatpush1.msra.mxu0 %v4874
      %4900 = vmatprep.subr.mxu0 0.0
      %4901 = vmatpush1.msra.mxu0 %v4892
      %4902 = vmatprep.subr.mxu0 0.0
      %4903 = vmatpush1.msra.mxu0 0.0
      %4904 = vmatprep.subr.mxu0 0.0
      %4905 = vmatpush1.msra.mxu0 0.0
      %4906 = vmatprep.subr.mxu0 0.0
      %4907 = vmatpush1.msra.mxu0 0.0
      %4908 = vmatprep.subr.mxu0 0.0
      %4909 = vmatpush1.msra.mxu0 0.0
      %4910 = vmatprep.subr.mxu0 0.0
      %4911 = vmatpush1.msra.mxu0 0.0
      %4912 = vmatprep.subr.mxu0 0.0
      %4913 = vmatpush1.msra.mxu0 0.0
      %4914 = vmatprep.subr.mxu0 0.0
      %4915 = vmatpush1.msra.mxu0 0.0
      %4916 = vmatprep.subr.mxu0 0.0
      %4917 = vmatpush1.msra.mxu0 0.0
      %4918 = vmatprep.subr.mxu0 0.0
      %4919 = vmatpush1.msra.mxu0 0.0
      %4920 = vmatprep.subr.mxu0 0.0
      %4921 = vmatpush1.msra.mxu0 0.0
      %4922 = vmatprep.subr.mxu0 0.0
      %4923 = vmatpush1.msra.mxu0 0.0
      %4924 = vmatprep.subr.mxu0 0.0
      %4925 = vmatpush1.msra.mxu0 0.0
      %4926 = vmatprep.subr.mxu0 0.0
      %4927 = vmatpush1.msra.mxu0 0.0
      %4928 = vmatprep.subr.mxu0 0.0
      %4929 = vmatpush1.msra.mxu0 0.0
      %4930 = vmatprep.subr.mxu0 0.0
      %4931 = vmatpush1.msra.mxu0 0.0
      %4932 = vmatprep.subr.mxu0 0.0
      %4933 = vmatpush1.msra.mxu0 0.0
      %4934 = vmatprep.subr.mxu0 0.0
      %4935 = vmatpush1.msra.mxu0 0.0
      %4936 = vmatprep.subr.mxu0 0.0
      %4937 = vmatpush1.msra.mxu0 0.0
      %4938 = vmatprep.subr.mxu0 0.0
      %4939 = vmatpush1.msra.mxu0 0.0
      %4940 = vmatprep.subr.mxu0 0.0
      %4941 = vmatpush1.msra.mxu0 0.0
      %4942 = vmatprep.subr.mxu0 0.0
      %4943 = vmatpush1.msra.mxu0 0.0
      %4944 = vmatprep.subr.mxu0 0.0
      %4945 = vmatpush1.msra.mxu0 0.0
      %4946 = vmatprep.subr.mxu0 0.0
      %4947 = vmatpush1.msra.mxu0 0.0
      %4948 = vmatprep.subr.mxu0 0.0
      %4949 = vmatpush1.msra.mxu0 0.0
      %4950 = vmatprep.subr.mxu0 0.0
      %4951 = vmatpush1.msra.mxu0 0.0
      %4952 = vmatprep.subr.mxu0 0.0
      %4953 = vmatpush1.msra.mxu0 0.0
      %4954 = vmatprep.subr.mxu0 0.0
      %4955 = vmatpush1.msra.mxu0 0.0
      %4956 = vmatprep.subr.mxu0 0.0
      %4957 = vmatpush1.msra.mxu0 0.0
      %4958 = vmatprep.mubr.f32.mxu0 0.0
      %4959 = vmatmul.mubr.f32.gmra.mrb[0].mxu0 %v4881
      %v4960 = vpop.f32.mrb[0].mxu0
      %v4961 = vadd.f32 0.0, %v4960
      %v4962 = vpop.f32.mrb[0].mxu0
      %4963 = vmatprep.mubr.f32.mxu0 0.0
      %4964 = vmatmul.mubr.f32.gmra.mrb[0].mxu0 %v4884
      %v4965 = vpop.f32.mrb[0].mxu0
      %v4966 = vadd.f32 0.0, %v4965
      %v4967 = vpop.f32.mrb[0].mxu0
      %4968 = vmatprep.mubr.f32.mxu0 0.0
      %4969 = vmatmul.mubr.f32.gmra.mrb[0].mxu0 %v4887
      %v4970 = vpop.f32.mrb[0].mxu0
      %v4971 = vadd.f32 0.0, %v4970
      %v4972 = vpop.f32.mrb[0].mxu0
      %4973 = vmatprep.mubr.f32.mxu0 0.0
      %4974 = vmatmul.mubr.f32.gmra.mrb[0].mxu0 %v4890
      %v4975 = vpop.f32.mrb[0].mxu0
      %v4976 = vadd.f32 0.0, %v4975
      %v4977 = vpop.f32.mrb[0].mxu0
      %4978 = vdwg.mxu0
      %4980 = vrot.lane.b32.xlu0 %v4199, 32
      %v4981 = vpop.permute.xlu0 %4980
      %v4984 = vsel %vm2148, %v4961, 0
      %v4987 = vsel %vm2148, %v4966, 0
      %v4990 = vsel %vm2148, %v4971, 0
      %v4993 = vsel %vm2148, %v4976, 0
      %4995 = vmatprep.subr.mxu0 0.0
      %4996 = vmatpush1.msra.mxu0 %v4981
      %4997 = vmatprep.subr.mxu0 0.0
      %4998 = vmatpush1.msra.mxu0 0.0
      %4999 = vmatprep.subr.mxu0 0.0
      %5000 = vmatpush1.msra.mxu0 0.0
      %5001 = vmatprep.subr.mxu0 0.0
      %5002 = vmatpush1.msra.mxu0 0.0
      %5003 = vmatprep.subr.mxu0 0.0
      %5004 = vmatpush1.msra.mxu0 0.0
      %5005 = vmatprep.subr.mxu0 0.0
      %5006 = vmatpush1.msra.mxu0 0.0
      %5007 = vmatprep.subr.mxu0 0.0
      %5008 = vmatpush1.msra.mxu0 0.0
      %5009 = vmatprep.subr.mxu0 0.0
      %5010 = vmatpush1.msra.mxu0 0.0
      %5011 = vmatprep.subr.mxu0 0.0
      %5012 = vmatpush1.msra.mxu0 0.0
      %5013 = vmatprep.subr.mxu0 0.0
      %5014 = vmatpush1.msra.mxu0 0.0
      %5015 = vmatprep.subr.mxu0 0.0
      %5016 = vmatpush1.msra.mxu0 0.0
      %5017 = vmatprep.subr.mxu0 0.0
      %5018 = vmatpush1.msra.mxu0 0.0
      %5019 = vmatprep.subr.mxu0 0.0
      %5020 = vmatpush1.msra.mxu0 0.0
      %5021 = vmatprep.subr.mxu0 0.0
      %5022 = vmatpush1.msra.mxu0 0.0
      %5023 = vmatprep.subr.mxu0 0.0
      %5024 = vmatpush1.msra.mxu0 0.0
      %5025 = vmatprep.subr.mxu0 0.0
      %5026 = vmatpush1.msra.mxu0 0.0
      %5027 = vmatprep.subr.mxu0 0.0
      %5028 = vmatpush1.msra.mxu0 0.0
      %5029 = vmatprep.subr.mxu0 0.0
      %5030 = vmatpush1.msra.mxu0 0.0
      %5031 = vmatprep.subr.mxu0 0.0
      %5032 = vmatpush1.msra.mxu0 0.0
      %5033 = vmatprep.subr.mxu0 0.0
      %5034 = vmatpush1.msra.mxu0 0.0
      %5035 = vmatprep.subr.mxu0 0.0
      %5036 = vmatpush1.msra.mxu0 0.0
      %5037 = vmatprep.subr.mxu0 0.0
      %5038 = vmatpush1.msra.mxu0 0.0
      %5039 = vmatprep.subr.mxu0 0.0
      %5040 = vmatpush1.msra.mxu0 0.0
      %5041 = vmatprep.subr.mxu0 0.0
      %5042 = vmatpush1.msra.mxu0 0.0
      %5043 = vmatprep.subr.mxu0 0.0
      %5044 = vmatpush1.msra.mxu0 0.0
      %5045 = vmatprep.subr.mxu0 0.0
      %5046 = vmatpush1.msra.mxu0 0.0
      %5047 = vmatprep.subr.mxu0 0.0
      %5048 = vmatpush1.msra.mxu0 0.0
      %5049 = vmatprep.subr.mxu0 0.0
      %5050 = vmatpush1.msra.mxu0 0.0
      %5051 = vmatprep.subr.mxu0 0.0
      %5052 = vmatpush1.msra.mxu0 0.0
      %5053 = vmatprep.subr.mxu0 0.0
      %5054 = vmatpush1.msra.mxu0 0.0
      %5055 = vmatprep.subr.mxu0 0.0
      %5056 = vmatpush1.msra.mxu0 0.0
      %5057 = vmatprep.subr.mxu0 0.0
      %5058 = vmatpush1.msra.mxu0 0.0
      %5059 = vmatprep.mubr.f32.mxu0 0.0
      %5060 = vmatmul.mubr.f32.gmra.mrb[0].mxu0 %v4984
      %v5061 = vpop.f32.mrb[0].mxu0
      %v5062 = vadd.f32 0.0, %v5061
      %v5063 = vpop.f32.mrb[0].mxu0
      %5064 = vmatprep.mubr.f32.mxu0 0.0
      %5065 = vmatmul.mubr.f32.gmra.mrb[0].mxu0 %v4987
      %v5066 = vpop.f32.mrb[0].mxu0
      %v5067 = vadd.f32 0.0, %v5066
      %v5068 = vpop.f32.mrb[0].mxu0
      %5069 = vmatprep.mubr.f32.mxu0 0.0
      %5070 = vmatmul.mubr.f32.gmra.mrb[0].mxu0 %v4990
      %v5071 = vpop.f32.mrb[0].mxu0
      %v5072 = vadd.f32 0.0, %v5071
      %v5073 = vpop.f32.mrb[0].mxu0
      %5074 = vmatprep.mubr.f32.mxu0 0.0
      %5075 = vmatmul.mubr.f32.gmra.mrb[0].mxu0 %v4993
      %v5076 = vpop.f32.mrb[0].mxu0
      %v5077 = vadd.f32 0.0, %v5076
      %v5078 = vpop.f32.mrb[0].mxu0
      %5079 = vdwg.mxu0
      %5084 = vrot.lane.b32.xlu0 %v5062, 96
      %v5085 = vpop.permute.xlu0 %5084
      %5086 = vrot.lane.b32.xlu0 %v5067, 96
      %v5087 = vpop.permute.xlu0 %5086
      %5088 = vrot.lane.b32.xlu0 %v5072, 96
      %v5089 = vpop.permute.xlu0 %5088
      %5090 = vrot.lane.b32.xlu0 %v5077, 96
      %v5091 = vpop.permute.xlu0 %5090
      %v5096 = vadd.f32 %v4700, %v5085
      %v5097 = vadd.f32 %v4701, %v5087
      %v5098 = vadd.f32 %v4702, %v5089
      %v5099 = vadd.f32 %v4703, %v5091
      %5100 = vrot.lane.b32.xlu0 %v4293, 112
      %v5101 = vpop.permute.xlu0 %5100
      %5102 = vrot.lane.b32.xlu0 %v4298, 112
      %v5103 = vpop.permute.xlu0 %5102
      %5104 = vrot.lane.b32.xlu0 %v4303, 112
      %v5105 = vpop.permute.xlu0 %5104
      %5106 = vrot.lane.b32.xlu0 %v4308, 112
      %v5107 = vpop.permute.xlu0 %5106
      %5108 = vrot.lane.b32.xlu0 %v4293, 80
      %v5109 = vpop.permute.xlu0 %5108
      %5110 = vrot.lane.b32.xlu0 %v4298, 80
      %v5111 = vpop.permute.xlu0 %5110
      %5112 = vrot.lane.b32.xlu0 %v4303, 80
      %v5113 = vpop.permute.xlu0 %5112
      %5114 = vrot.lane.b32.xlu0 %v4308, 80
      %v5115 = vpop.permute.xlu0 %5114
      %v5116 = vsel %vm2148, %v5101, 0
      %v5118 = vsel %vm2148, %v5103, 0
      %v5120 = vsel %vm2148, %v5105, 0
      %v5122 = vsel %vm2148, %v5107, 0
      %v5124 = vsel %vm2148, %v5109, 0
      %v5126 = vsel %vm2148, %v5111, 0
      %v5128 = vsel %vm2148, %v5113, 0
      %v5130 = vsel %vm2148, %v5115, 0
      %5132 = vmatprep.subr.mxu0 0.0
      %5133 = vmatpush1.xpose.msra.mxu0 %v5124
      %5134 = vmatprep.subr.mxu0 0.0
      %5135 = vmatpush1.xpose.msra.mxu0 %v5126
      %5136 = vmatprep.subr.mxu0 0.0
      %5137 = vmatpush1.xpose.msra.mxu0 %v5128
      %5138 = vmatprep.subr.mxu0 0.0
      %5139 = vmatpush1.xpose.msra.mxu0 %v5130
      %5140 = vmatprep.subr.mxu0 0.0
      %5141 = vmatpush1.xpose.msra.mxu0 0.0
      %5142 = vmatprep.subr.mxu0 0.0
      %5143 = vmatpush1.xpose.msra.mxu0 0.0
      %5144 = vmatprep.subr.mxu0 0.0
      %5145 = vmatpush1.xpose.msra.mxu0 0.0
      %5146 = vmatprep.subr.mxu0 0.0
      %5147 = vmatpush1.xpose.msra.mxu0 0.0
      %5148 = vmatprep.subr.mxu0 0.0
      %5149 = vmatpush1.xpose.msra.mxu0 0.0
      %5150 = vmatprep.subr.mxu0 0.0
      %5151 = vmatpush1.xpose.msra.mxu0 0.0
      %5152 = vmatprep.subr.mxu0 0.0
      %5153 = vmatpush1.xpose.msra.mxu0 0.0
      %5154 = vmatprep.subr.mxu0 0.0
      %5155 = vmatpush1.xpose.msra.mxu0 0.0
      %5156 = vmatprep.subr.mxu0 0.0
      %5157 = vmatpush1.xpose.msra.mxu0 0.0
      %5158 = vmatprep.subr.mxu0 0.0
      %5159 = vmatpush1.xpose.msra.mxu0 0.0
      %5160 = vmatprep.subr.mxu0 0.0
      %5161 = vmatpush1.xpose.msra.mxu0 0.0
      %5162 = vmatprep.subr.mxu0 0.0
      %5163 = vmatpush1.xpose.msra.mxu0 0.0
      %5164 = vmatprep.subr.mxu0 0.0
      %5165 = vmatpush1.xpose.msra.mxu0 0.0
      %5166 = vmatprep.subr.mxu0 0.0
      %5167 = vmatpush1.xpose.msra.mxu0 0.0
      %5168 = vmatprep.subr.mxu0 0.0
      %5169 = vmatpush1.xpose.msra.mxu0 0.0
      %5170 = vmatprep.subr.mxu0 0.0
      %5171 = vmatpush1.xpose.msra.mxu0 0.0
      %5172 = vmatprep.subr.mxu0 0.0
      %5173 = vmatpush1.xpose.msra.mxu0 0.0
      %5174 = vmatprep.subr.mxu0 0.0
      %5175 = vmatpush1.xpose.msra.mxu0 0.0
      %5176 = vmatprep.subr.mxu0 0.0
      %5177 = vmatpush1.xpose.msra.mxu0 0.0
      %5178 = vmatprep.subr.mxu0 0.0
      %5179 = vmatpush1.xpose.msra.mxu0 0.0
      %5180 = vmatprep.subr.mxu0 0.0
      %5181 = vmatpush1.xpose.msra.mxu0 0.0
      %5182 = vmatprep.subr.mxu0 0.0
      %5183 = vmatpush1.xpose.msra.mxu0 0.0
      %5184 = vmatprep.subr.mxu0 0.0
      %5185 = vmatpush1.xpose.msra.mxu0 0.0
      %5186 = vmatprep.subr.mxu0 0.0
      %5187 = vmatpush1.xpose.msra.mxu0 0.0
      %5188 = vmatprep.subr.mxu0 0.0
      %5189 = vmatpush1.xpose.msra.mxu0 0.0
      %5190 = vmatprep.subr.mxu0 0.0
      %5191 = vmatpush1.xpose.msra.mxu0 0.0
      %5192 = vmatprep.subr.mxu0 0.0
      %5193 = vmatpush1.xpose.msra.mxu0 0.0
      %5194 = vmatprep.subr.mxu0 0.0
      %5195 = vmatpush1.xpose.msra.mxu0 0.0
      %5196 = vmatprep.mubr.f32.mxu0 0.0
      %5197 = vmatmul.mubr.f32.gmra.mrb[0].mxu0 %v5116
      %v5198 = vpop.f32.mrb[0].mxu0
      %v5199 = vadd.f32 0.0, %v5198
      %v5200 = vpop.f32.mrb[0].mxu0
      %5201 = vmatprep.mubr.f32.mxu0 0.0
      %5202 = vmatmul.mubr.f32.gmra.mrb[0].mxu0 %v5118
      %v5203 = vpop.f32.mrb[0].mxu0
      %v5204 = vadd.f32 0.0, %v5203
      %v5205 = vpop.f32.mrb[0].mxu0
      %5206 = vmatprep.mubr.f32.mxu0 0.0
      %5207 = vmatmul.mubr.f32.gmra.mrb[0].mxu0 %v5120
      %v5208 = vpop.f32.mrb[0].mxu0
      %v5209 = vadd.f32 0.0, %v5208
      %v5210 = vpop.f32.mrb[0].mxu0
      %5211 = vmatprep.mubr.f32.mxu0 0.0
      %5212 = vmatmul.mubr.f32.gmra.mrb[0].mxu0 %v5122
      %v5213 = vpop.f32.mrb[0].mxu0
      %v5214 = vadd.f32 0.0, %v5213
      %v5215 = vpop.f32.mrb[0].mxu0
      %5216 = vdwg.mxu0
      %v5217 = vmul.f32 %v5199, 0.35355338
      %v5218 = vmul.f32 %v5204, 0.35355338
      %v5219 = vmul.f32 %v5209, 0.35355338
      %v5220 = vmul.f32 %v5214, 0.35355338
      %v5221 = vsel %vm2254, %v5217, -inf
      %5222 = vmax.xlane.f32.xlu0 %v5221
      %v5223 = vpop.xlane.xlu0 %5222
      %v5224 = vsel %vm2254, %v5218, -inf
      %5225 = vmax.xlane.f32.xlu0 %v5224
      %v5226 = vpop.xlane.xlu0 %5225
      %v5227 = vsel %vm2254, %v5219, -inf
      %5228 = vmax.xlane.f32.xlu0 %v5227
      %v5229 = vpop.xlane.xlu0 %5228
      %v5230 = vsel %vm2264, %v5220, -inf
      %5231 = vmax.xlane.f32.xlu0 %v5230
      %v5232 = vpop.xlane.xlu0 %5231
      %v5233 = vsub.f32 %v5217, %v5223
      %v5234 = vsub.f32 %v5218, %v5226
      %v5235 = vsub.f32 %v5219, %v5229
      %v5236 = vsub.f32 %v5220, %v5232
      %v5237 = vmul.f32 %v5233, 1.442695
      %v5238 = vpow.pop %v5237
      %v5239 = vmul.f32 %v5234, 1.442695
      %v5240 = vpow.pop %v5239
      %v5241 = vmul.f32 %v5235, 1.442695
      %v5242 = vpow.pop %v5241
      %v5243 = vmul.f32 %v5236, 1.442695
      %v5244 = vpow.pop %v5243
      %v5245 = vsel %vm2254, %v5238, 0.0
      %5246 = vadd.xlane.f32.xlu0 %v5245
      %v5247 = vpop.xlane.xlu0 %5246
      %v5248 = vsel %vm2254, %v5240, 0.0
      %5249 = vadd.xlane.f32.xlu0 %v5248
      %v5250 = vpop.xlane.xlu0 %5249
      %v5251 = vsel %vm2254, %v5242, 0.0
      %5252 = vadd.xlane.f32.xlu0 %v5251
      %v5253 = vpop.xlane.xlu0 %5252
      %v5254 = vsel %vm2264, %v5244, 0.0
      %5255 = vadd.xlane.f32.xlu0 %v5254
      %v5256 = vpop.xlane.xlu0 %5255
      %v5257 = vrcp.pop %v5247
      %v5258 = vrcp.pop %v5250
      %v5259 = vrcp.pop %v5253
      %v5260 = vrcp.pop %v5256
      %v5261 = vmul.f32 %v5238, %v5257
      %v5262 = vmul.f32 %v5240, %v5258
      %v5263 = vmul.f32 %v5242, %v5259
      %v5264 = vmul.f32 %v5244, %v5260
      %5265 = vrot.lane.b32.xlu0 %v4293, 48
      %v5266 = vpop.permute.xlu0 %5265
      %5267 = vrot.lane.b32.xlu0 %v4298, 48
      %v5268 = vpop.permute.xlu0 %5267
      %5269 = vrot.lane.b32.xlu0 %v4303, 48
      %v5270 = vpop.permute.xlu0 %5269
      %5271 = vrot.lane.b32.xlu0 %v4308, 48
      %v5272 = vpop.permute.xlu0 %5271
      %v5277 = vsel %vm2254, %v5261, 0
      %v5280 = vsel %vm2254, %v5262, 0
      %v5283 = vsel %vm2254, %v5263, 0
      %v5286 = vsel %vm2254, %v5264, 0
      %v5288 = vsel %vm2323, %v5272, 0
      %5290 = vmatprep.subr.mxu0 0.0
      %5291 = vmatpush1.msra.mxu0 %v5266
      %5292 = vmatprep.subr.mxu0 0.0
      %5293 = vmatpush1.msra.mxu0 %v5268
      %5294 = vmatprep.subr.mxu0 0.0
      %5295 = vmatpush1.msra.mxu0 %v5270
      %5296 = vmatprep.subr.mxu0 0.0
      %5297 = vmatpush1.msra.mxu0 %v5288
      %5298 = vmatprep.subr.mxu0 0.0
      %5299 = vmatpush1.msra.mxu0 0.0
      %5300 = vmatprep.subr.mxu0 0.0
      %5301 = vmatpush1.msra.mxu0 0.0
      %5302 = vmatprep.subr.mxu0 0.0
      %5303 = vmatpush1.msra.mxu0 0.0
      %5304 = vmatprep.subr.mxu0 0.0
      %5305 = vmatpush1.msra.mxu0 0.0
      %5306 = vmatprep.subr.mxu0 0.0
      %5307 = vmatpush1.msra.mxu0 0.0
      %5308 = vmatprep.subr.mxu0 0.0
      %5309 = vmatpush1.msra.mxu0 0.0
      %5310 = vmatprep.subr.mxu0 0.0
      %5311 = vmatpush1.msra.mxu0 0.0
      %5312 = vmatprep.subr.mxu0 0.0
      %5313 = vmatpush1.msra.mxu0 0.0
      %5314 = vmatprep.subr.mxu0 0.0
      %5315 = vmatpush1.msra.mxu0 0.0
      %5316 = vmatprep.subr.mxu0 0.0
      %5317 = vmatpush1.msra.mxu0 0.0
      %5318 = vmatprep.subr.mxu0 0.0
      %5319 = vmatpush1.msra.mxu0 0.0
      %5320 = vmatprep.subr.mxu0 0.0
      %5321 = vmatpush1.msra.mxu0 0.0
      %5322 = vmatprep.subr.mxu0 0.0
      %5323 = vmatpush1.msra.mxu0 0.0
      %5324 = vmatprep.subr.mxu0 0.0
      %5325 = vmatpush1.msra.mxu0 0.0
      %5326 = vmatprep.subr.mxu0 0.0
      %5327 = vmatpush1.msra.mxu0 0.0
      %5328 = vmatprep.subr.mxu0 0.0
      %5329 = vmatpush1.msra.mxu0 0.0
      %5330 = vmatprep.subr.mxu0 0.0
      %5331 = vmatpush1.msra.mxu0 0.0
      %5332 = vmatprep.subr.mxu0 0.0
      %5333 = vmatpush1.msra.mxu0 0.0
      %5334 = vmatprep.subr.mxu0 0.0
      %5335 = vmatpush1.msra.mxu0 0.0
      %5336 = vmatprep.subr.mxu0 0.0
      %5337 = vmatpush1.msra.mxu0 0.0
      %5338 = vmatprep.subr.mxu0 0.0
      %5339 = vmatpush1.msra.mxu0 0.0
      %5340 = vmatprep.subr.mxu0 0.0
      %5341 = vmatpush1.msra.mxu0 0.0
      %5342 = vmatprep.subr.mxu0 0.0
      %5343 = vmatpush1.msra.mxu0 0.0
      %5344 = vmatprep.subr.mxu0 0.0
      %5345 = vmatpush1.msra.mxu0 0.0
      %5346 = vmatprep.subr.mxu0 0.0
      %5347 = vmatpush1.msra.mxu0 0.0
      %5348 = vmatprep.subr.mxu0 0.0
      %5349 = vmatpush1.msra.mxu0 0.0
      %5350 = vmatprep.subr.mxu0 0.0
      %5351 = vmatpush1.msra.mxu0 0.0
      %5352 = vmatprep.subr.mxu0 0.0
      %5353 = vmatpush1.msra.mxu0 0.0
      %5354 = vmatprep.mubr.f32.mxu0 0.0
      %5355 = vmatmul.mubr.f32.gmra.mrb[0].mxu0 %v5277
      %v5356 = vpop.f32.mrb[0].mxu0
      %v5357 = vadd.f32 0.0, %v5356
      %v5358 = vpop.f32.mrb[0].mxu0
      %5359 = vmatprep.mubr.f32.mxu0 0.0
      %5360 = vmatmul.mubr.f32.gmra.mrb[0].mxu0 %v5280
      %v5361 = vpop.f32.mrb[0].mxu0
      %v5362 = vadd.f32 0.0, %v5361
      %v5363 = vpop.f32.mrb[0].mxu0
      %5364 = vmatprep.mubr.f32.mxu0 0.0
      %5365 = vmatmul.mubr.f32.gmra.mrb[0].mxu0 %v5283
      %v5366 = vpop.f32.mrb[0].mxu0
      %v5367 = vadd.f32 0.0, %v5366
      %v5368 = vpop.f32.mrb[0].mxu0
      %5369 = vmatprep.mubr.f32.mxu0 0.0
      %5370 = vmatmul.mubr.f32.gmra.mrb[0].mxu0 %v5286
      %v5371 = vpop.f32.mrb[0].mxu0
      %v5372 = vadd.f32 0.0, %v5371
      %v5373 = vpop.f32.mrb[0].mxu0
      %5374 = vdwg.mxu0
      %5376 = vrot.lane.b32.xlu0 %v4200, 32
      %v5377 = vpop.permute.xlu0 %5376
      %v5380 = vsel %vm2148, %v5357, 0
      %v5383 = vsel %vm2148, %v5362, 0
      %v5386 = vsel %vm2148, %v5367, 0
      %v5389 = vsel %vm2148, %v5372, 0
      %5391 = vmatprep.subr.mxu0 0.0
      %5392 = vmatpush1.msra.mxu0 %v5377
      %5393 = vmatprep.subr.mxu0 0.0
      %5394 = vmatpush1.msra.mxu0 0.0
      %5395 = vmatprep.subr.mxu0 0.0
      %5396 = vmatpush1.msra.mxu0 0.0
      %5397 = vmatprep.subr.mxu0 0.0
      %5398 = vmatpush1.msra.mxu0 0.0
      %5399 = vmatprep.subr.mxu0 0.0
      %5400 = vmatpush1.msra.mxu0 0.0
      %5401 = vmatprep.subr.mxu0 0.0
      %5402 = vmatpush1.msra.mxu0 0.0
      %5403 = vmatprep.subr.mxu0 0.0
      %5404 = vmatpush1.msra.mxu0 0.0
      %5405 = vmatprep.subr.mxu0 0.0
      %5406 = vmatpush1.msra.mxu0 0.0
      %5407 = vmatprep.subr.mxu0 0.0
      %5408 = vmatpush1.msra.mxu0 0.0
      %5409 = vmatprep.subr.mxu0 0.0
      %5410 = vmatpush1.msra.mxu0 0.0
      %5411 = vmatprep.subr.mxu0 0.0
      %5412 = vmatpush1.msra.mxu0 0.0
      %5413 = vmatprep.subr.mxu0 0.0
      %5414 = vmatpush1.msra.mxu0 0.0
      %5415 = vmatprep.subr.mxu0 0.0
      %5416 = vmatpush1.msra.mxu0 0.0
      %5417 = vmatprep.subr.mxu0 0.0
      %5418 = vmatpush1.msra.mxu0 0.0
      %5419 = vmatprep.subr.mxu0 0.0
      %5420 = vmatpush1.msra.mxu0 0.0
      %5421 = vmatprep.subr.mxu0 0.0
      %5422 = vmatpush1.msra.mxu0 0.0
      %5423 = vmatprep.subr.mxu0 0.0
      %5424 = vmatpush1.msra.mxu0 0.0
      %5425 = vmatprep.subr.mxu0 0.0
      %5426 = vmatpush1.msra.mxu0 0.0
      %5427 = vmatprep.subr.mxu0 0.0
      %5428 = vmatpush1.msra.mxu0 0.0
      %5429 = vmatprep.subr.mxu0 0.0
      %5430 = vmatpush1.msra.mxu0 0.0
      %5431 = vmatprep.subr.mxu0 0.0
      %5432 = vmatpush1.msra.mxu0 0.0
      %5433 = vmatprep.subr.mxu0 0.0
      %5434 = vmatpush1.msra.mxu0 0.0
      %5435 = vmatprep.subr.mxu0 0.0
      %5436 = vmatpush1.msra.mxu0 0.0
      %5437 = vmatprep.subr.mxu0 0.0
      %5438 = vmatpush1.msra.mxu0 0.0
      %5439 = vmatprep.subr.mxu0 0.0
      %5440 = vmatpush1.msra.mxu0 0.0
      %5441 = vmatprep.subr.mxu0 0.0
      %5442 = vmatpush1.msra.mxu0 0.0
      %5443 = vmatprep.subr.mxu0 0.0
      %5444 = vmatpush1.msra.mxu0 0.0
      %5445 = vmatprep.subr.mxu0 0.0
      %5446 = vmatpush1.msra.mxu0 0.0
      %5447 = vmatprep.subr.mxu0 0.0
      %5448 = vmatpush1.msra.mxu0 0.0
      %5449 = vmatprep.subr.mxu0 0.0
      %5450 = vmatpush1.msra.mxu0 0.0
      %5451 = vmatprep.subr.mxu0 0.0
      %5452 = vmatpush1.msra.mxu0 0.0
      %5453 = vmatprep.subr.mxu0 0.0
      %5454 = vmatpush1.msra.mxu0 0.0
      %5455 = vmatprep.mubr.f32.mxu0 0.0
      %5456 = vmatmul.mubr.f32.gmra.mrb[0].mxu0 %v5380
      %v5457 = vpop.f32.mrb[0].mxu0
      %v5458 = vadd.f32 0.0, %v5457
      %v5459 = vpop.f32.mrb[0].mxu0
      %5460 = vmatprep.mubr.f32.mxu0 0.0
      %5461 = vmatmul.mubr.f32.gmra.mrb[0].mxu0 %v5383
      %v5462 = vpop.f32.mrb[0].mxu0
      %v5463 = vadd.f32 0.0, %v5462
      %v5464 = vpop.f32.mrb[0].mxu0
      %5465 = vmatprep.mubr.f32.mxu0 0.0
      %5466 = vmatmul.mubr.f32.gmra.mrb[0].mxu0 %v5386
      %v5467 = vpop.f32.mrb[0].mxu0
      %v5468 = vadd.f32 0.0, %v5467
      %v5469 = vpop.f32.mrb[0].mxu0
      %5470 = vmatprep.mubr.f32.mxu0 0.0
      %5471 = vmatmul.mubr.f32.gmra.mrb[0].mxu0 %v5389
      %v5472 = vpop.f32.mrb[0].mxu0
      %v5473 = vadd.f32 0.0, %v5472
      %v5474 = vpop.f32.mrb[0].mxu0
      %5475 = vdwg.mxu0
      %5480 = vrot.lane.b32.xlu0 %v5458, 96
      %v5481 = vpop.permute.xlu0 %5480
      %5482 = vrot.lane.b32.xlu0 %v5463, 96
      %v5483 = vpop.permute.xlu0 %5482
      %5484 = vrot.lane.b32.xlu0 %v5468, 96
      %v5485 = vpop.permute.xlu0 %5484
      %5486 = vrot.lane.b32.xlu0 %v5473, 96
      %v5487 = vpop.permute.xlu0 %5486
      %v5492 = vadd.f32 %v5096, %v5481
      %v5493 = vadd.f32 %v5097, %v5483
      %v5494 = vadd.f32 %v5098, %v5485
      %v5495 = vadd.f32 %v5099, %v5487
      %5496 = vrot.lane.b32.xlu0 %v4293, 104
      %v5497 = vpop.permute.xlu0 %5496
      %5498 = vrot.lane.b32.xlu0 %v4298, 104
      %v5499 = vpop.permute.xlu0 %5498
      %5500 = vrot.lane.b32.xlu0 %v4303, 104
      %v5501 = vpop.permute.xlu0 %5500
      %5502 = vrot.lane.b32.xlu0 %v4308, 104
      %v5503 = vpop.permute.xlu0 %5502
      %5504 = vrot.lane.b32.xlu0 %v4293, 72
      %v5505 = vpop.permute.xlu0 %5504
      %5506 = vrot.lane.b32.xlu0 %v4298, 72
      %v5507 = vpop.permute.xlu0 %5506
      %5508 = vrot.lane.b32.xlu0 %v4303, 72
      %v5509 = vpop.permute.xlu0 %5508
      %5510 = vrot.lane.b32.xlu0 %v4308, 72
      %v5511 = vpop.permute.xlu0 %5510
      %v5512 = vsel %vm2148, %v5497, 0
      %v5514 = vsel %vm2148, %v5499, 0
      %v5516 = vsel %vm2148, %v5501, 0
      %v5518 = vsel %vm2148, %v5503, 0
      %v5520 = vsel %vm2148, %v5505, 0
      %v5522 = vsel %vm2148, %v5507, 0
      %v5524 = vsel %vm2148, %v5509, 0
      %v5526 = vsel %vm2148, %v5511, 0
      %5528 = vmatprep.subr.mxu0 0.0
      %5529 = vmatpush1.xpose.msra.mxu0 %v5520
      %5530 = vmatprep.subr.mxu0 0.0
      %5531 = vmatpush1.xpose.msra.mxu0 %v5522
      %5532 = vmatprep.subr.mxu0 0.0
      %5533 = vmatpush1.xpose.msra.mxu0 %v5524
      %5534 = vmatprep.subr.mxu0 0.0
      %5535 = vmatpush1.xpose.msra.mxu0 %v5526
      %5536 = vmatprep.subr.mxu0 0.0
      %5537 = vmatpush1.xpose.msra.mxu0 0.0
      %5538 = vmatprep.subr.mxu0 0.0
      %5539 = vmatpush1.xpose.msra.mxu0 0.0
      %5540 = vmatprep.subr.mxu0 0.0
      %5541 = vmatpush1.xpose.msra.mxu0 0.0
      %5542 = vmatprep.subr.mxu0 0.0
      %5543 = vmatpush1.xpose.msra.mxu0 0.0
      %5544 = vmatprep.subr.mxu0 0.0
      %5545 = vmatpush1.xpose.msra.mxu0 0.0
      %5546 = vmatprep.subr.mxu0 0.0
      %5547 = vmatpush1.xpose.msra.mxu0 0.0
      %5548 = vmatprep.subr.mxu0 0.0
      %5549 = vmatpush1.xpose.msra.mxu0 0.0
      %5550 = vmatprep.subr.mxu0 0.0
      %5551 = vmatpush1.xpose.msra.mxu0 0.0
      %5552 = vmatprep.subr.mxu0 0.0
      %5553 = vmatpush1.xpose.msra.mxu0 0.0
      %5554 = vmatprep.subr.mxu0 0.0
      %5555 = vmatpush1.xpose.msra.mxu0 0.0
      %5556 = vmatprep.subr.mxu0 0.0
      %5557 = vmatpush1.xpose.msra.mxu0 0.0
      %5558 = vmatprep.subr.mxu0 0.0
      %5559 = vmatpush1.xpose.msra.mxu0 0.0
      %5560 = vmatprep.subr.mxu0 0.0
      %5561 = vmatpush1.xpose.msra.mxu0 0.0
      %5562 = vmatprep.subr.mxu0 0.0
      %5563 = vmatpush1.xpose.msra.mxu0 0.0
      %5564 = vmatprep.subr.mxu0 0.0
      %5565 = vmatpush1.xpose.msra.mxu0 0.0
      %5566 = vmatprep.subr.mxu0 0.0
      %5567 = vmatpush1.xpose.msra.mxu0 0.0
      %5568 = vmatprep.subr.mxu0 0.0
      %5569 = vmatpush1.xpose.msra.mxu0 0.0
      %5570 = vmatprep.subr.mxu0 0.0
      %5571 = vmatpush1.xpose.msra.mxu0 0.0
      %5572 = vmatprep.subr.mxu0 0.0
      %5573 = vmatpush1.xpose.msra.mxu0 0.0
      %5574 = vmatprep.subr.mxu0 0.0
      %5575 = vmatpush1.xpose.msra.mxu0 0.0
      %5576 = vmatprep.subr.mxu0 0.0
      %5577 = vmatpush1.xpose.msra.mxu0 0.0
      %5578 = vmatprep.subr.mxu0 0.0
      %5579 = vmatpush1.xpose.msra.mxu0 0.0
      %5580 = vmatprep.subr.mxu0 0.0
      %5581 = vmatpush1.xpose.msra.mxu0 0.0
      %5582 = vmatprep.subr.mxu0 0.0
      %5583 = vmatpush1.xpose.msra.mxu0 0.0
      %5584 = vmatprep.subr.mxu0 0.0
      %5585 = vmatpush1.xpose.msra.mxu0 0.0
      %5586 = vmatprep.subr.mxu0 0.0
      %5587 = vmatpush1.xpose.msra.mxu0 0.0
      %5588 = vmatprep.subr.mxu0 0.0
      %5589 = vmatpush1.xpose.msra.mxu0 0.0
      %5590 = vmatprep.subr.mxu0 0.0
      %5591 = vmatpush1.xpose.msra.mxu0 0.0
      %5592 = vmatprep.mubr.f32.mxu0 0.0
      %5593 = vmatmul.mubr.f32.gmra.mrb[0].mxu0 %v5512
      %v5594 = vpop.f32.mrb[0].mxu0
      %v5595 = vadd.f32 0.0, %v5594
      %v5596 = vpop.f32.mrb[0].mxu0
      %5597 = vmatprep.mubr.f32.mxu0 0.0
      %5598 = vmatmul.mubr.f32.gmra.mrb[0].mxu0 %v5514
      %v5599 = vpop.f32.mrb[0].mxu0
      %v5600 = vadd.f32 0.0, %v5599
      %v5601 = vpop.f32.mrb[0].mxu0
      %5602 = vmatprep.mubr.f32.mxu0 0.0
      %5603 = vmatmul.mubr.f32.gmra.mrb[0].mxu0 %v5516
      %v5604 = vpop.f32.mrb[0].mxu0
      %v5605 = vadd.f32 0.0, %v5604
      %v5606 = vpop.f32.mrb[0].mxu0
      %5607 = vmatprep.mubr.f32.mxu0 0.0
      %5608 = vmatmul.mubr.f32.gmra.mrb[0].mxu0 %v5518
      %v5609 = vpop.f32.mrb[0].mxu0
      %v5610 = vadd.f32 0.0, %v5609
      %v5611 = vpop.f32.mrb[0].mxu0
      %5612 = vdwg.mxu0
      %v5613 = vmul.f32 %v5595, 0.35355338
      %v5614 = vmul.f32 %v5600, 0.35355338
      %v5615 = vmul.f32 %v5605, 0.35355338
      %v5616 = vmul.f32 %v5610, 0.35355338
      %v5617 = vsel %vm2254, %v5613, -inf
      %5618 = vmax.xlane.f32.xlu0 %v5617
      %v5619 = vpop.xlane.xlu0 %5618
      %v5620 = vsel %vm2254, %v5614, -inf
      %5621 = vmax.xlane.f32.xlu0 %v5620
      %v5622 = vpop.xlane.xlu0 %5621
      %v5623 = vsel %vm2254, %v5615, -inf
      %5624 = vmax.xlane.f32.xlu0 %v5623
      %v5625 = vpop.xlane.xlu0 %5624
      %v5626 = vsel %vm2264, %v5616, -inf
      %5627 = vmax.xlane.f32.xlu0 %v5626
      %v5628 = vpop.xlane.xlu0 %5627
      %v5629 = vsub.f32 %v5613, %v5619
      %v5630 = vsub.f32 %v5614, %v5622
      %v5631 = vsub.f32 %v5615, %v5625
      %v5632 = vsub.f32 %v5616, %v5628
      %v5633 = vmul.f32 %v5629, 1.442695
      %v5634 = vpow.pop %v5633
      %v5635 = vmul.f32 %v5630, 1.442695
      %v5636 = vpow.pop %v5635
      %v5637 = vmul.f32 %v5631, 1.442695
      %v5638 = vpow.pop %v5637
      %v5639 = vmul.f32 %v5632, 1.442695
      %v5640 = vpow.pop %v5639
      %v5641 = vsel %vm2254, %v5634, 0.0
      %5642 = vadd.xlane.f32.xlu0 %v5641
      %v5643 = vpop.xlane.xlu0 %5642
      %v5644 = vsel %vm2254, %v5636, 0.0
      %5645 = vadd.xlane.f32.xlu0 %v5644
      %v5646 = vpop.xlane.xlu0 %5645
      %v5647 = vsel %vm2254, %v5638, 0.0
      %5648 = vadd.xlane.f32.xlu0 %v5647
      %v5649 = vpop.xlane.xlu0 %5648
      %v5650 = vsel %vm2264, %v5640, 0.0
      %5651 = vadd.xlane.f32.xlu0 %v5650
      %v5652 = vpop.xlane.xlu0 %5651
      %v5653 = vrcp.pop %v5643
      %v5654 = vrcp.pop %v5646
      %v5655 = vrcp.pop %v5649
      %v5656 = vrcp.pop %v5652
      %v5657 = vmul.f32 %v5634, %v5653
      %v5658 = vmul.f32 %v5636, %v5654
      %v5659 = vmul.f32 %v5638, %v5655
      %v5660 = vmul.f32 %v5640, %v5656
      %5661 = vrot.lane.b32.xlu0 %v4293, 40
      %v5662 = vpop.permute.xlu0 %5661
      %5663 = vrot.lane.b32.xlu0 %v4298, 40
      %v5664 = vpop.permute.xlu0 %5663
      %5665 = vrot.lane.b32.xlu0 %v4303, 40
      %v5666 = vpop.permute.xlu0 %5665
      %5667 = vrot.lane.b32.xlu0 %v4308, 40
      %v5668 = vpop.permute.xlu0 %5667
      %v5673 = vsel %vm2254, %v5657, 0
      %v5676 = vsel %vm2254, %v5658, 0
      %v5679 = vsel %vm2254, %v5659, 0
      %v5682 = vsel %vm2254, %v5660, 0
      %v5684 = vsel %vm2323, %v5668, 0
      %5686 = vmatprep.subr.mxu0 0.0
      %5687 = vmatpush1.msra.mxu0 %v5662
      %5688 = vmatprep.subr.mxu0 0.0
      %5689 = vmatpush1.msra.mxu0 %v5664
      %5690 = vmatprep.subr.mxu0 0.0
      %5691 = vmatpush1.msra.mxu0 %v5666
      %5692 = vmatprep.subr.mxu0 0.0
      %5693 = vmatpush1.msra.mxu0 %v5684
      %5694 = vmatprep.subr.mxu0 0.0
      %5695 = vmatpush1.msra.mxu0 0.0
      %5696 = vmatprep.subr.mxu0 0.0
      %5697 = vmatpush1.msra.mxu0 0.0
      %5698 = vmatprep.subr.mxu0 0.0
      %5699 = vmatpush1.msra.mxu0 0.0
      %5700 = vmatprep.subr.mxu0 0.0
      %5701 = vmatpush1.msra.mxu0 0.0
      %5702 = vmatprep.subr.mxu0 0.0
      %5703 = vmatpush1.msra.mxu0 0.0
      %5704 = vmatprep.subr.mxu0 0.0
      %5705 = vmatpush1.msra.mxu0 0.0
      %5706 = vmatprep.subr.mxu0 0.0
      %5707 = vmatpush1.msra.mxu0 0.0
      %5708 = vmatprep.subr.mxu0 0.0
      %5709 = vmatpush1.msra.mxu0 0.0
      %5710 = vmatprep.subr.mxu0 0.0
      %5711 = vmatpush1.msra.mxu0 0.0
      %5712 = vmatprep.subr.mxu0 0.0
      %5713 = vmatpush1.msra.mxu0 0.0
      %5714 = vmatprep.subr.mxu0 0.0
      %5715 = vmatpush1.msra.mxu0 0.0
      %5716 = vmatprep.subr.mxu0 0.0
      %5717 = vmatpush1.msra.mxu0 0.0
      %5718 = vmatprep.subr.mxu0 0.0
      %5719 = vmatpush1.msra.mxu0 0.0
      %5720 = vmatprep.subr.mxu0 0.0
      %5721 = vmatpush1.msra.mxu0 0.0
      %5722 = vmatprep.subr.mxu0 0.0
      %5723 = vmatpush1.msra.mxu0 0.0
      %5724 = vmatprep.subr.mxu0 0.0
      %5725 = vmatpush1.msra.mxu0 0.0
      %5726 = vmatprep.subr.mxu0 0.0
      %5727 = vmatpush1.msra.mxu0 0.0
      %5728 = vmatprep.subr.mxu0 0.0
      %5729 = vmatpush1.msra.mxu0 0.0
      %5730 = vmatprep.subr.mxu0 0.0
      %5731 = vmatpush1.msra.mxu0 0.0
      %5732 = vmatprep.subr.mxu0 0.0
      %5733 = vmatpush1.msra.mxu0 0.0
      %5734 = vmatprep.subr.mxu0 0.0
      %5735 = vmatpush1.msra.mxu0 0.0
      %5736 = vmatprep.subr.mxu0 0.0
      %5737 = vmatpush1.msra.mxu0 0.0
      %5738 = vmatprep.subr.mxu0 0.0
      %5739 = vmatpush1.msra.mxu0 0.0
      %5740 = vmatprep.subr.mxu0 0.0
      %5741 = vmatpush1.msra.mxu0 0.0
      %5742 = vmatprep.subr.mxu0 0.0
      %5743 = vmatpush1.msra.mxu0 0.0
      %5744 = vmatprep.subr.mxu0 0.0
      %5745 = vmatpush1.msra.mxu0 0.0
      %5746 = vmatprep.subr.mxu0 0.0
      %5747 = vmatpush1.msra.mxu0 0.0
      %5748 = vmatprep.subr.mxu0 0.0
      %5749 = vmatpush1.msra.mxu0 0.0
      %5750 = vmatprep.mubr.f32.mxu0 0.0
      %5751 = vmatmul.mubr.f32.gmra.mrb[0].mxu0 %v5673
      %v5752 = vpop.f32.mrb[0].mxu0
      %v5753 = vadd.f32 0.0, %v5752
      %v5754 = vpop.f32.mrb[0].mxu0
      %5755 = vmatprep.mubr.f32.mxu0 0.0
      %5756 = vmatmul.mubr.f32.gmra.mrb[0].mxu0 %v5676
      %v5757 = vpop.f32.mrb[0].mxu0
      %v5758 = vadd.f32 0.0, %v5757
      %v5759 = vpop.f32.mrb[0].mxu0
      %5760 = vmatprep.mubr.f32.mxu0 0.0
      %5761 = vmatmul.mubr.f32.gmra.mrb[0].mxu0 %v5679
      %v5762 = vpop.f32.mrb[0].mxu0
      %v5763 = vadd.f32 0.0, %v5762
      %v5764 = vpop.f32.mrb[0].mxu0
      %5765 = vmatprep.mubr.f32.mxu0 0.0
      %5766 = vmatmul.mubr.f32.gmra.mrb[0].mxu0 %v5682
      %v5767 = vpop.f32.mrb[0].mxu0
      %v5768 = vadd.f32 0.0, %v5767
      %v5769 = vpop.f32.mrb[0].mxu0
      %5770 = vdwg.mxu0
      %5772 = vrot.lane.b32.xlu0 %v4201, 32
      %v5773 = vpop.permute.xlu0 %5772
      %v5776 = vsel %vm2148, %v5753, 0
      %v5779 = vsel %vm2148, %v5758, 0
      %v5782 = vsel %vm2148, %v5763, 0
      %v5785 = vsel %vm2148, %v5768, 0
      %5787 = vmatprep.subr.mxu0 0.0
      %5788 = vmatpush1.msra.mxu0 %v5773
      %5789 = vmatprep.subr.mxu0 0.0
      %5790 = vmatpush1.msra.mxu0 0.0
      %5791 = vmatprep.subr.mxu0 0.0
      %5792 = vmatpush1.msra.mxu0 0.0
      %5793 = vmatprep.subr.mxu0 0.0
      %5794 = vmatpush1.msra.mxu0 0.0
      %5795 = vmatprep.subr.mxu0 0.0
      %5796 = vmatpush1.msra.mxu0 0.0
      %5797 = vmatprep.subr.mxu0 0.0
      %5798 = vmatpush1.msra.mxu0 0.0
      %5799 = vmatprep.subr.mxu0 0.0
      %5800 = vmatpush1.msra.mxu0 0.0
      %5801 = vmatprep.subr.mxu0 0.0
      %5802 = vmatpush1.msra.mxu0 0.0
      %5803 = vmatprep.subr.mxu0 0.0
      %5804 = vmatpush1.msra.mxu0 0.0
      %5805 = vmatprep.subr.mxu0 0.0
      %5806 = vmatpush1.msra.mxu0 0.0
      %5807 = vmatprep.subr.mxu0 0.0
      %5808 = vmatpush1.msra.mxu0 0.0
      %5809 = vmatprep.subr.mxu0 0.0
      %5810 = vmatpush1.msra.mxu0 0.0
      %5811 = vmatprep.subr.mxu0 0.0
      %5812 = vmatpush1.msra.mxu0 0.0
      %5813 = vmatprep.subr.mxu0 0.0
      %5814 = vmatpush1.msra.mxu0 0.0
      %5815 = vmatprep.subr.mxu0 0.0
      %5816 = vmatpush1.msra.mxu0 0.0
      %5817 = vmatprep.subr.mxu0 0.0
      %5818 = vmatpush1.msra.mxu0 0.0
      %5819 = vmatprep.subr.mxu0 0.0
      %5820 = vmatpush1.msra.mxu0 0.0
      %5821 = vmatprep.subr.mxu0 0.0
      %5822 = vmatpush1.msra.mxu0 0.0
      %5823 = vmatprep.subr.mxu0 0.0
      %5824 = vmatpush1.msra.mxu0 0.0
      %5825 = vmatprep.subr.mxu0 0.0
      %5826 = vmatpush1.msra.mxu0 0.0
      %5827 = vmatprep.subr.mxu0 0.0
      %5828 = vmatpush1.msra.mxu0 0.0
      %5829 = vmatprep.subr.mxu0 0.0
      %5830 = vmatpush1.msra.mxu0 0.0
      %5831 = vmatprep.subr.mxu0 0.0
      %5832 = vmatpush1.msra.mxu0 0.0
      %5833 = vmatprep.subr.mxu0 0.0
      %5834 = vmatpush1.msra.mxu0 0.0
      %5835 = vmatprep.subr.mxu0 0.0
      %5836 = vmatpush1.msra.mxu0 0.0
      %5837 = vmatprep.subr.mxu0 0.0
      %5838 = vmatpush1.msra.mxu0 0.0
      %5839 = vmatprep.subr.mxu0 0.0
      %5840 = vmatpush1.msra.mxu0 0.0
      %5841 = vmatprep.subr.mxu0 0.0
      %5842 = vmatpush1.msra.mxu0 0.0
      %5843 = vmatprep.subr.mxu0 0.0
      %5844 = vmatpush1.msra.mxu0 0.0
      %5845 = vmatprep.subr.mxu0 0.0
      %5846 = vmatpush1.msra.mxu0 0.0
      %5847 = vmatprep.subr.mxu0 0.0
      %5848 = vmatpush1.msra.mxu0 0.0
      %5849 = vmatprep.subr.mxu0 0.0
      %5850 = vmatpush1.msra.mxu0 0.0
      %5851 = vmatprep.mubr.f32.mxu0 0.0
      %5852 = vmatmul.mubr.f32.gmra.mrb[0].mxu0 %v5776
      %v5853 = vpop.f32.mrb[0].mxu0
      %v5854 = vadd.f32 0.0, %v5853
      %v5855 = vpop.f32.mrb[0].mxu0
      %5856 = vmatprep.mubr.f32.mxu0 0.0
      %5857 = vmatmul.mubr.f32.gmra.mrb[0].mxu0 %v5779
      %v5858 = vpop.f32.mrb[0].mxu0
      %v5859 = vadd.f32 0.0, %v5858
      %v5860 = vpop.f32.mrb[0].mxu0
      %5861 = vmatprep.mubr.f32.mxu0 0.0
      %5862 = vmatmul.mubr.f32.gmra.mrb[0].mxu0 %v5782
      %v5863 = vpop.f32.mrb[0].mxu0
      %v5864 = vadd.f32 0.0, %v5863
      %v5865 = vpop.f32.mrb[0].mxu0
      %5866 = vmatprep.mubr.f32.mxu0 0.0
      %5867 = vmatmul.mubr.f32.gmra.mrb[0].mxu0 %v5785
      %v5868 = vpop.f32.mrb[0].mxu0
      %v5869 = vadd.f32 0.0, %v5868
      %v5870 = vpop.f32.mrb[0].mxu0
      %5871 = vdwg.mxu0
      %5876 = vrot.lane.b32.xlu0 %v5854, 96
      %v5877 = vpop.permute.xlu0 %5876
      %5878 = vrot.lane.b32.xlu0 %v5859, 96
      %v5879 = vpop.permute.xlu0 %5878
      %5880 = vrot.lane.b32.xlu0 %v5864, 96
      %v5881 = vpop.permute.xlu0 %5880
      %5882 = vrot.lane.b32.xlu0 %v5869, 96
      %v5883 = vpop.permute.xlu0 %5882
      %v5888 = vadd.f32 %v5492, %v5877
      %v5889 = vadd.f32 %v5493, %v5879
      %v5890 = vadd.f32 %v5494, %v5881
      %v5891 = vadd.f32 %v5495, %v5883
      %5896 = vrot.lane.b32.xlu0 %v5888, 64
      %v5897 = vpop.permute.xlu0 %5896
      %5898 = vrot.lane.b32.xlu0 %v5889, 64
      %v5899 = vpop.permute.xlu0 %5898
      %5900 = vrot.lane.b32.xlu0 %v5890, 64
      %v5901 = vpop.permute.xlu0 %5900
      %5902 = vrot.lane.b32.xlu0 %v5891, 64
      %v5903 = vpop.permute.xlu0 %5902
      %v5908 = vadd.f32 %v2022, %v5897
      %v5909 = vadd.f32 %v2023, %v5899
      %v5910 = vadd.f32 %v2024, %v5901
      %v5911 = vadd.f32 %v2025, %v5903
      %5916 = vrot.lane.b32.xlu0 %v5908, 96
      %v5917 = vpop.permute.xlu0 %5916
      %5918 = vrot.lane.b32.xlu0 %v5909, 96
      %v5919 = vpop.permute.xlu0 %5918
      %5920 = vrot.lane.b32.xlu0 %v5910, 96
      %v5921 = vpop.permute.xlu0 %5920
      %5922 = vrot.lane.b32.xlu0 %v5911, 96
      %v5923 = vpop.permute.xlu0 %5922
      %v5928 = vsel %vm2037, %v5917, 0.0
      %5929 = vadd.xlane.f32.xlu0 %v5928
      %v5930 = vpop.xlane.xlu0 %5929
      %v5931 = vsel %vm2037, %v5919, 0.0
      %5932 = vadd.xlane.f32.xlu0 %v5931
      %v5933 = vpop.xlane.xlu0 %5932
      %v5934 = vsel %vm2037, %v5921, 0.0
      %5935 = vadd.xlane.f32.xlu0 %v5934
      %v5936 = vpop.xlane.xlu0 %5935
      %v5937 = vsel %vm3749, %v5923, 0.0
      %5938 = vadd.xlane.f32.xlu0 %v5937
      %v5939 = vpop.xlane.xlu0 %5938
      %v5940 = vmul.f32 %v5930, %v3753
      %v5941 = vmul.f32 %v5933, %v3753
      %v5942 = vmul.f32 %v5936, %v3753
      %v5943 = vmul.f32 %v5939, %v3753
      %v5944 = vsub.f32 %v5908, %v5940
      %v5945 = vsub.f32 %v5909, %v5941
      %v5946 = vsub.f32 %v5910, %v5942
      %v5947 = vsub.f32 %v5911, %v5943
      %v5948 = vmul.f32 %v5944, %v5944
      %v5949 = vmul.f32 %v5945, %v5945
      %v5950 = vmul.f32 %v5946, %v5946
      %v5951 = vmul.f32 %v5947, %v5947
      %5956 = vrot.lane.b32.xlu0 %v5948, 96
      %v5957 = vpop.permute.xlu0 %5956
      %5958 = vrot.lane.b32.xlu0 %v5949, 96
      %v5959 = vpop.permute.xlu0 %5958
      %5960 = vrot.lane.b32.xlu0 %v5950, 96
      %v5961 = vpop.permute.xlu0 %5960
      %5962 = vrot.lane.b32.xlu0 %v5951, 96
      %v5963 = vpop.permute.xlu0 %5962
      %v5968 = vsel %vm2037, %v5957, 0.0
      %5969 = vadd.xlane.f32.xlu0 %v5968
      %v5970 = vpop.xlane.xlu0 %5969
      %v5971 = vsel %vm2037, %v5959, 0.0
      %5972 = vadd.xlane.f32.xlu0 %v5971
      %v5973 = vpop.xlane.xlu0 %5972
      %v5974 = vsel %vm2037, %v5961, 0.0
      %5975 = vadd.xlane.f32.xlu0 %v5974
      %v5976 = vpop.xlane.xlu0 %5975
      %v5977 = vsel %vm3749, %v5963, 0.0
      %5978 = vadd.xlane.f32.xlu0 %v5977
      %v5979 = vpop.xlane.xlu0 %5978
      %v5980 = vmul.f32 %v5970, %v3753
      %v5981 = vmul.f32 %v5973, %v3753
      %v5982 = vmul.f32 %v5976, %v3753
      %v5983 = vmul.f32 %v5979, %v3753
      %v5984 = vadd.f32 %v5980, 1e-05
      %v5985 = vadd.f32 %v5981, 1e-05
      %v5986 = vadd.f32 %v5982, 1e-05
      %v5987 = vadd.f32 %v5983, 1e-05
      %v5988 = vrsqrt.pop %v5984
      %v5989 = vrsqrt.pop %v5985
      %v5990 = vrsqrt.pop %v5986
      %v5991 = vrsqrt.pop %v5987
      %v5992 = vmul.f32 %v5944, %v5988
      %v5993 = vmul.f32 %v5945, %v5989
      %v5994 = vmul.f32 %v5946, %v5990
      %v5995 = vmul.f32 %v5947, %v5991
      %s5996 = scalar_lea.vmem %s16, 4
      %v5997 = vld [vmem:[%s5996] sm:$0x1]
      %v5999 = vlaneseq
      %v6000 = vshrl.u32 %v5999, 7
      %v6001 = vsub.s32 0, %v6000
      %v6002 = vrot.slane %v5997, %v6001
      %6003 = vrot.lane.b32.xlu0 %v6002, 32
      %v6004 = vpop.permute.xlu0 %6003
      %v6006 = vmul.f32 %v5992, %v6004
      %v6007 = vmul.f32 %v5993, %v6004
      %v6008 = vmul.f32 %v5994, %v6004
      %v6009 = vmul.f32 %v5995, %v6004
      %s6010 = scalar_lea.vmem %s16, 5
      %v6011 = vld [vmem:[%s6010] sm:$0x1]
      %v6013 = vlaneseq
      %v6014 = vshrl.u32 %v6013, 7
      %v6015 = vsub.s32 0, %v6014
      %v6016 = vrot.slane %v6011, %v6015
      %6017 = vrot.lane.b32.xlu0 %v6016, 32
      %v6018 = vpop.permute.xlu0 %6017
      %v6020 = vadd.f32 %v6006, %v6018
      %v6021 = vadd.f32 %v6007, %v6018
      %v6022 = vadd.f32 %v6008, %v6018
      %v6023 = vadd.f32 %v6009, %v6018
      %s6024 = scalar_lea.vmem %s10, 64
      %v6025 = vld [vmem:[%s6024] sm:$0xff]
      %v6026 = vld [vmem:[%s6024 + $0x8] sm:$0xff]
      %v6027 = vld [vmem:[%s6024 + $0x10] sm:$0xff]
      %v6028 = vld [vmem:[%s6024 + $0x18] sm:$0xff]
      %s6029 = scalar_lea.vmem %s11, 2
      %v6030 = vld [vmem:[%s6029] sm:$0x1]
      %v6032 = vlaneseq
      %v6033 = vshrl.u32 %v6032, 7
      %v6034 = vsub.s32 0, %v6033
      %v6035 = vrot.slane %v6030, %v6034
      %6041 = vrot.lane.b32.xlu0 %v6020, 96
      %v6042 = vpop.permute.xlu0 %6041
      %6043 = vrot.lane.b32.xlu0 %v6021, 96
      %v6044 = vpop.permute.xlu0 %6043
      %6045 = vrot.lane.b32.xlu0 %v6022, 96
      %v6046 = vpop.permute.xlu0 %6045
      %6047 = vrot.lane.b32.xlu0 %v6023, 96
      %v6048 = vpop.permute.xlu0 %6047
      %v6049 = vsel %vm2037, %v6042, 0
      %v6051 = vsel %vm2037, %v6044, 0
      %v6053 = vsel %vm2037, %v6046, 0
      %v6055 = vsel %vm2037, %v6048, 0
      %6057 = vmatprep.subr.mxu0 0.0
      %6058 = vmatpush1.msra.mxu0 %v6025
      %6059 = vmatprep.subr.mxu0 0.0
      %6060 = vmatpush1.msra.mxu0 %v6026
      %6061 = vmatprep.subr.mxu0 0.0
      %6062 = vmatpush1.msra.mxu0 %v6027
      %6063 = vmatprep.subr.mxu0 0.0
      %6064 = vmatpush1.msra.mxu0 %v6028
      %6065 = vmatprep.subr.mxu0 0.0
      %6066 = vmatpush1.msra.mxu0 0.0
      %6067 = vmatprep.subr.mxu0 0.0
      %6068 = vmatpush1.msra.mxu0 0.0
      %6069 = vmatprep.subr.mxu0 0.0
      %6070 = vmatpush1.msra.mxu0 0.0
      %6071 = vmatprep.subr.mxu0 0.0
      %6072 = vmatpush1.msra.mxu0 0.0
      %6073 = vmatprep.subr.mxu0 0.0
      %6074 = vmatpush1.msra.mxu0 0.0
      %6075 = vmatprep.subr.mxu0 0.0
      %6076 = vmatpush1.msra.mxu0 0.0
      %6077 = vmatprep.subr.mxu0 0.0
      %6078 = vmatpush1.msra.mxu0 0.0
      %6079 = vmatprep.subr.mxu0 0.0
      %6080 = vmatpush1.msra.mxu0 0.0
      %6081 = vmatprep.subr.mxu0 0.0
      %6082 = vmatpush1.msra.mxu0 0.0
      %6083 = vmatprep.subr.mxu0 0.0
      %6084 = vmatpush1.msra.mxu0 0.0
      %6085 = vmatprep.subr.mxu0 0.0
      %6086 = vmatpush1.msra.mxu0 0.0
      %6087 = vmatprep.subr.mxu0 0.0
      %6088 = vmatpush1.msra.mxu0 0.0
      %6089 = vmatprep.subr.mxu0 0.0
      %6090 = vmatpush1.msra.mxu0 0.0
      %6091 = vmatprep.subr.mxu0 0.0
      %6092 = vmatpush1.msra.mxu0 0.0
      %6093 = vmatprep.subr.mxu0 0.0
      %6094 = vmatpush1.msra.mxu0 0.0
      %6095 = vmatprep.subr.mxu0 0.0
      %6096 = vmatpush1.msra.mxu0 0.0
      %6097 = vmatprep.subr.mxu0 0.0
      %6098 = vmatpush1.msra.mxu0 0.0
      %6099 = vmatprep.subr.mxu0 0.0
      %6100 = vmatpush1.msra.mxu0 0.0
      %6101 = vmatprep.subr.mxu0 0.0
      %6102 = vmatpush1.msra.mxu0 0.0
      %6103 = vmatprep.subr.mxu0 0.0
      %6104 = vmatpush1.msra.mxu0 0.0
      %6105 = vmatprep.subr.mxu0 0.0
      %6106 = vmatpush1.msra.mxu0 0.0
      %6107 = vmatprep.subr.mxu0 0.0
      %6108 = vmatpush1.msra.mxu0 0.0
      %6109 = vmatprep.subr.mxu0 0.0
      %6110 = vmatpush1.msra.mxu0 0.0
      %6111 = vmatprep.subr.mxu0 0.0
      %6112 = vmatpush1.msra.mxu0 0.0
      %6113 = vmatprep.subr.mxu0 0.0
      %6114 = vmatpush1.msra.mxu0 0.0
      %6115 = vmatprep.subr.mxu0 0.0
      %6116 = vmatpush1.msra.mxu0 0.0
      %6117 = vmatprep.subr.mxu0 0.0
      %6118 = vmatpush1.msra.mxu0 0.0
      %6119 = vmatprep.subr.mxu0 0.0
      %6120 = vmatpush1.msra.mxu0 0.0
      %6121 = vmatprep.mubr.f32.mxu0 0.0
      %6122 = vmatmul.mubr.f32.gmra.mrb[0].mxu0 %v6049
      %v6123 = vpop.f32.mrb[0].mxu0
      %v6124 = vadd.f32 %v6035, %v6123
      %v6125 = vpop.f32.mrb[0].mxu0
      %6126 = vmatprep.mubr.f32.mxu0 0.0
      %6127 = vmatmul.mubr.f32.gmra.mrb[0].mxu0 %v6051
      %v6128 = vpop.f32.mrb[0].mxu0
      %v6129 = vadd.f32 %v6035, %v6128
      %v6130 = vpop.f32.mrb[0].mxu0
      %6131 = vmatprep.mubr.f32.mxu0 0.0
      %6132 = vmatmul.mubr.f32.gmra.mrb[0].mxu0 %v6053
      %v6133 = vpop.f32.mrb[0].mxu0
      %v6134 = vadd.f32 %v6035, %v6133
      %v6135 = vpop.f32.mrb[0].mxu0
      %6136 = vmatprep.mubr.f32.mxu0 0.0
      %6137 = vmatmul.mubr.f32.gmra.mrb[0].mxu0 %v6055
      %v6138 = vpop.f32.mrb[0].mxu0
      %v6139 = vadd.f32 %v6035, %v6138
      %v6140 = vpop.f32.mrb[0].mxu0
      %6141 = vdwg.mxu0
      %6146 = vrot.lane.b32.xlu0 %v6025, 96
      %v6147 = vpop.permute.xlu0 %6146
      %6148 = vrot.lane.b32.xlu0 %v6026, 96
      %v6149 = vpop.permute.xlu0 %6148
      %6150 = vrot.lane.b32.xlu0 %v6027, 96
      %v6151 = vpop.permute.xlu0 %6150
      %6152 = vrot.lane.b32.xlu0 %v6028, 96
      %v6153 = vpop.permute.xlu0 %6152
      %6158 = vrot.lane.b32.xlu0 %v6035, 96
      %v6159 = vpop.permute.xlu0 %6158
      %v6162 = vsel %vm2037, %v4193, 0
      %v6165 = vsel %vm2037, %v4194, 0
      %v6168 = vsel %vm2037, %v4195, 0
      %v6171 = vsel %vm2037, %v4196, 0
      %6173 = vmatprep.subr.mxu0 0.0
      %6174 = vmatpush1.msra.mxu0 %v6147
      %6175 = vmatprep.subr.mxu0 0.0
      %6176 = vmatpush1.msra.mxu0 %v6149
      %6177 = vmatprep.subr.mxu0 0.0
      %6178 = vmatpush1.msra.mxu0 %v6151
      %6179 = vmatprep.subr.mxu0 0.0
      %6180 = vmatpush1.msra.mxu0 %v6153
      %6181 = vmatprep.subr.mxu0 0.0
      %6182 = vmatpush1.msra.mxu0 0.0
      %6183 = vmatprep.subr.mxu0 0.0
      %6184 = vmatpush1.msra.mxu0 0.0
      %6185 = vmatprep.subr.mxu0 0.0
      %6186 = vmatpush1.msra.mxu0 0.0
      %6187 = vmatprep.subr.mxu0 0.0
      %6188 = vmatpush1.msra.mxu0 0.0
      %6189 = vmatprep.subr.mxu0 0.0
      %6190 = vmatpush1.msra.mxu0 0.0
      %6191 = vmatprep.subr.mxu0 0.0
      %6192 = vmatpush1.msra.mxu0 0.0
      %6193 = vmatprep.subr.mxu0 0.0
      %6194 = vmatpush1.msra.mxu0 0.0
      %6195 = vmatprep.subr.mxu0 0.0
      %6196 = vmatpush1.msra.mxu0 0.0
      %6197 = vmatprep.subr.mxu0 0.0
      %6198 = vmatpush1.msra.mxu0 0.0
      %6199 = vmatprep.subr.mxu0 0.0
      %6200 = vmatpush1.msra.mxu0 0.0
      %6201 = vmatprep.subr.mxu0 0.0
      %6202 = vmatpush1.msra.mxu0 0.0
      %6203 = vmatprep.subr.mxu0 0.0
      %6204 = vmatpush1.msra.mxu0 0.0
      %6205 = vmatprep.subr.mxu0 0.0
      %6206 = vmatpush1.msra.mxu0 0.0
      %6207 = vmatprep.subr.mxu0 0.0
      %6208 = vmatpush1.msra.mxu0 0.0
      %6209 = vmatprep.subr.mxu0 0.0
      %6210 = vmatpush1.msra.mxu0 0.0
      %6211 = vmatprep.subr.mxu0 0.0
      %6212 = vmatpush1.msra.mxu0 0.0
      %6213 = vmatprep.subr.mxu0 0.0
      %6214 = vmatpush1.msra.mxu0 0.0
      %6215 = vmatprep.subr.mxu0 0.0
      %6216 = vmatpush1.msra.mxu0 0.0
      %6217 = vmatprep.subr.mxu0 0.0
      %6218 = vmatpush1.msra.mxu0 0.0
      %6219 = vmatprep.subr.mxu0 0.0
      %6220 = vmatpush1.msra.mxu0 0.0
      %6221 = vmatprep.subr.mxu0 0.0
      %6222 = vmatpush1.msra.mxu0 0.0
      %6223 = vmatprep.subr.mxu0 0.0
      %6224 = vmatpush1.msra.mxu0 0.0
      %6225 = vmatprep.subr.mxu0 0.0
      %6226 = vmatpush1.msra.mxu0 0.0
      %6227 = vmatprep.subr.mxu0 0.0
      %6228 = vmatpush1.msra.mxu0 0.0
      %6229 = vmatprep.subr.mxu0 0.0
      %6230 = vmatpush1.msra.mxu0 0.0
      %6231 = vmatprep.subr.mxu0 0.0
      %6232 = vmatpush1.msra.mxu0 0.0
      %6233 = vmatprep.subr.mxu0 0.0
      %6234 = vmatpush1.msra.mxu0 0.0
      %6235 = vmatprep.subr.mxu0 0.0
      %6236 = vmatpush1.msra.mxu0 0.0
      %6237 = vmatprep.mubr.f32.mxu0 0.0
      %6238 = vmatmul.mubr.f32.gmra.mrb[0].mxu0 %v6162
      %v6239 = vpop.f32.mrb[0].mxu0
      %v6240 = vadd.f32 %v6159, %v6239
      %v6241 = vpop.f32.mrb[0].mxu0
      %6242 = vmatprep.mubr.f32.mxu0 0.0
      %6243 = vmatmul.mubr.f32.gmra.mrb[0].mxu0 %v6165
      %v6244 = vpop.f32.mrb[0].mxu0
      %v6245 = vadd.f32 %v6159, %v6244
      %v6246 = vpop.f32.mrb[0].mxu0
      %6247 = vmatprep.mubr.f32.mxu0 0.0
      %6248 = vmatmul.mubr.f32.gmra.mrb[0].mxu0 %v6168
      %v6249 = vpop.f32.mrb[0].mxu0
      %v6250 = vadd.f32 %v6159, %v6249
      %v6251 = vpop.f32.mrb[0].mxu0
      %6252 = vmatprep.mubr.f32.mxu0 0.0
      %6253 = vmatmul.mubr.f32.gmra.mrb[0].mxu0 %v6171
      %v6254 = vpop.f32.mrb[0].mxu0
      %v6255 = vadd.f32 %v6159, %v6254
      %v6256 = vpop.f32.mrb[0].mxu0
      %6257 = vdwg.mxu0
      %v6258 = vadd.f32 %v6035, 0.0
      %v6260 = vsel %vm2148, %v6124, 0
      %v6263 = vsel %vm2148, %v6129, 0
      %v6266 = vsel %vm2148, %v6134, 0
      %v6269 = vsel %vm2148, %v6139, 0
      %v6272 = vsel %vm2148, %v6240, 0
      %v6275 = vsel %vm2148, %v6245, 0
      %v6278 = vsel %vm2148, %v6250, 0
      %v6281 = vsel %vm2148, %v6255, 0
      %6283 = vmatprep.subr.mxu0 0.0
      %6284 = vmatpush1.xpose.msra.mxu0 %v6272
      %6285 = vmatprep.subr.mxu0 0.0
      %6286 = vmatpush1.xpose.msra.mxu0 %v6275
      %6287 = vmatprep.subr.mxu0 0.0
      %6288 = vmatpush1.xpose.msra.mxu0 %v6278
      %6289 = vmatprep.subr.mxu0 0.0
      %6290 = vmatpush1.xpose.msra.mxu0 %v6281
      %6291 = vmatprep.subr.mxu0 0.0
      %6292 = vmatpush1.xpose.msra.mxu0 0.0
      %6293 = vmatprep.subr.mxu0 0.0
      %6294 = vmatpush1.xpose.msra.mxu0 0.0
      %6295 = vmatprep.subr.mxu0 0.0
      %6296 = vmatpush1.xpose.msra.mxu0 0.0
      %6297 = vmatprep.subr.mxu0 0.0
      %6298 = vmatpush1.xpose.msra.mxu0 0.0
      %6299 = vmatprep.subr.mxu0 0.0
      %6300 = vmatpush1.xpose.msra.mxu0 0.0
      %6301 = vmatprep.subr.mxu0 0.0
      %6302 = vmatpush1.xpose.msra.mxu0 0.0
      %6303 = vmatprep.subr.mxu0 0.0
      %6304 = vmatpush1.xpose.msra.mxu0 0.0
      %6305 = vmatprep.subr.mxu0 0.0
      %6306 = vmatpush1.xpose.msra.mxu0 0.0
      %6307 = vmatprep.subr.mxu0 0.0
      %6308 = vmatpush1.xpose.msra.mxu0 0.0
      %6309 = vmatprep.subr.mxu0 0.0
      %6310 = vmatpush1.xpose.msra.mxu0 0.0
      %6311 = vmatprep.subr.mxu0 0.0
      %6312 = vmatpush1.xpose.msra.mxu0 0.0
      %6313 = vmatprep.subr.mxu0 0.0
      %6314 = vmatpush1.xpose.msra.mxu0 0.0
      %6315 = vmatprep.subr.mxu0 0.0
      %6316 = vmatpush1.xpose.msra.mxu0 0.0
      %6317 = vmatprep.subr.mxu0 0.0
      %6318 = vmatpush1.xpose.msra.mxu0 0.0
      %6319 = vmatprep.subr.mxu0 0.0
      %6320 = vmatpush1.xpose.msra.mxu0 0.0
      %6321 = vmatprep.subr.mxu0 0.0
      %6322 = vmatpush1.xpose.msra.mxu0 0.0
      %6323 = vmatprep.subr.mxu0 0.0
      %6324 = vmatpush1.xpose.msra.mxu0 0.0
      %6325 = vmatprep.subr.mxu0 0.0
      %6326 = vmatpush1.xpose.msra.mxu0 0.0
      %6327 = vmatprep.subr.mxu0 0.0
      %6328 = vmatpush1.xpose.msra.mxu0 0.0
      %6329 = vmatprep.subr.mxu0 0.0
      %6330 = vmatpush1.xpose.msra.mxu0 0.0
      %6331 = vmatprep.subr.mxu0 0.0
      %6332 = vmatpush1.xpose.msra.mxu0 0.0
      %6333 = vmatprep.subr.mxu0 0.0
      %6334 = vmatpush1.xpose.msra.mxu0 0.0
      %6335 = vmatprep.subr.mxu0 0.0
      %6336 = vmatpush1.xpose.msra.mxu0 0.0
      %6337 = vmatprep.subr.mxu0 0.0
      %6338 = vmatpush1.xpose.msra.mxu0 0.0
      %6339 = vmatprep.subr.mxu0 0.0
      %6340 = vmatpush1.xpose.msra.mxu0 0.0
      %6341 = vmatprep.subr.mxu0 0.0
      %6342 = vmatpush1.xpose.msra.mxu0 0.0
      %6343 = vmatprep.subr.mxu0 0.0
      %6344 = vmatpush1.xpose.msra.mxu0 0.0
      %6345 = vmatprep.subr.mxu0 0.0
      %6346 = vmatpush1.xpose.msra.mxu0 0.0
      %6347 = vmatprep.mubr.f32.mxu0 0.0
      %6348 = vmatmul.mubr.f32.gmra.mrb[0].mxu0 %v6260
      %v6349 = vpop.f32.mrb[0].mxu0
      %v6350 = vadd.f32 0.0, %v6349
      %v6351 = vpop.f32.mrb[0].mxu0
      %6352 = vmatprep.mubr.f32.mxu0 0.0
      %6353 = vmatmul.mubr.f32.gmra.mrb[0].mxu0 %v6263
      %v6354 = vpop.f32.mrb[0].mxu0
      %v6355 = vadd.f32 0.0, %v6354
      %v6356 = vpop.f32.mrb[0].mxu0
      %6357 = vmatprep.mubr.f32.mxu0 0.0
      %6358 = vmatmul.mubr.f32.gmra.mrb[0].mxu0 %v6266
      %v6359 = vpop.f32.mrb[0].mxu0
      %v6360 = vadd.f32 0.0, %v6359
      %v6361 = vpop.f32.mrb[0].mxu0
      %6362 = vmatprep.mubr.f32.mxu0 0.0
      %6363 = vmatmul.mubr.f32.gmra.mrb[0].mxu0 %v6269
      %v6364 = vpop.f32.mrb[0].mxu0
      %v6365 = vadd.f32 0.0, %v6364
      %v6366 = vpop.f32.mrb[0].mxu0
      %6367 = vdwg.mxu0
      %v6368 = vmul.f32 %v6350, 0.35355338
      %v6369 = vmul.f32 %v6355, 0.35355338
      %v6370 = vmul.f32 %v6360, 0.35355338
      %v6371 = vmul.f32 %v6365, 0.35355338
      %v6372 = vsel %vm2254, %v6368, -inf
      %6373 = vmax.xlane.f32.xlu0 %v6372
      %v6374 = vpop.xlane.xlu0 %6373
      %v6375 = vsel %vm2254, %v6369, -inf
      %6376 = vmax.xlane.f32.xlu0 %v6375
      %v6377 = vpop.xlane.xlu0 %6376
      %v6378 = vsel %vm2254, %v6370, -inf
      %6379 = vmax.xlane.f32.xlu0 %v6378
      %v6380 = vpop.xlane.xlu0 %6379
      %v6381 = vsel %vm2264, %v6371, -inf
      %6382 = vmax.xlane.f32.xlu0 %v6381
      %v6383 = vpop.xlane.xlu0 %6382
      %v6384 = vsub.f32 %v6368, %v6374
      %v6385 = vsub.f32 %v6369, %v6377
      %v6386 = vsub.f32 %v6370, %v6380
      %v6387 = vsub.f32 %v6371, %v6383
      %v6388 = vmul.f32 %v6384, 1.442695
      %v6389 = vpow.pop %v6388
      %v6390 = vmul.f32 %v6385, 1.442695
      %v6391 = vpow.pop %v6390
      %v6392 = vmul.f32 %v6386, 1.442695
      %v6393 = vpow.pop %v6392
      %v6394 = vmul.f32 %v6387, 1.442695
      %v6395 = vpow.pop %v6394
      %v6396 = vsel %vm2254, %v6389, 0.0
      %6397 = vadd.xlane.f32.xlu0 %v6396
      %v6398 = vpop.xlane.xlu0 %6397
      %v6399 = vsel %vm2254, %v6391, 0.0
      %6400 = vadd.xlane.f32.xlu0 %v6399
      %v6401 = vpop.xlane.xlu0 %6400
      %v6402 = vsel %vm2254, %v6393, 0.0
      %6403 = vadd.xlane.f32.xlu0 %v6402
      %v6404 = vpop.xlane.xlu0 %6403
      %v6405 = vsel %vm2264, %v6395, 0.0
      %6406 = vadd.xlane.f32.xlu0 %v6405
      %v6407 = vpop.xlane.xlu0 %6406
      %v6408 = vrcp.pop %v6398
      %v6409 = vrcp.pop %v6401
      %v6410 = vrcp.pop %v6404
      %v6411 = vrcp.pop %v6407
      %v6412 = vmul.f32 %v6389, %v6408
      %v6413 = vmul.f32 %v6391, %v6409
      %v6414 = vmul.f32 %v6393, %v6410
      %v6415 = vmul.f32 %v6395, %v6411
      %6416 = vrot.lane.b32.xlu0 %v6240, 96
      %v6417 = vpop.permute.xlu0 %6416
      %6418 = vrot.lane.b32.xlu0 %v6245, 96
      %v6419 = vpop.permute.xlu0 %6418
      %6420 = vrot.lane.b32.xlu0 %v6250, 96
      %v6421 = vpop.permute.xlu0 %6420
      %6422 = vrot.lane.b32.xlu0 %v6255, 96
      %v6423 = vpop.permute.xlu0 %6422
      %v6428 = vsel %vm2254, %v6412, 0
      %v6431 = vsel %vm2254, %v6413, 0
      %v6434 = vsel %vm2254, %v6414, 0
      %v6437 = vsel %vm2254, %v6415, 0
      %v6439 = vsel %vm2323, %v6423, 0
      %6441 = vmatprep.subr.mxu0 0.0
      %6442 = vmatpush1.msra.mxu0 %v6417
      %6443 = vmatprep.subr.mxu0 0.0
      %6444 = vmatpush1.msra.mxu0 %v6419
      %6445 = vmatprep.subr.mxu0 0.0
      %6446 = vmatpush1.msra.mxu0 %v6421
      %6447 = vmatprep.subr.mxu0 0.0
      %6448 = vmatpush1.msra.mxu0 %v6439
      %6449 = vmatprep.subr.mxu0 0.0
      %6450 = vmatpush1.msra.mxu0 0.0
      %6451 = vmatprep.subr.mxu0 0.0
      %6452 = vmatpush1.msra.mxu0 0.0
      %6453 = vmatprep.subr.mxu0 0.0
      %6454 = vmatpush1.msra.mxu0 0.0
      %6455 = vmatprep.subr.mxu0 0.0
      %6456 = vmatpush1.msra.mxu0 0.0
      %6457 = vmatprep.subr.mxu0 0.0
      %6458 = vmatpush1.msra.mxu0 0.0
      %6459 = vmatprep.subr.mxu0 0.0
      %6460 = vmatpush1.msra.mxu0 0.0
      %6461 = vmatprep.subr.mxu0 0.0
      %6462 = vmatpush1.msra.mxu0 0.0
      %6463 = vmatprep.subr.mxu0 0.0
      %6464 = vmatpush1.msra.mxu0 0.0
      %6465 = vmatprep.subr.mxu0 0.0
      %6466 = vmatpush1.msra.mxu0 0.0
      %6467 = vmatprep.subr.mxu0 0.0
      %6468 = vmatpush1.msra.mxu0 0.0
      %6469 = vmatprep.subr.mxu0 0.0
      %6470 = vmatpush1.msra.mxu0 0.0
      %6471 = vmatprep.subr.mxu0 0.0
      %6472 = vmatpush1.msra.mxu0 0.0
      %6473 = vmatprep.subr.mxu0 0.0
      %6474 = vmatpush1.msra.mxu0 0.0
      %6475 = vmatprep.subr.mxu0 0.0
      %6476 = vmatpush1.msra.mxu0 0.0
      %6477 = vmatprep.subr.mxu0 0.0
      %6478 = vmatpush1.msra.mxu0 0.0
      %6479 = vmatprep.subr.mxu0 0.0
      %6480 = vmatpush1.msra.mxu0 0.0
      %6481 = vmatprep.subr.mxu0 0.0
      %6482 = vmatpush1.msra.mxu0 0.0
      %6483 = vmatprep.subr.mxu0 0.0
      %6484 = vmatpush1.msra.mxu0 0.0
      %6485 = vmatprep.subr.mxu0 0.0
      %6486 = vmatpush1.msra.mxu0 0.0
      %6487 = vmatprep.subr.mxu0 0.0
      %6488 = vmatpush1.msra.mxu0 0.0
      %6489 = vmatprep.subr.mxu0 0.0
      %6490 = vmatpush1.msra.mxu0 0.0
      %6491 = vmatprep.subr.mxu0 0.0
      %6492 = vmatpush1.msra.mxu0 0.0
      %6493 = vmatprep.subr.mxu0 0.0
      %6494 = vmatpush1.msra.mxu0 0.0
      %6495 = vmatprep.subr.mxu0 0.0
      %6496 = vmatpush1.msra.mxu0 0.0
      %6497 = vmatprep.subr.mxu0 0.0
      %6498 = vmatpush1.msra.mxu0 0.0
      %6499 = vmatprep.subr.mxu0 0.0
      %6500 = vmatpush1.msra.mxu0 0.0
      %6501 = vmatprep.subr.mxu0 0.0
      %6502 = vmatpush1.msra.mxu0 0.0
      %6503 = vmatprep.subr.mxu0 0.0
      %6504 = vmatpush1.msra.mxu0 0.0
      %6505 = vmatprep.mubr.f32.mxu0 0.0
      %6506 = vmatmul.mubr.f32.gmra.mrb[0].mxu0 %v6428
      %v6507 = vpop.f32.mrb[0].mxu0
      %v6508 = vadd.f32 0.0, %v6507
      %v6509 = vpop.f32.mrb[0].mxu0
      %6510 = vmatprep.mubr.f32.mxu0 0.0
      %6511 = vmatmul.mubr.f32.gmra.mrb[0].mxu0 %v6431
      %v6512 = vpop.f32.mrb[0].mxu0
      %v6513 = vadd.f32 0.0, %v6512
      %v6514 = vpop.f32.mrb[0].mxu0
      %6515 = vmatprep.mubr.f32.mxu0 0.0
      %6516 = vmatmul.mubr.f32.gmra.mrb[0].mxu0 %v6434
      %v6517 = vpop.f32.mrb[0].mxu0
      %v6518 = vadd.f32 0.0, %v6517
      %v6519 = vpop.f32.mrb[0].mxu0
      %6520 = vmatprep.mubr.f32.mxu0 0.0
      %6521 = vmatmul.mubr.f32.gmra.mrb[0].mxu0 %v6437
      %v6522 = vpop.f32.mrb[0].mxu0
      %v6523 = vadd.f32 0.0, %v6522
      %v6524 = vpop.f32.mrb[0].mxu0
      %6525 = vdwg.mxu0
      %6526 = vrot.lane.b32.xlu0 %v6025, 32
      %v6527 = vpop.permute.xlu0 %6526
      %v6530 = vsel %vm2148, %v6508, 0
      %v6533 = vsel %vm2148, %v6513, 0
      %v6536 = vsel %vm2148, %v6518, 0
      %v6539 = vsel %vm2148, %v6523, 0
      %6541 = vmatprep.subr.mxu0 0.0
      %6542 = vmatpush1.msra.mxu0 %v6527
      %6543 = vmatprep.subr.mxu0 0.0
      %6544 = vmatpush1.msra.mxu0 0.0
      %6545 = vmatprep.subr.mxu0 0.0
      %6546 = vmatpush1.msra.mxu0 0.0
      %6547 = vmatprep.subr.mxu0 0.0
      %6548 = vmatpush1.msra.mxu0 0.0
      %6549 = vmatprep.subr.mxu0 0.0
      %6550 = vmatpush1.msra.mxu0 0.0
      %6551 = vmatprep.subr.mxu0 0.0
      %6552 = vmatpush1.msra.mxu0 0.0
      %6553 = vmatprep.subr.mxu0 0.0
      %6554 = vmatpush1.msra.mxu0 0.0
      %6555 = vmatprep.subr.mxu0 0.0
      %6556 = vmatpush1.msra.mxu0 0.0
      %6557 = vmatprep.subr.mxu0 0.0
      %6558 = vmatpush1.msra.mxu0 0.0
      %6559 = vmatprep.subr.mxu0 0.0
      %6560 = vmatpush1.msra.mxu0 0.0
      %6561 = vmatprep.subr.mxu0 0.0
      %6562 = vmatpush1.msra.mxu0 0.0
      %6563 = vmatprep.subr.mxu0 0.0
      %6564 = vmatpush1.msra.mxu0 0.0
      %6565 = vmatprep.subr.mxu0 0.0
      %6566 = vmatpush1.msra.mxu0 0.0
      %6567 = vmatprep.subr.mxu0 0.0
      %6568 = vmatpush1.msra.mxu0 0.0
      %6569 = vmatprep.subr.mxu0 0.0
      %6570 = vmatpush1.msra.mxu0 0.0
      %6571 = vmatprep.subr.mxu0 0.0
      %6572 = vmatpush1.msra.mxu0 0.0
      %6573 = vmatprep.subr.mxu0 0.0
      %6574 = vmatpush1.msra.mxu0 0.0
      %6575 = vmatprep.subr.mxu0 0.0
      %6576 = vmatpush1.msra.mxu0 0.0
      %6577 = vmatprep.subr.mxu0 0.0
      %6578 = vmatpush1.msra.mxu0 0.0
      %6579 = vmatprep.subr.mxu0 0.0
      %6580 = vmatpush1.msra.mxu0 0.0
      %6581 = vmatprep.subr.mxu0 0.0
      %6582 = vmatpush1.msra.mxu0 0.0
      %6583 = vmatprep.subr.mxu0 0.0
      %6584 = vmatpush1.msra.mxu0 0.0
      %6585 = vmatprep.subr.mxu0 0.0
      %6586 = vmatpush1.msra.mxu0 0.0
      %6587 = vmatprep.subr.mxu0 0.0
      %6588 = vmatpush1.msra.mxu0 0.0
      %6589 = vmatprep.subr.mxu0 0.0
      %6590 = vmatpush1.msra.mxu0 0.0
      %6591 = vmatprep.subr.mxu0 0.0
      %6592 = vmatpush1.msra.mxu0 0.0
      %6593 = vmatprep.subr.mxu0 0.0
      %6594 = vmatpush1.msra.mxu0 0.0
      %6595 = vmatprep.subr.mxu0 0.0
      %6596 = vmatpush1.msra.mxu0 0.0
      %6597 = vmatprep.subr.mxu0 0.0
      %6598 = vmatpush1.msra.mxu0 0.0
      %6599 = vmatprep.subr.mxu0 0.0
      %6600 = vmatpush1.msra.mxu0 0.0
      %6601 = vmatprep.subr.mxu0 0.0
      %6602 = vmatpush1.msra.mxu0 0.0
      %6603 = vmatprep.subr.mxu0 0.0
      %6604 = vmatpush1.msra.mxu0 0.0
      %6605 = vmatprep.mubr.f32.mxu0 0.0
      %6606 = vmatmul.mubr.f32.gmra.mrb[0].mxu0 %v6530
      %v6607 = vpop.f32.mrb[0].mxu0
      %v6608 = vadd.f32 0.0, %v6607
      %v6609 = vpop.f32.mrb[0].mxu0
      %6610 = vmatprep.mubr.f32.mxu0 0.0
      %6611 = vmatmul.mubr.f32.gmra.mrb[0].mxu0 %v6533
      %v6612 = vpop.f32.mrb[0].mxu0
      %v6613 = vadd.f32 0.0, %v6612
      %v6614 = vpop.f32.mrb[0].mxu0
      %6615 = vmatprep.mubr.f32.mxu0 0.0
      %6616 = vmatmul.mubr.f32.gmra.mrb[0].mxu0 %v6536
      %v6617 = vpop.f32.mrb[0].mxu0
      %v6618 = vadd.f32 0.0, %v6617
      %v6619 = vpop.f32.mrb[0].mxu0
      %6620 = vmatprep.mubr.f32.mxu0 0.0
      %6621 = vmatmul.mubr.f32.gmra.mrb[0].mxu0 %v6539
      %v6622 = vpop.f32.mrb[0].mxu0
      %v6623 = vadd.f32 0.0, %v6622
      %v6624 = vpop.f32.mrb[0].mxu0
      %6625 = vdwg.mxu0
      %6630 = vrot.lane.b32.xlu0 %v6608, 96
      %v6631 = vpop.permute.xlu0 %6630
      %6632 = vrot.lane.b32.xlu0 %v6613, 96
      %v6633 = vpop.permute.xlu0 %6632
      %6634 = vrot.lane.b32.xlu0 %v6618, 96
      %v6635 = vpop.permute.xlu0 %6634
      %6636 = vrot.lane.b32.xlu0 %v6623, 96
      %v6637 = vpop.permute.xlu0 %6636
      %v6642 = vadd.f32 %v6258, %v6631
      %v6643 = vadd.f32 %v6258, %v6633
      %v6644 = vadd.f32 %v6258, %v6635
      %v6645 = vadd.f32 %v6258, %v6637
      %6646 = vrot.lane.b32.xlu0 %v6124, 120
      %v6647 = vpop.permute.xlu0 %6646
      %6648 = vrot.lane.b32.xlu0 %v6129, 120
      %v6649 = vpop.permute.xlu0 %6648
      %6650 = vrot.lane.b32.xlu0 %v6134, 120
      %v6651 = vpop.permute.xlu0 %6650
      %6652 = vrot.lane.b32.xlu0 %v6139, 120
      %v6653 = vpop.permute.xlu0 %6652
      %6654 = vrot.lane.b32.xlu0 %v6240, 120
      %v6655 = vpop.permute.xlu0 %6654
      %6656 = vrot.lane.b32.xlu0 %v6245, 120
      %v6657 = vpop.permute.xlu0 %6656
      %6658 = vrot.lane.b32.xlu0 %v6250, 120
      %v6659 = vpop.permute.xlu0 %6658
      %6660 = vrot.lane.b32.xlu0 %v6255, 120
      %v6661 = vpop.permute.xlu0 %6660
      %v6662 = vsel %vm2148, %v6647, 0
      %v6664 = vsel %vm2148, %v6649, 0
      %v6666 = vsel %vm2148, %v6651, 0
      %v6668 = vsel %vm2148, %v6653, 0
      %v6670 = vsel %vm2148, %v6655, 0
      %v6672 = vsel %vm2148, %v6657, 0
      %v6674 = vsel %vm2148, %v6659, 0
      %v6676 = vsel %vm2148, %v6661, 0
      %6678 = vmatprep.subr.mxu0 0.0
      %6679 = vmatpush1.xpose.msra.mxu0 %v6670
      %6680 = vmatprep.subr.mxu0 0.0
      %6681 = vmatpush1.xpose.msra.mxu0 %v6672
      %6682 = vmatprep.subr.mxu0 0.0
      %6683 = vmatpush1.xpose.msra.mxu0 %v6674
      %6684 = vmatprep.subr.mxu0 0.0
      %6685 = vmatpush1.xpose.msra.mxu0 %v6676
      %6686 = vmatprep.subr.mxu0 0.0
      %6687 = vmatpush1.xpose.msra.mxu0 0.0
      %6688 = vmatprep.subr.mxu0 0.0
      %6689 = vmatpush1.xpose.msra.mxu0 0.0
      %6690 = vmatprep.subr.mxu0 0.0
      %6691 = vmatpush1.xpose.msra.mxu0 0.0
      %6692 = vmatprep.subr.mxu0 0.0
      %6693 = vmatpush1.xpose.msra.mxu0 0.0
      %6694 = vmatprep.subr.mxu0 0.0
      %6695 = vmatpush1.xpose.msra.mxu0 0.0
      %6696 = vmatprep.subr.mxu0 0.0
      %6697 = vmatpush1.xpose.msra.mxu0 0.0
      %6698 = vmatprep.subr.mxu0 0.0
      %6699 = vmatpush1.xpose.msra.mxu0 0.0
      %6700 = vmatprep.subr.mxu0 0.0
      %6701 = vmatpush1.xpose.msra.mxu0 0.0
      %6702 = vmatprep.subr.mxu0 0.0
      %6703 = vmatpush1.xpose.msra.mxu0 0.0
      %6704 = vmatprep.subr.mxu0 0.0
      %6705 = vmatpush1.xpose.msra.mxu0 0.0
      %6706 = vmatprep.subr.mxu0 0.0
      %6707 = vmatpush1.xpose.msra.mxu0 0.0
      %6708 = vmatprep.subr.mxu0 0.0
      %6709 = vmatpush1.xpose.msra.mxu0 0.0
      %6710 = vmatprep.subr.mxu0 0.0
      %6711 = vmatpush1.xpose.msra.mxu0 0.0
      %6712 = vmatprep.subr.mxu0 0.0
      %6713 = vmatpush1.xpose.msra.mxu0 0.0
      %6714 = vmatprep.subr.mxu0 0.0
      %6715 = vmatpush1.xpose.msra.mxu0 0.0
      %6716 = vmatprep.subr.mxu0 0.0
      %6717 = vmatpush1.xpose.msra.mxu0 0.0
      %6718 = vmatprep.subr.mxu0 0.0
      %6719 = vmatpush1.xpose.msra.mxu0 0.0
      %6720 = vmatprep.subr.mxu0 0.0
      %6721 = vmatpush1.xpose.msra.mxu0 0.0
      %6722 = vmatprep.subr.mxu0 0.0
      %6723 = vmatpush1.xpose.msra.mxu0 0.0
      %6724 = vmatprep.subr.mxu0 0.0
      %6725 = vmatpush1.xpose.msra.mxu0 0.0
      %6726 = vmatprep.subr.mxu0 0.0
      %6727 = vmatpush1.xpose.msra.mxu0 0.0
      %6728 = vmatprep.subr.mxu0 0.0
      %6729 = vmatpush1.xpose.msra.mxu0 0.0
      %6730 = vmatprep.subr.mxu0 0.0
      %6731 = vmatpush1.xpose.msra.mxu0 0.0
      %6732 = vmatprep.subr.mxu0 0.0
      %6733 = vmatpush1.xpose.msra.mxu0 0.0
      %6734 = vmatprep.subr.mxu0 0.0
      %6735 = vmatpush1.xpose.msra.mxu0 0.0
      %6736 = vmatprep.subr.mxu0 0.0
      %6737 = vmatpush1.xpose.msra.mxu0 0.0
      %6738 = vmatprep.subr.mxu0 0.0
      %6739 = vmatpush1.xpose.msra.mxu0 0.0
      %6740 = vmatprep.subr.mxu0 0.0
      %6741 = vmatpush1.xpose.msra.mxu0 0.0
      %6742 = vmatprep.mubr.f32.mxu0 0.0
      %6743 = vmatmul.mubr.f32.gmra.mrb[0].mxu0 %v6662
      %v6744 = vpop.f32.mrb[0].mxu0
      %v6745 = vadd.f32 0.0, %v6744
      %v6746 = vpop.f32.mrb[0].mxu0
      %6747 = vmatprep.mubr.f32.mxu0 0.0
      %6748 = vmatmul.mubr.f32.gmra.mrb[0].mxu0 %v6664
      %v6749 = vpop.f32.mrb[0].mxu0
      %v6750 = vadd.f32 0.0, %v6749
      %v6751 = vpop.f32.mrb[0].mxu0
      %6752 = vmatprep.mubr.f32.mxu0 0.0
      %6753 = vmatmul.mubr.f32.gmra.mrb[0].mxu0 %v6666
      %v6754 = vpop.f32.mrb[0].mxu0
      %v6755 = vadd.f32 0.0, %v6754
      %v6756 = vpop.f32.mrb[0].mxu0
      %6757 = vmatprep.mubr.f32.mxu0 0.0
      %6758 = vmatmul.mubr.f32.gmra.mrb[0].mxu0 %v6668
      %v6759 = vpop.f32.mrb[0].mxu0
      %v6760 = vadd.f32 0.0, %v6759
      %v6761 = vpop.f32.mrb[0].mxu0
      %6762 = vdwg.mxu0
      %v6763 = vmul.f32 %v6745, 0.35355338
      %v6764 = vmul.f32 %v6750, 0.35355338
      %v6765 = vmul.f32 %v6755, 0.35355338
      %v6766 = vmul.f32 %v6760, 0.35355338
      %v6767 = vsel %vm2254, %v6763, -inf
      %6768 = vmax.xlane.f32.xlu0 %v6767
      %v6769 = vpop.xlane.xlu0 %6768
      %v6770 = vsel %vm2254, %v6764, -inf
      %6771 = vmax.xlane.f32.xlu0 %v6770
      %v6772 = vpop.xlane.xlu0 %6771
      %v6773 = vsel %vm2254, %v6765, -inf
      %6774 = vmax.xlane.f32.xlu0 %v6773
      %v6775 = vpop.xlane.xlu0 %6774
      %v6776 = vsel %vm2264, %v6766, -inf
      %6777 = vmax.xlane.f32.xlu0 %v6776
      %v6778 = vpop.xlane.xlu0 %6777
      %v6779 = vsub.f32 %v6763, %v6769
      %v6780 = vsub.f32 %v6764, %v6772
      %v6781 = vsub.f32 %v6765, %v6775
      %v6782 = vsub.f32 %v6766, %v6778
      %v6783 = vmul.f32 %v6779, 1.442695
      %v6784 = vpow.pop %v6783
      %v6785 = vmul.f32 %v6780, 1.442695
      %v6786 = vpow.pop %v6785
      %v6787 = vmul.f32 %v6781, 1.442695
      %v6788 = vpow.pop %v6787
      %v6789 = vmul.f32 %v6782, 1.442695
      %v6790 = vpow.pop %v6789
      %v6791 = vsel %vm2254, %v6784, 0.0
      %6792 = vadd.xlane.f32.xlu0 %v6791
      %v6793 = vpop.xlane.xlu0 %6792
      %v6794 = vsel %vm2254, %v6786, 0.0
      %6795 = vadd.xlane.f32.xlu0 %v6794
      %v6796 = vpop.xlane.xlu0 %6795
      %v6797 = vsel %vm2254, %v6788, 0.0
      %6798 = vadd.xlane.f32.xlu0 %v6797
      %v6799 = vpop.xlane.xlu0 %6798
      %v6800 = vsel %vm2264, %v6790, 0.0
      %6801 = vadd.xlane.f32.xlu0 %v6800
      %v6802 = vpop.xlane.xlu0 %6801
      %v6803 = vrcp.pop %v6793
      %v6804 = vrcp.pop %v6796
      %v6805 = vrcp.pop %v6799
      %v6806 = vrcp.pop %v6802
      %v6807 = vmul.f32 %v6784, %v6803
      %v6808 = vmul.f32 %v6786, %v6804
      %v6809 = vmul.f32 %v6788, %v6805
      %v6810 = vmul.f32 %v6790, %v6806
      %6811 = vrot.lane.b32.xlu0 %v6240, 88
      %v6812 = vpop.permute.xlu0 %6811
      %6813 = vrot.lane.b32.xlu0 %v6245, 88
      %v6814 = vpop.permute.xlu0 %6813
      %6815 = vrot.lane.b32.xlu0 %v6250, 88
      %v6816 = vpop.permute.xlu0 %6815
      %6817 = vrot.lane.b32.xlu0 %v6255, 88
      %v6818 = vpop.permute.xlu0 %6817
      %v6823 = vsel %vm2254, %v6807, 0
      %v6826 = vsel %vm2254, %v6808, 0
      %v6829 = vsel %vm2254, %v6809, 0
      %v6832 = vsel %vm2254, %v6810, 0
      %v6834 = vsel %vm2323, %v6818, 0
      %6836 = vmatprep.subr.mxu0 0.0
      %6837 = vmatpush1.msra.mxu0 %v6812
      %6838 = vmatprep.subr.mxu0 0.0
      %6839 = vmatpush1.msra.mxu0 %v6814
      %6840 = vmatprep.subr.mxu0 0.0
      %6841 = vmatpush1.msra.mxu0 %v6816
      %6842 = vmatprep.subr.mxu0 0.0
      %6843 = vmatpush1.msra.mxu0 %v6834
      %6844 = vmatprep.subr.mxu0 0.0
      %6845 = vmatpush1.msra.mxu0 0.0
      %6846 = vmatprep.subr.mxu0 0.0
      %6847 = vmatpush1.msra.mxu0 0.0
      %6848 = vmatprep.subr.mxu0 0.0
      %6849 = vmatpush1.msra.mxu0 0.0
      %6850 = vmatprep.subr.mxu0 0.0
      %6851 = vmatpush1.msra.mxu0 0.0
      %6852 = vmatprep.subr.mxu0 0.0
      %6853 = vmatpush1.msra.mxu0 0.0
      %6854 = vmatprep.subr.mxu0 0.0
      %6855 = vmatpush1.msra.mxu0 0.0
      %6856 = vmatprep.subr.mxu0 0.0
      %6857 = vmatpush1.msra.mxu0 0.0
      %6858 = vmatprep.subr.mxu0 0.0
      %6859 = vmatpush1.msra.mxu0 0.0
      %6860 = vmatprep.subr.mxu0 0.0
      %6861 = vmatpush1.msra.mxu0 0.0
      %6862 = vmatprep.subr.mxu0 0.0
      %6863 = vmatpush1.msra.mxu0 0.0
      %6864 = vmatprep.subr.mxu0 0.0
      %6865 = vmatpush1.msra.mxu0 0.0
      %6866 = vmatprep.subr.mxu0 0.0
      %6867 = vmatpush1.msra.mxu0 0.0
      %6868 = vmatprep.subr.mxu0 0.0
      %6869 = vmatpush1.msra.mxu0 0.0
      %6870 = vmatprep.subr.mxu0 0.0
      %6871 = vmatpush1.msra.mxu0 0.0
      %6872 = vmatprep.subr.mxu0 0.0
      %6873 = vmatpush1.msra.mxu0 0.0
      %6874 = vmatprep.subr.mxu0 0.0
      %6875 = vmatpush1.msra.mxu0 0.0
      %6876 = vmatprep.subr.mxu0 0.0
      %6877 = vmatpush1.msra.mxu0 0.0
      %6878 = vmatprep.subr.mxu0 0.0
      %6879 = vmatpush1.msra.mxu0 0.0
      %6880 = vmatprep.subr.mxu0 0.0
      %6881 = vmatpush1.msra.mxu0 0.0
      %6882 = vmatprep.subr.mxu0 0.0
      %6883 = vmatpush1.msra.mxu0 0.0
      %6884 = vmatprep.subr.mxu0 0.0
      %6885 = vmatpush1.msra.mxu0 0.0
      %6886 = vmatprep.subr.mxu0 0.0
      %6887 = vmatpush1.msra.mxu0 0.0
      %6888 = vmatprep.subr.mxu0 0.0
      %6889 = vmatpush1.msra.mxu0 0.0
      %6890 = vmatprep.subr.mxu0 0.0
      %6891 = vmatpush1.msra.mxu0 0.0
      %6892 = vmatprep.subr.mxu0 0.0
      %6893 = vmatpush1.msra.mxu0 0.0
      %6894 = vmatprep.subr.mxu0 0.0
      %6895 = vmatpush1.msra.mxu0 0.0
      %6896 = vmatprep.subr.mxu0 0.0
      %6897 = vmatpush1.msra.mxu0 0.0
      %6898 = vmatprep.subr.mxu0 0.0
      %6899 = vmatpush1.msra.mxu0 0.0
      %6900 = vmatprep.mubr.f32.mxu0 0.0
      %6901 = vmatmul.mubr.f32.gmra.mrb[0].mxu0 %v6823
      %v6902 = vpop.f32.mrb[0].mxu0
      %v6903 = vadd.f32 0.0, %v6902
      %v6904 = vpop.f32.mrb[0].mxu0
      %6905 = vmatprep.mubr.f32.mxu0 0.0
      %6906 = vmatmul.mubr.f32.gmra.mrb[0].mxu0 %v6826
      %v6907 = vpop.f32.mrb[0].mxu0
      %v6908 = vadd.f32 0.0, %v6907
      %v6909 = vpop.f32.mrb[0].mxu0
      %6910 = vmatprep.mubr.f32.mxu0 0.0
      %6911 = vmatmul.mubr.f32.gmra.mrb[0].mxu0 %v6829
      %v6912 = vpop.f32.mrb[0].mxu0
      %v6913 = vadd.f32 0.0, %v6912
      %v6914 = vpop.f32.mrb[0].mxu0
      %6915 = vmatprep.mubr.f32.mxu0 0.0
      %6916 = vmatmul.mubr.f32.gmra.mrb[0].mxu0 %v6832
      %v6917 = vpop.f32.mrb[0].mxu0
      %v6918 = vadd.f32 0.0, %v6917
      %v6919 = vpop.f32.mrb[0].mxu0
      %6920 = vdwg.mxu0
      %6921 = vrot.lane.b32.xlu0 %v6026, 32
      %v6922 = vpop.permute.xlu0 %6921
      %v6925 = vsel %vm2148, %v6903, 0
      %v6928 = vsel %vm2148, %v6908, 0
      %v6931 = vsel %vm2148, %v6913, 0
      %v6934 = vsel %vm2148, %v6918, 0
      %6936 = vmatprep.subr.mxu0 0.0
      %6937 = vmatpush1.msra.mxu0 %v6922
      %6938 = vmatprep.subr.mxu0 0.0
      %6939 = vmatpush1.msra.mxu0 0.0
      %6940 = vmatprep.subr.mxu0 0.0
      %6941 = vmatpush1.msra.mxu0 0.0
      %6942 = vmatprep.subr.mxu0 0.0
      %6943 = vmatpush1.msra.mxu0 0.0
      %6944 = vmatprep.subr.mxu0 0.0
      %6945 = vmatpush1.msra.mxu0 0.0
      %6946 = vmatprep.subr.mxu0 0.0
      %6947 = vmatpush1.msra.mxu0 0.0
      %6948 = vmatprep.subr.mxu0 0.0
      %6949 = vmatpush1.msra.mxu0 0.0
      %6950 = vmatprep.subr.mxu0 0.0
      %6951 = vmatpush1.msra.mxu0 0.0
      %6952 = vmatprep.subr.mxu0 0.0
      %6953 = vmatpush1.msra.mxu0 0.0
      %6954 = vmatprep.subr.mxu0 0.0
      %6955 = vmatpush1.msra.mxu0 0.0
      %6956 = vmatprep.subr.mxu0 0.0
      %6957 = vmatpush1.msra.mxu0 0.0
      %6958 = vmatprep.subr.mxu0 0.0
      %6959 = vmatpush1.msra.mxu0 0.0
      %6960 = vmatprep.subr.mxu0 0.0
      %6961 = vmatpush1.msra.mxu0 0.0
      %6962 = vmatprep.subr.mxu0 0.0
      %6963 = vmatpush1.msra.mxu0 0.0
      %6964 = vmatprep.subr.mxu0 0.0
      %6965 = vmatpush1.msra.mxu0 0.0
      %6966 = vmatprep.subr.mxu0 0.0
      %6967 = vmatpush1.msra.mxu0 0.0
      %6968 = vmatprep.subr.mxu0 0.0
      %6969 = vmatpush1.msra.mxu0 0.0
      %6970 = vmatprep.subr.mxu0 0.0
      %6971 = vmatpush1.msra.mxu0 0.0
      %6972 = vmatprep.subr.mxu0 0.0
      %6973 = vmatpush1.msra.mxu0 0.0
      %6974 = vmatprep.subr.mxu0 0.0
      %6975 = vmatpush1.msra.mxu0 0.0
      %6976 = vmatprep.subr.mxu0 0.0
      %6977 = vmatpush1.msra.mxu0 0.0
      %6978 = vmatprep.subr.mxu0 0.0
      %6979 = vmatpush1.msra.mxu0 0.0
      %6980 = vmatprep.subr.mxu0 0.0
      %6981 = vmatpush1.msra.mxu0 0.0
      %6982 = vmatprep.subr.mxu0 0.0
      %6983 = vmatpush1.msra.mxu0 0.0
      %6984 = vmatprep.subr.mxu0 0.0
      %6985 = vmatpush1.msra.mxu0 0.0
      %6986 = vmatprep.subr.mxu0 0.0
      %6987 = vmatpush1.msra.mxu0 0.0
      %6988 = vmatprep.subr.mxu0 0.0
      %6989 = vmatpush1.msra.mxu0 0.0
      %6990 = vmatprep.subr.mxu0 0.0
      %6991 = vmatpush1.msra.mxu0 0.0
      %6992 = vmatprep.subr.mxu0 0.0
      %6993 = vmatpush1.msra.mxu0 0.0
      %6994 = vmatprep.subr.mxu0 0.0
      %6995 = vmatpush1.msra.mxu0 0.0
      %6996 = vmatprep.subr.mxu0 0.0
      %6997 = vmatpush1.msra.mxu0 0.0
      %6998 = vmatprep.subr.mxu0 0.0
      %6999 = vmatpush1.msra.mxu0 0.0
      %7000 = vmatprep.mubr.f32.mxu0 0.0
      %7001 = vmatmul.mubr.f32.gmra.mrb[0].mxu0 %v6925
      %v7002 = vpop.f32.mrb[0].mxu0
      %v7003 = vadd.f32 0.0, %v7002
      %v7004 = vpop.f32.mrb[0].mxu0
      %7005 = vmatprep.mubr.f32.mxu0 0.0
      %7006 = vmatmul.mubr.f32.gmra.mrb[0].mxu0 %v6928
      %v7007 = vpop.f32.mrb[0].mxu0
      %v7008 = vadd.f32 0.0, %v7007
      %v7009 = vpop.f32.mrb[0].mxu0
      %7010 = vmatprep.mubr.f32.mxu0 0.0
      %7011 = vmatmul.mubr.f32.gmra.mrb[0].mxu0 %v6931
      %v7012 = vpop.f32.mrb[0].mxu0
      %v7013 = vadd.f32 0.0, %v7012
      %v7014 = vpop.f32.mrb[0].mxu0
      %7015 = vmatprep.mubr.f32.mxu0 0.0
      %7016 = vmatmul.mubr.f32.gmra.mrb[0].mxu0 %v6934
      %v7017 = vpop.f32.mrb[0].mxu0
      %v7018 = vadd.f32 0.0, %v7017
      %v7019 = vpop.f32.mrb[0].mxu0
      %7020 = vdwg.mxu0
      %7025 = vrot.lane.b32.xlu0 %v7003, 96
      %v7026 = vpop.permute.xlu0 %7025
      %7027 = vrot.lane.b32.xlu0 %v7008, 96
      %v7028 = vpop.permute.xlu0 %7027
      %7029 = vrot.lane.b32.xlu0 %v7013, 96
      %v7030 = vpop.permute.xlu0 %7029
      %7031 = vrot.lane.b32.xlu0 %v7018, 96
      %v7032 = vpop.permute.xlu0 %7031
      %v7037 = vadd.f32 %v6642, %v7026
      %v7038 = vadd.f32 %v6643, %v7028
      %v7039 = vadd.f32 %v6644, %v7030
      %v7040 = vadd.f32 %v6645, %v7032
      %7041 = vrot.lane.b32.xlu0 %v6124, 112
      %v7042 = vpop.permute.xlu0 %7041
      %7043 = vrot.lane.b32.xlu0 %v6129, 112
      %v7044 = vpop.permute.xlu0 %7043
      %7045 = vrot.lane.b32.xlu0 %v6134, 112
      %v7046 = vpop.permute.xlu0 %7045
      %7047 = vrot.lane.b32.xlu0 %v6139, 112
      %v7048 = vpop.permute.xlu0 %7047
      %7049 = vrot.lane.b32.xlu0 %v6240, 112
      %v7050 = vpop.permute.xlu0 %7049
      %7051 = vrot.lane.b32.xlu0 %v6245, 112
      %v7052 = vpop.permute.xlu0 %7051
      %7053 = vrot.lane.b32.xlu0 %v6250, 112
      %v7054 = vpop.permute.xlu0 %7053
      %7055 = vrot.lane.b32.xlu0 %v6255, 112
      %v7056 = vpop.permute.xlu0 %7055
      %v7057 = vsel %vm2148, %v7042, 0
      %v7059 = vsel %vm2148, %v7044, 0
      %v7061 = vsel %vm2148, %v7046, 0
      %v7063 = vsel %vm2148, %v7048, 0
      %v7065 = vsel %vm2148, %v7050, 0
      %v7067 = vsel %vm2148, %v7052, 0
      %v7069 = vsel %vm2148, %v7054, 0
      %v7071 = vsel %vm2148, %v7056, 0
      %7073 = vmatprep.subr.mxu0 0.0
      %7074 = vmatpush1.xpose.msra.mxu0 %v7065
      %7075 = vmatprep.subr.mxu0 0.0
      %7076 = vmatpush1.xpose.msra.mxu0 %v7067
      %7077 = vmatprep.subr.mxu0 0.0
      %7078 = vmatpush1.xpose.msra.mxu0 %v7069
      %7079 = vmatprep.subr.mxu0 0.0
      %7080 = vmatpush1.xpose.msra.mxu0 %v7071
      %7081 = vmatprep.subr.mxu0 0.0
      %7082 = vmatpush1.xpose.msra.mxu0 0.0
      %7083 = vmatprep.subr.mxu0 0.0
      %7084 = vmatpush1.xpose.msra.mxu0 0.0
      %7085 = vmatprep.subr.mxu0 0.0
      %7086 = vmatpush1.xpose.msra.mxu0 0.0
      %7087 = vmatprep.subr.mxu0 0.0
      %7088 = vmatpush1.xpose.msra.mxu0 0.0
      %7089 = vmatprep.subr.mxu0 0.0
      %7090 = vmatpush1.xpose.msra.mxu0 0.0
      %7091 = vmatprep.subr.mxu0 0.0
      %7092 = vmatpush1.xpose.msra.mxu0 0.0
      %7093 = vmatprep.subr.mxu0 0.0
      %7094 = vmatpush1.xpose.msra.mxu0 0.0
      %7095 = vmatprep.subr.mxu0 0.0
      %7096 = vmatpush1.xpose.msra.mxu0 0.0
      %7097 = vmatprep.subr.mxu0 0.0
      %7098 = vmatpush1.xpose.msra.mxu0 0.0
      %7099 = vmatprep.subr.mxu0 0.0
      %7100 = vmatpush1.xpose.msra.mxu0 0.0
      %7101 = vmatprep.subr.mxu0 0.0
      %7102 = vmatpush1.xpose.msra.mxu0 0.0
      %7103 = vmatprep.subr.mxu0 0.0
      %7104 = vmatpush1.xpose.msra.mxu0 0.0
      %7105 = vmatprep.subr.mxu0 0.0
      %7106 = vmatpush1.xpose.msra.mxu0 0.0
      %7107 = vmatprep.subr.mxu0 0.0
      %7108 = vmatpush1.xpose.msra.mxu0 0.0
      %7109 = vmatprep.subr.mxu0 0.0
      %7110 = vmatpush1.xpose.msra.mxu0 0.0
      %7111 = vmatprep.subr.mxu0 0.0
      %7112 = vmatpush1.xpose.msra.mxu0 0.0
      %7113 = vmatprep.subr.mxu0 0.0
      %7114 = vmatpush1.xpose.msra.mxu0 0.0
      %7115 = vmatprep.subr.mxu0 0.0
      %7116 = vmatpush1.xpose.msra.mxu0 0.0
      %7117 = vmatprep.subr.mxu0 0.0
      %7118 = vmatpush1.xpose.msra.mxu0 0.0
      %7119 = vmatprep.subr.mxu0 0.0
      %7120 = vmatpush1.xpose.msra.mxu0 0.0
      %7121 = vmatprep.subr.mxu0 0.0
      %7122 = vmatpush1.xpose.msra.mxu0 0.0
      %7123 = vmatprep.subr.mxu0 0.0
      %7124 = vmatpush1.xpose.msra.mxu0 0.0
      %7125 = vmatprep.subr.mxu0 0.0
      %7126 = vmatpush1.xpose.msra.mxu0 0.0
      %7127 = vmatprep.subr.mxu0 0.0
      %7128 = vmatpush1.xpose.msra.mxu0 0.0
      %7129 = vmatprep.subr.mxu0 0.0
      %7130 = vmatpush1.xpose.msra.mxu0 0.0
      %7131 = vmatprep.subr.mxu0 0.0
      %7132 = vmatpush1.xpose.msra.mxu0 0.0
      %7133 = vmatprep.subr.mxu0 0.0
      %7134 = vmatpush1.xpose.msra.mxu0 0.0
      %7135 = vmatprep.subr.mxu0 0.0
      %7136 = vmatpush1.xpose.msra.mxu0 0.0
      %7137 = vmatprep.mubr.f32.mxu0 0.0
      %7138 = vmatmul.mubr.f32.gmra.mrb[0].mxu0 %v7057
      %v7139 = vpop.f32.mrb[0].mxu0
      %v7140 = vadd.f32 0.0, %v7139
      %v7141 = vpop.f32.mrb[0].mxu0
      %7142 = vmatprep.mubr.f32.mxu0 0.0
      %7143 = vmatmul.mubr.f32.gmra.mrb[0].mxu0 %v7059
      %v7144 = vpop.f32.mrb[0].mxu0
      %v7145 = vadd.f32 0.0, %v7144
      %v7146 = vpop.f32.mrb[0].mxu0
      %7147 = vmatprep.mubr.f32.mxu0 0.0
      %7148 = vmatmul.mubr.f32.gmra.mrb[0].mxu0 %v7061
      %v7149 = vpop.f32.mrb[0].mxu0
      %v7150 = vadd.f32 0.0, %v7149
      %v7151 = vpop.f32.mrb[0].mxu0
      %7152 = vmatprep.mubr.f32.mxu0 0.0
      %7153 = vmatmul.mubr.f32.gmra.mrb[0].mxu0 %v7063
      %v7154 = vpop.f32.mrb[0].mxu0
      %v7155 = vadd.f32 0.0, %v7154
      %v7156 = vpop.f32.mrb[0].mxu0
      %7157 = vdwg.mxu0
      %v7158 = vmul.f32 %v7140, 0.35355338
      %v7159 = vmul.f32 %v7145, 0.35355338
      %v7160 = vmul.f32 %v7150, 0.35355338
      %v7161 = vmul.f32 %v7155, 0.35355338
      %v7162 = vsel %vm2254, %v7158, -inf
      %7163 = vmax.xlane.f32.xlu0 %v7162
      %v7164 = vpop.xlane.xlu0 %7163
      %v7165 = vsel %vm2254, %v7159, -inf
      %7166 = vmax.xlane.f32.xlu0 %v7165
      %v7167 = vpop.xlane.xlu0 %7166
      %v7168 = vsel %vm2254, %v7160, -inf
      %7169 = vmax.xlane.f32.xlu0 %v7168
      %v7170 = vpop.xlane.xlu0 %7169
      %v7171 = vsel %vm2264, %v7161, -inf
      %7172 = vmax.xlane.f32.xlu0 %v7171
      %v7173 = vpop.xlane.xlu0 %7172
      %v7174 = vsub.f32 %v7158, %v7164
      %v7175 = vsub.f32 %v7159, %v7167
      %v7176 = vsub.f32 %v7160, %v7170
      %v7177 = vsub.f32 %v7161, %v7173
      %v7178 = vmul.f32 %v7174, 1.442695
      %v7179 = vpow.pop %v7178
      %v7180 = vmul.f32 %v7175, 1.442695
      %v7181 = vpow.pop %v7180
      %v7182 = vmul.f32 %v7176, 1.442695
      %v7183 = vpow.pop %v7182
      %v7184 = vmul.f32 %v7177, 1.442695
      %v7185 = vpow.pop %v7184
      %v7186 = vsel %vm2254, %v7179, 0.0
      %7187 = vadd.xlane.f32.xlu0 %v7186
      %v7188 = vpop.xlane.xlu0 %7187
      %v7189 = vsel %vm2254, %v7181, 0.0
      %7190 = vadd.xlane.f32.xlu0 %v7189
      %v7191 = vpop.xlane.xlu0 %7190
      %v7192 = vsel %vm2254, %v7183, 0.0
      %7193 = vadd.xlane.f32.xlu0 %v7192
      %v7194 = vpop.xlane.xlu0 %7193
      %v7195 = vsel %vm2264, %v7185, 0.0
      %7196 = vadd.xlane.f32.xlu0 %v7195
      %v7197 = vpop.xlane.xlu0 %7196
      %v7198 = vrcp.pop %v7188
      %v7199 = vrcp.pop %v7191
      %v7200 = vrcp.pop %v7194
      %v7201 = vrcp.pop %v7197
      %v7202 = vmul.f32 %v7179, %v7198
      %v7203 = vmul.f32 %v7181, %v7199
      %v7204 = vmul.f32 %v7183, %v7200
      %v7205 = vmul.f32 %v7185, %v7201
      %7206 = vrot.lane.b32.xlu0 %v6240, 80
      %v7207 = vpop.permute.xlu0 %7206
      %7208 = vrot.lane.b32.xlu0 %v6245, 80
      %v7209 = vpop.permute.xlu0 %7208
      %7210 = vrot.lane.b32.xlu0 %v6250, 80
      %v7211 = vpop.permute.xlu0 %7210
      %7212 = vrot.lane.b32.xlu0 %v6255, 80
      %v7213 = vpop.permute.xlu0 %7212
      %v7218 = vsel %vm2254, %v7202, 0
      %v7221 = vsel %vm2254, %v7203, 0
      %v7224 = vsel %vm2254, %v7204, 0
      %v7227 = vsel %vm2254, %v7205, 0
      %v7229 = vsel %vm2323, %v7213, 0
      %7231 = vmatprep.subr.mxu0 0.0
      %7232 = vmatpush1.msra.mxu0 %v7207
      %7233 = vmatprep.subr.mxu0 0.0
      %7234 = vmatpush1.msra.mxu0 %v7209
      %7235 = vmatprep.subr.mxu0 0.0
      %7236 = vmatpush1.msra.mxu0 %v7211
      %7237 = vmatprep.subr.mxu0 0.0
      %7238 = vmatpush1.msra.mxu0 %v7229
      %7239 = vmatprep.subr.mxu0 0.0
      %7240 = vmatpush1.msra.mxu0 0.0
      %7241 = vmatprep.subr.mxu0 0.0
      %7242 = vmatpush1.msra.mxu0 0.0
      %7243 = vmatprep.subr.mxu0 0.0
      %7244 = vmatpush1.msra.mxu0 0.0
      %7245 = vmatprep.subr.mxu0 0.0
      %7246 = vmatpush1.msra.mxu0 0.0
      %7247 = vmatprep.subr.mxu0 0.0
      %7248 = vmatpush1.msra.mxu0 0.0
      %7249 = vmatprep.subr.mxu0 0.0
      %7250 = vmatpush1.msra.mxu0 0.0
      %7251 = vmatprep.subr.mxu0 0.0
      %7252 = vmatpush1.msra.mxu0 0.0
      %7253 = vmatprep.subr.mxu0 0.0
      %7254 = vmatpush1.msra.mxu0 0.0
      %7255 = vmatprep.subr.mxu0 0.0
      %7256 = vmatpush1.msra.mxu0 0.0
      %7257 = vmatprep.subr.mxu0 0.0
      %7258 = vmatpush1.msra.mxu0 0.0
      %7259 = vmatprep.subr.mxu0 0.0
      %7260 = vmatpush1.msra.mxu0 0.0
      %7261 = vmatprep.subr.mxu0 0.0
      %7262 = vmatpush1.msra.mxu0 0.0
      %7263 = vmatprep.subr.mxu0 0.0
      %7264 = vmatpush1.msra.mxu0 0.0
      %7265 = vmatprep.subr.mxu0 0.0
      %7266 = vmatpush1.msra.mxu0 0.0
      %7267 = vmatprep.subr.mxu0 0.0
      %7268 = vmatpush1.msra.mxu0 0.0
      %7269 = vmatprep.subr.mxu0 0.0
      %7270 = vmatpush1.msra.mxu0 0.0
      %7271 = vmatprep.subr.mxu0 0.0
      %7272 = vmatpush1.msra.mxu0 0.0
      %7273 = vmatprep.subr.mxu0 0.0
      %7274 = vmatpush1.msra.mxu0 0.0
      %7275 = vmatprep.subr.mxu0 0.0
      %7276 = vmatpush1.msra.mxu0 0.0
      %7277 = vmatprep.subr.mxu0 0.0
      %7278 = vmatpush1.msra.mxu0 0.0
      %7279 = vmatprep.subr.mxu0 0.0
      %7280 = vmatpush1.msra.mxu0 0.0
      %7281 = vmatprep.subr.mxu0 0.0
      %7282 = vmatpush1.msra.mxu0 0.0
      %7283 = vmatprep.subr.mxu0 0.0
      %7284 = vmatpush1.msra.mxu0 0.0
      %7285 = vmatprep.subr.mxu0 0.0
      %7286 = vmatpush1.msra.mxu0 0.0
      %7287 = vmatprep.subr.mxu0 0.0
      %7288 = vmatpush1.msra.mxu0 0.0
      %7289 = vmatprep.subr.mxu0 0.0
      %7290 = vmatpush1.msra.mxu0 0.0
      %7291 = vmatprep.subr.mxu0 0.0
      %7292 = vmatpush1.msra.mxu0 0.0
      %7293 = vmatprep.subr.mxu0 0.0
      %7294 = vmatpush1.msra.mxu0 0.0
      %7295 = vmatprep.mubr.f32.mxu0 0.0
      %7296 = vmatmul.mubr.f32.gmra.mrb[0].mxu0 %v7218
      %v7297 = vpop.f32.mrb[0].mxu0
      %v7298 = vadd.f32 0.0, %v7297
      %v7299 = vpop.f32.mrb[0].mxu0
      %7300 = vmatprep.mubr.f32.mxu0 0.0
      %7301 = vmatmul.mubr.f32.gmra.mrb[0].mxu0 %v7221
      %v7302 = vpop.f32.mrb[0].mxu0
      %v7303 = vadd.f32 0.0, %v7302
      %v7304 = vpop.f32.mrb[0].mxu0
      %7305 = vmatprep.mubr.f32.mxu0 0.0
      %7306 = vmatmul.mubr.f32.gmra.mrb[0].mxu0 %v7224
      %v7307 = vpop.f32.mrb[0].mxu0
      %v7308 = vadd.f32 0.0, %v7307
      %v7309 = vpop.f32.mrb[0].mxu0
      %7310 = vmatprep.mubr.f32.mxu0 0.0
      %7311 = vmatmul.mubr.f32.gmra.mrb[0].mxu0 %v7227
      %v7312 = vpop.f32.mrb[0].mxu0
      %v7313 = vadd.f32 0.0, %v7312
      %v7314 = vpop.f32.mrb[0].mxu0
      %7315 = vdwg.mxu0
      %7316 = vrot.lane.b32.xlu0 %v6027, 32
      %v7317 = vpop.permute.xlu0 %7316
      %v7320 = vsel %vm2148, %v7298, 0
      %v7323 = vsel %vm2148, %v7303, 0
      %v7326 = vsel %vm2148, %v7308, 0
      %v7329 = vsel %vm2148, %v7313, 0
      %7331 = vmatprep.subr.mxu0 0.0
      %7332 = vmatpush1.msra.mxu0 %v7317
      %7333 = vmatprep.subr.mxu0 0.0
      %7334 = vmatpush1.msra.mxu0 0.0
      %7335 = vmatprep.subr.mxu0 0.0
      %7336 = vmatpush1.msra.mxu0 0.0
      %7337 = vmatprep.subr.mxu0 0.0
      %7338 = vmatpush1.msra.mxu0 0.0
      %7339 = vmatprep.subr.mxu0 0.0
      %7340 = vmatpush1.msra.mxu0 0.0
      %7341 = vmatprep.subr.mxu0 0.0
      %7342 = vmatpush1.msra.mxu0 0.0
      %7343 = vmatprep.subr.mxu0 0.0
      %7344 = vmatpush1.msra.mxu0 0.0
      %7345 = vmatprep.subr.mxu0 0.0
      %7346 = vmatpush1.msra.mxu0 0.0
      %7347 = vmatprep.subr.mxu0 0.0
      %7348 = vmatpush1.msra.mxu0 0.0
      %7349 = vmatprep.subr.mxu0 0.0
      %7350 = vmatpush1.msra.mxu0 0.0
      %7351 = vmatprep.subr.mxu0 0.0
      %7352 = vmatpush1.msra.mxu0 0.0
      %7353 = vmatprep.subr.mxu0 0.0
      %7354 = vmatpush1.msra.mxu0 0.0
      %7355 = vmatprep.subr.mxu0 0.0
      %7356 = vmatpush1.msra.mxu0 0.0
      %7357 = vmatprep.subr.mxu0 0.0
      %7358 = vmatpush1.msra.mxu0 0.0
      %7359 = vmatprep.subr.mxu0 0.0
      %7360 = vmatpush1.msra.mxu0 0.0
      %7361 = vmatprep.subr.mxu0 0.0
      %7362 = vmatpush1.msra.mxu0 0.0
      %7363 = vmatprep.subr.mxu0 0.0
      %7364 = vmatpush1.msra.mxu0 0.0
      %7365 = vmatprep.subr.mxu0 0.0
      %7366 = vmatpush1.msra.mxu0 0.0
      %7367 = vmatprep.subr.mxu0 0.0
      %7368 = vmatpush1.msra.mxu0 0.0
      %7369 = vmatprep.subr.mxu0 0.0
      %7370 = vmatpush1.msra.mxu0 0.0
      %7371 = vmatprep.subr.mxu0 0.0
      %7372 = vmatpush1.msra.mxu0 0.0
      %7373 = vmatprep.subr.mxu0 0.0
      %7374 = vmatpush1.msra.mxu0 0.0
      %7375 = vmatprep.subr.mxu0 0.0
      %7376 = vmatpush1.msra.mxu0 0.0
      %7377 = vmatprep.subr.mxu0 0.0
      %7378 = vmatpush1.msra.mxu0 0.0
      %7379 = vmatprep.subr.mxu0 0.0
      %7380 = vmatpush1.msra.mxu0 0.0
      %7381 = vmatprep.subr.mxu0 0.0
      %7382 = vmatpush1.msra.mxu0 0.0
      %7383 = vmatprep.subr.mxu0 0.0
      %7384 = vmatpush1.msra.mxu0 0.0
      %7385 = vmatprep.subr.mxu0 0.0
      %7386 = vmatpush1.msra.mxu0 0.0
      %7387 = vmatprep.subr.mxu0 0.0
      %7388 = vmatpush1.msra.mxu0 0.0
      %7389 = vmatprep.subr.mxu0 0.0
      %7390 = vmatpush1.msra.mxu0 0.0
      %7391 = vmatprep.subr.mxu0 0.0
      %7392 = vmatpush1.msra.mxu0 0.0
      %7393 = vmatprep.subr.mxu0 0.0
      %7394 = vmatpush1.msra.mxu0 0.0
      %7395 = vmatprep.mubr.f32.mxu0 0.0
      %7396 = vmatmul.mubr.f32.gmra.mrb[0].mxu0 %v7320
      %v7397 = vpop.f32.mrb[0].mxu0
      %v7398 = vadd.f32 0.0, %v7397
      %v7399 = vpop.f32.mrb[0].mxu0
      %7400 = vmatprep.mubr.f32.mxu0 0.0
      %7401 = vmatmul.mubr.f32.gmra.mrb[0].mxu0 %v7323
      %v7402 = vpop.f32.mrb[0].mxu0
      %v7403 = vadd.f32 0.0, %v7402
      %v7404 = vpop.f32.mrb[0].mxu0
      %7405 = vmatprep.mubr.f32.mxu0 0.0
      %7406 = vmatmul.mubr.f32.gmra.mrb[0].mxu0 %v7326
      %v7407 = vpop.f32.mrb[0].mxu0
      %v7408 = vadd.f32 0.0, %v7407
      %v7409 = vpop.f32.mrb[0].mxu0
      %7410 = vmatprep.mubr.f32.mxu0 0.0
      %7411 = vmatmul.mubr.f32.gmra.mrb[0].mxu0 %v7329
      %v7412 = vpop.f32.mrb[0].mxu0
      %v7413 = vadd.f32 0.0, %v7412
      %v7414 = vpop.f32.mrb[0].mxu0
      %7415 = vdwg.mxu0
      %7420 = vrot.lane.b32.xlu0 %v7398, 96
      %v7421 = vpop.permute.xlu0 %7420
      %7422 = vrot.lane.b32.xlu0 %v7403, 96
      %v7423 = vpop.permute.xlu0 %7422
      %7424 = vrot.lane.b32.xlu0 %v7408, 96
      %v7425 = vpop.permute.xlu0 %7424
      %7426 = vrot.lane.b32.xlu0 %v7413, 96
      %v7427 = vpop.permute.xlu0 %7426
      %v7432 = vadd.f32 %v7037, %v7421
      %v7433 = vadd.f32 %v7038, %v7423
      %v7434 = vadd.f32 %v7039, %v7425
      %v7435 = vadd.f32 %v7040, %v7427
      %7436 = vrot.lane.b32.xlu0 %v6124, 104
      %v7437 = vpop.permute.xlu0 %7436
      %7438 = vrot.lane.b32.xlu0 %v6129, 104
      %v7439 = vpop.permute.xlu0 %7438
      %7440 = vrot.lane.b32.xlu0 %v6134, 104
      %v7441 = vpop.permute.xlu0 %7440
      %7442 = vrot.lane.b32.xlu0 %v6139, 104
      %v7443 = vpop.permute.xlu0 %7442
      %7444 = vrot.lane.b32.xlu0 %v6240, 104
      %v7445 = vpop.permute.xlu0 %7444
      %7446 = vrot.lane.b32.xlu0 %v6245, 104
      %v7447 = vpop.permute.xlu0 %7446
      %7448 = vrot.lane.b32.xlu0 %v6250, 104
      %v7449 = vpop.permute.xlu0 %7448
      %7450 = vrot.lane.b32.xlu0 %v6255, 104
      %v7451 = vpop.permute.xlu0 %7450
      %v7452 = vsel %vm2148, %v7437, 0
      %v7454 = vsel %vm2148, %v7439, 0
      %v7456 = vsel %vm2148, %v7441, 0
      %v7458 = vsel %vm2148, %v7443, 0
      %v7460 = vsel %vm2148, %v7445, 0
      %v7462 = vsel %vm2148, %v7447, 0
      %v7464 = vsel %vm2148, %v7449, 0
      %v7466 = vsel %vm2148, %v7451, 0
      %7468 = vmatprep.subr.mxu0 0.0
      %7469 = vmatpush1.xpose.msra.mxu0 %v7460
      %7470 = vmatprep.subr.mxu0 0.0
      %7471 = vmatpush1.xpose.msra.mxu0 %v7462
      %7472 = vmatprep.subr.mxu0 0.0
      %7473 = vmatpush1.xpose.msra.mxu0 %v7464
      %7474 = vmatprep.subr.mxu0 0.0
      %7475 = vmatpush1.xpose.msra.mxu0 %v7466
      %7476 = vmatprep.subr.mxu0 0.0
      %7477 = vmatpush1.xpose.msra.mxu0 0.0
      %7478 = vmatprep.subr.mxu0 0.0
      %7479 = vmatpush1.xpose.msra.mxu0 0.0
      %7480 = vmatprep.subr.mxu0 0.0
      %7481 = vmatpush1.xpose.msra.mxu0 0.0
      %7482 = vmatprep.subr.mxu0 0.0
      %7483 = vmatpush1.xpose.msra.mxu0 0.0
      %7484 = vmatprep.subr.mxu0 0.0
      %7485 = vmatpush1.xpose.msra.mxu0 0.0
      %7486 = vmatprep.subr.mxu0 0.0
      %7487 = vmatpush1.xpose.msra.mxu0 0.0
      %7488 = vmatprep.subr.mxu0 0.0
      %7489 = vmatpush1.xpose.msra.mxu0 0.0
      %7490 = vmatprep.subr.mxu0 0.0
      %7491 = vmatpush1.xpose.msra.mxu0 0.0
      %7492 = vmatprep.subr.mxu0 0.0
      %7493 = vmatpush1.xpose.msra.mxu0 0.0
      %7494 = vmatprep.subr.mxu0 0.0
      %7495 = vmatpush1.xpose.msra.mxu0 0.0
      %7496 = vmatprep.subr.mxu0 0.0
      %7497 = vmatpush1.xpose.msra.mxu0 0.0
      %7498 = vmatprep.subr.mxu0 0.0
      %7499 = vmatpush1.xpose.msra.mxu0 0.0
      %7500 = vmatprep.subr.mxu0 0.0
      %7501 = vmatpush1.xpose.msra.mxu0 0.0
      %7502 = vmatprep.subr.mxu0 0.0
      %7503 = vmatpush1.xpose.msra.mxu0 0.0
      %7504 = vmatprep.subr.mxu0 0.0
      %7505 = vmatpush1.xpose.msra.mxu0 0.0
      %7506 = vmatprep.subr.mxu0 0.0
      %7507 = vmatpush1.xpose.msra.mxu0 0.0
      %7508 = vmatprep.subr.mxu0 0.0
      %7509 = vmatpush1.xpose.msra.mxu0 0.0
      %7510 = vmatprep.subr.mxu0 0.0
      %7511 = vmatpush1.xpose.msra.mxu0 0.0
      %7512 = vmatprep.subr.mxu0 0.0
      %7513 = vmatpush1.xpose.msra.mxu0 0.0
      %7514 = vmatprep.subr.mxu0 0.0
      %7515 = vmatpush1.xpose.msra.mxu0 0.0
      %7516 = vmatprep.subr.mxu0 0.0
      %7517 = vmatpush1.xpose.msra.mxu0 0.0
      %7518 = vmatprep.subr.mxu0 0.0
      %7519 = vmatpush1.xpose.msra.mxu0 0.0
      %7520 = vmatprep.subr.mxu0 0.0
      %7521 = vmatpush1.xpose.msra.mxu0 0.0
      %7522 = vmatprep.subr.mxu0 0.0
      %7523 = vmatpush1.xpose.msra.mxu0 0.0
      %7524 = vmatprep.subr.mxu0 0.0
      %7525 = vmatpush1.xpose.msra.mxu0 0.0
      %7526 = vmatprep.subr.mxu0 0.0
      %7527 = vmatpush1.xpose.msra.mxu0 0.0
      %7528 = vmatprep.subr.mxu0 0.0
      %7529 = vmatpush1.xpose.msra.mxu0 0.0
      %7530 = vmatprep.subr.mxu0 0.0
      %7531 = vmatpush1.xpose.msra.mxu0 0.0
      %7532 = vmatprep.mubr.f32.mxu0 0.0
      %7533 = vmatmul.mubr.f32.gmra.mrb[0].mxu0 %v7452
      %v7534 = vpop.f32.mrb[0].mxu0
      %v7535 = vadd.f32 0.0, %v7534
      %v7536 = vpop.f32.mrb[0].mxu0
      %7537 = vmatprep.mubr.f32.mxu0 0.0
      %7538 = vmatmul.mubr.f32.gmra.mrb[0].mxu0 %v7454
      %v7539 = vpop.f32.mrb[0].mxu0
      %v7540 = vadd.f32 0.0, %v7539
      %v7541 = vpop.f32.mrb[0].mxu0
      %7542 = vmatprep.mubr.f32.mxu0 0.0
      %7543 = vmatmul.mubr.f32.gmra.mrb[0].mxu0 %v7456
      %v7544 = vpop.f32.mrb[0].mxu0
      %v7545 = vadd.f32 0.0, %v7544
      %v7546 = vpop.f32.mrb[0].mxu0
      %7547 = vmatprep.mubr.f32.mxu0 0.0
      %7548 = vmatmul.mubr.f32.gmra.mrb[0].mxu0 %v7458
      %v7549 = vpop.f32.mrb[0].mxu0
      %v7550 = vadd.f32 0.0, %v7549
      %v7551 = vpop.f32.mrb[0].mxu0
      %7552 = vdwg.mxu0
      %v7553 = vmul.f32 %v7535, 0.35355338
      %v7554 = vmul.f32 %v7540, 0.35355338
      %v7555 = vmul.f32 %v7545, 0.35355338
      %v7556 = vmul.f32 %v7550, 0.35355338
      %v7557 = vsel %vm2254, %v7553, -inf
      %7558 = vmax.xlane.f32.xlu0 %v7557
      %v7559 = vpop.xlane.xlu0 %7558
      %v7560 = vsel %vm2254, %v7554, -inf
      %7561 = vmax.xlane.f32.xlu0 %v7560
      %v7562 = vpop.xlane.xlu0 %7561
      %v7563 = vsel %vm2254, %v7555, -inf
      %7564 = vmax.xlane.f32.xlu0 %v7563
      %v7565 = vpop.xlane.xlu0 %7564
      %v7566 = vsel %vm2264, %v7556, -inf
      %7567 = vmax.xlane.f32.xlu0 %v7566
      %v7568 = vpop.xlane.xlu0 %7567
      %v7569 = vsub.f32 %v7553, %v7559
      %v7570 = vsub.f32 %v7554, %v7562
      %v7571 = vsub.f32 %v7555, %v7565
      %v7572 = vsub.f32 %v7556, %v7568
      %v7573 = vmul.f32 %v7569, 1.442695
      %v7574 = vpow.pop %v7573
      %v7575 = vmul.f32 %v7570, 1.442695
      %v7576 = vpow.pop %v7575
      %v7577 = vmul.f32 %v7571, 1.442695
      %v7578 = vpow.pop %v7577
      %v7579 = vmul.f32 %v7572, 1.442695
      %v7580 = vpow.pop %v7579
      %v7581 = vsel %vm2254, %v7574, 0.0
      %7582 = vadd.xlane.f32.xlu0 %v7581
      %v7583 = vpop.xlane.xlu0 %7582
      %v7584 = vsel %vm2254, %v7576, 0.0
      %7585 = vadd.xlane.f32.xlu0 %v7584
      %v7586 = vpop.xlane.xlu0 %7585
      %v7587 = vsel %vm2254, %v7578, 0.0
      %7588 = vadd.xlane.f32.xlu0 %v7587
      %v7589 = vpop.xlane.xlu0 %7588
      %v7590 = vsel %vm2264, %v7580, 0.0
      %7591 = vadd.xlane.f32.xlu0 %v7590
      %v7592 = vpop.xlane.xlu0 %7591
      %v7593 = vrcp.pop %v7583
      %v7594 = vrcp.pop %v7586
      %v7595 = vrcp.pop %v7589
      %v7596 = vrcp.pop %v7592
      %v7597 = vmul.f32 %v7574, %v7593
      %v7598 = vmul.f32 %v7576, %v7594
      %v7599 = vmul.f32 %v7578, %v7595
      %v7600 = vmul.f32 %v7580, %v7596
      %7601 = vrot.lane.b32.xlu0 %v6240, 72
      %v7602 = vpop.permute.xlu0 %7601
      %7603 = vrot.lane.b32.xlu0 %v6245, 72
      %v7604 = vpop.permute.xlu0 %7603
      %7605 = vrot.lane.b32.xlu0 %v6250, 72
      %v7606 = vpop.permute.xlu0 %7605
      %7607 = vrot.lane.b32.xlu0 %v6255, 72
      %v7608 = vpop.permute.xlu0 %7607
      %v7613 = vsel %vm2254, %v7597, 0
      %v7616 = vsel %vm2254, %v7598, 0
      %v7619 = vsel %vm2254, %v7599, 0
      %v7622 = vsel %vm2254, %v7600, 0
      %v7624 = vsel %vm2323, %v7608, 0
      %7626 = vmatprep.subr.mxu0 0.0
      %7627 = vmatpush1.msra.mxu0 %v7602
      %7628 = vmatprep.subr.mxu0 0.0
      %7629 = vmatpush1.msra.mxu0 %v7604
      %7630 = vmatprep.subr.mxu0 0.0
      %7631 = vmatpush1.msra.mxu0 %v7606
      %7632 = vmatprep.subr.mxu0 0.0
      %7633 = vmatpush1.msra.mxu0 %v7624
      %7634 = vmatprep.subr.mxu0 0.0
      %7635 = vmatpush1.msra.mxu0 0.0
      %7636 = vmatprep.subr.mxu0 0.0
      %7637 = vmatpush1.msra.mxu0 0.0
      %7638 = vmatprep.subr.mxu0 0.0
      %7639 = vmatpush1.msra.mxu0 0.0
      %7640 = vmatprep.subr.mxu0 0.0
      %7641 = vmatpush1.msra.mxu0 0.0
      %7642 = vmatprep.subr.mxu0 0.0
      %7643 = vmatpush1.msra.mxu0 0.0
      %7644 = vmatprep.subr.mxu0 0.0
      %7645 = vmatpush1.msra.mxu0 0.0
      %7646 = vmatprep.subr.mxu0 0.0
      %7647 = vmatpush1.msra.mxu0 0.0
      %7648 = vmatprep.subr.mxu0 0.0
      %7649 = vmatpush1.msra.mxu0 0.0
      %7650 = vmatprep.subr.mxu0 0.0
      %7651 = vmatpush1.msra.mxu0 0.0
      %7652 = vmatprep.subr.mxu0 0.0
      %7653 = vmatpush1.msra.mxu0 0.0
      %7654 = vmatprep.subr.mxu0 0.0
      %7655 = vmatpush1.msra.mxu0 0.0
      %7656 = vmatprep.subr.mxu0 0.0
      %7657 = vmatpush1.msra.mxu0 0.0
      %7658 = vmatprep.subr.mxu0 0.0
      %7659 = vmatpush1.msra.mxu0 0.0
      %7660 = vmatprep.subr.mxu0 0.0
      %7661 = vmatpush1.msra.mxu0 0.0
      %7662 = vmatprep.subr.mxu0 0.0
      %7663 = vmatpush1.msra.mxu0 0.0
      %7664 = vmatprep.subr.mxu0 0.0
      %7665 = vmatpush1.msra.mxu0 0.0
      %7666 = vmatprep.subr.mxu0 0.0
      %7667 = vmatpush1.msra.mxu0 0.0
      %7668 = vmatprep.subr.mxu0 0.0
      %7669 = vmatpush1.msra.mxu0 0.0
      %7670 = vmatprep.subr.mxu0 0.0
      %7671 = vmatpush1.msra.mxu0 0.0
      %7672 = vmatprep.subr.mxu0 0.0
      %7673 = vmatpush1.msra.mxu0 0.0
      %7674 = vmatprep.subr.mxu0 0.0
      %7675 = vmatpush1.msra.mxu0 0.0
      %7676 = vmatprep.subr.mxu0 0.0
      %7677 = vmatpush1.msra.mxu0 0.0
      %7678 = vmatprep.subr.mxu0 0.0
      %7679 = vmatpush1.msra.mxu0 0.0
      %7680 = vmatprep.subr.mxu0 0.0
      %7681 = vmatpush1.msra.mxu0 0.0
      %7682 = vmatprep.subr.mxu0 0.0
      %7683 = vmatpush1.msra.mxu0 0.0
      %7684 = vmatprep.subr.mxu0 0.0
      %7685 = vmatpush1.msra.mxu0 0.0
      %7686 = vmatprep.subr.mxu0 0.0
      %7687 = vmatpush1.msra.mxu0 0.0
      %7688 = vmatprep.subr.mxu0 0.0
      %7689 = vmatpush1.msra.mxu0 0.0
      %7690 = vmatprep.mubr.f32.mxu0 0.0
      %7691 = vmatmul.mubr.f32.gmra.mrb[0].mxu0 %v7613
      %v7692 = vpop.f32.mrb[0].mxu0
      %v7693 = vadd.f32 0.0, %v7692
      %v7694 = vpop.f32.mrb[0].mxu0
      %7695 = vmatprep.mubr.f32.mxu0 0.0
      %7696 = vmatmul.mubr.f32.gmra.mrb[0].mxu0 %v7616
      %v7697 = vpop.f32.mrb[0].mxu0
      %v7698 = vadd.f32 0.0, %v7697
      %v7699 = vpop.f32.mrb[0].mxu0
      %7700 = vmatprep.mubr.f32.mxu0 0.0
      %7701 = vmatmul.mubr.f32.gmra.mrb[0].mxu0 %v7619
      %v7702 = vpop.f32.mrb[0].mxu0
      %v7703 = vadd.f32 0.0, %v7702
      %v7704 = vpop.f32.mrb[0].mxu0
      %7705 = vmatprep.mubr.f32.mxu0 0.0
      %7706 = vmatmul.mubr.f32.gmra.mrb[0].mxu0 %v7622
      %v7707 = vpop.f32.mrb[0].mxu0
      %v7708 = vadd.f32 0.0, %v7707
      %v7709 = vpop.f32.mrb[0].mxu0
      %7710 = vdwg.mxu0
      %7711 = vrot.lane.b32.xlu0 %v6028, 32
      %v7712 = vpop.permute.xlu0 %7711
      %v7715 = vsel %vm2148, %v7693, 0
      %v7718 = vsel %vm2148, %v7698, 0
      %v7721 = vsel %vm2148, %v7703, 0
      %v7724 = vsel %vm2148, %v7708, 0
      %7726 = vmatprep.subr.mxu0 0.0
      %7727 = vmatpush1.msra.mxu0 %v7712
      %7728 = vmatprep.subr.mxu0 0.0
      %7729 = vmatpush1.msra.mxu0 0.0
      %7730 = vmatprep.subr.mxu0 0.0
      %7731 = vmatpush1.msra.mxu0 0.0
      %7732 = vmatprep.subr.mxu0 0.0
      %7733 = vmatpush1.msra.mxu0 0.0
      %7734 = vmatprep.subr.mxu0 0.0
      %7735 = vmatpush1.msra.mxu0 0.0
      %7736 = vmatprep.subr.mxu0 0.0
      %7737 = vmatpush1.msra.mxu0 0.0
      %7738 = vmatprep.subr.mxu0 0.0
      %7739 = vmatpush1.msra.mxu0 0.0
      %7740 = vmatprep.subr.mxu0 0.0
      %7741 = vmatpush1.msra.mxu0 0.0
      %7742 = vmatprep.subr.mxu0 0.0
      %7743 = vmatpush1.msra.mxu0 0.0
      %7744 = vmatprep.subr.mxu0 0.0
      %7745 = vmatpush1.msra.mxu0 0.0
      %7746 = vmatprep.subr.mxu0 0.0
      %7747 = vmatpush1.msra.mxu0 0.0
      %7748 = vmatprep.subr.mxu0 0.0
      %7749 = vmatpush1.msra.mxu0 0.0
      %7750 = vmatprep.subr.mxu0 0.0
      %7751 = vmatpush1.msra.mxu0 0.0
      %7752 = vmatprep.subr.mxu0 0.0
      %7753 = vmatpush1.msra.mxu0 0.0
      %7754 = vmatprep.subr.mxu0 0.0
      %7755 = vmatpush1.msra.mxu0 0.0
      %7756 = vmatprep.subr.mxu0 0.0
      %7757 = vmatpush1.msra.mxu0 0.0
      %7758 = vmatprep.subr.mxu0 0.0
      %7759 = vmatpush1.msra.mxu0 0.0
      %7760 = vmatprep.subr.mxu0 0.0
      %7761 = vmatpush1.msra.mxu0 0.0
      %7762 = vmatprep.subr.mxu0 0.0
      %7763 = vmatpush1.msra.mxu0 0.0
      %7764 = vmatprep.subr.mxu0 0.0
      %7765 = vmatpush1.msra.mxu0 0.0
      %7766 = vmatprep.subr.mxu0 0.0
      %7767 = vmatpush1.msra.mxu0 0.0
      %7768 = vmatprep.subr.mxu0 0.0
      %7769 = vmatpush1.msra.mxu0 0.0
      %7770 = vmatprep.subr.mxu0 0.0
      %7771 = vmatpush1.msra.mxu0 0.0
      %7772 = vmatprep.subr.mxu0 0.0
      %7773 = vmatpush1.msra.mxu0 0.0
      %7774 = vmatprep.subr.mxu0 0.0
      %7775 = vmatpush1.msra.mxu0 0.0
      %7776 = vmatprep.subr.mxu0 0.0
      %7777 = vmatpush1.msra.mxu0 0.0
      %7778 = vmatprep.subr.mxu0 0.0
      %7779 = vmatpush1.msra.mxu0 0.0
      %7780 = vmatprep.subr.mxu0 0.0
      %7781 = vmatpush1.msra.mxu0 0.0
      %7782 = vmatprep.subr.mxu0 0.0
      %7783 = vmatpush1.msra.mxu0 0.0
      %7784 = vmatprep.subr.mxu0 0.0
      %7785 = vmatpush1.msra.mxu0 0.0
      %7786 = vmatprep.subr.mxu0 0.0
      %7787 = vmatpush1.msra.mxu0 0.0
      %7788 = vmatprep.subr.mxu0 0.0
      %7789 = vmatpush1.msra.mxu0 0.0
      %7790 = vmatprep.mubr.f32.mxu0 0.0
      %7791 = vmatmul.mubr.f32.gmra.mrb[0].mxu0 %v7715
      %v7792 = vpop.f32.mrb[0].mxu0
      %v7793 = vadd.f32 0.0, %v7792
      %v7794 = vpop.f32.mrb[0].mxu0
      %7795 = vmatprep.mubr.f32.mxu0 0.0
      %7796 = vmatmul.mubr.f32.gmra.mrb[0].mxu0 %v7718
      %v7797 = vpop.f32.mrb[0].mxu0
      %v7798 = vadd.f32 0.0, %v7797
      %v7799 = vpop.f32.mrb[0].mxu0
      %7800 = vmatprep.mubr.f32.mxu0 0.0
      %7801 = vmatmul.mubr.f32.gmra.mrb[0].mxu0 %v7721
      %v7802 = vpop.f32.mrb[0].mxu0
      %v7803 = vadd.f32 0.0, %v7802
      %v7804 = vpop.f32.mrb[0].mxu0
      %7805 = vmatprep.mubr.f32.mxu0 0.0
      %7806 = vmatmul.mubr.f32.gmra.mrb[0].mxu0 %v7724
      %v7807 = vpop.f32.mrb[0].mxu0
      %v7808 = vadd.f32 0.0, %v7807
      %v7809 = vpop.f32.mrb[0].mxu0
      %7810 = vdwg.mxu0
      %7815 = vrot.lane.b32.xlu0 %v7793, 96
      %v7816 = vpop.permute.xlu0 %7815
      %7817 = vrot.lane.b32.xlu0 %v7798, 96
      %v7818 = vpop.permute.xlu0 %7817
      %7819 = vrot.lane.b32.xlu0 %v7803, 96
      %v7820 = vpop.permute.xlu0 %7819
      %7821 = vrot.lane.b32.xlu0 %v7808, 96
      %v7822 = vpop.permute.xlu0 %7821
      %v7827 = vadd.f32 %v7432, %v7816
      %v7828 = vadd.f32 %v7433, %v7818
      %v7829 = vadd.f32 %v7434, %v7820
      %v7830 = vadd.f32 %v7435, %v7822
      %7835 = vrot.lane.b32.xlu0 %v7827, 64
      %v7836 = vpop.permute.xlu0 %7835
      %7837 = vrot.lane.b32.xlu0 %v7828, 64
      %v7838 = vpop.permute.xlu0 %7837
      %7839 = vrot.lane.b32.xlu0 %v7829, 64
      %v7840 = vpop.permute.xlu0 %7839
      %7841 = vrot.lane.b32.xlu0 %v7830, 64
      %v7842 = vpop.permute.xlu0 %7841
      %v7847 = vadd.f32 %v6020, %v7836
      %v7848 = vadd.f32 %v6021, %v7838
      %v7849 = vadd.f32 %v6022, %v7840
      %v7850 = vadd.f32 %v6023, %v7842
      %7855 = vrot.lane.b32.xlu0 %v7847, 96
      %v7856 = vpop.permute.xlu0 %7855
      %7857 = vrot.lane.b32.xlu0 %v7848, 96
      %v7858 = vpop.permute.xlu0 %7857
      %7859 = vrot.lane.b32.xlu0 %v7849, 96
      %v7860 = vpop.permute.xlu0 %7859
      %7861 = vrot.lane.b32.xlu0 %v7850, 96
      %v7862 = vpop.permute.xlu0 %7861
      %v7867 = vsel %vm2037, %v7856, 0.0
      %7868 = vadd.xlane.f32.xlu0 %v7867
      %v7869 = vpop.xlane.xlu0 %7868
      %v7870 = vsel %vm2037, %v7858, 0.0
      %7871 = vadd.xlane.f32.xlu0 %v7870
      %v7872 = vpop.xlane.xlu0 %7871
      %v7873 = vsel %vm2037, %v7860, 0.0
      %7874 = vadd.xlane.f32.xlu0 %v7873
      %v7875 = vpop.xlane.xlu0 %7874
      %v7876 = vsel %vm3749, %v7862, 0.0
      %7877 = vadd.xlane.f32.xlu0 %v7876
      %v7878 = vpop.xlane.xlu0 %7877
      %v7879 = vmul.f32 %v7869, %v3753
      %v7880 = vmul.f32 %v7872, %v3753
      %v7881 = vmul.f32 %v7875, %v3753
      %v7882 = vmul.f32 %v7878, %v3753
      %v7883 = vsub.f32 %v7847, %v7879
      %v7884 = vsub.f32 %v7848, %v7880
      %v7885 = vsub.f32 %v7849, %v7881
      %v7886 = vsub.f32 %v7850, %v7882
      %v7887 = vmul.f32 %v7883, %v7883
      %v7888 = vmul.f32 %v7884, %v7884
      %v7889 = vmul.f32 %v7885, %v7885
      %v7890 = vmul.f32 %v7886, %v7886
      %7895 = vrot.lane.b32.xlu0 %v7887, 96
      %v7896 = vpop.permute.xlu0 %7895
      %7897 = vrot.lane.b32.xlu0 %v7888, 96
      %v7898 = vpop.permute.xlu0 %7897
      %7899 = vrot.lane.b32.xlu0 %v7889, 96
      %v7900 = vpop.permute.xlu0 %7899
      %7901 = vrot.lane.b32.xlu0 %v7890, 96
      %v7902 = vpop.permute.xlu0 %7901
      %v7907 = vsel %vm2037, %v7896, 0.0
      %7908 = vadd.xlane.f32.xlu0 %v7907
      %v7909 = vpop.xlane.xlu0 %7908
      %v7910 = vsel %vm2037, %v7898, 0.0
      %7911 = vadd.xlane.f32.xlu0 %v7910
      %v7912 = vpop.xlane.xlu0 %7911
      %v7913 = vsel %vm2037, %v7900, 0.0
      %7914 = vadd.xlane.f32.xlu0 %v7913
      %v7915 = vpop.xlane.xlu0 %7914
      %v7916 = vsel %vm3749, %v7902, 0.0
      %7917 = vadd.xlane.f32.xlu0 %v7916
      %v7918 = vpop.xlane.xlu0 %7917
      %v7919 = vmul.f32 %v7909, %v3753
      %v7920 = vmul.f32 %v7912, %v3753
      %v7921 = vmul.f32 %v7915, %v3753
      %v7922 = vmul.f32 %v7918, %v3753
      %v7923 = vadd.f32 %v7919, 1e-05
      %v7924 = vadd.f32 %v7920, 1e-05
      %v7925 = vadd.f32 %v7921, 1e-05
      %v7926 = vadd.f32 %v7922, 1e-05
      %v7927 = vrsqrt.pop %v7923
      %v7928 = vrsqrt.pop %v7924
      %v7929 = vrsqrt.pop %v7925
      %v7930 = vrsqrt.pop %v7926
      %v7931 = vmul.f32 %v7883, %v7927
      %v7932 = vmul.f32 %v7884, %v7928
      %v7933 = vmul.f32 %v7885, %v7929
      %v7934 = vmul.f32 %v7886, %v7930
      %s7935 = scalar_lea.vmem %s16, 6
      %v7936 = vld [vmem:[%s7935] sm:$0x1]
      %v7938 = vlaneseq
      %v7939 = vshrl.u32 %v7938, 7
      %v7940 = vsub.s32 0, %v7939
      %v7941 = vrot.slane %v7936, %v7940
      %7942 = vrot.lane.b32.xlu0 %v7941, 32
      %v7943 = vpop.permute.xlu0 %7942
      %v7945 = vmul.f32 %v7931, %v7943
      %v7946 = vmul.f32 %v7932, %v7943
      %v7947 = vmul.f32 %v7933, %v7943
      %v7948 = vmul.f32 %v7934, %v7943
      %s7949 = scalar_lea.vmem %s16, 7
      %v7950 = vld [vmem:[%s7949] sm:$0x1]
      %v7952 = vlaneseq
      %v7953 = vshrl.u32 %v7952, 7
      %v7954 = vsub.s32 0, %v7953
      %v7955 = vrot.slane %v7950, %v7954
      %7956 = vrot.lane.b32.xlu0 %v7955, 32
      %v7957 = vpop.permute.xlu0 %7956
      %v7959 = vadd.f32 %v7945, %v7957
      %v7960 = vadd.f32 %v7946, %v7957
      %v7961 = vadd.f32 %v7947, %v7957
      %v7962 = vadd.f32 %v7948, %v7957
      %s7963 = scalar_lea.vmem %s12, 32
      %v7964 = vld [vmem:[%s7963] sm:$0xff]
      %v7965 = vld [vmem:[%s7963 + $0x8] sm:$0xff]
      %v7966 = vld [vmem:[%s7963 + $0x10] sm:$0xff]
      %v7967 = vld [vmem:[%s7963 + $0x18] sm:$0xff]
      %s7968 = scalar_lea.vmem %s13, 1
      %v7969 = vld [vmem:[%s7968] sm:$0x1]
      %v7971 = vlaneseq
      %v7972 = vshrl.u32 %v7971, 7
      %v7973 = vsub.s32 0, %v7972
      %v7974 = vrot.slane %v7969, %v7973
      %7980 = vrot.lane.b32.xlu0 %v7959, 96
      %v7981 = vpop.permute.xlu0 %7980
      %7982 = vrot.lane.b32.xlu0 %v7960, 96
      %v7983 = vpop.permute.xlu0 %7982
      %7984 = vrot.lane.b32.xlu0 %v7961, 96
      %v7985 = vpop.permute.xlu0 %7984
      %7986 = vrot.lane.b32.xlu0 %v7962, 96
      %v7987 = vpop.permute.xlu0 %7986
      %v7988 = vsel %vm2037, %v7981, 0
      %v7990 = vsel %vm2037, %v7983, 0
      %v7992 = vsel %vm2037, %v7985, 0
      %v7994 = vsel %vm2037, %v7987, 0
      %7996 = vmatprep.subr.mxu0 0.0
      %7997 = vmatpush1.msra.mxu0 %v7964
      %7998 = vmatprep.subr.mxu0 0.0
      %7999 = vmatpush1.msra.mxu0 %v7965
      %8000 = vmatprep.subr.mxu0 0.0
      %8001 = vmatpush1.msra.mxu0 %v7966
      %8002 = vmatprep.subr.mxu0 0.0
      %8003 = vmatpush1.msra.mxu0 %v7967
      %8004 = vmatprep.subr.mxu0 0.0
      %8005 = vmatpush1.msra.mxu0 0.0
      %8006 = vmatprep.subr.mxu0 0.0
      %8007 = vmatpush1.msra.mxu0 0.0
      %8008 = vmatprep.subr.mxu0 0.0
      %8009 = vmatpush1.msra.mxu0 0.0
      %8010 = vmatprep.subr.mxu0 0.0
      %8011 = vmatpush1.msra.mxu0 0.0
      %8012 = vmatprep.subr.mxu0 0.0
      %8013 = vmatpush1.msra.mxu0 0.0
      %8014 = vmatprep.subr.mxu0 0.0
      %8015 = vmatpush1.msra.mxu0 0.0
      %8016 = vmatprep.subr.mxu0 0.0
      %8017 = vmatpush1.msra.mxu0 0.0
      %8018 = vmatprep.subr.mxu0 0.0
      %8019 = vmatpush1.msra.mxu0 0.0
      %8020 = vmatprep.subr.mxu0 0.0
      %8021 = vmatpush1.msra.mxu0 0.0
      %8022 = vmatprep.subr.mxu0 0.0
      %8023 = vmatpush1.msra.mxu0 0.0
      %8024 = vmatprep.subr.mxu0 0.0
      %8025 = vmatpush1.msra.mxu0 0.0
      %8026 = vmatprep.subr.mxu0 0.0
      %8027 = vmatpush1.msra.mxu0 0.0
      %8028 = vmatprep.subr.mxu0 0.0
      %8029 = vmatpush1.msra.mxu0 0.0
      %8030 = vmatprep.subr.mxu0 0.0
      %8031 = vmatpush1.msra.mxu0 0.0
      %8032 = vmatprep.subr.mxu0 0.0
      %8033 = vmatpush1.msra.mxu0 0.0
      %8034 = vmatprep.subr.mxu0 0.0
      %8035 = vmatpush1.msra.mxu0 0.0
      %8036 = vmatprep.subr.mxu0 0.0
      %8037 = vmatpush1.msra.mxu0 0.0
      %8038 = vmatprep.subr.mxu0 0.0
      %8039 = vmatpush1.msra.mxu0 0.0
      %8040 = vmatprep.subr.mxu0 0.0
      %8041 = vmatpush1.msra.mxu0 0.0
      %8042 = vmatprep.subr.mxu0 0.0
      %8043 = vmatpush1.msra.mxu0 0.0
      %8044 = vmatprep.subr.mxu0 0.0
      %8045 = vmatpush1.msra.mxu0 0.0
      %8046 = vmatprep.subr.mxu0 0.0
      %8047 = vmatpush1.msra.mxu0 0.0
      %8048 = vmatprep.subr.mxu0 0.0
      %8049 = vmatpush1.msra.mxu0 0.0
      %8050 = vmatprep.subr.mxu0 0.0
      %8051 = vmatpush1.msra.mxu0 0.0
      %8052 = vmatprep.subr.mxu0 0.0
      %8053 = vmatpush1.msra.mxu0 0.0
      %8054 = vmatprep.subr.mxu0 0.0
      %8055 = vmatpush1.msra.mxu0 0.0
      %8056 = vmatprep.subr.mxu0 0.0
      %8057 = vmatpush1.msra.mxu0 0.0
      %8058 = vmatprep.subr.mxu0 0.0
      %8059 = vmatpush1.msra.mxu0 0.0
      %8060 = vmatprep.mubr.f32.mxu0 0.0
      %8061 = vmatmul.mubr.f32.gmra.mrb[0].mxu0 %v7988
      %v8062 = vpop.f32.mrb[0].mxu0
      %v8063 = vadd.f32 %v7974, %v8062
      %v8064 = vpop.f32.mrb[0].mxu0
      %8065 = vmatprep.mubr.f32.mxu0 0.0
      %8066 = vmatmul.mubr.f32.gmra.mrb[0].mxu0 %v7990
      %v8067 = vpop.f32.mrb[0].mxu0
      %v8068 = vadd.f32 %v7974, %v8067
      %v8069 = vpop.f32.mrb[0].mxu0
      %8070 = vmatprep.mubr.f32.mxu0 0.0
      %8071 = vmatmul.mubr.f32.gmra.mrb[0].mxu0 %v7992
      %v8072 = vpop.f32.mrb[0].mxu0
      %v8073 = vadd.f32 %v7974, %v8072
      %v8074 = vpop.f32.mrb[0].mxu0
      %8075 = vmatprep.mubr.f32.mxu0 0.0
      %8076 = vmatmul.mubr.f32.gmra.mrb[0].mxu0 %v7994
      %v8077 = vpop.f32.mrb[0].mxu0
      %v8078 = vadd.f32 %v7974, %v8077
      %v8079 = vpop.f32.mrb[0].mxu0
      %8080 = vdwg.mxu0
      %v8081 = vmax.f32 %v8063, 0.0
      %v8082 = vmax.f32 %v8068, 0.0
      %v8083 = vmax.f32 %v8073, 0.0
      %v8084 = vmax.f32 %v8078, 0.0
      %s8085 = scalar_lea.vmem %s14, 64
      %v8086 = vld [vmem:[%s8085] sm:$0xff]
      %v8087 = vld [vmem:[%s8085 + $0x8] sm:$0xff]
      %v8088 = vld [vmem:[%s8085 + $0x10] sm:$0xff]
      %v8089 = vld [vmem:[%s8085 + $0x18] sm:$0xff]
      %v8090 = vld [vmem:[%s8085 + $0x20] sm:$0xff]
      %v8091 = vld [vmem:[%s8085 + $0x28] sm:$0xff]
      %v8092 = vld [vmem:[%s8085 + $0x30] sm:$0xff]
      %v8093 = vld [vmem:[%s8085 + $0x38] sm:$0xff]
      %s8094 = scalar_lea.vmem %s15, 1
      %v8095 = vld [vmem:[%s8094] sm:$0x1]
      %v8097 = vlaneseq
      %v8098 = vshrl.u32 %v8097, 7
      %v8099 = vsub.s32 0, %v8098
      %v8100 = vrot.slane %v8095, %v8099
      %v8103 = vsel %vm1317, %v8081, 0
      %v8106 = vsel %vm1317, %v8082, 0
      %v8109 = vsel %vm1317, %v8083, 0
      %v8112 = vsel %vm1317, %v8084, 0
      %8114 = vmatprep.subr.mxu0 0.0
      %8115 = vmatpush1.msra.mxu0 %v8086
      %8116 = vmatprep.subr.mxu0 0.0
      %8117 = vmatpush1.msra.mxu0 %v8087
      %8118 = vmatprep.subr.mxu0 0.0
      %8119 = vmatpush1.msra.mxu0 %v8088
      %8120 = vmatprep.subr.mxu0 0.0
      %8121 = vmatpush1.msra.mxu0 %v8089
      %8122 = vmatprep.subr.mxu0 0.0
      %8123 = vmatpush1.msra.mxu0 %v8090
      %8124 = vmatprep.subr.mxu0 0.0
      %8125 = vmatpush1.msra.mxu0 %v8091
      %8126 = vmatprep.subr.mxu0 0.0
      %8127 = vmatpush1.msra.mxu0 %v8092
      %8128 = vmatprep.subr.mxu0 0.0
      %8129 = vmatpush1.msra.mxu0 %v8093
      %8130 = vmatprep.subr.mxu0 0.0
      %8131 = vmatpush1.msra.mxu0 0.0
      %8132 = vmatprep.subr.mxu0 0.0
      %8133 = vmatpush1.msra.mxu0 0.0
      %8134 = vmatprep.subr.mxu0 0.0
      %8135 = vmatpush1.msra.mxu0 0.0
      %8136 = vmatprep.subr.mxu0 0.0
      %8137 = vmatpush1.msra.mxu0 0.0
      %8138 = vmatprep.subr.mxu0 0.0
      %8139 = vmatpush1.msra.mxu0 0.0
      %8140 = vmatprep.subr.mxu0 0.0
      %8141 = vmatpush1.msra.mxu0 0.0
      %8142 = vmatprep.subr.mxu0 0.0
      %8143 = vmatpush1.msra.mxu0 0.0
      %8144 = vmatprep.subr.mxu0 0.0
      %8145 = vmatpush1.msra.mxu0 0.0
      %8146 = vmatprep.subr.mxu0 0.0
      %8147 = vmatpush1.msra.mxu0 0.0
      %8148 = vmatprep.subr.mxu0 0.0
      %8149 = vmatpush1.msra.mxu0 0.0
      %8150 = vmatprep.subr.mxu0 0.0
      %8151 = vmatpush1.msra.mxu0 0.0
      %8152 = vmatprep.subr.mxu0 0.0
      %8153 = vmatpush1.msra.mxu0 0.0
      %8154 = vmatprep.subr.mxu0 0.0
      %8155 = vmatpush1.msra.mxu0 0.0
      %8156 = vmatprep.subr.mxu0 0.0
      %8157 = vmatpush1.msra.mxu0 0.0
      %8158 = vmatprep.subr.mxu0 0.0
      %8159 = vmatpush1.msra.mxu0 0.0
      %8160 = vmatprep.subr.mxu0 0.0
      %8161 = vmatpush1.msra.mxu0 0.0
      %8162 = vmatprep.subr.mxu0 0.0
      %8163 = vmatpush1.msra.mxu0 0.0
      %8164 = vmatprep.subr.mxu0 0.0
      %8165 = vmatpush1.msra.mxu0 0.0
      %8166 = vmatprep.subr.mxu0 0.0
      %8167 = vmatpush1.msra.mxu0 0.0
      %8168 = vmatprep.subr.mxu0 0.0
      %8169 = vmatpush1.msra.mxu0 0.0
      %8170 = vmatprep.subr.mxu0 0.0
      %8171 = vmatpush1.msra.mxu0 0.0
      %8172 = vmatprep.subr.mxu0 0.0
      %8173 = vmatpush1.msra.mxu0 0.0
      %8174 = vmatprep.subr.mxu0 0.0
      %8175 = vmatpush1.msra.mxu0 0.0
      %8176 = vmatprep.subr.mxu0 0.0
      %8177 = vmatpush1.msra.mxu0 0.0
      %8178 = vmatprep.mubr.f32.mxu0 0.0
      %8179 = vmatmul.mubr.f32.gmra.mrb[0].mxu0 %v8103
      %v8180 = vpop.f32.mrb[0].mxu0
      %v8181 = vadd.f32 %v8100, %v8180
      %v8182 = vpop.f32.mrb[0].mxu0
      %8183 = vmatprep.mubr.f32.mxu0 0.0
      %8184 = vmatmul.mubr.f32.gmra.mrb[0].mxu0 %v8106
      %v8185 = vpop.f32.mrb[0].mxu0
      %v8186 = vadd.f32 %v8100, %v8185
      %v8187 = vpop.f32.mrb[0].mxu0
      %8188 = vmatprep.mubr.f32.mxu0 0.0
      %8189 = vmatmul.mubr.f32.gmra.mrb[0].mxu0 %v8109
      %v8190 = vpop.f32.mrb[0].mxu0
      %v8191 = vadd.f32 %v8100, %v8190
      %v8192 = vpop.f32.mrb[0].mxu0
      %8193 = vmatprep.mubr.f32.mxu0 0.0
      %8194 = vmatmul.mubr.f32.gmra.mrb[0].mxu0 %v8112
      %v8195 = vpop.f32.mrb[0].mxu0
      %v8196 = vadd.f32 %v8100, %v8195
      %v8197 = vpop.f32.mrb[0].mxu0
      %8198 = vdwg.mxu0
      %8203 = vrot.lane.b32.xlu0 %v8181, 32
      %v8204 = vpop.permute.xlu0 %8203
      %8205 = vrot.lane.b32.xlu0 %v8186, 32
      %v8206 = vpop.permute.xlu0 %8205
      %8207 = vrot.lane.b32.xlu0 %v8191, 32
      %v8208 = vpop.permute.xlu0 %8207
      %8209 = vrot.lane.b32.xlu0 %v8196, 32
      %v8210 = vpop.permute.xlu0 %8209
      %v8215 = vadd.f32 %v7959, %v8204
      %v8216 = vadd.f32 %v7960, %v8206
      %v8217 = vadd.f32 %v7961, %v8208
      %v8218 = vadd.f32 %v7962, %v8210
      %8223 = vrot.lane.b32.xlu0 %v8215, 96
      %v8224 = vpop.permute.xlu0 %8223
      %8225 = vrot.lane.b32.xlu0 %v8216, 96
      %v8226 = vpop.permute.xlu0 %8225
      %8227 = vrot.lane.b32.xlu0 %v8217, 96
      %v8228 = vpop.permute.xlu0 %8227
      %8229 = vrot.lane.b32.xlu0 %v8218, 96
      %v8230 = vpop.permute.xlu0 %8229
      %v8235 = vsel %vm2037, %v8224, 0.0
      %8236 = vadd.xlane.f32.xlu0 %v8235
      %v8237 = vpop.xlane.xlu0 %8236
      %v8238 = vsel %vm2037, %v8226, 0.0
      %8239 = vadd.xlane.f32.xlu0 %v8238
      %v8240 = vpop.xlane.xlu0 %8239
      %v8241 = vsel %vm2037, %v8228, 0.0
      %8242 = vadd.xlane.f32.xlu0 %v8241
      %v8243 = vpop.xlane.xlu0 %8242
      %v8244 = vsel %vm3749, %v8230, 0.0
      %8245 = vadd.xlane.f32.xlu0 %v8244
      %v8246 = vpop.xlane.xlu0 %8245
      %v8247 = vmul.f32 %v8237, %v3753
      %v8248 = vmul.f32 %v8240, %v3753
      %v8249 = vmul.f32 %v8243, %v3753
      %v8250 = vmul.f32 %v8246, %v3753
      %v8251 = vsub.f32 %v8215, %v8247
      %v8252 = vsub.f32 %v8216, %v8248
      %v8253 = vsub.f32 %v8217, %v8249
      %v8254 = vsub.f32 %v8218, %v8250
      %v8255 = vmul.f32 %v8251, %v8251
      %v8256 = vmul.f32 %v8252, %v8252
      %v8257 = vmul.f32 %v8253, %v8253
      %v8258 = vmul.f32 %v8254, %v8254
      %8263 = vrot.lane.b32.xlu0 %v8255, 96
      %v8264 = vpop.permute.xlu0 %8263
      %8265 = vrot.lane.b32.xlu0 %v8256, 96
      %v8266 = vpop.permute.xlu0 %8265
      %8267 = vrot.lane.b32.xlu0 %v8257, 96
      %v8268 = vpop.permute.xlu0 %8267
      %8269 = vrot.lane.b32.xlu0 %v8258, 96
      %v8270 = vpop.permute.xlu0 %8269
      %v8275 = vsel %vm2037, %v8264, 0.0
      %8276 = vadd.xlane.f32.xlu0 %v8275
      %v8277 = vpop.xlane.xlu0 %8276
      %v8278 = vsel %vm2037, %v8266, 0.0
      %8279 = vadd.xlane.f32.xlu0 %v8278
      %v8280 = vpop.xlane.xlu0 %8279
      %v8281 = vsel %vm2037, %v8268, 0.0
      %8282 = vadd.xlane.f32.xlu0 %v8281
      %v8283 = vpop.xlane.xlu0 %8282
      %v8284 = vsel %vm3749, %v8270, 0.0
      %8285 = vadd.xlane.f32.xlu0 %v8284
      %v8286 = vpop.xlane.xlu0 %8285
      %v8287 = vmul.f32 %v8277, %v3753
      %v8288 = vmul.f32 %v8280, %v3753
      %v8289 = vmul.f32 %v8283, %v3753
      %v8290 = vmul.f32 %v8286, %v3753
      %v8291 = vadd.f32 %v8287, 1e-05
      %v8292 = vadd.f32 %v8288, 1e-05
      %v8293 = vadd.f32 %v8289, 1e-05
      %v8294 = vadd.f32 %v8290, 1e-05
      %v8295 = vrsqrt.pop %v8291
      %v8296 = vrsqrt.pop %v8292
      %v8297 = vrsqrt.pop %v8293
      %v8298 = vrsqrt.pop %v8294
      %v8299 = vmul.f32 %v8251, %v8295
      %v8300 = vmul.f32 %v8252, %v8296
      %v8301 = vmul.f32 %v8253, %v8297
      %v8302 = vmul.f32 %v8254, %v8298
      %s8303 = scalar_lea.vmem %s16, 8
      %v8304 = vld [vmem:[%s8303] sm:$0x1]
      %v8306 = vlaneseq
      %v8307 = vshrl.u32 %v8306, 7
      %v8308 = vsub.s32 0, %v8307
      %v8309 = vrot.slane %v8304, %v8308
      %8310 = vrot.lane.b32.xlu0 %v8309, 32
      %v8311 = vpop.permute.xlu0 %8310
      %v8313 = vmul.f32 %v8299, %v8311
      %v8314 = vmul.f32 %v8300, %v8311
      %v8315 = vmul.f32 %v8301, %v8311
      %v8316 = vmul.f32 %v8302, %v8311
      %s8317 = scalar_lea.vmem %s16, 9
      %v8318 = vld [vmem:[%s8317] sm:$0x1]
      %v8320 = vlaneseq
      %v8321 = vshrl.u32 %v8320, 7
      %v8322 = vsub.s32 0, %v8321
      %v8323 = vrot.slane %v8318, %v8322
      %8324 = vrot.lane.b32.xlu0 %v8323, 32
      %v8325 = vpop.permute.xlu0 %8324
      %v8327 = vadd.f32 %v8313, %v8325
      %v8328 = vadd.f32 %v8314, %v8325
      %v8329 = vadd.f32 %v8315, %v8325
      %v8330 = vadd.f32 %v8316, %v8325
      %8335 = vrot.lane.b32.xlu0 %v8327, 96
      %v8336 = vpop.permute.xlu0 %8335
      %8337 = vrot.lane.b32.xlu0 %v8328, 96
      %v8338 = vpop.permute.xlu0 %8337
      %8339 = vrot.lane.b32.xlu0 %v8329, 96
      %v8340 = vpop.permute.xlu0 %8339
      %8341 = vrot.lane.b32.xlu0 %v8330, 96
      %v8342 = vpop.permute.xlu0 %8341
      %v8347 = vsel %vm2037, %v8336, 0.0
      %8348 = vadd.xlane.f32.xlu0 %v8347
      %v8349 = vpop.xlane.xlu0 %8348
      %v8350 = vsel %vm2037, %v8338, 0.0
      %8351 = vadd.xlane.f32.xlu0 %v8350
      %v8352 = vpop.xlane.xlu0 %8351
      %v8353 = vsel %vm2037, %v8340, 0.0
      %8354 = vadd.xlane.f32.xlu0 %v8353
      %v8355 = vpop.xlane.xlu0 %8354
      %v8356 = vsel %vm3749, %v8342, 0.0
      %8357 = vadd.xlane.f32.xlu0 %v8356
      %v8358 = vpop.xlane.xlu0 %8357
      %v8359 = vmul.f32 %v8349, %v3753
      %v8360 = vmul.f32 %v8352, %v3753
      %v8361 = vmul.f32 %v8355, %v3753
      %v8362 = vmul.f32 %v8358, %v3753
      %v8363 = vsub.f32 %v8327, %v8359
      %v8364 = vsub.f32 %v8328, %v8360
      %v8365 = vsub.f32 %v8329, %v8361
      %v8366 = vsub.f32 %v8330, %v8362
      %v8367 = vmul.f32 %v8363, %v8363
      %v8368 = vmul.f32 %v8364, %v8364
      %v8369 = vmul.f32 %v8365, %v8365
      %v8370 = vmul.f32 %v8366, %v8366
      %8375 = vrot.lane.b32.xlu0 %v8367, 96
      %v8376 = vpop.permute.xlu0 %8375
      %8377 = vrot.lane.b32.xlu0 %v8368, 96
      %v8378 = vpop.permute.xlu0 %8377
      %8379 = vrot.lane.b32.xlu0 %v8369, 96
      %v8380 = vpop.permute.xlu0 %8379
      %8381 = vrot.lane.b32.xlu0 %v8370, 96
      %v8382 = vpop.permute.xlu0 %8381
      %v8387 = vsel %vm2037, %v8376, 0.0
      %8388 = vadd.xlane.f32.xlu0 %v8387
      %v8389 = vpop.xlane.xlu0 %8388
      %v8390 = vsel %vm2037, %v8378, 0.0
      %8391 = vadd.xlane.f32.xlu0 %v8390
      %v8392 = vpop.xlane.xlu0 %8391
      %v8393 = vsel %vm2037, %v8380, 0.0
      %8394 = vadd.xlane.f32.xlu0 %v8393
      %v8395 = vpop.xlane.xlu0 %8394
      %v8396 = vsel %vm3749, %v8382, 0.0
      %8397 = vadd.xlane.f32.xlu0 %v8396
      %v8398 = vpop.xlane.xlu0 %8397
      %v8399 = vmul.f32 %v8389, %v3753
      %v8400 = vmul.f32 %v8392, %v3753
      %v8401 = vmul.f32 %v8395, %v3753
      %v8402 = vmul.f32 %v8398, %v3753
      %v8403 = vadd.f32 %v8399, 1e-05
      %v8404 = vadd.f32 %v8400, 1e-05
      %v8405 = vadd.f32 %v8401, 1e-05
      %v8406 = vadd.f32 %v8402, 1e-05
      %v8407 = vrsqrt.pop %v8403
      %v8408 = vrsqrt.pop %v8404
      %v8409 = vrsqrt.pop %v8405
      %v8410 = vrsqrt.pop %v8406
      %v8411 = vmul.f32 %v8363, %v8407
      %v8412 = vmul.f32 %v8364, %v8408
      %v8413 = vmul.f32 %v8365, %v8409
      %v8414 = vmul.f32 %v8366, %v8410
      %s8415 = scalar_lea.vmem %s16, 12
      %v8416 = vld [vmem:[%s8415] sm:$0x1]
      %v8418 = vlaneseq
      %v8419 = vshrl.u32 %v8418, 7
      %v8420 = vsub.s32 0, %v8419
      %v8421 = vrot.slane %v8416, %v8420
      %8422 = vrot.lane.b32.xlu0 %v8421, 32
      %v8423 = vpop.permute.xlu0 %8422
      %v8425 = vmul.f32 %v8411, %v8423
      %v8426 = vmul.f32 %v8412, %v8423
      %v8427 = vmul.f32 %v8413, %v8423
      %v8428 = vmul.f32 %v8414, %v8423
      %s8429 = scalar_lea.vmem %s16, 13
      %v8430 = vld [vmem:[%s8429] sm:$0x1]
      %v8432 = vlaneseq
      %v8433 = vshrl.u32 %v8432, 7
      %v8434 = vsub.s32 0, %v8433
      %v8435 = vrot.slane %v8430, %v8434
      %8436 = vrot.lane.b32.xlu0 %v8435, 32
      %v8437 = vpop.permute.xlu0 %8436
      %v8439 = vadd.f32 %v8425, %v8437
      %v8440 = vadd.f32 %v8426, %v8437
      %v8441 = vadd.f32 %v8427, %v8437
      %v8442 = vadd.f32 %v8428, %v8437
      %vm8443 = vcmask 523520
      %v8444 = vsel %vm8443, %v8439, 0.0
      %v8445 = vsel %vm8443, %v8440, 0.0
      %v8446 = vadd.f32 %v8444, %v8445
      %v8447 = vsel %vm8443, %v8441, 0.0
      %v8448 = vadd.f32 %v8446, %v8447
      %vm8449 = vcmask 516352
      %v8450 = vsel %vm8449, %v8442, 0.0
      %v8451 = vadd.f32 %v8448, %v8450
      %v8452 = vrot.slane %v8451, 4
      %v8453 = vadd.f32 %v8451, %v8452
      %v8454 = vrot.slane %v8453, 2
      %v8455 = vadd.f32 %v8453, %v8454
      %v8456 = vrot.slane %v8455, 1
      %v8457 = vadd.f32 %v8455, %v8456
      %v8458 = vrcp.pop 25.0
      %v8459 = vmul.f32 %v8457, %v8458
      %v8460 = vld [vmem:[%s17] sm:$0xff]
      %v8461 = vld [vmem:[%s17 + $0x8] sm:$0xff]
      %v8462 = vld [vmem:[%s17 + $0x10] sm:$0xff]
      %v8463 = vld [vmem:[%s17 + $0x18] sm:$0xff]
      %v8464 = vld [vmem:[%s18] sm:$0x1]
      %8466 = vrot.lane.b32.xlu0 %v8459, 96
      %v8467 = vpop.permute.xlu0 %8466
      %v8468 = vsel %vm2037, %v8467, 0
      %8470 = vmatprep.subr.mxu0 0.0
      %8471 = vmatpush1.msra.mxu0 %v8460
      %8472 = vmatprep.subr.mxu0 0.0
      %8473 = vmatpush1.msra.mxu0 %v8461
      %8474 = vmatprep.subr.mxu0 0.0
      %8475 = vmatpush1.msra.mxu0 %v8462
      %8476 = vmatprep.subr.mxu0 0.0
      %8477 = vmatpush1.msra.mxu0 %v8463
      %8478 = vmatprep.subr.mxu0 0.0
      %8479 = vmatpush1.msra.mxu0 0.0
      %8480 = vmatprep.subr.mxu0 0.0
      %8481 = vmatpush1.msra.mxu0 0.0
      %8482 = vmatprep.subr.mxu0 0.0
      %8483 = vmatpush1.msra.mxu0 0.0
      %8484 = vmatprep.subr.mxu0 0.0
      %8485 = vmatpush1.msra.mxu0 0.0
      %8486 = vmatprep.subr.mxu0 0.0
      %8487 = vmatpush1.msra.mxu0 0.0
      %8488 = vmatprep.subr.mxu0 0.0
      %8489 = vmatpush1.msra.mxu0 0.0
      %8490 = vmatprep.subr.mxu0 0.0
      %8491 = vmatpush1.msra.mxu0 0.0
      %8492 = vmatprep.subr.mxu0 0.0
      %8493 = vmatpush1.msra.mxu0 0.0
      %8494 = vmatprep.subr.mxu0 0.0
      %8495 = vmatpush1.msra.mxu0 0.0
      %8496 = vmatprep.subr.mxu0 0.0
      %8497 = vmatpush1.msra.mxu0 0.0
      %8498 = vmatprep.subr.mxu0 0.0
      %8499 = vmatpush1.msra.mxu0 0.0
      %8500 = vmatprep.subr.mxu0 0.0
      %8501 = vmatpush1.msra.mxu0 0.0
      %8502 = vmatprep.subr.mxu0 0.0
      %8503 = vmatpush1.msra.mxu0 0.0
      %8504 = vmatprep.subr.mxu0 0.0
      %8505 = vmatpush1.msra.mxu0 0.0
      %8506 = vmatprep.subr.mxu0 0.0
      %8507 = vmatpush1.msra.mxu0 0.0
      %8508 = vmatprep.subr.mxu0 0.0
      %8509 = vmatpush1.msra.mxu0 0.0
      %8510 = vmatprep.subr.mxu0 0.0
      %8511 = vmatpush1.msra.mxu0 0.0
      %8512 = vmatprep.subr.mxu0 0.0
      %8513 = vmatpush1.msra.mxu0 0.0
      %8514 = vmatprep.subr.mxu0 0.0
      %8515 = vmatpush1.msra.mxu0 0.0
      %8516 = vmatprep.subr.mxu0 0.0
      %8517 = vmatpush1.msra.mxu0 0.0
      %8518 = vmatprep.subr.mxu0 0.0
      %8519 = vmatpush1.msra.mxu0 0.0
      %8520 = vmatprep.subr.mxu0 0.0
      %8521 = vmatpush1.msra.mxu0 0.0
      %8522 = vmatprep.subr.mxu0 0.0
      %8523 = vmatpush1.msra.mxu0 0.0
      %8524 = vmatprep.subr.mxu0 0.0
      %8525 = vmatpush1.msra.mxu0 0.0
      %8526 = vmatprep.subr.mxu0 0.0
      %8527 = vmatpush1.msra.mxu0 0.0
      %8528 = vmatprep.subr.mxu0 0.0
      %8529 = vmatpush1.msra.mxu0 0.0
      %8530 = vmatprep.subr.mxu0 0.0
      %8531 = vmatpush1.msra.mxu0 0.0
      %8532 = vmatprep.subr.mxu0 0.0
      %8533 = vmatpush1.msra.mxu0 0.0
      %8534 = vmatprep.mubr.f32.mxu0 0.0
      %8535 = vmatmul.mubr.f32.gmra.mrb[0].mxu0 %v8468
      %v8536 = vpop.f32.mrb[0].mxu0
      %v8537 = vadd.f32 %v8464, %v8536
      %v8538 = vpop.f32.mrb[0].mxu0
      %8539 = vdwg.mxu0
      %v8540 = vmax.f32 %v8537, 0.0
      %v8541 = vld [vmem:[%s19] sm:$0xff]
      %v8542 = vld [vmem:[%s19 + $0x8] sm:$0xff]
      %v8543 = vld [vmem:[%s19 + $0x10] sm:$0xff]
      %v8544 = vld [vmem:[%s19 + $0x18] sm:$0xff]
      %v8545 = vld [vmem:[%s19 + $0x20] sm:$0xff]
      %v8546 = vld [vmem:[%s19 + $0x28] sm:$0xff]
      %v8547 = vld [vmem:[%s19 + $0x30] sm:$0xff]
      %v8548 = vld [vmem:[%s19 + $0x38] sm:$0xff]
      %v8549 = vld [vmem:[%s19 + $0x40] sm:$0xff]
      %v8550 = vld [vmem:[%s19 + $0x48] sm:$0xff]
      %v8551 = vld [vmem:[%s20] sm:$0x1]
      %vm8552 = vcmask 654336
      %v8554 = vsel %vm8552, %v8540, 0
      %8556 = vmatprep.subr.mxu0 0.0
      %8557 = vmatpush1.msra.mxu0 %v8541
      %8558 = vmatprep.subr.mxu0 0.0
      %8559 = vmatpush1.msra.mxu0 %v8542
      %8560 = vmatprep.subr.mxu0 0.0
      %8561 = vmatpush1.msra.mxu0 %v8543
      %8562 = vmatprep.subr.mxu0 0.0
      %8563 = vmatpush1.msra.mxu0 %v8544
      %8564 = vmatprep.subr.mxu0 0.0
      %8565 = vmatpush1.msra.mxu0 %v8545
      %8566 = vmatprep.subr.mxu0 0.0
      %8567 = vmatpush1.msra.mxu0 %v8546
      %8568 = vmatprep.subr.mxu0 0.0
      %8569 = vmatpush1.msra.mxu0 %v8547
      %8570 = vmatprep.subr.mxu0 0.0
      %8571 = vmatpush1.msra.mxu0 %v8548
      %8572 = vmatprep.subr.mxu0 0.0
      %8573 = vmatpush1.msra.mxu0 %v8549
      %8574 = vmatprep.subr.mxu0 0.0
      %8575 = vmatpush1.msra.mxu0 %v8550
      %8576 = vmatprep.subr.mxu0 0.0
      %8577 = vmatpush1.msra.mxu0 0.0
      %8578 = vmatprep.subr.mxu0 0.0
      %8579 = vmatpush1.msra.mxu0 0.0
      %8580 = vmatprep.subr.mxu0 0.0
      %8581 = vmatpush1.msra.mxu0 0.0
      %8582 = vmatprep.subr.mxu0 0.0
      %8583 = vmatpush1.msra.mxu0 0.0
      %8584 = vmatprep.subr.mxu0 0.0
      %8585 = vmatpush1.msra.mxu0 0.0
      %8586 = vmatprep.subr.mxu0 0.0
      %8587 = vmatpush1.msra.mxu0 0.0
      %8588 = vmatprep.subr.mxu0 0.0
      %8589 = vmatpush1.msra.mxu0 0.0
      %8590 = vmatprep.subr.mxu0 0.0
      %8591 = vmatpush1.msra.mxu0 0.0
      %8592 = vmatprep.subr.mxu0 0.0
      %8593 = vmatpush1.msra.mxu0 0.0
      %8594 = vmatprep.subr.mxu0 0.0
      %8595 = vmatpush1.msra.mxu0 0.0
      %8596 = vmatprep.subr.mxu0 0.0
      %8597 = vmatpush1.msra.mxu0 0.0
      %8598 = vmatprep.subr.mxu0 0.0
      %8599 = vmatpush1.msra.mxu0 0.0
      %8600 = vmatprep.subr.mxu0 0.0
      %8601 = vmatpush1.msra.mxu0 0.0
      %8602 = vmatprep.subr.mxu0 0.0
      %8603 = vmatpush1.msra.mxu0 0.0
      %8604 = vmatprep.subr.mxu0 0.0
      %8605 = vmatpush1.msra.mxu0 0.0
      %8606 = vmatprep.subr.mxu0 0.0
      %8607 = vmatpush1.msra.mxu0 0.0
      %8608 = vmatprep.subr.mxu0 0.0
      %8609 = vmatpush1.msra.mxu0 0.0
      %8610 = vmatprep.subr.mxu0 0.0
      %8611 = vmatpush1.msra.mxu0 0.0
      %8612 = vmatprep.subr.mxu0 0.0
      %8613 = vmatpush1.msra.mxu0 0.0
      %8614 = vmatprep.subr.mxu0 0.0
      %8615 = vmatpush1.msra.mxu0 0.0
      %8616 = vmatprep.subr.mxu0 0.0
      %8617 = vmatpush1.msra.mxu0 0.0
      %8618 = vmatprep.subr.mxu0 0.0
      %8619 = vmatpush1.msra.mxu0 0.0
      %8620 = vmatprep.mubr.f32.mxu0 0.0
      %8621 = vmatmul.mubr.f32.gmra.mrb[0].mxu0 %v8554
      %v8622 = vpop.f32.mrb[0].mxu0
      %v8623 = vadd.f32 %v8551, %v8622
      %v8624 = vpop.f32.mrb[0].mxu0
      %8625 = vdwg.mxu0
      %v8626 = vlaneseq
      %v8627 = vand.u32 %v8626, 127
      %vm8628 = vcmp.lt.s32.totalorder %v8627, 4
      %v8629 = vxor.u32 %v8623, 2147483648
      %v8630 = vmul.f32 %v8629, 1.442695
      %v8631 = vpow.pop %v8630
      %v8632 = vadd.f32 %v8631, 1.0
      %v8633 = vrcp.pop %v8632
      %v8634 = vmul.f32 1.0, %v8633
      %v8635 = vsel %vm8628, %v8634, %v8623
      %vm8636 = vcmask 65536
      %8637 = vst.msk [vmem:[%s649] sm:$0x1] %vm8636, %v8635
      %p8638 = scmp.lt.s32.totalorder %s32, 1
      %s8639 = scalar_select %p8638, %s32, 1
      %s8640 = scalar_lea.vmem %s21, %s8639
      // Predicated region
      $region105: #{forward.1} parent=103 // pred_check
        %p8641 = pneg %p496
      $region106: #{forward.1} parent=103 // pred_check_branch
        %8643 = sbr.rel (%p8641) target = $region108
      $region107: #{forward.1} parent=103 // pred_region
        _
      $region108: #{forward.1} parent=103 // pred_fallthru
        _
    $region104: #{forward.1} parent=5 // pred_fallthru
      _
    %p8644 = scmp.le.s32.totalorder 2, %s27
    // Predicated region
    $region109: #{forward.1} parent=5 // pred_check
      %p8645 = pneg %p8644
    $region110: #{forward.1} parent=5 // pred_check_branch
      %8647 = sbr.rel (%p8645) target = $region112
    $region111: #{forward.1} parent=5 // pred_region
      %s8648 = ssub.s32 %s27, 2
      // Predicated region
      $region113: #{forward.1} parent=111 // pred_check
        %p8649 = pneg %p502
      $region114: #{forward.1} parent=111 // pred_check_branch
        %8651 = sbr.rel (%p8649) target = $region116
      $region115: #{forward.1} parent=111 // pred_region
        %p8652 = scmp.lt.s32.totalorder %s33, 1
        %s8653 = scalar_select %p8652, %s33, 1
        %s8654 = scalar_lea.vmem %s21, %s8653
      $region116: #{forward.1} parent=111 // pred_fallthru
        _
    $region112: #{forward.1} parent=5 // pred_fallthru
      _
  $region6: #{forward.1} parent=0 // loop_footer
    %s31 = sadd.s32 1, %s27
  $region7: #{forward.1} parent=0 // loop_footer_branch
    %26 = sbr.rel target = $region3
  $region8: #{forward.1} parent=0 // loop_exit
    _

</llo_original>
